<compile_context>
chip_gen: v7x
topology: tpu7x:2x2x1
jax: 0.10.0
libtpu: 0.0.40
codegen_flags: <defaults>
</compile_context>

<pallas_src>
import math

import jax
import jax.numpy as jnp
from jax import lax
from jax.experimental import pallas as pl
from jax.experimental.pallas import tpu as pltpu


# ----------------------------------------------------------------------------
# Pallas kernel 1: SA MLP + max-pool over nsample, single-matmul-per-layer.
#   x_ref  : [Cin, K*S] bf16  (fused lane axis, K-major / S-minor)
#   w1_ref : [C1, Cin] bf16, b1_ref : [C1, 1] f32
#   w2_ref : [C2, C1 ] bf16, b2_ref : [C2, 1] f32
#   o_ref  : [C2, S]   bf16
# ----------------------------------------------------------------------------
def _sa_mlp_max_kernel(x_ref, w1_ref, b1_ref, w2_ref, b2_ref, o_ref):
    _, ks = x_ref.shape
    c2, s = o_ref.shape
    k = ks // s

    x = x_ref[...]                                               # [Cin, K*S] bf16
    # Layer 1: one wide MXU matmul + one relu/cast pass over the whole slab.
    h = jnp.dot(w1_ref[...], x, preferred_element_type=jnp.float32) + b1_ref[...]
    h = jnp.maximum(h, 0.0).astype(jnp.bfloat16)                 # [C1, K*S]
    # Layer 2: one wide MXU matmul (bias/relu deferred past the max).
    z = jnp.dot(w2_ref[...], h, preferred_element_type=jnp.float32)  # [C2, K*S]

    # Max over the K neighbour slices: static, 128-aligned lane slices, folded
    # with a tree of jnp.maximum (pure VPU work, short dependency chain).
    parts = [z[:, i * s:(i + 1) * s] for i in range(k)]
    while len(parts) > 1:
        nxt = [jnp.maximum(a, b) for a, b in zip(parts[0::2], parts[1::2])]
        if len(parts) % 2:
            nxt.append(parts[-1])
        parts = nxt

    # Layer-2 bias + ReLU commute with max-over-K -> applied once here.
    o_ref[...] = jnp.maximum(parts[0] + b2_ref[...], 0.0).astype(o_ref.dtype)


def sa_mlp_maxpool(x, w1t, b1, w2t, b2, npoint):
    """x: [B, Cin, K*npoint] bf16 -> [B, C2, npoint] bf16 ((conv-bn-relu)x2, max over K)."""
    bsz, cin, ks = x.shape
    c1 = w1t.shape[0]
    c2 = w2t.shape[0]
    return pl.pallas_call(
        _sa_mlp_max_kernel,
        out_shape=jax.ShapeDtypeStruct((bsz, c2, npoint), jnp.bfloat16),
        grid=(bsz,),
        in_specs=[
            pl.BlockSpec((None, cin, ks), lambda b: (b, 0, 0)),
            pl.BlockSpec((c1, cin), lambda b: (0, 0)),
            pl.BlockSpec((c1, 1), lambda b: (0, 0)),
            pl.BlockSpec((c2, c1), lambda b: (0, 0)),
            pl.BlockSpec((c2, 1), lambda b: (0, 0)),
        ],
        out_specs=pl.BlockSpec((None, c2, npoint), lambda b: (b, 0, 0)),
        compiler_params=pltpu.CompilerParams(
            dimension_semantics=("parallel",)),
    )(x.astype(jnp.bfloat16), w1t.astype(jnp.bfloat16), b1,
      w2t.astype(jnp.bfloat16), b2)


# ----------------------------------------------------------------------------
# Pallas kernel 2: farthest point sampling, whole loop in-kernel, batch on
# sublanes.  Coordinate planes are passed as three [B, N] inputs so every
# per-iteration lane reduction covers all batches at once.
# ----------------------------------------------------------------------------
def _fps_kernel(x0_ref, x1_ref, x2_ref, o0_ref, o1_ref, o2_ref):
    b, n = x0_ref.shape
    npoint = o0_ref.shape[1]
    x0 = x0_ref[...]                                             # [B, N]
    x1 = x1_ref[...]
    x2 = x2_ref[...]
    lane_iota = lax.broadcasted_iota(jnp.int32, (b, n), 1)       # [B, N]
    col_iota = lax.broadcasted_iota(jnp.int32, (b, npoint), 1)   # [B, npoint]

    def body(i, carry):
        distance, farthest, s0, s1, s2 = carry
        onehot = lane_iota == farthest                           # [B, N]
        c0 = jnp.sum(jnp.where(onehot, x0, 0.0), axis=1, keepdims=True)  # [B, 1]
        c1 = jnp.sum(jnp.where(onehot, x1, 0.0), axis=1, keepdims=True)
        c2 = jnp.sum(jnp.where(onehot, x2, 0.0), axis=1, keepdims=True)
        rec = col_iota == i                                      # record centroid i
        s0 = jnp.where(rec, c0, s0)
        s1 = jnp.where(rec, c1, s1)
        s2 = jnp.where(rec, c2, s2)
        # Explicit 3-term sum: keeps the serial chain on the VPU (no
        # cross-sublane XLU reduce per iteration).
        d = (x0 - c0) ** 2 + (x1 - c1) ** 2 + (x2 - c2) ** 2     # [B, N]
        distance = jnp.minimum(distance, d)
        m = jnp.max(distance, axis=1, keepdims=True)             # [B, 1]
        farthest = jnp.min(jnp.where(distance == m, lane_iota, n),
                           axis=1, keepdims=True)                # first argmax
        return distance, farthest, s0, s1, s2

    init = (jnp.full((b, n), 1e10, jnp.float32),
            jnp.zeros((b, 1), jnp.int32),    # deterministic seed (see TODO above)
            jnp.zeros((b, npoint), jnp.float32),
            jnp.zeros((b, npoint), jnp.float32),
            jnp.zeros((b, npoint), jnp.float32))
    _, _, s0, s1, s2 = lax.fori_loop(0, npoint, body, init)
    o0_ref[...] = s0
    o1_ref[...] = s1
    o2_ref[...] = s2


def farthest_point_sample_xyz(xyz_cf, npoint):
    """xyz_cf: [B, 3, N] f32 -> coordinates of FPS centroids [B, 3, npoint].

    One kernel invocation with the batch vectorized on sublanes; a grid over
    batch would serialize the dominant FPS loop on single-TC chips (v5e/v6e)
    while being roughly neutral on v7x at these batch sizes.
    """
    b, _, n = xyz_cf.shape
    out = jax.ShapeDtypeStruct((b, npoint), jnp.float32)
    s0, s1, s2 = pl.pallas_call(
        _fps_kernel,
        out_shape=(out, out, out),
        grid=(1,),
        in_specs=[pl.BlockSpec((b, n), lambda i: (0, 0))] * 3,
        out_specs=(pl.BlockSpec((b, npoint), lambda i: (0, 0)),) * 3,
    )(xyz_cf[:, 0, :], xyz_cf[:, 1, :], xyz_cf[:, 2, :])
    return jnp.stack([s0, s1, s2], axis=1)                       # [B, 3, npoint]


# ----------------------------------------------------------------------------
# Grouping utilities (data-dependent selection / gather stay in XLA).
# ----------------------------------------------------------------------------
def query_ball_point(radius, nsample, xyz_cf, new_xyz_cf):
    """xyz_cf [B,3,N], new_xyz_cf [B,3,S] -> idx [B,S,nsample] int32."""
    b, _, n = xyz_cf.shape
    s = new_xyz_cf.shape[2]
    sqrdists = (jnp.sum(new_xyz_cf ** 2, axis=1)[:, :, None]
                + jnp.sum(xyz_cf ** 2, axis=1)[:, None, :]
                - 2.0 * jnp.einsum("bcs,bcn->bsn", new_xyz_cf, xyz_cf))
    pt_idx = jnp.broadcast_to(jnp.arange(n, dtype=jnp.int32), (b, s, n))
    masked = jnp.where(sqrdists > radius ** 2, jnp.int32(n), pt_idx)
    # smallest-`nsample` indices in ascending order via partial selection
    # (top_k on the negation) instead of a full sort over N.
    neg_topk, _ = lax.top_k(-masked, nsample)
    idx = -neg_topk
    first = idx[:, :, :1]
    return jnp.where(idx == n, first, idx)


def set_abstraction(xyz_cf, points_cf, params, npoint, radius, nsample):
    """Channels-first PointNetSetAbstraction (group_all=False)."""
    w1t, b1, w2t, b2 = params
    new_xyz = farthest_point_sample_xyz(xyz_cf, npoint)          # [B,3,S]   (Pallas)
    idx = query_ball_point(radius, nsample, xyz_cf, new_xyz)     # [B,S,K]
    idx_t = jnp.transpose(idx, (0, 2, 1))                        # [B,K,S]

    # TODO(synk): gather + centering + concat left in XLA; could be fused into
    # the SA kernel via PrefetchScalarGridSpec + in-kernel DMA gather.
    gather = jax.vmap(lambda p, i: p[:, i])
    grouped_xyz = gather(xyz_cf, idx_t)                          # [B,3,K,S]
    rel = grouped_xyz - new_xyz[:, :, None, :]
    grouped_pts = gather(points_cf, idx_t)                       # [B,D,K,S]
    feat = jnp.concatenate([rel.astype(jnp.bfloat16),
                            grouped_pts.astype(jnp.bfloat16)], axis=1)  # [B,Cin,K,S]
    bsz, cin = feat.shape[0], feat.shape[1]
    x_in = feat.reshape(bsz, cin, nsample * npoint)              # free (contiguous)

    new_points = sa_mlp_maxpool(x_in, w1t, b1, w2t, b2, npoint)  # [B,C2,S]  (Pallas)
    return new_xyz, new_points


def set_abstraction_group_all(xyz_cf, points_cf, params):
    """group_all SA layer (tiny) -- plain XLA; pallas_call here is pure overhead."""
    w1t, b1, w2t, b2 = params
    bsz = xyz_cf.shape[0]
    feat = jnp.concatenate([xyz_cf, points_cf.astype(jnp.float32)], axis=1)
    h = jnp.maximum(jnp.einsum("oc,bcn->bon", w1t, feat) + b1[None], 0.0)
    y = jnp.maximum(jnp.einsum("oc,bcn->bon", w2t, h) + b2[None], 0.0)
    new_points = jnp.max(y, axis=2, keepdims=True)               # [B,C2,1]
    new_xyz = jnp.zeros((bsz, 3, 1), jnp.float32)
    return new_xyz, new_points


def pointnet_encoder(l0_xyz, l0_points, params1, params2, params3, hc):
    l1_xyz, l1_points = set_abstraction(l0_xyz, l0_points, params1,
                                        npoint=256, radius=0.2, nsample=32)
    l2_xyz, l2_points = set_abstraction(l1_xyz, l1_points, params2,
                                        npoint=128, radius=0.25, nsample=64)
    l3_xyz, l3_points = set_abstraction_group_all(l2_xyz, l2_points, params3)
    x = l3_points.reshape(-1, hc * 8)
    # bf16 feature maps feed the next layer internally; encoder outputs are f32.
    return (l1_xyz, l1_points.astype(jnp.float32),
            l2_xyz, l2_points.astype(jnp.float32), l3_xyz, x)


# ----------------------------------------------------------------------------
# Deterministic parameter init (Conv2d 1x1 + eval-mode BatchNorm2d folded),
# weights stored transposed [Cout, Cin] for the channels-first kernel.
# ----------------------------------------------------------------------------
def init_sa_params(key, cin, c1, c2):
    def conv_bn(kw, kb, ci, co):
        w = jax.random.normal(kw, (co, ci), jnp.float32) * (1.0 / math.sqrt(ci))
        bias = jax.random.normal(kb, (co,), jnp.float32) * 0.01
        gamma = jnp.ones((co,), jnp.float32)
        beta = jnp.zeros((co,), jnp.float32)
        rmean = jnp.zeros((co,), jnp.float32)
        rvar = jnp.ones((co,), jnp.float32)
        scale = gamma / jnp.sqrt(rvar + 1e-5)
        return w * scale[:, None], ((bias - rmean) * scale + beta).reshape(co, 1)

    k1, k2, k3, k4 = jax.random.split(key, 4)
    w1t, b1 = conv_bn(k1, k2, cin, c1)
    w2t, b2 = conv_bn(k3, k4, c1, c2)
    return w1t, b1, w2t, b2


# ----------------------------------------------------------------------------
# Pure-JAX references for correctness checks.
# ----------------------------------------------------------------------------
def _fps_reference(xyz_cf, npoint):
    xyz = jnp.transpose(xyz_cf, (0, 2, 1))                       # [B,N,3]
    b, n, _ = xyz.shape

    def body(i, carry):
        centroids, distance, farthest = carry
        centroids = centroids.at[:, i].set(farthest)
        centroid = jax.vmap(lambda p, f: p[f])(xyz, farthest)[:, None, :]
        dist = jnp.sum((xyz - centroid) ** 2, -1)
        distance = jnp.minimum(distance, dist)
        farthest = jnp.argmax(distance, -1).astype(jnp.int32)
        return centroids, distance, farthest

    init = (jnp.zeros((b, npoint), jnp.int32),
            jnp.full((b, n), 1e10, jnp.float32),
            jnp.zeros((b,), jnp.int32))
    centroids, _, _ = lax.fori_loop(0, npoint, body, init)
    return jax.vmap(lambda p, i: p[:, i])(xyz_cf, centroids)     # [B,3,npoint]


def _sa_mlp_maxpool_ref(x, w1t, b1, w2t, b2):
    """x: [B, Cin, K, S] f32 (mirrors the kernel's bf16 operand casts)."""
    xb = x.astype(jnp.bfloat16)
    h = jnp.einsum("oc,bcks->boks", w1t.astype(jnp.bfloat16), xb,
                   preferred_element_type=jnp.float32) + b1[None, :, :, None]
    h = jnp.maximum(h, 0.0).astype(jnp.bfloat16)
    z = jnp.einsum("oc,bcks->boks", w2t.astype(jnp.bfloat16), h,
                   preferred_element_type=jnp.float32)
    z = jnp.max(z, axis=2)                                       # [B,C2,S]
    return jnp.maximum(z + b2[None], 0.0)


if __name__ == "__main__":
    hc = 8
    in_feature = 6  # 3 (relative xyz) + 3 (per-point features)
    B, N = 2, 512

    key = jax.random.PRNGKey(0)
    kx, kf, kp, kt = jax.random.split(key, 4)
    l0_xyz = jax.random.normal(kx, (B, 3, N), jnp.float32)
    l0_points = jax.random.normal(kf, (B, in_feature - 3, N), jnp.float32)

    kp1, kp2, kp3 = jax.random.split(kp, 3)
    params1 = init_sa_params(kp1, in_feature, hc, hc * 2)
    params2 = init_sa_params(kp2, hc * 2 + 3, hc * 2, hc * 4)
    params3 = init_sa_params(kp3, hc * 4 + 3, hc * 4, hc * 8)

    outs = jax.jit(pointnet_encoder, static_argnums=(5,))(
        l0_xyz, l0_points, params1, params2, params3, hc)
    l1_xyz, l1_points, l2_xyz, l2_points, l3_xyz, x = outs
    jax.block_until_ready(x)

    assert l1_xyz.shape == (B, 3, 256) and l1_points.shape == (B, hc * 2, 256)
    assert l2_xyz.shape == (B, 3, 128) and l2_points.shape == (B, hc * 4, 128)
    assert l3_xyz.shape == (B, 3, 1) and x.shape == (B, hc * 8)

    # Check 1: FPS kernel vs pure-JAX reference. Float tie-breaks can diverge
    # by 1 ulp mid-sequence (and then cascade), so require a high match
    # fraction rather than bit-exact equality.
    fps_k = farthest_point_sample_xyz(l0_xyz, 256)
    fps_r = _fps_reference(l0_xyz, 256)
    match = jnp.mean((jnp.abs(fps_k - fps_r) < 1e-4).astype(jnp.float32))
    assert float(match) > 0.9, f"FPS mismatch: match fraction {float(match):.3f}"

    # Check 2: SA MLP+max kernel vs pure-JAX reference (same bf16 operand casts).
    K, S = 32, 256
    x_test = jax.random.normal(kt, (B, in_feature, K, S), jnp.float32)
    x_in = x_test.astype(jnp.bfloat16).reshape(B, in_feature, K * S)
    mlp_k = sa_mlp_maxpool(x_in, *params1, S).astype(jnp.float32)
    mlp_r = _sa_mlp_maxpool_ref(x_test, *params1)
    assert jnp.allclose(mlp_k, mlp_r, rtol=5e-2, atol=5e-2), "SA MLP mismatch"

    print("KERNEL_OK")
</pallas_src>

<mosaic_0001>
module attributes {stable_mosaic.version = 11 : i64} {
  func.func @_fps_kernel(%arg0: i32, %arg1: memref<2x512xf32, #tpu.memory_space<vmem>>, %arg2: memref<2x512xf32, #tpu.memory_space<vmem>>, %arg3: memref<2x512xf32, #tpu.memory_space<vmem>>, %arg4: memref<2x256xf32, #tpu.memory_space<vmem>>, %arg5: memref<2x256xf32, #tpu.memory_space<vmem>>, %arg6: memref<2x256xf32, #tpu.memory_space<vmem>>) attributes {dimension_semantics = [#tpu.dimension_semantics<arbitrary>], iteration_bounds = array<i64: 1>, scalar_prefetch = 0 : i64, scratch_operands = 0 : i64, tpu.core_type = #tpu.core_type<tc>, window_params = [{pipeline_mode = #tpu.pipeline_mode<synchronous>, transform_indices = @transform_0, window_bounds = array<i64: 2, 512>}, {pipeline_mode = #tpu.pipeline_mode<synchronous>, transform_indices = @transform_1, window_bounds = array<i64: 2, 512>}, {pipeline_mode = #tpu.pipeline_mode<synchronous>, transform_indices = @transform_2, window_bounds = array<i64: 2, 512>}, {pipeline_mode = #tpu.pipeline_mode<synchronous>, transform_indices = @transform_3, window_bounds = array<i64: 2, 256>}, {pipeline_mode = #tpu.pipeline_mode<synchronous>, transform_indices = @transform_4, window_bounds = array<i64: 2, 256>}, {pipeline_mode = #tpu.pipeline_mode<synchronous>, transform_indices = @transform_5, window_bounds = array<i64: 2, 256>}]} {
    %c0 = arith.constant 0 : index
    %c0_0 = arith.constant 0 : index
    %0 = vector.load %arg1[%c0, %c0_0] : memref<2x512xf32, #tpu.memory_space<vmem>>, vector<2x512xf32>
    %c0_1 = arith.constant 0 : index
    %c0_2 = arith.constant 0 : index
    %1 = vector.load %arg2[%c0_1, %c0_2] : memref<2x512xf32, #tpu.memory_space<vmem>>, vector<2x512xf32>
    %c0_3 = arith.constant 0 : index
    %c0_4 = arith.constant 0 : index
    %2 = vector.load %arg3[%c0_3, %c0_4] : memref<2x512xf32, #tpu.memory_space<vmem>>, vector<2x512xf32>
    %3 = tpu.iota {dimensions = array<i32: 1>} : vector<2x512xi32>
    %4 = tpu.iota {dimensions = array<i32: 1>} : vector<2x256xi32>
    %cst = arith.constant 1.000000e+10 : f32
    %5 = vector.broadcast %cst : f32 to vector<2x512xf32>
    %c0_i32 = arith.constant 0 : i32
    %6 = vector.broadcast %c0_i32 : i32 to vector<2x1xi32>
    %cst_5 = arith.constant 0.000000e+00 : f32
    %7 = vector.broadcast %cst_5 : f32 to vector<2x256xf32>
    %cst_6 = arith.constant 0.000000e+00 : f32
    %8 = vector.broadcast %cst_6 : f32 to vector<2x256xf32>
    %cst_7 = arith.constant 0.000000e+00 : f32
    %9 = vector.broadcast %cst_7 : f32 to vector<2x256xf32>
    %c0_i32_8 = arith.constant 0 : i32
    %c256_i32 = arith.constant 256 : i32
    %10 = arith.addi %c0_i32_8, %c256_i32 : i32
    %c1_i32 = arith.constant 1 : i32
    %11:5 = scf.for %arg7 = %c0_i32_8 to %10 step %c1_i32 iter_args(%arg8 = %5, %arg9 = %6, %arg10 = %7, %arg11 = %8, %arg12 = %9) -> (vector<2x512xf32>, vector<2x1xi32>, vector<2x256xf32>, vector<2x256xf32>, vector<2x256xf32>)  : i32 {
      %15 = vector.broadcast %arg9 : vector<2x1xi32> to vector<2x512xi32>
      %16 = arith.cmpi eq, %3, %15 : vector<2x512xi32>
      %cst_16 = arith.constant 0.000000e+00 : f32
      %17 = vector.broadcast %cst_16 : f32 to vector<2x512xf32>
      %18 = arith.select %16, %0, %17 : vector<2x512xi1>, vector<2x512xf32>
      %cst_17 = arith.constant dense<0.000000e+00> : vector<2xf32>
      %19 = vector.multi_reduction <add>, %18, %cst_17 [1] : vector<2x512xf32> to vector<2xf32>
      %20 = vector.shape_cast %19 : vector<2xf32> to vector<2x1xf32>
      %cst_18 = arith.constant 0.000000e+00 : f32
      %21 = vector.broadcast %cst_18 : f32 to vector<2x512xf32>
      %22 = arith.select %16, %1, %21 : vector<2x512xi1>, vector<2x512xf32>
      %cst_19 = arith.constant dense<0.000000e+00> : vector<2xf32>
      %23 = vector.multi_reduction <add>, %22, %cst_19 [1] : vector<2x512xf32> to vector<2xf32>
      %24 = vector.shape_cast %23 : vector<2xf32> to vector<2x1xf32>
      %cst_20 = arith.constant 0.000000e+00 : f32
      %25 = vector.broadcast %cst_20 : f32 to vector<2x512xf32>
      %26 = arith.select %16, %2, %25 : vector<2x512xi1>, vector<2x512xf32>
      %cst_21 = arith.constant dense<0.000000e+00> : vector<2xf32>
      %27 = vector.multi_reduction <add>, %26, %cst_21 [1] : vector<2x512xf32> to vector<2xf32>
      %28 = vector.shape_cast %27 : vector<2xf32> to vector<2x1xf32>
      %29 = vector.broadcast %arg7 : i32 to vector<2x256xi32>
      %30 = arith.cmpi eq, %4, %29 : vector<2x256xi32>
      %31 = vector.shape_cast %20 : vector<2x1xf32> to vector<2x1xf32>
      %32 = vector.broadcast %31 : vector<2x1xf32> to vector<2x256xf32>
      %33 = arith.select %30, %32, %arg10 : vector<2x256xi1>, vector<2x256xf32>
      %34 = vector.shape_cast %24 : vector<2x1xf32> to vector<2x1xf32>
      %35 = vector.broadcast %34 : vector<2x1xf32> to vector<2x256xf32>
      %36 = arith.select %30, %35, %arg11 : vector<2x256xi1>, vector<2x256xf32>
      %37 = vector.shape_cast %28 : vector<2x1xf32> to vector<2x1xf32>
      %38 = vector.broadcast %37 : vector<2x1xf32> to vector<2x256xf32>
      %39 = arith.select %30, %38, %arg12 : vector<2x256xi1>, vector<2x256xf32>
      %40 = vector.broadcast %20 : vector<2x1xf32> to vector<2x512xf32>
      %41 = arith.subf %0, %40 : vector<2x512xf32>
      %42 = arith.mulf %41, %41 : vector<2x512xf32>
      %43 = vector.broadcast %24 : vector<2x1xf32> to vector<2x512xf32>
      %44 = arith.subf %1, %43 : vector<2x512xf32>
      %45 = arith.mulf %44, %44 : vector<2x512xf32>
      %46 = arith.addf %42, %45 : vector<2x512xf32>
      %47 = vector.broadcast %28 : vector<2x1xf32> to vector<2x512xf32>
      %48 = arith.subf %2, %47 : vector<2x512xf32>
      %49 = arith.mulf %48, %48 : vector<2x512xf32>
      %50 = arith.addf %46, %49 : vector<2x512xf32>
      %51 = arith.minimumf %arg8, %50 : vector<2x512xf32>
      %cst_22 = arith.constant dense<0xFF800000> : vector<2xf32>
      %52 = vector.multi_reduction <maximumf>, %51, %cst_22 [1] : vector<2x512xf32> to vector<2xf32>
      %53 = vector.shape_cast %52 : vector<2xf32> to vector<2x1xf32>
      %54 = vector.broadcast %53 : vector<2x1xf32> to vector<2x512xf32>
      %55 = arith.cmpf oeq, %51, %54 : vector<2x512xf32>
      %c512_i32 = arith.constant 512 : i32
      %56 = vector.broadcast %c512_i32 : i32 to vector<2x512xi32>
      %57 = arith.select %55, %3, %56 : vector<2x512xi1>, vector<2x512xi32>
      %cst_23 = arith.constant dense<2147483647> : vector<2xi32>
      %58 = vector.multi_reduction <minsi>, %57, %cst_23 [1] : vector<2x512xi32> to vector<2xi32>
      %59 = vector.shape_cast %58 : vector<2xi32> to vector<2x1xi32>
      scf.yield %51, %59, %33, %36, %39 : vector<2x512xf32>, vector<2x1xi32>, vector<2x256xf32>, vector<2x256xf32>, vector<2x256xf32>
    }
    %c256_i32_9 = arith.constant 256 : i32
    %c0_10 = arith.constant 0 : index
    %c0_11 = arith.constant 0 : index
    %12 = vector.load %arg4[%c0_10, %c0_11] : memref<2x256xf32, #tpu.memory_space<vmem>>, vector<2x256xf32>
    tpu.vector_store %arg4[%c0_10, %c0_11], %11#2 {strides = array<i32>} : memref<2x256xf32, #tpu.memory_space<vmem>>, vector<2x256xf32>,
    %c0_12 = arith.constant 0 : index
    %c0_13 = arith.constant 0 : index
    %13 = vector.load %arg5[%c0_12, %c0_13] : memref<2x256xf32, #tpu.memory_space<vmem>>, vector<2x256xf32>
    tpu.vector_store %arg5[%c0_12, %c0_13], %11#3 {strides = array<i32>} : memref<2x256xf32, #tpu.memory_space<vmem>>, vector<2x256xf32>,
    %c0_14 = arith.constant 0 : index
    %c0_15 = arith.constant 0 : index
    %14 = vector.load %arg6[%c0_14, %c0_15] : memref<2x256xf32, #tpu.memory_space<vmem>>, vector<2x256xf32>
    tpu.vector_store %arg6[%c0_14, %c0_15], %11#4 {strides = array<i32>} : memref<2x256xf32, #tpu.memory_space<vmem>>, vector<2x256xf32>,
    return
  }
  func.func @transform_0(%arg0: i32) -> (i32, i32) {
    %c0_i32 = arith.constant 0 : i32
    %c0_i32_0 = arith.constant 0 : i32
    %c0_i32_1 = arith.constant 0 : i32
    return %c0_i32, %c0_i32_0 : i32, i32
  }
  func.func @transform_1(%arg0: i32) -> (i32, i32) {
    %c0_i32 = arith.constant 0 : i32
    %c0_i32_0 = arith.constant 0 : i32
    %c0_i32_1 = arith.constant 0 : i32
    return %c0_i32, %c0_i32_0 : i32, i32
  }
  func.func @transform_2(%arg0: i32) -> (i32, i32) {
    %c0_i32 = arith.constant 0 : i32
    %c0_i32_0 = arith.constant 0 : i32
    %c0_i32_1 = arith.constant 0 : i32
    return %c0_i32, %c0_i32_0 : i32, i32
  }
  func.func @transform_3(%arg0: i32) -> (i32, i32) {
    %c0_i32 = arith.constant 0 : i32
    %c0_i32_0 = arith.constant 0 : i32
    %c0_i32_1 = arith.constant 0 : i32
    return %c0_i32, %c0_i32_0 : i32, i32
  }
  func.func @transform_4(%arg0: i32) -> (i32, i32) {
    %c0_i32 = arith.constant 0 : i32
    %c0_i32_0 = arith.constant 0 : i32
    %c0_i32_1 = arith.constant 0 : i32
    return %c0_i32, %c0_i32_0 : i32, i32
  }
  func.func @transform_5(%arg0: i32) -> (i32, i32) {
    %c0_i32 = arith.constant 0 : i32
    %c0_i32_0 = arith.constant 0 : i32
    %c0_i32_1 = arith.constant 0 : i32
    return %c0_i32, %c0_i32_0 : i32, i32
  }
}

module attributes {stable_mosaic.version = 11 : i64} {
  func.func @_sa_mlp_max_kernel(%arg0: i32, %arg1: memref<1x6x8192xbf16, #tpu.memory_space<vmem>>, %arg2: memref<8x6xbf16, #tpu.memory_space<vmem>>, %arg3: memref<8x1xf32, #tpu.memory_space<vmem>>, %arg4: memref<16x8xbf16, #tpu.memory_space<vmem>>, %arg5: memref<16x1xf32, #tpu.memory_space<vmem>>, %arg6: memref<1x16x256xbf16, #tpu.memory_space<vmem>>) attributes {dimension_semantics = [#tpu.dimension_semantics<parallel>], iteration_bounds = array<i64: 2>, scalar_prefetch = 0 : i64, scratch_operands = 0 : i64, tpu.core_type = #tpu.core_type<tc>, window_params = [{transform_indices = @transform_0, window_bounds = array<i64: 1, 6, 8192>}, {pipeline_mode = #tpu.pipeline_mode<synchronous>, transform_indices = @transform_1, window_bounds = array<i64: 8, 6>}, {pipeline_mode = #tpu.pipeline_mode<synchronous>, transform_indices = @transform_2, window_bounds = array<i64: 8, 1>}, {pipeline_mode = #tpu.pipeline_mode<synchronous>, transform_indices = @transform_3, window_bounds = array<i64: 16, 8>}, {pipeline_mode = #tpu.pipeline_mode<synchronous>, transform_indices = @transform_4, window_bounds = array<i64: 16, 1>}, {transform_indices = @transform_5, window_bounds = array<i64: 1, 16, 256>}]} {
    %c0 = arith.constant 0 : index
    %c0_0 = arith.constant 0 : index
    %c0_1 = arith.constant 0 : index
    %0 = vector.load %arg1[%c0, %c0_0, %c0_1] : memref<1x6x8192xbf16, #tpu.memory_space<vmem>>, vector<1x6x8192xbf16>
    %1 = vector.shape_cast %0 : vector<1x6x8192xbf16> to vector<6x8192xbf16>
    %c0_2 = arith.constant 0 : index
    %c0_3 = arith.constant 0 : index
    %2 = vector.load %arg2[%c0_2, %c0_3] : memref<8x6xbf16, #tpu.memory_space<vmem>>, vector<8x6xbf16>
    %cst = arith.constant dense<0.000000e+00> : vector<8x8192xf32>
    %3 = tpu.matmul %2, %1, %cst {dimension_numbers = #tpu.dot_dimension_numbers<[1], [0], [0], [1], [0, 0, 1, 1], [], []>} : vector<8x6xbf16>, vector<6x8192xbf16>, vector<8x8192xf32> -> vector<8x8192xf32>
    %c0_4 = arith.constant 0 : index
    %c0_5 = arith.constant 0 : index
    %4 = vector.load %arg3[%c0_4, %c0_5] : memref<8x1xf32, #tpu.memory_space<vmem>>, vector<8x1xf32>
    %5 = vector.broadcast %4 : vector<8x1xf32> to vector<8x8192xf32>
    %6 = arith.addf %3, %5 : vector<8x8192xf32>
    %cst_6 = arith.constant 0.000000e+00 : f32
    %7 = vector.broadcast %cst_6 : f32 to vector<8x8192xf32>
    %8 = arith.maximumf %6, %7 : vector<8x8192xf32>
    %9 = arith.truncf %8 : vector<8x8192xf32> to vector<8x8192xbf16>
    %c0_7 = arith.constant 0 : index
    %c0_8 = arith.constant 0 : index
    %10 = vector.load %arg4[%c0_7, %c0_8] : memref<16x8xbf16, #tpu.memory_space<vmem>>, vector<16x8xbf16>
    %cst_9 = arith.constant dense<0.000000e+00> : vector<16x8192xf32>
    %11 = tpu.matmul %10, %9, %cst_9 {dimension_numbers = #tpu.dot_dimension_numbers<[1], [0], [0], [1], [0, 0, 1, 1], [], []>} : vector<16x8xbf16>, vector<8x8192xbf16>, vector<16x8192xf32> -> vector<16x8192xf32>
    %12 = vector.extract_strided_slice %11 {offsets = [0, 0], sizes = [16, 256], strides = [1, 1]} : vector<16x8192xf32> to vector<16x256xf32>
    %13 = vector.extract_strided_slice %11 {offsets = [0, 256], sizes = [16, 256], strides = [1, 1]} : vector<16x8192xf32> to vector<16x256xf32>
    %14 = vector.extract_strided_slice %11 {offsets = [0, 512], sizes = [16, 256], strides = [1, 1]} : vector<16x8192xf32> to vector<16x256xf32>
    %15 = vector.extract_strided_slice %11 {offsets = [0, 768], sizes = [16, 256], strides = [1, 1]} : vector<16x8192xf32> to vector<16x256xf32>
    %16 = vector.extract_strided_slice %11 {offsets = [0, 1024], sizes = [16, 256], strides = [1, 1]} : vector<16x8192xf32> to vector<16x256xf32>
    %17 = vector.extract_strided_slice %11 {offsets = [0, 1280], sizes = [16, 256], strides = [1, 1]} : vector<16x8192xf32> to vector<16x256xf32>
    %18 = vector.extract_strided_slice %11 {offsets = [0, 1536], sizes = [16, 256], strides = [1, 1]} : vector<16x8192xf32> to vector<16x256xf32>
    %19 = vector.extract_strided_slice %11 {offsets = [0, 1792], sizes = [16, 256], strides = [1, 1]} : vector<16x8192xf32> to vector<16x256xf32>
    %20 = vector.extract_strided_slice %11 {offsets = [0, 2048], sizes = [16, 256], strides = [1, 1]} : vector<16x8192xf32> to vector<16x256xf32>
    %21 = vector.extract_strided_slice %11 {offsets = [0, 2304], sizes = [16, 256], strides = [1, 1]} : vector<16x8192xf32> to vector<16x256xf32>
    %22 = vector.extract_strided_slice %11 {offsets = [0, 2560], sizes = [16, 256], strides = [1, 1]} : vector<16x8192xf32> to vector<16x256xf32>
    %23 = vector.extract_strided_slice %11 {offsets = [0, 2816], sizes = [16, 256], strides = [1, 1]} : vector<16x8192xf32> to vector<16x256xf32>
    %24 = vector.extract_strided_slice %11 {offsets = [0, 3072], sizes = [16, 256], strides = [1, 1]} : vector<16x8192xf32> to vector<16x256xf32>
    %25 = vector.extract_strided_slice %11 {offsets = [0, 3328], sizes = [16, 256], strides = [1, 1]} : vector<16x8192xf32> to vector<16x256xf32>
    %26 = vector.extract_strided_slice %11 {offsets = [0, 3584], sizes = [16, 256], strides = [1, 1]} : vector<16x8192xf32> to vector<16x256xf32>
    %27 = vector.extract_strided_slice %11 {offsets = [0, 3840], sizes = [16, 256], strides = [1, 1]} : vector<16x8192xf32> to vector<16x256xf32>
    %28 = vector.extract_strided_slice %11 {offsets = [0, 4096], sizes = [16, 256], strides = [1, 1]} : vector<16x8192xf32> to vector<16x256xf32>
    %29 = vector.extract_strided_slice %11 {offsets = [0, 4352], sizes = [16, 256], strides = [1, 1]} : vector<16x8192xf32> to vector<16x256xf32>
    %30 = vector.extract_strided_slice %11 {offsets = [0, 4608], sizes = [16, 256], strides = [1, 1]} : vector<16x8192xf32> to vector<16x256xf32>
    %31 = vector.extract_strided_slice %11 {offsets = [0, 4864], sizes = [16, 256], strides = [1, 1]} : vector<16x8192xf32> to vector<16x256xf32>
    %32 = vector.extract_strided_slice %11 {offsets = [0, 5120], sizes = [16, 256], strides = [1, 1]} : vector<16x8192xf32> to vector<16x256xf32>
    %33 = vector.extract_strided_slice %11 {offsets = [0, 5376], sizes = [16, 256], strides = [1, 1]} : vector<16x8192xf32> to vector<16x256xf32>
    %34 = vector.extract_strided_slice %11 {offsets = [0, 5632], sizes = [16, 256], strides = [1, 1]} : vector<16x8192xf32> to vector<16x256xf32>
    %35 = vector.extract_strided_slice %11 {offsets = [0, 5888], sizes = [16, 256], strides = [1, 1]} : vector<16x8192xf32> to vector<16x256xf32>
    %36 = vector.extract_strided_slice %11 {offsets = [0, 6144], sizes = [16, 256], strides = [1, 1]} : vector<16x8192xf32> to vector<16x256xf32>
    %37 = vector.extract_strided_slice %11 {offsets = [0, 6400], sizes = [16, 256], strides = [1, 1]} : vector<16x8192xf32> to vector<16x256xf32>
    %38 = vector.extract_strided_slice %11 {offsets = [0, 6656], sizes = [16, 256], strides = [1, 1]} : vector<16x8192xf32> to vector<16x256xf32>
    %39 = vector.extract_strided_slice %11 {offsets = [0, 6912], sizes = [16, 256], strides = [1, 1]} : vector<16x8192xf32> to vector<16x256xf32>
    %40 = vector.extract_strided_slice %11 {offsets = [0, 7168], sizes = [16, 256], strides = [1, 1]} : vector<16x8192xf32> to vector<16x256xf32>
    %41 = vector.extract_strided_slice %11 {offsets = [0, 7424], sizes = [16, 256], strides = [1, 1]} : vector<16x8192xf32> to vector<16x256xf32>
    %42 = vector.extract_strided_slice %11 {offsets = [0, 7680], sizes = [16, 256], strides = [1, 1]} : vector<16x8192xf32> to vector<16x256xf32>
    %43 = vector.extract_strided_slice %11 {offsets = [0, 7936], sizes = [16, 256], strides = [1, 1]} : vector<16x8192xf32> to vector<16x256xf32>
    %44 = arith.maximumf %12, %13 : vector<16x256xf32>
    %45 = arith.maximumf %14, %15 : vector<16x256xf32>
    %46 = arith.maximumf %16, %17 : vector<16x256xf32>
    %47 = arith.maximumf %18, %19 : vector<16x256xf32>
    %48 = arith.maximumf %20, %21 : vector<16x256xf32>
    %49 = arith.maximumf %22, %23 : vector<16x256xf32>
    %50 = arith.maximumf %24, %25 : vector<16x256xf32>
    %51 = arith.maximumf %26, %27 : vector<16x256xf32>
    %52 = arith.maximumf %28, %29 : vector<16x256xf32>
    %53 = arith.maximumf %30, %31 : vector<16x256xf32>
    %54 = arith.maximumf %32, %33 : vector<16x256xf32>
    %55 = arith.maximumf %34, %35 : vector<16x256xf32>
    %56 = arith.maximumf %36, %37 : vector<16x256xf32>
    %57 = arith.maximumf %38, %39 : vector<16x256xf32>
    %58 = arith.maximumf %40, %41 : vector<16x256xf32>
    %59 = arith.maximumf %42, %43 : vector<16x256xf32>
    %60 = arith.maximumf %44, %45 : vector<16x256xf32>
    %61 = arith.maximumf %46, %47 : vector<16x256xf32>
    %62 = arith.maximumf %48, %49 : vector<16x256xf32>
    %63 = arith.maximumf %50, %51 : vector<16x256xf32>
    %64 = arith.maximumf %52, %53 : vector<16x256xf32>
    %65 = arith.maximumf %54, %55 : vector<16x256xf32>
    %66 = arith.maximumf %56, %57 : vector<16x256xf32>
    %67 = arith.maximumf %58, %59 : vector<16x256xf32>
    %68 = arith.maximumf %60, %61 : vector<16x256xf32>
    %69 = arith.maximumf %62, %63 : vector<16x256xf32>
    %70 = arith.maximumf %64, %65 : vector<16x256xf32>
    %71 = arith.maximumf %66, %67 : vector<16x256xf32>
    %72 = arith.maximumf %68, %69 : vector<16x256xf32>
    %73 = arith.maximumf %70, %71 : vector<16x256xf32>
    %74 = arith.maximumf %72, %73 : vector<16x256xf32>
    %c0_10 = arith.constant 0 : index
    %c0_11 = arith.constant 0 : index
    %75 = vector.load %arg5[%c0_10, %c0_11] : memref<16x1xf32, #tpu.memory_space<vmem>>, vector<16x1xf32>
    %76 = vector.broadcast %75 : vector<16x1xf32> to vector<16x256xf32>
    %77 = arith.addf %74, %76 : vector<16x256xf32>
    %cst_12 = arith.constant 0.000000e+00 : f32
    %78 = vector.broadcast %cst_12 : f32 to vector<16x256xf32>
    %79 = arith.maximumf %77, %78 : vector<16x256xf32>
    %80 = arith.truncf %79 : vector<16x256xf32> to vector<16x256xbf16>
    %c0_13 = arith.constant 0 : index
    %c0_14 = arith.constant 0 : index
    %c0_15 = arith.constant 0 : index
    %81 = vector.load %arg6[%c0_13, %c0_14, %c0_15] : memref<1x16x256xbf16, #tpu.memory_space<vmem>>, vector<1x16x256xbf16>
    %82 = vector.shape_cast %81 : vector<1x16x256xbf16> to vector<16x256xbf16>
    %83 = vector.shape_cast %80 : vector<16x256xbf16> to vector<1x16x256xbf16>
    tpu.vector_store %arg6[%c0_13, %c0_14, %c0_15], %83 {strides = array<i32>} : memref<1x16x256xbf16, #tpu.memory_space<vmem>>, vector<1x16x256xbf16>,
    return
  }
  func.func @transform_0(%arg0: i32) -> (i32, i32, i32) {
    %c0_i32 = arith.constant 0 : i32
    %c0_i32_0 = arith.constant 0 : i32
    %c0_i32_1 = arith.constant 0 : i32
    return %arg0, %c0_i32, %c0_i32_0 : i32, i32, i32
  }
  func.func @transform_1(%arg0: i32) -> (i32, i32) {
    %c0_i32 = arith.constant 0 : i32
    %c0_i32_0 = arith.constant 0 : i32
    %c0_i32_1 = arith.constant 0 : i32
    return %c0_i32, %c0_i32_0 : i32, i32
  }
  func.func @transform_2(%arg0: i32) -> (i32, i32) {
    %c0_i32 = arith.constant 0 : i32
    %c0_i32_0 = arith.constant 0 : i32
    %c0_i32_1 = arith.constant 0 : i32
    return %c0_i32, %c0_i32_0 : i32, i32
  }
  func.func @transform_3(%arg0: i32) -> (i32, i32) {
    %c0_i32 = arith.constant 0 : i32
    %c0_i32_0 = arith.constant 0 : i32
    %c0_i32_1 = arith.constant 0 : i32
    return %c0_i32, %c0_i32_0 : i32, i32
  }
  func.func @transform_4(%arg0: i32) -> (i32, i32) {
    %c0_i32 = arith.constant 0 : i32
    %c0_i32_0 = arith.constant 0 : i32
    %c0_i32_1 = arith.constant 0 : i32
    return %c0_i32, %c0_i32_0 : i32, i32
  }
  func.func @transform_5(%arg0: i32) -> (i32, i32, i32) {
    %c0_i32 = arith.constant 0 : i32
    %c0_i32_0 = arith.constant 0 : i32
    %c0_i32_1 = arith.constant 0 : i32
    return %arg0, %c0_i32, %c0_i32_0 : i32, i32, i32
  }
}

module attributes {stable_mosaic.version = 11 : i64} {
  func.func @_fps_kernel(%arg0: i32, %arg1: memref<2x256xf32, #tpu.memory_space<vmem>>, %arg2: memref<2x256xf32, #tpu.memory_space<vmem>>, %arg3: memref<2x256xf32, #tpu.memory_space<vmem>>, %arg4: memref<2x128xf32, #tpu.memory_space<vmem>>, %arg5: memref<2x128xf32, #tpu.memory_space<vmem>>, %arg6: memref<2x128xf32, #tpu.memory_space<vmem>>) attributes {dimension_semantics = [#tpu.dimension_semantics<arbitrary>], iteration_bounds = array<i64: 1>, scalar_prefetch = 0 : i64, scratch_operands = 0 : i64, tpu.core_type = #tpu.core_type<tc>, window_params = [{pipeline_mode = #tpu.pipeline_mode<synchronous>, transform_indices = @transform_0, window_bounds = array<i64: 2, 256>}, {pipeline_mode = #tpu.pipeline_mode<synchronous>, transform_indices = @transform_1, window_bounds = array<i64: 2, 256>}, {pipeline_mode = #tpu.pipeline_mode<synchronous>, transform_indices = @transform_2, window_bounds = array<i64: 2, 256>}, {pipeline_mode = #tpu.pipeline_mode<synchronous>, transform_indices = @transform_3, window_bounds = array<i64: 2, 128>}, {pipeline_mode = #tpu.pipeline_mode<synchronous>, transform_indices = @transform_4, window_bounds = array<i64: 2, 128>}, {pipeline_mode = #tpu.pipeline_mode<synchronous>, transform_indices = @transform_5, window_bounds = array<i64: 2, 128>}]} {
    %c0 = arith.constant 0 : index
    %c0_0 = arith.constant 0 : index
    %0 = vector.load %arg1[%c0, %c0_0] : memref<2x256xf32, #tpu.memory_space<vmem>>, vector<2x256xf32>
    %c0_1 = arith.constant 0 : index
    %c0_2 = arith.constant 0 : index
    %1 = vector.load %arg2[%c0_1, %c0_2] : memref<2x256xf32, #tpu.memory_space<vmem>>, vector<2x256xf32>
    %c0_3 = arith.constant 0 : index
    %c0_4 = arith.constant 0 : index
    %2 = vector.load %arg3[%c0_3, %c0_4] : memref<2x256xf32, #tpu.memory_space<vmem>>, vector<2x256xf32>
    %3 = tpu.iota {dimensions = array<i32: 1>} : vector<2x256xi32>
    %4 = tpu.iota {dimensions = array<i32: 1>} : vector<2x128xi32>
    %cst = arith.constant 1.000000e+10 : f32
    %5 = vector.broadcast %cst : f32 to vector<2x256xf32>
    %c0_i32 = arith.constant 0 : i32
    %6 = vector.broadcast %c0_i32 : i32 to vector<2x1xi32>
    %cst_5 = arith.constant 0.000000e+00 : f32
    %7 = vector.broadcast %cst_5 : f32 to vector<2x128xf32>
    %cst_6 = arith.constant 0.000000e+00 : f32
    %8 = vector.broadcast %cst_6 : f32 to vector<2x128xf32>
    %cst_7 = arith.constant 0.000000e+00 : f32
    %9 = vector.broadcast %cst_7 : f32 to vector<2x128xf32>
    %c0_i32_8 = arith.constant 0 : i32
    %c128_i32 = arith.constant 128 : i32
    %10 = arith.addi %c0_i32_8, %c128_i32 : i32
    %c1_i32 = arith.constant 1 : i32
    %11:5 = scf.for %arg7 = %c0_i32_8 to %10 step %c1_i32 iter_args(%arg8 = %5, %arg9 = %6, %arg10 = %7, %arg11 = %8, %arg12 = %9) -> (vector<2x256xf32>, vector<2x1xi32>, vector<2x128xf32>, vector<2x128xf32>, vector<2x128xf32>)  : i32 {
      %15 = vector.broadcast %arg9 : vector<2x1xi32> to vector<2x256xi32>
      %16 = arith.cmpi eq, %3, %15 : vector<2x256xi32>
      %cst_16 = arith.constant 0.000000e+00 : f32
      %17 = vector.broadcast %cst_16 : f32 to vector<2x256xf32>
      %18 = arith.select %16, %0, %17 : vector<2x256xi1>, vector<2x256xf32>
      %cst_17 = arith.constant dense<0.000000e+00> : vector<2xf32>
      %19 = vector.multi_reduction <add>, %18, %cst_17 [1] : vector<2x256xf32> to vector<2xf32>
      %20 = vector.shape_cast %19 : vector<2xf32> to vector<2x1xf32>
      %cst_18 = arith.constant 0.000000e+00 : f32
      %21 = vector.broadcast %cst_18 : f32 to vector<2x256xf32>
      %22 = arith.select %16, %1, %21 : vector<2x256xi1>, vector<2x256xf32>
      %cst_19 = arith.constant dense<0.000000e+00> : vector<2xf32>
      %23 = vector.multi_reduction <add>, %22, %cst_19 [1] : vector<2x256xf32> to vector<2xf32>
      %24 = vector.shape_cast %23 : vector<2xf32> to vector<2x1xf32>
      %cst_20 = arith.constant 0.000000e+00 : f32
      %25 = vector.broadcast %cst_20 : f32 to vector<2x256xf32>
      %26 = arith.select %16, %2, %25 : vector<2x256xi1>, vector<2x256xf32>
      %cst_21 = arith.constant dense<0.000000e+00> : vector<2xf32>
      %27 = vector.multi_reduction <add>, %26, %cst_21 [1] : vector<2x256xf32> to vector<2xf32>
      %28 = vector.shape_cast %27 : vector<2xf32> to vector<2x1xf32>
      %29 = vector.broadcast %arg7 : i32 to vector<2x128xi32>
      %30 = arith.cmpi eq, %4, %29 : vector<2x128xi32>
      %31 = vector.shape_cast %20 : vector<2x1xf32> to vector<2x1xf32>
      %32 = vector.broadcast %31 : vector<2x1xf32> to vector<2x128xf32>
      %33 = arith.select %30, %32, %arg10 : vector<2x128xi1>, vector<2x128xf32>
      %34 = vector.shape_cast %24 : vector<2x1xf32> to vector<2x1xf32>
      %35 = vector.broadcast %34 : vector<2x1xf32> to vector<2x128xf32>
      %36 = arith.select %30, %35, %arg11 : vector<2x128xi1>, vector<2x128xf32>
      %37 = vector.shape_cast %28 : vector<2x1xf32> to vector<2x1xf32>
      %38 = vector.broadcast %37 : vector<2x1xf32> to vector<2x128xf32>
      %39 = arith.select %30, %38, %arg12 : vector<2x128xi1>, vector<2x128xf32>
      %40 = vector.broadcast %20 : vector<2x1xf32> to vector<2x256xf32>
      %41 = arith.subf %0, %40 : vector<2x256xf32>
      %42 = arith.mulf %41, %41 : vector<2x256xf32>
      %43 = vector.broadcast %24 : vector<2x1xf32> to vector<2x256xf32>
      %44 = arith.subf %1, %43 : vector<2x256xf32>
      %45 = arith.mulf %44, %44 : vector<2x256xf32>
      %46 = arith.addf %42, %45 : vector<2x256xf32>
      %47 = vector.broadcast %28 : vector<2x1xf32> to vector<2x256xf32>
      %48 = arith.subf %2, %47 : vector<2x256xf32>
      %49 = arith.mulf %48, %48 : vector<2x256xf32>
      %50 = arith.addf %46, %49 : vector<2x256xf32>
      %51 = arith.minimumf %arg8, %50 : vector<2x256xf32>
      %cst_22 = arith.constant dense<0xFF800000> : vector<2xf32>
      %52 = vector.multi_reduction <maximumf>, %51, %cst_22 [1] : vector<2x256xf32> to vector<2xf32>
      %53 = vector.shape_cast %52 : vector<2xf32> to vector<2x1xf32>
      %54 = vector.broadcast %53 : vector<2x1xf32> to vector<2x256xf32>
      %55 = arith.cmpf oeq, %51, %54 : vector<2x256xf32>
      %c256_i32 = arith.constant 256 : i32
      %56 = vector.broadcast %c256_i32 : i32 to vector<2x256xi32>
      %57 = arith.select %55, %3, %56 : vector<2x256xi1>, vector<2x256xi32>
      %cst_23 = arith.constant dense<2147483647> : vector<2xi32>
      %58 = vector.multi_reduction <minsi>, %57, %cst_23 [1] : vector<2x256xi32> to vector<2xi32>
      %59 = vector.shape_cast %58 : vector<2xi32> to vector<2x1xi32>
      scf.yield %51, %59, %33, %36, %39 : vector<2x256xf32>, vector<2x1xi32>, vector<2x128xf32>, vector<2x128xf32>, vector<2x128xf32>
    }
    %c128_i32_9 = arith.constant 128 : i32
    %c0_10 = arith.constant 0 : index
    %c0_11 = arith.constant 0 : index
    %12 = vector.load %arg4[%c0_10, %c0_11] : memref<2x128xf32, #tpu.memory_space<vmem>>, vector<2x128xf32>
    tpu.vector_store %arg4[%c0_10, %c0_11], %11#2 {strides = array<i32>} : memref<2x128xf32, #tpu.memory_space<vmem>>, vector<2x128xf32>,
    %c0_12 = arith.constant 0 : index
    %c0_13 = arith.constant 0 : index
    %13 = vector.load %arg5[%c0_12, %c0_13] : memref<2x128xf32, #tpu.memory_space<vmem>>, vector<2x128xf32>
    tpu.vector_store %arg5[%c0_12, %c0_13], %11#3 {strides = array<i32>} : memref<2x128xf32, #tpu.memory_space<vmem>>, vector<2x128xf32>,
    %c0_14 = arith.constant 0 : index
    %c0_15 = arith.constant 0 : index
    %14 = vector.load %arg6[%c0_14, %c0_15] : memref<2x128xf32, #tpu.memory_space<vmem>>, vector<2x128xf32>
    tpu.vector_store %arg6[%c0_14, %c0_15], %11#4 {strides = array<i32>} : memref<2x128xf32, #tpu.memory_space<vmem>>, vector<2x128xf32>,
    return
  }
  func.func @transform_0(%arg0: i32) -> (i32, i32) {
    %c0_i32 = arith.constant 0 : i32
    %c0_i32_0 = arith.constant 0 : i32
    %c0_i32_1 = arith.constant 0 : i32
    return %c0_i32, %c0_i32_0 : i32, i32
  }
  func.func @transform_1(%arg0: i32) -> (i32, i32) {
    %c0_i32 = arith.constant 0 : i32
    %c0_i32_0 = arith.constant 0 : i32
    %c0_i32_1 = arith.constant 0 : i32
    return %c0_i32, %c0_i32_0 : i32, i32
  }
  func.func @transform_2(%arg0: i32) -> (i32, i32) {
    %c0_i32 = arith.constant 0 : i32
    %c0_i32_0 = arith.constant 0 : i32
    %c0_i32_1 = arith.constant 0 : i32
    return %c0_i32, %c0_i32_0 : i32, i32
  }
  func.func @transform_3(%arg0: i32) -> (i32, i32) {
    %c0_i32 = arith.constant 0 : i32
    %c0_i32_0 = arith.constant 0 : i32
    %c0_i32_1 = arith.constant 0 : i32
    return %c0_i32, %c0_i32_0 : i32, i32
  }
  func.func @transform_4(%arg0: i32) -> (i32, i32) {
    %c0_i32 = arith.constant 0 : i32
    %c0_i32_0 = arith.constant 0 : i32
    %c0_i32_1 = arith.constant 0 : i32
    return %c0_i32, %c0_i32_0 : i32, i32
  }
  func.func @transform_5(%arg0: i32) -> (i32, i32) {
    %c0_i32 = arith.constant 0 : i32
    %c0_i32_0 = arith.constant 0 : i32
    %c0_i32_1 = arith.constant 0 : i32
    return %c0_i32, %c0_i32_0 : i32, i32
  }
}

module attributes {stable_mosaic.version = 11 : i64} {
  func.func @_sa_mlp_max_kernel(%arg0: i32, %arg1: memref<1x19x8192xbf16, #tpu.memory_space<vmem>>, %arg2: memref<16x19xbf16, #tpu.memory_space<vmem>>, %arg3: memref<16x1xf32, #tpu.memory_space<vmem>>, %arg4: memref<32x16xbf16, #tpu.memory_space<vmem>>, %arg5: memref<32x1xf32, #tpu.memory_space<vmem>>, %arg6: memref<1x32x128xbf16, #tpu.memory_space<vmem>>) attributes {dimension_semantics = [#tpu.dimension_semantics<parallel>], iteration_bounds = array<i64: 2>, scalar_prefetch = 0 : i64, scratch_operands = 0 : i64, tpu.core_type = #tpu.core_type<tc>, window_params = [{transform_indices = @transform_0, window_bounds = array<i64: 1, 19, 8192>}, {pipeline_mode = #tpu.pipeline_mode<synchronous>, transform_indices = @transform_1, window_bounds = array<i64: 16, 19>}, {pipeline_mode = #tpu.pipeline_mode<synchronous>, transform_indices = @transform_2, window_bounds = array<i64: 16, 1>}, {pipeline_mode = #tpu.pipeline_mode<synchronous>, transform_indices = @transform_3, window_bounds = array<i64: 32, 16>}, {pipeline_mode = #tpu.pipeline_mode<synchronous>, transform_indices = @transform_4, window_bounds = array<i64: 32, 1>}, {transform_indices = @transform_5, window_bounds = array<i64: 1, 32, 128>}]} {
    %c0 = arith.constant 0 : index
    %c0_0 = arith.constant 0 : index
    %c0_1 = arith.constant 0 : index
    %0 = vector.load %arg1[%c0, %c0_0, %c0_1] : memref<1x19x8192xbf16, #tpu.memory_space<vmem>>, vector<1x19x8192xbf16>
    %1 = vector.shape_cast %0 : vector<1x19x8192xbf16> to vector<19x8192xbf16>
    %c0_2 = arith.constant 0 : index
    %c0_3 = arith.constant 0 : index
    %2 = vector.load %arg2[%c0_2, %c0_3] : memref<16x19xbf16, #tpu.memory_space<vmem>>, vector<16x19xbf16>
    %cst = arith.constant dense<0.000000e+00> : vector<16x8192xf32>
    %3 = tpu.matmul %2, %1, %cst {dimension_numbers = #tpu.dot_dimension_numbers<[1], [0], [0], [1], [0, 0, 1, 1], [], []>} : vector<16x19xbf16>, vector<19x8192xbf16>, vector<16x8192xf32> -> vector<16x8192xf32>
    %c0_4 = arith.constant 0 : index
    %c0_5 = arith.constant 0 : index
    %4 = vector.load %arg3[%c0_4, %c0_5] : memref<16x1xf32, #tpu.memory_space<vmem>>, vector<16x1xf32>
    %5 = vector.broadcast %4 : vector<16x1xf32> to vector<16x8192xf32>
    %6 = arith.addf %3, %5 : vector<16x8192xf32>
    %cst_6 = arith.constant 0.000000e+00 : f32
    %7 = vector.broadcast %cst_6 : f32 to vector<16x8192xf32>
    %8 = arith.maximumf %6, %7 : vector<16x8192xf32>
    %9 = arith.truncf %8 : vector<16x8192xf32> to vector<16x8192xbf16>
    %c0_7 = arith.constant 0 : index
    %c0_8 = arith.constant 0 : index
    %10 = vector.load %arg4[%c0_7, %c0_8] : memref<32x16xbf16, #tpu.memory_space<vmem>>, vector<32x16xbf16>
    %cst_9 = arith.constant dense<0.000000e+00> : vector<32x8192xf32>
    %11 = tpu.matmul %10, %9, %cst_9 {dimension_numbers = #tpu.dot_dimension_numbers<[1], [0], [0], [1], [0, 0, 1, 1], [], []>} : vector<32x16xbf16>, vector<16x8192xbf16>, vector<32x8192xf32> -> vector<32x8192xf32>
    %12 = vector.extract_strided_slice %11 {offsets = [0, 0], sizes = [32, 128], strides = [1, 1]} : vector<32x8192xf32> to vector<32x128xf32>
    %13 = vector.extract_strided_slice %11 {offsets = [0, 128], sizes = [32, 128], strides = [1, 1]} : vector<32x8192xf32> to vector<32x128xf32>
    %14 = vector.extract_strided_slice %11 {offsets = [0, 256], sizes = [32, 128], strides = [1, 1]} : vector<32x8192xf32> to vector<32x128xf32>
    %15 = vector.extract_strided_slice %11 {offsets = [0, 384], sizes = [32, 128], strides = [1, 1]} : vector<32x8192xf32> to vector<32x128xf32>
    %16 = vector.extract_strided_slice %11 {offsets = [0, 512], sizes = [32, 128], strides = [1, 1]} : vector<32x8192xf32> to vector<32x128xf32>
    %17 = vector.extract_strided_slice %11 {offsets = [0, 640], sizes = [32, 128], strides = [1, 1]} : vector<32x8192xf32> to vector<32x128xf32>
    %18 = vector.extract_strided_slice %11 {offsets = [0, 768], sizes = [32, 128], strides = [1, 1]} : vector<32x8192xf32> to vector<32x128xf32>
    %19 = vector.extract_strided_slice %11 {offsets = [0, 896], sizes = [32, 128], strides = [1, 1]} : vector<32x8192xf32> to vector<32x128xf32>
    %20 = vector.extract_strided_slice %11 {offsets = [0, 1024], sizes = [32, 128], strides = [1, 1]} : vector<32x8192xf32> to vector<32x128xf32>
    %21 = vector.extract_strided_slice %11 {offsets = [0, 1152], sizes = [32, 128], strides = [1, 1]} : vector<32x8192xf32> to vector<32x128xf32>
    %22 = vector.extract_strided_slice %11 {offsets = [0, 1280], sizes = [32, 128], strides = [1, 1]} : vector<32x8192xf32> to vector<32x128xf32>
    %23 = vector.extract_strided_slice %11 {offsets = [0, 1408], sizes = [32, 128], strides = [1, 1]} : vector<32x8192xf32> to vector<32x128xf32>
    %24 = vector.extract_strided_slice %11 {offsets = [0, 1536], sizes = [32, 128], strides = [1, 1]} : vector<32x8192xf32> to vector<32x128xf32>
    %25 = vector.extract_strided_slice %11 {offsets = [0, 1664], sizes = [32, 128], strides = [1, 1]} : vector<32x8192xf32> to vector<32x128xf32>
    %26 = vector.extract_strided_slice %11 {offsets = [0, 1792], sizes = [32, 128], strides = [1, 1]} : vector<32x8192xf32> to vector<32x128xf32>
    %27 = vector.extract_strided_slice %11 {offsets = [0, 1920], sizes = [32, 128], strides = [1, 1]} : vector<32x8192xf32> to vector<32x128xf32>
    %28 = vector.extract_strided_slice %11 {offsets = [0, 2048], sizes = [32, 128], strides = [1, 1]} : vector<32x8192xf32> to vector<32x128xf32>
    %29 = vector.extract_strided_slice %11 {offsets = [0, 2176], sizes = [32, 128], strides = [1, 1]} : vector<32x8192xf32> to vector<32x128xf32>
    %30 = vector.extract_strided_slice %11 {offsets = [0, 2304], sizes = [32, 128], strides = [1, 1]} : vector<32x8192xf32> to vector<32x128xf32>
    %31 = vector.extract_strided_slice %11 {offsets = [0, 2432], sizes = [32, 128], strides = [1, 1]} : vector<32x8192xf32> to vector<32x128xf32>
    %32 = vector.extract_strided_slice %11 {offsets = [0, 2560], sizes = [32, 128], strides = [1, 1]} : vector<32x8192xf32> to vector<32x128xf32>
    %33 = vector.extract_strided_slice %11 {offsets = [0, 2688], sizes = [32, 128], strides = [1, 1]} : vector<32x8192xf32> to vector<32x128xf32>
    %34 = vector.extract_strided_slice %11 {offsets = [0, 2816], sizes = [32, 128], strides = [1, 1]} : vector<32x8192xf32> to vector<32x128xf32>
    %35 = vector.extract_strided_slice %11 {offsets = [0, 2944], sizes = [32, 128], strides = [1, 1]} : vector<32x8192xf32> to vector<32x128xf32>
    %36 = vector.extract_strided_slice %11 {offsets = [0, 3072], sizes = [32, 128], strides = [1, 1]} : vector<32x8192xf32> to vector<32x128xf32>
    %37 = vector.extract_strided_slice %11 {offsets = [0, 3200], sizes = [32, 128], strides = [1, 1]} : vector<32x8192xf32> to vector<32x128xf32>
    %38 = vector.extract_strided_slice %11 {offsets = [0, 3328], sizes = [32, 128], strides = [1, 1]} : vector<32x8192xf32> to vector<32x128xf32>
    %39 = vector.extract_strided_slice %11 {offsets = [0, 3456], sizes = [32, 128], strides = [1, 1]} : vector<32x8192xf32> to vector<32x128xf32>
    %40 = vector.extract_strided_slice %11 {offsets = [0, 3584], sizes = [32, 128], strides = [1, 1]} : vector<32x8192xf32> to vector<32x128xf32>
    %41 = vector.extract_strided_slice %11 {offsets = [0, 3712], sizes = [32, 128], strides = [1, 1]} : vector<32x8192xf32> to vector<32x128xf32>
    %42 = vector.extract_strided_slice %11 {offsets = [0, 3840], sizes = [32, 128], strides = [1, 1]} : vector<32x8192xf32> to vector<32x128xf32>
    %43 = vector.extract_strided_slice %11 {offsets = [0, 3968], sizes = [32, 128], strides = [1, 1]} : vector<32x8192xf32> to vector<32x128xf32>
    %44 = vector.extract_strided_slice %11 {offsets = [0, 4096], sizes = [32, 128], strides = [1, 1]} : vector<32x8192xf32> to vector<32x128xf32>
    %45 = vector.extract_strided_slice %11 {offsets = [0, 4224], sizes = [32, 128], strides = [1, 1]} : vector<32x8192xf32> to vector<32x128xf32>
    %46 = vector.extract_strided_slice %11 {offsets = [0, 4352], sizes = [32, 128], strides = [1, 1]} : vector<32x8192xf32> to vector<32x128xf32>
    %47 = vector.extract_strided_slice %11 {offsets = [0, 4480], sizes = [32, 128], strides = [1, 1]} : vector<32x8192xf32> to vector<32x128xf32>
    %48 = vector.extract_strided_slice %11 {offsets = [0, 4608], sizes = [32, 128], strides = [1, 1]} : vector<32x8192xf32> to vector<32x128xf32>
    %49 = vector.extract_strided_slice %11 {offsets = [0, 4736], sizes = [32, 128], strides = [1, 1]} : vector<32x8192xf32> to vector<32x128xf32>
    %50 = vector.extract_strided_slice %11 {offsets = [0, 4864], sizes = [32, 128], strides = [1, 1]} : vector<32x8192xf32> to vector<32x128xf32>
    %51 = vector.extract_strided_slice %11 {offsets = [0, 4992], sizes = [32, 128], strides = [1, 1]} : vector<32x8192xf32> to vector<32x128xf32>
    %52 = vector.extract_strided_slice %11 {offsets = [0, 5120], sizes = [32, 128], strides = [1, 1]} : vector<32x8192xf32> to vector<32x128xf32>
    %53 = vector.extract_strided_slice %11 {offsets = [0, 5248], sizes = [32, 128], strides = [1, 1]} : vector<32x8192xf32> to vector<32x128xf32>
    %54 = vector.extract_strided_slice %11 {offsets = [0, 5376], sizes = [32, 128], strides = [1, 1]} : vector<32x8192xf32> to vector<32x128xf32>
    %55 = vector.extract_strided_slice %11 {offsets = [0, 5504], sizes = [32, 128], strides = [1, 1]} : vector<32x8192xf32> to vector<32x128xf32>
    %56 = vector.extract_strided_slice %11 {offsets = [0, 5632], sizes = [32, 128], strides = [1, 1]} : vector<32x8192xf32> to vector<32x128xf32>
    %57 = vector.extract_strided_slice %11 {offsets = [0, 5760], sizes = [32, 128], strides = [1, 1]} : vector<32x8192xf32> to vector<32x128xf32>
    %58 = vector.extract_strided_slice %11 {offsets = [0, 5888], sizes = [32, 128], strides = [1, 1]} : vector<32x8192xf32> to vector<32x128xf32>
    %59 = vector.extract_strided_slice %11 {offsets = [0, 6016], sizes = [32, 128], strides = [1, 1]} : vector<32x8192xf32> to vector<32x128xf32>
    %60 = vector.extract_strided_slice %11 {offsets = [0, 6144], sizes = [32, 128], strides = [1, 1]} : vector<32x8192xf32> to vector<32x128xf32>
    %61 = vector.extract_strided_slice %11 {offsets = [0, 6272], sizes = [32, 128], strides = [1, 1]} : vector<32x8192xf32> to vector<32x128xf32>
    %62 = vector.extract_strided_slice %11 {offsets = [0, 6400], sizes = [32, 128], strides = [1, 1]} : vector<32x8192xf32> to vector<32x128xf32>
    %63 = vector.extract_strided_slice %11 {offsets = [0, 6528], sizes = [32, 128], strides = [1, 1]} : vector<32x8192xf32> to vector<32x128xf32>
    %64 = vector.extract_strided_slice %11 {offsets = [0, 6656], sizes = [32, 128], strides = [1, 1]} : vector<32x8192xf32> to vector<32x128xf32>
    %65 = vector.extract_strided_slice %11 {offsets = [0, 6784], sizes = [32, 128], strides = [1, 1]} : vector<32x8192xf32> to vector<32x128xf32>
    %66 = vector.extract_strided_slice %11 {offsets = [0, 6912], sizes = [32, 128], strides = [1, 1]} : vector<32x8192xf32> to vector<32x128xf32>
    %67 = vector.extract_strided_slice %11 {offsets = [0, 7040], sizes = [32, 128], strides = [1, 1]} : vector<32x8192xf32> to vector<32x128xf32>
    %68 = vector.extract_strided_slice %11 {offsets = [0, 7168], sizes = [32, 128], strides = [1, 1]} : vector<32x8192xf32> to vector<32x128xf32>
    %69 = vector.extract_strided_slice %11 {offsets = [0, 7296], sizes = [32, 128], strides = [1, 1]} : vector<32x8192xf32> to vector<32x128xf32>
    %70 = vector.extract_strided_slice %11 {offsets = [0, 7424], sizes = [32, 128], strides = [1, 1]} : vector<32x8192xf32> to vector<32x128xf32>
    %71 = vector.extract_strided_slice %11 {offsets = [0, 7552], sizes = [32, 128], strides = [1, 1]} : vector<32x8192xf32> to vector<32x128xf32>
    %72 = vector.extract_strided_slice %11 {offsets = [0, 7680], sizes = [32, 128], strides = [1, 1]} : vector<32x8192xf32> to vector<32x128xf32>
    %73 = vector.extract_strided_slice %11 {offsets = [0, 7808], sizes = [32, 128], strides = [1, 1]} : vector<32x8192xf32> to vector<32x128xf32>
    %74 = vector.extract_strided_slice %11 {offsets = [0, 7936], sizes = [32, 128], strides = [1, 1]} : vector<32x8192xf32> to vector<32x128xf32>
    %75 = vector.extract_strided_slice %11 {offsets = [0, 8064], sizes = [32, 128], strides = [1, 1]} : vector<32x8192xf32> to vector<32x128xf32>
    %76 = arith.maximumf %12, %13 : vector<32x128xf32>
    %77 = arith.maximumf %14, %15 : vector<32x128xf32>
    %78 = arith.maximumf %16, %17 : vector<32x128xf32>
    %79 = arith.maximumf %18, %19 : vector<32x128xf32>
    %80 = arith.maximumf %20, %21 : vector<32x128xf32>
    %81 = arith.maximumf %22, %23 : vector<32x128xf32>
    %82 = arith.maximumf %24, %25 : vector<32x128xf32>
    %83 = arith.maximumf %26, %27 : vector<32x128xf32>
    %84 = arith.maximumf %28, %29 : vector<32x128xf32>
    %85 = arith.maximumf %30, %31 : vector<32x128xf32>
    %86 = arith.maximumf %32, %33 : vector<32x128xf32>
    %87 = arith.maximumf %34, %35 : vector<32x128xf32>
    %88 = arith.maximumf %36, %37 : vector<32x128xf32>
    %89 = arith.maximumf %38, %39 : vector<32x128xf32>
    %90 = arith.maximumf %40, %41 : vector<32x128xf32>
    %91 = arith.maximumf %42, %43 : vector<32x128xf32>
    %92 = arith.maximumf %44, %45 : vector<32x128xf32>
    %93 = arith.maximumf %46, %47 : vector<32x128xf32>
    %94 = arith.maximumf %48, %49 : vector<32x128xf32>
    %95 = arith.maximumf %50, %51 : vector<32x128xf32>
    %96 = arith.maximumf %52, %53 : vector<32x128xf32>
    %97 = arith.maximumf %54, %55 : vector<32x128xf32>
    %98 = arith.maximumf %56, %57 : vector<32x128xf32>
    %99 = arith.maximumf %58, %59 : vector<32x128xf32>
    %100 = arith.maximumf %60, %61 : vector<32x128xf32>
    %101 = arith.maximumf %62, %63 : vector<32x128xf32>
    %102 = arith.maximumf %64, %65 : vector<32x128xf32>
    %103 = arith.maximumf %66, %67 : vector<32x128xf32>
    %104 = arith.maximumf %68, %69 : vector<32x128xf32>
    %105 = arith.maximumf %70, %71 : vector<32x128xf32>
    %106 = arith.maximumf %72, %73 : vector<32x128xf32>
    %107 = arith.maximumf %74, %75 : vector<32x128xf32>
    %108 = arith.maximumf %76, %77 : vector<32x128xf32>
    %109 = arith.maximumf %78, %79 : vector<32x128xf32>
    %110 = arith.maximumf %80, %81 : vector<32x128xf32>
    %111 = arith.maximumf %82, %83 : vector<32x128xf32>
    %112 = arith.maximumf %84, %85 : vector<32x128xf32>
    %113 = arith.maximumf %86, %87 : vector<32x128xf32>
    %114 = arith.maximumf %88, %89 : vector<32x128xf32>
    %115 = arith.maximumf %90, %91 : vector<32x128xf32>
    %116 = arith.maximumf %92, %93 : vector<32x128xf32>
    %117 = arith.maximumf %94, %95 : vector<32x128xf32>
    %118 = arith.maximumf %96, %97 : vector<32x128xf32>
    %119 = arith.maximumf %98, %99 : vector<32x128xf32>
    %120 = arith.maximumf %100, %101 : vector<32x128xf32>
    %121 = arith.maximumf %102, %103 : vector<32x128xf32>
    %122 = arith.maximumf %104, %105 : vector<32x128xf32>
    %123 = arith.maximumf %106, %107 : vector<32x128xf32>
    %124 = arith.maximumf %108, %109 : vector<32x128xf32>
    %125 = arith.maximumf %110, %111 : vector<32x128xf32>
    %126 = arith.maximumf %112, %113 : vector<32x128xf32>
    %127 = arith.maximumf %114, %115 : vector<32x128xf32>
    %128 = arith.maximumf %116, %117 : vector<32x128xf32>
    %129 = arith.maximumf %118, %119 : vector<32x128xf32>
    %130 = arith.maximumf %120, %121 : vector<32x128xf32>
    %131 = arith.maximumf %122, %123 : vector<32x128xf32>
    %132 = arith.maximumf %124, %125 : vector<32x128xf32>
    %133 = arith.maximumf %126, %127 : vector<32x128xf32>
    %134 = arith.maximumf %128, %129 : vector<32x128xf32>
    %135 = arith.maximumf %130, %131 : vector<32x128xf32>
    %136 = arith.maximumf %132, %133 : vector<32x128xf32>
    %137 = arith.maximumf %134, %135 : vector<32x128xf32>
    %138 = arith.maximumf %136, %137 : vector<32x128xf32>
    %c0_10 = arith.constant 0 : index
    %c0_11 = arith.constant 0 : index
    %139 = vector.load %arg5[%c0_10, %c0_11] : memref<32x1xf32, #tpu.memory_space<vmem>>, vector<32x1xf32>
    %140 = vector.broadcast %139 : vector<32x1xf32> to vector<32x128xf32>
    %141 = arith.addf %138, %140 : vector<32x128xf32>
    %cst_12 = arith.constant 0.000000e+00 : f32
    %142 = vector.broadcast %cst_12 : f32 to vector<32x128xf32>
    %143 = arith.maximumf %141, %142 : vector<32x128xf32>
    %144 = arith.truncf %143 : vector<32x128xf32> to vector<32x128xbf16>
    %c0_13 = arith.constant 0 : index
    %c0_14 = arith.constant 0 : index
    %c0_15 = arith.constant 0 : index
    %145 = vector.load %arg6[%c0_13, %c0_14, %c0_15] : memref<1x32x128xbf16, #tpu.memory_space<vmem>>, vector<1x32x128xbf16>
    %146 = vector.shape_cast %145 : vector<1x32x128xbf16> to vector<32x128xbf16>
    %147 = vector.shape_cast %144 : vector<32x128xbf16> to vector<1x32x128xbf16>
    tpu.vector_store %arg6[%c0_13, %c0_14, %c0_15], %147 {strides = array<i32>} : memref<1x32x128xbf16, #tpu.memory_space<vmem>>, vector<1x32x128xbf16>,
    return
  }
  func.func @transform_0(%arg0: i32) -> (i32, i32, i32) {
    %c0_i32 = arith.constant 0 : i32
    %c0_i32_0 = arith.constant 0 : i32
    %c0_i32_1 = arith.constant 0 : i32
    return %arg0, %c0_i32, %c0_i32_0 : i32, i32, i32
  }
  func.func @transform_1(%arg0: i32) -> (i32, i32) {
    %c0_i32 = arith.constant 0 : i32
    %c0_i32_0 = arith.constant 0 : i32
    %c0_i32_1 = arith.constant 0 : i32
    return %c0_i32, %c0_i32_0 : i32, i32
  }
  func.func @transform_2(%arg0: i32) -> (i32, i32) {
    %c0_i32 = arith.constant 0 : i32
    %c0_i32_0 = arith.constant 0 : i32
    %c0_i32_1 = arith.constant 0 : i32
    return %c0_i32, %c0_i32_0 : i32, i32
  }
  func.func @transform_3(%arg0: i32) -> (i32, i32) {
    %c0_i32 = arith.constant 0 : i32
    %c0_i32_0 = arith.constant 0 : i32
    %c0_i32_1 = arith.constant 0 : i32
    return %c0_i32, %c0_i32_0 : i32, i32
  }
  func.func @transform_4(%arg0: i32) -> (i32, i32) {
    %c0_i32 = arith.constant 0 : i32
    %c0_i32_0 = arith.constant 0 : i32
    %c0_i32_1 = arith.constant 0 : i32
    return %c0_i32, %c0_i32_0 : i32, i32
  }
  func.func @transform_5(%arg0: i32) -> (i32, i32, i32) {
    %c0_i32 = arith.constant 0 : i32
    %c0_i32_0 = arith.constant 0 : i32
    %c0_i32_1 = arith.constant 0 : i32
    return %arg0, %c0_i32, %c0_i32_0 : i32, i32, i32
  }
}

</mosaic_0001>

<llo_original>
// kernel: pointnet_encoder.4
$region0: #{pointnet_encoder.4}
  #allocation0 [shape = 'u32[]', space=smem, size = 0x4, offset = 0x4, fixed_abs, tag = 'smem constant byte address 0x4 - core index']
  #allocation1 [shape = 'u32[144,128]{1,0:T(1,128)}', space=vmem, size = 0x12000, scoped, tag = 'internal scratch']
  %s0 = inlined_call_operand.vmem [shape: f32[2,512], index: 0, kind: input, shape index: {}]
  %s1 = inlined_call_operand.vmem [shape: f32[2,512], index: 1, kind: input, shape index: {}]
  %s2 = inlined_call_operand.vmem [shape: f32[2,512], index: 2, kind: input, shape index: {}]
  %s3 = inlined_call_operand.vmem [shape: f32[2,256], index: 3, kind: output, shape index: {0}]
  %s4 = inlined_call_operand.vmem [shape: f32[2,256], index: 4, kind: output, shape index: {1}]
  %s5 = inlined_call_operand.vmem [shape: f32[2,256], index: 5, kind: output, shape index: {2}]
  %6 = xla_tuple %s3, %s4, %s5
  %s7 = sld [smem:[#allocation0]]
  $region45: #{pointnet_encoder.4} parent=0
    _
  %s9 = ssub.s32 1, %s7
  %s10 = scalar_select 0, %s9, %s7
  // Predicated region
  $region2: #{pointnet_encoder.4} parent=0 // pred_check
    _
  $region3: #{pointnet_encoder.4} parent=0 // pred_check_branch
    %12 = sbr.rel (0) target = $region5
  $region4: #{pointnet_encoder.4} parent=0 // pred_region
    _
  $region5: #{pointnet_encoder.4} parent=0 // pred_fallthru
    _
  // Predicated region
  $region6: #{pointnet_encoder.4} parent=0 // pred_check
    _
  $region7: #{pointnet_encoder.4} parent=0 // pred_check_branch
    %14 = sbr.rel (0) target = $region9
  $region8: #{pointnet_encoder.4} parent=0 // pred_region
    _
  $region9: #{pointnet_encoder.4} parent=0 // pred_fallthru
    _
  // Predicated region
  $region10: #{pointnet_encoder.4} parent=0 // pred_check
    _
  $region11: #{pointnet_encoder.4} parent=0 // pred_check_branch
    %16 = sbr.rel (0) target = $region13
  $region12: #{pointnet_encoder.4} parent=0 // pred_region
    _
  $region13: #{pointnet_encoder.4} parent=0 // pred_fallthru
    _
  %v17 = vld [vmem:[%s0] sm:$0xff]
  %v18 = vld [vmem:[%s1] sm:$0xff]
  %v19 = vld [vmem:[%s2] sm:$0xff]
  %v20 = vlaneseq
  %v21 = vand.u32 %v20, 127
  %v22 = vadd.s32 %v21, 128
  %v23 = vadd.s32 %v21, 256
  %v24 = vadd.s32 %v21, 384
  loop: start=0, step=1, limit=256
  $region14: #{pointnet_encoder.4} parent=0 // loop_pre_header
    _
  $region15: #{pointnet_encoder.4} parent=0 // loop_header
    %s26 = sphi 0, %s30
    %p27 = scmp.ge.s32.totalorder %s26, 256
    %v31 = vphi 1e+10, %v193
    %v32 = vphi 0, %v293
    %v33 = vphi 0.0, %v152
    %v34 = vphi 0.0, %v153
    %v35 = vphi 0.0, %v154
    %v36 = vphi 0.0, %v155
    %v37 = vphi 0.0, %v156
    %v38 = vphi 0.0, %v157
  $region16: #{pointnet_encoder.4} parent=0 // loop_header_branch
    %29 = sbr.rel (%p27) target = $region20
  $region17: #{pointnet_encoder.4} parent=0 // loop_body
    %vm39 = vcmp.eq.s32.totalorder %v21, %v32
    %vm40 = vcmp.eq.s32.totalorder %v22, %v32
    %vm41 = vcmp.eq.s32.totalorder %v23, %v32
    %vm42 = vcmp.eq.s32.totalorder %v24, %v32
    %v44 = vcombine.high %v17, %v17
    %v46 = vunpack.c.l.s4 1983009808
    %v47 = vunpack.c.0.s8 %v46
    %v48 = vlaneseq
    %v49 = vshrl.u32 %v48, 7
    %v50 = vsub.s32 %v47, %v49
    %v51 = vrot.slane %v17, %v50
    %v53 = vunpack.c.l.s4 1983009808
    %v54 = vunpack.c.0.s8 %v53
    %v55 = vlaneseq
    %v56 = vshrl.u32 %v55, 7
    %v57 = vsub.s32 %v54, %v56
    %v58 = vrot.slane %v44, %v57
    %v59 = vcombine.high %v51, %v51
    %v60 = vcombine.high %v58, %v58
    %v65 = vsel %vm39, %v51, 0.0
    %v66 = vsel %vm40, %v59, 0.0
    %v67 = vsel %vm41, %v58, 0.0
    %v68 = vsel %vm42, %v60, 0.0
    %vm69 = vcmask 1041408
    %v70 = vsel %vm69, %v65, 0.0
    %v71 = vsel %vm69, %v66, 0.0
    %v72 = vadd.f32 %v70, %v71
    %v73 = vsel %vm69, %v67, 0.0
    %v74 = vadd.f32 %v72, %v73
    %v75 = vsel %vm69, %v68, 0.0
    %v76 = vadd.f32 %v74, %v75
    %77 = vadd.xlane.f32.xlu0 %v76
    %v78 = vpop.xlane.xlu0 %77
    %v80 = vcombine.high %v18, %v18
    %v82 = vunpack.c.l.s4 1983009808
    %v83 = vunpack.c.0.s8 %v82
    %v84 = vlaneseq
    %v85 = vshrl.u32 %v84, 7
    %v86 = vsub.s32 %v83, %v85
    %v87 = vrot.slane %v18, %v86
    %v89 = vunpack.c.l.s4 1983009808
    %v90 = vunpack.c.0.s8 %v89
    %v91 = vlaneseq
    %v92 = vshrl.u32 %v91, 7
    %v93 = vsub.s32 %v90, %v92
    %v94 = vrot.slane %v80, %v93
    %v95 = vcombine.high %v87, %v87
    %v96 = vcombine.high %v94, %v94
    %v101 = vsel %vm39, %v87, 0.0
    %v102 = vsel %vm40, %v95, 0.0
    %v103 = vsel %vm41, %v94, 0.0
    %v104 = vsel %vm42, %v96, 0.0
    %v105 = vsel %vm69, %v101, 0.0
    %v106 = vsel %vm69, %v102, 0.0
    %v107 = vadd.f32 %v105, %v106
    %v108 = vsel %vm69, %v103, 0.0
    %v109 = vadd.f32 %v107, %v108
    %v110 = vsel %vm69, %v104, 0.0
    %v111 = vadd.f32 %v109, %v110
    %112 = vadd.xlane.f32.xlu0 %v111
    %v113 = vpop.xlane.xlu0 %112
    %v115 = vcombine.high %v19, %v19
    %v117 = vunpack.c.l.s4 1983009808
    %v118 = vunpack.c.0.s8 %v117
    %v119 = vlaneseq
    %v120 = vshrl.u32 %v119, 7
    %v121 = vsub.s32 %v118, %v120
    %v122 = vrot.slane %v19, %v121
    %v124 = vunpack.c.l.s4 1983009808
    %v125 = vunpack.c.0.s8 %v124
    %v126 = vlaneseq
    %v127 = vshrl.u32 %v126, 7
    %v128 = vsub.s32 %v125, %v127
    %v129 = vrot.slane %v115, %v128
    %v130 = vcombine.high %v122, %v122
    %v131 = vcombine.high %v129, %v129
    %v136 = vsel %vm39, %v122, 0.0
    %v137 = vsel %vm40, %v130, 0.0
    %v138 = vsel %vm41, %v129, 0.0
    %v139 = vsel %vm42, %v131, 0.0
    %v140 = vsel %vm69, %v136, 0.0
    %v141 = vsel %vm69, %v137, 0.0
    %v142 = vadd.f32 %v140, %v141
    %v143 = vsel %vm69, %v138, 0.0
    %v144 = vadd.f32 %v142, %v143
    %v145 = vsel %vm69, %v139, 0.0
    %v146 = vadd.f32 %v144, %v145
    %147 = vadd.xlane.f32.xlu0 %v146
    %v148 = vpop.xlane.xlu0 %147
    %v149 = vstv %s26
    %vm150 = vcmp.eq.s32.totalorder %v21, %v149
    %vm151 = vcmp.eq.s32.totalorder %v22, %v149
    %v152 = vsel %vm150, %v78, %v33
    %v153 = vsel %vm151, %v78, %v34
    %v154 = vsel %vm150, %v113, %v35
    %v155 = vsel %vm151, %v113, %v36
    %v156 = vsel %vm150, %v148, %v37
    %v157 = vsel %vm151, %v148, %v38
    %v160 = vunpack.c.l.s4 269488144
    %v161 = vunpack.c.0.s8 %v160
    %v162 = vlaneseq
    %v163 = vshrl.u32 %v162, 7
    %v164 = vsub.s32 %v161, %v163
    %v165 = vrot.slane %v78, %v164
    %v167 = vsub.f32 %v17, %v165
    %v168 = vmul.f32 %v167, %v167
    %v171 = vunpack.c.l.s4 269488144
    %v172 = vunpack.c.0.s8 %v171
    %v173 = vlaneseq
    %v174 = vshrl.u32 %v173, 7
    %v175 = vsub.s32 %v172, %v174
    %v176 = vrot.slane %v113, %v175
    %v178 = vsub.f32 %v18, %v176
    %v179 = vmul.f32 %v178, %v178
    %v180 = vadd.f32 %v168, %v179
    %v183 = vunpack.c.l.s4 269488144
    %v184 = vunpack.c.0.s8 %v183
    %v185 = vlaneseq
    %v186 = vshrl.u32 %v185, 7
    %v187 = vsub.s32 %v184, %v186
    %v188 = vrot.slane %v148, %v187
    %v190 = vsub.f32 %v19, %v188
    %v191 = vmul.f32 %v190, %v190
    %v192 = vadd.f32 %v180, %v191
    %v193 = vmin.f32 %v31, %v192
    %v195 = vcombine.high %v193, %v193
    %v197 = vunpack.c.l.s4 1983009808
    %v198 = vunpack.c.0.s8 %v197
    %v199 = vlaneseq
    %v200 = vshrl.u32 %v199, 7
    %v201 = vsub.s32 %v198, %v200
    %v202 = vrot.slane %v193, %v201
    %v204 = vunpack.c.l.s4 1983009808
    %v205 = vunpack.c.0.s8 %v204
    %v206 = vlaneseq
    %v207 = vshrl.u32 %v206, 7
    %v208 = vsub.s32 %v205, %v207
    %v209 = vrot.slane %v195, %v208
    %v210 = vcombine.high %v202, %v202
    %v211 = vcombine.high %v209, %v209
    %v216 = vsel %vm69, %v202, -inf
    %v217 = vsel %vm69, %v210, -inf
    %v218 = vsel %vm69, %v209, -inf
    %v219 = vsel %vm69, %v211, -inf
    %v220 = vmax.f32 %v216, %v217
    %v221 = vmax.f32 %v218, %v219
    %v222 = vmax.f32 %v220, %v221
    %223 = vmax.xlane.f32.xlu0 %v222
    %v224 = vpop.xlane.xlu0 %223
    %v227 = vunpack.c.l.s4 269488144
    %v228 = vunpack.c.0.s8 %v227
    %v229 = vlaneseq
    %v230 = vshrl.u32 %v229, 7
    %v231 = vsub.s32 %v228, %v230
    %v232 = vrot.slane %v224, %v231
    %vm234 = vcmp.eq.f32.partialorder %v193, %v232
    %v235 = vcombine.low %v21, %v22
    %v236 = vcombine.low %v23, %v24
    %v238 = vunpack.c.l.s4 1983009808
    %v239 = vunpack.c.0.s8 %v238
    %v240 = vlaneseq
    %v241 = vshrl.u32 %v240, 7
    %v242 = vsub.s32 %v239, %v241
    %v243 = vrot.slane %v235, %v242
    %v245 = vunpack.c.l.s4 1983009808
    %v246 = vunpack.c.0.s8 %v245
    %v247 = vlaneseq
    %v248 = vshrl.u32 %v247, 7
    %v249 = vsub.s32 %v246, %v248
    %v250 = vrot.slane %v236, %v249
    %v251 = vcombine.low %v243, %v250
    %v252 = vsel %vm234, %v251, 512
    %v253 = vcombine.high %v252, %v252
    %v255 = vunpack.c.l.s4 1983009808
    %v256 = vunpack.c.0.s8 %v255
    %v257 = vlaneseq
    %v258 = vshrl.u32 %v257, 7
    %v259 = vsub.s32 %v256, %v258
    %v260 = vrot.slane %v252, %v259
    %v262 = vunpack.c.l.s4 1983009808
    %v263 = vunpack.c.0.s8 %v262
    %v264 = vlaneseq
    %v265 = vshrl.u32 %v264, 7
    %v266 = vsub.s32 %v263, %v265
    %v267 = vrot.slane %v253, %v266
    %v268 = vcombine.high %v260, %v260
    %v269 = vcombine.high %v267, %v267
    %v270 = vsel %vm69, %v260, 2147483647
    %v271 = vsel %vm69, %v268, 2147483647
    %v272 = vsel %vm69, %v267, 2147483647
    %v273 = vsel %vm69, %v269, 2147483647
    %vm274 = vcmp.lt.s32.totalorder %v270, %v271
    %v275 = vsel %vm274, %v270, %v271
    %vm276 = vcmp.lt.s32.totalorder %v272, %v273
    %v277 = vsel %vm276, %v272, %v273
    %vm278 = vcmp.lt.s32.totalorder %v275, %v277
    %v279 = vsel %vm278, %v275, %v277
    %v280 = vand.u32 %v279, 65535
    %v281 = vshra.s32 %v279, 16
    %v282 = vcvt.s32.f32 %v280
    %v283 = vcvt.s32.f32 %v281
    %284 = vmin.xlane.f32.xlu0 %v283
    %v285 = vpop.xlane.xlu0 %284
    %vm286 = vcmp.eq.f32.partialorder %v283, %v285
    %v287 = vsel %vm286, %v282, inf
    %288 = vmin.xlane.f32.xlu0 %v287
    %v289 = vpop.xlane.xlu0 %288
    %v290 = vcvt.f32.s32 %v289
    %v291 = vcvt.f32.s32 %v285
    %v292 = vshll.u32 %v291, 16
    %v293 = vadd.s32 %v292, %v290
  $region18: #{pointnet_encoder.4} parent=0 // loop_footer
    %s30 = sadd.s32 1, %s26
  $region19: #{pointnet_encoder.4} parent=0 // loop_footer_branch
    %25 = sbr.rel target = $region15
  $region20: #{pointnet_encoder.4} parent=0 // loop_exit
    _
  %v296 = vcombine.low %v33, %v34
  %v298 = vunpack.c.l.s4 1983009808
  %v299 = vunpack.c.0.s8 %v298
  %v300 = vlaneseq
  %v301 = vshrl.u32 %v300, 7
  %v302 = vsub.s32 %v299, %v301
  %v303 = vrot.slane %v296, %v302
  %305 = vst [vmem:[%s3] sm:$0xf] %v303
  %v308 = vcombine.low %v35, %v36
  %v310 = vunpack.c.l.s4 1983009808
  %v311 = vunpack.c.0.s8 %v310
  %v312 = vlaneseq
  %v313 = vshrl.u32 %v312, 7
  %v314 = vsub.s32 %v311, %v313
  %v315 = vrot.slane %v308, %v314
  %317 = vst [vmem:[%s4] sm:$0xf] %v315
  %v320 = vcombine.low %v37, %v38
  %v322 = vunpack.c.l.s4 1983009808
  %v323 = vunpack.c.0.s8 %v322
  %v324 = vlaneseq
  %v325 = vshrl.u32 %v324, 7
  %v326 = vsub.s32 %v323, %v325
  %v327 = vrot.slane %v320, %v326
  %329 = vst [vmem:[%s5] sm:$0xf] %v327
  // Predicated region
  $region21: #{pointnet_encoder.4} parent=0 // pred_check
    _
  $region22: #{pointnet_encoder.4} parent=0 // pred_check_branch
    %331 = sbr.rel (0) target = $region24
  $region23: #{pointnet_encoder.4} parent=0 // pred_region
    _
  $region24: #{pointnet_encoder.4} parent=0 // pred_fallthru
    _
  // Predicated region
  $region25: #{pointnet_encoder.4} parent=0 // pred_check
    _
  $region26: #{pointnet_encoder.4} parent=0 // pred_check_branch
    %333 = sbr.rel (0) target = $region28
  $region27: #{pointnet_encoder.4} parent=0 // pred_region
    _
  $region28: #{pointnet_encoder.4} parent=0 // pred_fallthru
    _
  // Predicated region
  $region29: #{pointnet_encoder.4} parent=0 // pred_check
    _
  $region30: #{pointnet_encoder.4} parent=0 // pred_check_branch
    %335 = sbr.rel (0) target = $region32
  $region31: #{pointnet_encoder.4} parent=0 // pred_region
    _
  $region32: #{pointnet_encoder.4} parent=0 // pred_fallthru
    _
  // Predicated region
  $region33: #{pointnet_encoder.4} parent=0 // pred_check
    _
  $region34: #{pointnet_encoder.4} parent=0 // pred_check_branch
    %337 = sbr.rel (0) target = $region36
  $region35: #{pointnet_encoder.4} parent=0 // pred_region
    _
  $region36: #{pointnet_encoder.4} parent=0 // pred_fallthru
    _
  // Predicated region
  $region37: #{pointnet_encoder.4} parent=0 // pred_check
    _
  $region38: #{pointnet_encoder.4} parent=0 // pred_check_branch
    %339 = sbr.rel (0) target = $region40
  $region39: #{pointnet_encoder.4} parent=0 // pred_region
    _
  $region40: #{pointnet_encoder.4} parent=0 // pred_fallthru
    _
  // Predicated region
  $region41: #{pointnet_encoder.4} parent=0 // pred_check
    _
  $region42: #{pointnet_encoder.4} parent=0 // pred_check_branch
    %341 = sbr.rel (0) target = $region44
  $region43: #{pointnet_encoder.4} parent=0 // pred_region
    _
  $region44: #{pointnet_encoder.4} parent=0 // pred_fallthru
    _

// kernel: pointnet_encoder.6
$region0: #{pointnet_encoder.6}
  #allocation0 [shape = 'u32[]', space=smem, size = 0x4, offset = 0x4, fixed_abs, tag = 'smem constant byte address 0x4 - core index']
  #allocation1 [shape = 'u32[144,128]{1,0:T(1,128)}', space=vmem, size = 0x12000, scoped, tag = 'internal scratch']
  %s0 = inlined_call_operand.vmem [shape: f32[2,256], index: 0, kind: input, shape index: {}]
  %s1 = inlined_call_operand.vmem [shape: f32[2,256], index: 1, kind: input, shape index: {}]
  %s2 = inlined_call_operand.vmem [shape: f32[2,256], index: 2, kind: input, shape index: {}]
  %s3 = inlined_call_operand.vmem [shape: f32[2,128], index: 3, kind: output, shape index: {0}]
  %s4 = inlined_call_operand.vmem [shape: f32[2,128], index: 4, kind: output, shape index: {1}]
  %s5 = inlined_call_operand.vmem [shape: f32[2,128], index: 5, kind: output, shape index: {2}]
  %6 = xla_tuple %s3, %s4, %s5
  %s7 = sld [smem:[#allocation0]]
  $region45: #{pointnet_encoder.6} parent=0
    _
  %s9 = ssub.s32 1, %s7
  %s10 = scalar_select 0, %s9, %s7
  // Predicated region
  $region2: #{pointnet_encoder.6} parent=0 // pred_check
    _
  $region3: #{pointnet_encoder.6} parent=0 // pred_check_branch
    %12 = sbr.rel (0) target = $region5
  $region4: #{pointnet_encoder.6} parent=0 // pred_region
    _
  $region5: #{pointnet_encoder.6} parent=0 // pred_fallthru
    _
  // Predicated region
  $region6: #{pointnet_encoder.6} parent=0 // pred_check
    _
  $region7: #{pointnet_encoder.6} parent=0 // pred_check_branch
    %14 = sbr.rel (0) target = $region9
  $region8: #{pointnet_encoder.6} parent=0 // pred_region
    _
  $region9: #{pointnet_encoder.6} parent=0 // pred_fallthru
    _
  // Predicated region
  $region10: #{pointnet_encoder.6} parent=0 // pred_check
    _
  $region11: #{pointnet_encoder.6} parent=0 // pred_check_branch
    %16 = sbr.rel (0) target = $region13
  $region12: #{pointnet_encoder.6} parent=0 // pred_region
    _
  $region13: #{pointnet_encoder.6} parent=0 // pred_fallthru
    _
  %v17 = vld [vmem:[%s0] sm:$0xf]
  %v18 = vld [vmem:[%s1] sm:$0xf]
  %v19 = vld [vmem:[%s2] sm:$0xf]
  %v20 = vlaneseq
  %v21 = vand.u32 %v20, 127
  %v22 = vadd.s32 %v21, 128
  loop: start=0, step=1, limit=128
  $region14: #{pointnet_encoder.6} parent=0 // loop_pre_header
    _
  $region15: #{pointnet_encoder.6} parent=0 // loop_header
    %s24 = sphi 0, %s28
    %p25 = scmp.ge.s32.totalorder %s24, 128
    %v29 = vphi 1e+10, %v131
    %v30 = vphi 0, %v192
    %v31 = vphi 0.0, %v93
    %v32 = vphi 0.0, %v94
    %v33 = vphi 0.0, %v95
  $region16: #{pointnet_encoder.6} parent=0 // loop_header_branch
    %27 = sbr.rel (%p25) target = $region20
  $region17: #{pointnet_encoder.6} parent=0 // loop_body
    %vm34 = vcmp.eq.s32.totalorder %v21, %v30
    %vm35 = vcmp.eq.s32.totalorder %v22, %v30
    %v38 = vunpack.c.l.s4 1983009808
    %v39 = vunpack.c.0.s8 %v38
    %v40 = vlaneseq
    %v41 = vshrl.u32 %v40, 7
    %v42 = vsub.s32 %v39, %v41
    %v43 = vrot.slane %v17, %v42
    %v44 = vcombine.high %v43, %v43
    %v47 = vsel %vm34, %v43, 0.0
    %v48 = vsel %vm35, %v44, 0.0
    %vm49 = vcmask 1041408
    %v50 = vsel %vm49, %v47, 0.0
    %v51 = vsel %vm49, %v48, 0.0
    %v52 = vadd.f32 %v50, %v51
    %53 = vadd.xlane.f32.xlu0 %v52
    %v54 = vpop.xlane.xlu0 %53
    %v57 = vunpack.c.l.s4 1983009808
    %v58 = vunpack.c.0.s8 %v57
    %v59 = vlaneseq
    %v60 = vshrl.u32 %v59, 7
    %v61 = vsub.s32 %v58, %v60
    %v62 = vrot.slane %v18, %v61
    %v63 = vcombine.high %v62, %v62
    %v66 = vsel %vm34, %v62, 0.0
    %v67 = vsel %vm35, %v63, 0.0
    %v68 = vsel %vm49, %v66, 0.0
    %v69 = vsel %vm49, %v67, 0.0
    %v70 = vadd.f32 %v68, %v69
    %71 = vadd.xlane.f32.xlu0 %v70
    %v72 = vpop.xlane.xlu0 %71
    %v75 = vunpack.c.l.s4 1983009808
    %v76 = vunpack.c.0.s8 %v75
    %v77 = vlaneseq
    %v78 = vshrl.u32 %v77, 7
    %v79 = vsub.s32 %v76, %v78
    %v80 = vrot.slane %v19, %v79
    %v81 = vcombine.high %v80, %v80
    %v84 = vsel %vm34, %v80, 0.0
    %v85 = vsel %vm35, %v81, 0.0
    %v86 = vsel %vm49, %v84, 0.0
    %v87 = vsel %vm49, %v85, 0.0
    %v88 = vadd.f32 %v86, %v87
    %89 = vadd.xlane.f32.xlu0 %v88
    %v90 = vpop.xlane.xlu0 %89
    %v91 = vstv %s24
    %vm92 = vcmp.eq.s32.totalorder %v21, %v91
    %v93 = vsel %vm92, %v54, %v31
    %v94 = vsel %vm92, %v72, %v32
    %v95 = vsel %vm92, %v90, %v33
    %v98 = vunpack.c.l.s4 269488144
    %v99 = vunpack.c.0.s8 %v98
    %v100 = vlaneseq
    %v101 = vshrl.u32 %v100, 7
    %v102 = vsub.s32 %v99, %v101
    %v103 = vrot.slane %v54, %v102
    %v105 = vsub.f32 %v17, %v103
    %v106 = vmul.f32 %v105, %v105
    %v109 = vunpack.c.l.s4 269488144
    %v110 = vunpack.c.0.s8 %v109
    %v111 = vlaneseq
    %v112 = vshrl.u32 %v111, 7
    %v113 = vsub.s32 %v110, %v112
    %v114 = vrot.slane %v72, %v113
    %v116 = vsub.f32 %v18, %v114
    %v117 = vmul.f32 %v116, %v116
    %v118 = vadd.f32 %v106, %v117
    %v121 = vunpack.c.l.s4 269488144
    %v122 = vunpack.c.0.s8 %v121
    %v123 = vlaneseq
    %v124 = vshrl.u32 %v123, 7
    %v125 = vsub.s32 %v122, %v124
    %v126 = vrot.slane %v90, %v125
    %v128 = vsub.f32 %v19, %v126
    %v129 = vmul.f32 %v128, %v128
    %v130 = vadd.f32 %v118, %v129
    %v131 = vmin.f32 %v29, %v130
    %v134 = vunpack.c.l.s4 1983009808
    %v135 = vunpack.c.0.s8 %v134
    %v136 = vlaneseq
    %v137 = vshrl.u32 %v136, 7
    %v138 = vsub.s32 %v135, %v137
    %v139 = vrot.slane %v131, %v138
    %v140 = vcombine.high %v139, %v139
    %v143 = vsel %vm49, %v139, -inf
    %v144 = vsel %vm49, %v140, -inf
    %v145 = vmax.f32 %v143, %v144
    %146 = vmax.xlane.f32.xlu0 %v145
    %v147 = vpop.xlane.xlu0 %146
    %v150 = vunpack.c.l.s4 269488144
    %v151 = vunpack.c.0.s8 %v150
    %v152 = vlaneseq
    %v153 = vshrl.u32 %v152, 7
    %v154 = vsub.s32 %v151, %v153
    %v155 = vrot.slane %v147, %v154
    %vm157 = vcmp.eq.f32.partialorder %v131, %v155
    %v158 = vcombine.low %v21, %v22
    %v160 = vunpack.c.l.s4 1983009808
    %v161 = vunpack.c.0.s8 %v160
    %v162 = vlaneseq
    %v163 = vshrl.u32 %v162, 7
    %v164 = vsub.s32 %v161, %v163
    %v165 = vrot.slane %v158, %v164
    %v166 = vsel %vm157, %v165, 256
    %v168 = vunpack.c.l.s4 1983009808
    %v169 = vunpack.c.0.s8 %v168
    %v170 = vlaneseq
    %v171 = vshrl.u32 %v170, 7
    %v172 = vsub.s32 %v169, %v171
    %v173 = vrot.slane %v166, %v172
    %v174 = vcombine.high %v173, %v173
    %v175 = vsel %vm49, %v173, 2147483647
    %v176 = vsel %vm49, %v174, 2147483647
    %vm177 = vcmp.lt.s32.totalorder %v175, %v176
    %v178 = vsel %vm177, %v175, %v176
    %v179 = vand.u32 %v178, 65535
    %v180 = vshra.s32 %v178, 16
    %v181 = vcvt.s32.f32 %v179
    %v182 = vcvt.s32.f32 %v180
    %183 = vmin.xlane.f32.xlu0 %v182
    %v184 = vpop.xlane.xlu0 %183
    %vm185 = vcmp.eq.f32.partialorder %v182, %v184
    %v186 = vsel %vm185, %v181, inf
    %187 = vmin.xlane.f32.xlu0 %v186
    %v188 = vpop.xlane.xlu0 %187
    %v189 = vcvt.f32.s32 %v188
    %v190 = vcvt.f32.s32 %v184
    %v191 = vshll.u32 %v190, 16
    %v192 = vadd.s32 %v191, %v189
  $region18: #{pointnet_encoder.6} parent=0 // loop_footer
    %s28 = sadd.s32 1, %s24
  $region19: #{pointnet_encoder.6} parent=0 // loop_footer_branch
    %23 = sbr.rel target = $region15
  $region20: #{pointnet_encoder.6} parent=0 // loop_exit
    _
  %193 = vst [vmem:[%s3] sm:$0x3] %v31
  %194 = vst [vmem:[%s4] sm:$0x3] %v32
  %195 = vst [vmem:[%s5] sm:$0x3] %v33
  // Predicated region
  $region21: #{pointnet_encoder.6} parent=0 // pred_check
    _
  $region22: #{pointnet_encoder.6} parent=0 // pred_check_branch
    %197 = sbr.rel (0) target = $region24
  $region23: #{pointnet_encoder.6} parent=0 // pred_region
    _
  $region24: #{pointnet_encoder.6} parent=0 // pred_fallthru
    _
  // Predicated region
  $region25: #{pointnet_encoder.6} parent=0 // pred_check
    _
  $region26: #{pointnet_encoder.6} parent=0 // pred_check_branch
    %199 = sbr.rel (0) target = $region28
  $region27: #{pointnet_encoder.6} parent=0 // pred_region
    _
  $region28: #{pointnet_encoder.6} parent=0 // pred_fallthru
    _
  // Predicated region
  $region29: #{pointnet_encoder.6} parent=0 // pred_check
    _
  $region30: #{pointnet_encoder.6} parent=0 // pred_check_branch
    %201 = sbr.rel (0) target = $region32
  $region31: #{pointnet_encoder.6} parent=0 // pred_region
    _
  $region32: #{pointnet_encoder.6} parent=0 // pred_fallthru
    _
  // Predicated region
  $region33: #{pointnet_encoder.6} parent=0 // pred_check
    _
  $region34: #{pointnet_encoder.6} parent=0 // pred_check_branch
    %203 = sbr.rel (0) target = $region36
  $region35: #{pointnet_encoder.6} parent=0 // pred_region
    _
  $region36: #{pointnet_encoder.6} parent=0 // pred_fallthru
    _
  // Predicated region
  $region37: #{pointnet_encoder.6} parent=0 // pred_check
    _
  $region38: #{pointnet_encoder.6} parent=0 // pred_check_branch
    %205 = sbr.rel (0) target = $region40
  $region39: #{pointnet_encoder.6} parent=0 // pred_region
    _
  $region40: #{pointnet_encoder.6} parent=0 // pred_fallthru
    _
  // Predicated region
  $region41: #{pointnet_encoder.6} parent=0 // pred_check
    _
  $region42: #{pointnet_encoder.6} parent=0 // pred_check_branch
    %207 = sbr.rel (0) target = $region44
  $region43: #{pointnet_encoder.6} parent=0 // pred_region
    _
  $region44: #{pointnet_encoder.6} parent=0 // pred_fallthru
    _

// kernel: pointnet_encoder.5
$region0: #{pointnet_encoder.5}
  #allocation0 [shape = 'u32[]', space=smem, size = 0x4, offset = 0x4, fixed_abs, tag = 'smem constant byte address 0x4 - core index']
  #allocation1 [shape = 'u32[144,128]{1,0:T(1,128)}', space=vmem, size = 0x12000, scoped, tag = 'internal scratch']
  %s0 = inlined_call_operand.vmem [shape: bf16[2,6,8192], index: 0, kind: input, shape index: {}]
  %s1 = inlined_call_operand.vmem [shape: bf16[8,6], index: 1, kind: input, shape index: {}]
  %s2 = inlined_call_operand.vmem [shape: f32[8,1], index: 2, kind: input, shape index: {}]
  %s3 = inlined_call_operand.vmem [shape: bf16[16,8], index: 3, kind: input, shape index: {}]
  %s4 = inlined_call_operand.vmem [shape: f32[16,1], index: 4, kind: input, shape index: {}]
  %s5 = inlined_call_operand.vmem [shape: bf16[2,16,256], index: 5, kind: output, shape index: {}]
  %s6 = sld [smem:[#allocation0]]
  $region53: #{pointnet_encoder.5} parent=0
    _
  %s8 = ssub.s32 1, %s6
  %s9 = scalar_select 0, %s8, %s6
  loop: start=0, step=1, limit=4
  $region2: #{pointnet_encoder.5} parent=0 // loop_pre_header
    _
  $region3: #{pointnet_encoder.5} parent=0 // loop_header
    %s11 = sphi 0, %s15
    %p12 = scmp.ge.s32.totalorder %s11, 4
    %s21 = sphi 0, %s23
    %s24 = sphi 0, %s21
    %s25 = sphi 0, %s24
    %s41 = sphi 0, %s25
    %s45 = sphi 0, %s45
    %s47 = sphi 0, %s45
    %s48 = sphi 0, %s47
    %s62 = sphi 0, %s48
    %s66 = sphi 0, %s66
    %s68 = sphi 0, %s66
    %s69 = sphi 0, %s68
    %s83 = sphi 0, %s69
    %s87 = sphi 0, %s87
    %s89 = sphi 0, %s87
    %s90 = sphi 0, %s89
    %s104 = sphi 0, %s90
    %s108 = sphi 0, %s108
    %s110 = sphi 0, %s108
    %s111 = sphi 0, %s110
    %s125 = sphi 0, %s111
    %s131 = sphi 0, %s133
    %s134 = sphi 0, %s131
    %s135 = sphi 0, %s134
    %s151 = sphi 0, %s135
  $region4: #{pointnet_encoder.5} parent=0 // loop_header_branch
    %14 = sbr.rel (%p12) target = $region8
  $region5: #{pointnet_encoder.5} parent=0 // loop_body
    %s16 = ssub.s32 %s11, 1
    %s17 = ssub.s32 %s11, 2
    %s18 = sadd.s32 %s11, 1
    %s19 = ssub.s32 %s11, %s18
    %p20 = scmp.eq.s32.totalorder %s19, 0
    %s22 = sadd.s32 %s21, 1
    %s23 = scalar_select %p20, %s21, %s22
    %p26 = pneg %p20
    %p27 = scmp.eq.s32.totalorder %s11, 1
    %p28 = por %p26, %p27
    %p29 = scmp.ne.s32.totalorder %s21, %s24
    %p30 = scmp.eq.s32.totalorder %s11, 0
    %p31 = por %p29, %p30
    %p32 = scmp.ne.s32.totalorder %s21, %s24
    %p33 = scmp.eq.s32.totalorder %s16, 1
    %p34 = por %p32, %p33
    %p35 = scmp.ne.s32.totalorder %s24, %s25
    %p36 = scmp.eq.s32.totalorder %s16, 0
    %p37 = por %p35, %p36
    %p38 = scmp.ne.s32.totalorder %s24, %s25
    %p39 = scmp.eq.s32.totalorder %s17, 1
    %p40 = por %p38, %p39
    %p42 = scmp.ne.s32.totalorder %s25, %s41
    %p43 = scmp.eq.s32.totalorder %s17, 0
    %p44 = por %p42, %p43
    %s46 = sadd.s32 %s45, 1
    %p49 = scmp.eq.s32.totalorder %s11, 1
    %p50 = scmp.ne.s32.totalorder %s45, %s47
    %p51 = scmp.eq.s32.totalorder %s11, 0
    %p52 = por %p50, %p51
    %p53 = scmp.ne.s32.totalorder %s45, %s47
    %p54 = scmp.eq.s32.totalorder %s16, 1
    %p55 = por %p53, %p54
    %p56 = scmp.ne.s32.totalorder %s47, %s48
    %p57 = scmp.eq.s32.totalorder %s16, 0
    %p58 = por %p56, %p57
    %p59 = scmp.ne.s32.totalorder %s47, %s48
    %p60 = scmp.eq.s32.totalorder %s17, 1
    %p61 = por %p59, %p60
    %p63 = scmp.ne.s32.totalorder %s48, %s62
    %p64 = scmp.eq.s32.totalorder %s17, 0
    %p65 = por %p63, %p64
    %s67 = sadd.s32 %s66, 1
    %p70 = scmp.eq.s32.totalorder %s11, 1
    %p71 = scmp.ne.s32.totalorder %s66, %s68
    %p72 = scmp.eq.s32.totalorder %s11, 0
    %p73 = por %p71, %p72
    %p74 = scmp.ne.s32.totalorder %s66, %s68
    %p75 = scmp.eq.s32.totalorder %s16, 1
    %p76 = por %p74, %p75
    %p77 = scmp.ne.s32.totalorder %s68, %s69
    %p78 = scmp.eq.s32.totalorder %s16, 0
    %p79 = por %p77, %p78
    %p80 = scmp.ne.s32.totalorder %s68, %s69
    %p81 = scmp.eq.s32.totalorder %s17, 1
    %p82 = por %p80, %p81
    %p84 = scmp.ne.s32.totalorder %s69, %s83
    %p85 = scmp.eq.s32.totalorder %s17, 0
    %p86 = por %p84, %p85
    %s88 = sadd.s32 %s87, 1
    %p91 = scmp.eq.s32.totalorder %s11, 1
    %p92 = scmp.ne.s32.totalorder %s87, %s89
    %p93 = scmp.eq.s32.totalorder %s11, 0
    %p94 = por %p92, %p93
    %p95 = scmp.ne.s32.totalorder %s87, %s89
    %p96 = scmp.eq.s32.totalorder %s16, 1
    %p97 = por %p95, %p96
    %p98 = scmp.ne.s32.totalorder %s89, %s90
    %p99 = scmp.eq.s32.totalorder %s16, 0
    %p100 = por %p98, %p99
    %p101 = scmp.ne.s32.totalorder %s89, %s90
    %p102 = scmp.eq.s32.totalorder %s17, 1
    %p103 = por %p101, %p102
    %p105 = scmp.ne.s32.totalorder %s90, %s104
    %p106 = scmp.eq.s32.totalorder %s17, 0
    %p107 = por %p105, %p106
    %s109 = sadd.s32 %s108, 1
    %p112 = scmp.eq.s32.totalorder %s11, 1
    %p113 = scmp.ne.s32.totalorder %s108, %s110
    %p114 = scmp.eq.s32.totalorder %s11, 0
    %p115 = por %p113, %p114
    %p116 = scmp.ne.s32.totalorder %s108, %s110
    %p117 = scmp.eq.s32.totalorder %s16, 1
    %p118 = por %p116, %p117
    %p119 = scmp.ne.s32.totalorder %s110, %s111
    %p120 = scmp.eq.s32.totalorder %s16, 0
    %p121 = por %p119, %p120
    %p122 = scmp.ne.s32.totalorder %s110, %s111
    %p123 = scmp.eq.s32.totalorder %s17, 1
    %p124 = por %p122, %p123
    %p126 = scmp.ne.s32.totalorder %s111, %s125
    %p127 = scmp.eq.s32.totalorder %s17, 0
    %p128 = por %p126, %p127
    %s129 = ssub.s32 %s11, %s18
    %p130 = scmp.eq.s32.totalorder %s129, 0
    %s132 = sadd.s32 %s131, 1
    %s133 = scalar_select %p130, %s131, %s132
    %p136 = pneg %p130
    %p137 = scmp.eq.s32.totalorder %s11, 1
    %p138 = por %p136, %p137
    %p139 = scmp.ne.s32.totalorder %s131, %s134
    %p140 = scmp.eq.s32.totalorder %s11, 0
    %p141 = por %p139, %p140
    %p142 = scmp.ne.s32.totalorder %s131, %s134
    %p143 = scmp.eq.s32.totalorder %s16, 1
    %p144 = por %p142, %p143
    %p145 = scmp.ne.s32.totalorder %s134, %s135
    %p146 = scmp.eq.s32.totalorder %s16, 0
    %p147 = por %p145, %p146
    %p148 = scmp.ne.s32.totalorder %s134, %s135
    %p149 = scmp.eq.s32.totalorder %s17, 1
    %p150 = por %p148, %p149
    %p152 = scmp.ne.s32.totalorder %s135, %s151
    %p153 = scmp.eq.s32.totalorder %s17, 0
    %p154 = por %p152, %p153
    %p155 = scmp.le.s32.totalorder 1, %s11
    %p156 = scmp.lt.s32.totalorder %s11, 3
    %p157 = pnand %p155, %p156
    %p158 = pneg %p157
    // Predicated region
    $region9: #{pointnet_encoder.5} parent=5 // pred_check
      _
    $region10: #{pointnet_encoder.5} parent=5 // pred_check_branch
      %160 = sbr.rel (%p157) target = $region12
    $region11: #{pointnet_encoder.5} parent=5 // pred_region
      %s161 = ssub.s32 %s11, 1
      // Predicated region
      $region13: #{pointnet_encoder.5} parent=11 // pred_check
        %p162 = pneg %p58
      $region14: #{pointnet_encoder.5} parent=11 // pred_check_branch
        %164 = sbr.rel (%p162) target = $region16
      $region15: #{pointnet_encoder.5} parent=11 // pred_region
        _
      $region16: #{pointnet_encoder.5} parent=11 // pred_fallthru
        _
      // Predicated region
      $region17: #{pointnet_encoder.5} parent=11 // pred_check
        %p165 = pneg %p79
      $region18: #{pointnet_encoder.5} parent=11 // pred_check_branch
        %167 = sbr.rel (%p165) target = $region20
      $region19: #{pointnet_encoder.5} parent=11 // pred_region
        _
      $region20: #{pointnet_encoder.5} parent=11 // pred_fallthru
        _
      // Predicated region
      $region21: #{pointnet_encoder.5} parent=11 // pred_check
        %p168 = pneg %p100
      $region22: #{pointnet_encoder.5} parent=11 // pred_check_branch
        %170 = sbr.rel (%p168) target = $region24
      $region23: #{pointnet_encoder.5} parent=11 // pred_region
        _
      $region24: #{pointnet_encoder.5} parent=11 // pred_fallthru
        _
      // Predicated region
      $region25: #{pointnet_encoder.5} parent=11 // pred_check
        %p171 = pneg %p121
      $region26: #{pointnet_encoder.5} parent=11 // pred_check_branch
        %173 = sbr.rel (%p171) target = $region28
      $region27: #{pointnet_encoder.5} parent=11 // pred_region
        _
      $region28: #{pointnet_encoder.5} parent=11 // pred_fallthru
        _
    $region12: #{pointnet_encoder.5} parent=5 // pred_fallthru
      _
    %p174 = scmp.lt.s32.totalorder %s11, 2
    // Predicated region
    $region29: #{pointnet_encoder.5} parent=5 // pred_check
      %p175 = pneg %p174
    $region30: #{pointnet_encoder.5} parent=5 // pred_check_branch
      %177 = sbr.rel (%p175) target = $region32
    $region31: #{pointnet_encoder.5} parent=5 // pred_region
      // Predicated region
      $region33: #{pointnet_encoder.5} parent=31 // pred_check
        %p178 = pneg %p31
      $region34: #{pointnet_encoder.5} parent=31 // pred_check_branch
        %180 = sbr.rel (%p178) target = $region36
      $region35: #{pointnet_encoder.5} parent=31 // pred_region
        %p181 = scmp.lt.s32.totalorder %s11, 1
        %s182 = scalar_select %p181, %s11, 1
        %s183 = smul.addr %s182, 64
        %s184 = smul.addr %s183, 4
        %s185 = scalar_lea.vmem %s0, %s184
      $region36: #{pointnet_encoder.5} parent=31 // pred_fallthru
        _
    $region32: #{pointnet_encoder.5} parent=5 // pred_fallthru
      _
    %p186 = scmp.le.s32.totalorder 1, %s11
    %p187 = scmp.lt.s32.totalorder %s11, 3
    %p188 = pnand %p186, %p187
    %p189 = pneg %p188
    // Predicated region
    $region37: #{pointnet_encoder.5} parent=5 // pred_check
      _
    $region38: #{pointnet_encoder.5} parent=5 // pred_check_branch
      %191 = sbr.rel (%p188) target = $region40
    $region39: #{pointnet_encoder.5} parent=5 // pred_region
      %s192 = ssub.s32 %s11, 1
      %p193 = scmp.lt.s32.totalorder %s16, 1
      %s194 = scalar_select %p193, %s16, 1
      %s195 = smul.addr %s194, 64
      %s196 = smul.addr %s195, 4
      %s197 = scalar_lea.vmem %s0, %s196
      %p198 = pneg %p37
      %p199 = pneg %p34
      %p200 = pneg %p58
      %p201 = pneg %p55
      %p202 = pneg %p79
      %p203 = pneg %p76
      %p204 = pneg %p100
      %p205 = pneg %p97
      %p206 = pneg %p121
      %p207 = pneg %p118
      %p208 = pneg %p147
      %p209 = pneg %p144
      %p210 = scmp.lt.s32.totalorder %s16, 1
      %s211 = scalar_select %p210, %s16, 1
      %s212 = smul.addr %s211, 4
      %s213 = smul.addr %s212, 4
      %s214 = scalar_lea.vmem %s5, %s213
      %p215 = scmp.lt.s32.totalorder %s16, 1
      %s216 = scalar_select %p215, %s16, 1
      %s217 = smul.addr %s216, 64
      %s218 = smul.addr %s217, 4
      %s219 = scalar_lea.vmem %s0, %s218
      %p220 = scmp.lt.s32.totalorder %s16, 1
      %s221 = scalar_select %p220, %s16, 1
      %s222 = smul.addr %s221, 4
      %s223 = smul.addr %s222, 4
      %s224 = scalar_lea.vmem %s5, %s223
      %v226 = vld [vmem:[%s219] sm:$0x77]
      %v227 = vld [vmem:[%s219 + $0x8] sm:$0x77]
      %v228 = vld [vmem:[%s219 + $0x10] sm:$0x77]
      %v229 = vld [vmem:[%s219 + $0x18] sm:$0x77]
      %v230 = vld [vmem:[%s219 + $0x20] sm:$0x77]
      %v231 = vld [vmem:[%s219 + $0x28] sm:$0x77]
      %v232 = vld [vmem:[%s219 + $0x30] sm:$0x77]
      %v233 = vld [vmem:[%s219 + $0x38] sm:$0x77]
      %v234 = vld [vmem:[%s219 + $0x40] sm:$0x77]
      %v235 = vld [vmem:[%s219 + $0x48] sm:$0x77]
      %v236 = vld [vmem:[%s219 + $0x50] sm:$0x77]
      %v237 = vld [vmem:[%s219 + $0x58] sm:$0x77]
      %v238 = vld [vmem:[%s219 + $0x60] sm:$0x77]
      %v239 = vld [vmem:[%s219 + $0x68] sm:$0x77]
      %v240 = vld [vmem:[%s219 + $0x70] sm:$0x77]
      %v241 = vld [vmem:[%s219 + $0x78] sm:$0x77]
      %v242 = vld [vmem:[%s219 + $0x80] sm:$0x77]
      %v243 = vld [vmem:[%s219 + $0x88] sm:$0x77]
      %v244 = vld [vmem:[%s219 + $0x90] sm:$0x77]
      %v245 = vld [vmem:[%s219 + $0x98] sm:$0x77]
      %v246 = vld [vmem:[%s219 + $0xa0] sm:$0x77]
      %v247 = vld [vmem:[%s219 + $0xa8] sm:$0x77]
      %v248 = vld [vmem:[%s219 + $0xb0] sm:$0x77]
      %v249 = vld [vmem:[%s219 + $0xb8] sm:$0x77]
      %v250 = vld [vmem:[%s219 + $0xc0] sm:$0x77]
      %v251 = vld [vmem:[%s219 + $0xc8] sm:$0x77]
      %v252 = vld [vmem:[%s219 + $0xd0] sm:$0x77]
      %v253 = vld [vmem:[%s219 + $0xd8] sm:$0x77]
      %v254 = vld [vmem:[%s219 + $0xe0] sm:$0x77]
      %v255 = vld [vmem:[%s219 + $0xe8] sm:$0x77]
      %v256 = vld [vmem:[%s219 + $0xf0] sm:$0x77]
      %v257 = vld [vmem:[%s219 + $0xf8] sm:$0x77]
      %v258 = vld [vmem:[%s1] sm:$0xf]
      %v259 = vld [vmem:[%s2] sm:$0xff]
      %261 = vset.pattern.permute.xlu0 0
      %262 = vperm.xlu0 %261, %v259
      %v263 = vpop.permute.xlu0 %262
      %v297 = vunpack.c.l.b16 %v226
      %v298 = vunpack.c.h.b16 %v226
      %v299 = vunpack.c.l.b16 %v227
      %v300 = vunpack.c.h.b16 %v227
      %v301 = vunpack.c.l.b16 %v228
      %v302 = vunpack.c.h.b16 %v228
      %v303 = vunpack.c.l.b16 %v229
      %v304 = vunpack.c.h.b16 %v229
      %v305 = vunpack.c.l.b16 %v230
      %v306 = vunpack.c.h.b16 %v230
      %v307 = vunpack.c.l.b16 %v231
      %v308 = vunpack.c.h.b16 %v231
      %v309 = vunpack.c.l.b16 %v232
      %v310 = vunpack.c.h.b16 %v232
      %v311 = vunpack.c.l.b16 %v233
      %v312 = vunpack.c.h.b16 %v233
      %v313 = vunpack.c.l.b16 %v234
      %v314 = vunpack.c.h.b16 %v234
      %v315 = vunpack.c.l.b16 %v235
      %v316 = vunpack.c.h.b16 %v235
      %v317 = vunpack.c.l.b16 %v236
      %v318 = vunpack.c.h.b16 %v236
      %v319 = vunpack.c.l.b16 %v237
      %v320 = vunpack.c.h.b16 %v237
      %v321 = vunpack.c.l.b16 %v238
      %v322 = vunpack.c.h.b16 %v238
      %v323 = vunpack.c.l.b16 %v239
      %v324 = vunpack.c.h.b16 %v239
      %v325 = vunpack.c.l.b16 %v240
      %v326 = vunpack.c.h.b16 %v240
      %v327 = vunpack.c.l.b16 %v241
      %v328 = vunpack.c.h.b16 %v241
      %v329 = vunpack.c.l.b16 %v242
      %v330 = vunpack.c.h.b16 %v242
      %v331 = vunpack.c.l.b16 %v243
      %v332 = vunpack.c.h.b16 %v243
      %v333 = vunpack.c.l.b16 %v244
      %v334 = vunpack.c.h.b16 %v244
      %v335 = vunpack.c.l.b16 %v245
      %v336 = vunpack.c.h.b16 %v245
      %v337 = vunpack.c.l.b16 %v246
      %v338 = vunpack.c.h.b16 %v246
      %v339 = vunpack.c.l.b16 %v247
      %v340 = vunpack.c.h.b16 %v247
      %v341 = vunpack.c.l.b16 %v248
      %v342 = vunpack.c.h.b16 %v248
      %v343 = vunpack.c.l.b16 %v249
      %v344 = vunpack.c.h.b16 %v249
      %v345 = vunpack.c.l.b16 %v250
      %v346 = vunpack.c.h.b16 %v250
      %v347 = vunpack.c.l.b16 %v251
      %v348 = vunpack.c.h.b16 %v251
      %v349 = vunpack.c.l.b16 %v252
      %v350 = vunpack.c.h.b16 %v252
      %v351 = vunpack.c.l.b16 %v253
      %v352 = vunpack.c.h.b16 %v253
      %v353 = vunpack.c.l.b16 %v254
      %v354 = vunpack.c.h.b16 %v254
      %v355 = vunpack.c.l.b16 %v255
      %v356 = vunpack.c.h.b16 %v255
      %v357 = vunpack.c.l.b16 %v256
      %v358 = vunpack.c.h.b16 %v256
      %v359 = vunpack.c.l.b16 %v257
      %v360 = vunpack.c.h.b16 %v257
      %v361 = vpack.c.b16 %v297, %v297
      %v362 = vpack.c.b16 %v298, %v298
      %v363 = vpack.c.b16 %v299, %v299
      %v364 = vpack.c.b16 %v300, %v300
      %v365 = vpack.c.b16 %v301, %v301
      %v366 = vpack.c.b16 %v302, %v302
      %v367 = vpack.c.b16 %v303, %v303
      %v368 = vpack.c.b16 %v304, %v304
      %v369 = vpack.c.b16 %v305, %v305
      %v370 = vpack.c.b16 %v306, %v306
      %v371 = vpack.c.b16 %v307, %v307
      %v372 = vpack.c.b16 %v308, %v308
      %v373 = vpack.c.b16 %v309, %v309
      %v374 = vpack.c.b16 %v310, %v310
      %v375 = vpack.c.b16 %v311, %v311
      %v376 = vpack.c.b16 %v312, %v312
      %v377 = vpack.c.b16 %v313, %v313
      %v378 = vpack.c.b16 %v314, %v314
      %v379 = vpack.c.b16 %v315, %v315
      %v380 = vpack.c.b16 %v316, %v316
      %v381 = vpack.c.b16 %v317, %v317
      %v382 = vpack.c.b16 %v318, %v318
      %v383 = vpack.c.b16 %v319, %v319
      %v384 = vpack.c.b16 %v320, %v320
      %v385 = vpack.c.b16 %v321, %v321
      %v386 = vpack.c.b16 %v322, %v322
      %v387 = vpack.c.b16 %v323, %v323
      %v388 = vpack.c.b16 %v324, %v324
      %v389 = vpack.c.b16 %v325, %v325
      %v390 = vpack.c.b16 %v326, %v326
      %v391 = vpack.c.b16 %v327, %v327
      %v392 = vpack.c.b16 %v328, %v328
      %v393 = vpack.c.b16 %v329, %v329
      %v394 = vpack.c.b16 %v330, %v330
      %v395 = vpack.c.b16 %v331, %v331
      %v396 = vpack.c.b16 %v332, %v332
      %v397 = vpack.c.b16 %v333, %v333
      %v398 = vpack.c.b16 %v334, %v334
      %v399 = vpack.c.b16 %v335, %v335
      %v400 = vpack.c.b16 %v336, %v336
      %v401 = vpack.c.b16 %v337, %v337
      %v402 = vpack.c.b16 %v338, %v338
      %v403 = vpack.c.b16 %v339, %v339
      %v404 = vpack.c.b16 %v340, %v340
      %v405 = vpack.c.b16 %v341, %v341
      %v406 = vpack.c.b16 %v342, %v342
      %v407 = vpack.c.b16 %v343, %v343
      %v408 = vpack.c.b16 %v344, %v344
      %v409 = vpack.c.b16 %v345, %v345
      %v410 = vpack.c.b16 %v346, %v346
      %v411 = vpack.c.b16 %v347, %v347
      %v412 = vpack.c.b16 %v348, %v348
      %v413 = vpack.c.b16 %v349, %v349
      %v414 = vpack.c.b16 %v350, %v350
      %v415 = vpack.c.b16 %v351, %v351
      %v416 = vpack.c.b16 %v352, %v352
      %v417 = vpack.c.b16 %v353, %v353
      %v418 = vpack.c.b16 %v354, %v354
      %v419 = vpack.c.b16 %v355, %v355
      %v420 = vpack.c.b16 %v356, %v356
      %v421 = vpack.c.b16 %v357, %v357
      %v422 = vpack.c.b16 %v358, %v358
      %v423 = vpack.c.b16 %v359, %v359
      %v424 = vpack.c.b16 %v360, %v360
      %vm425 = vcmask 48128
      %v427 = vsel %vm425, %v258, 0
      %vm429 = vcmask 1042432
      %v431 = vsel %vm429, %v361, 0
      %v434 = vsel %vm429, %v362, 0
      %v437 = vsel %vm429, %v363, 0
      %v440 = vsel %vm429, %v364, 0
      %v443 = vsel %vm429, %v365, 0
      %v446 = vsel %vm429, %v366, 0
      %v449 = vsel %vm429, %v367, 0
      %v452 = vsel %vm429, %v368, 0
      %v455 = vsel %vm429, %v369, 0
      %v458 = vsel %vm429, %v370, 0
      %v461 = vsel %vm429, %v371, 0
      %v464 = vsel %vm429, %v372, 0
      %v467 = vsel %vm429, %v373, 0
      %v470 = vsel %vm429, %v374, 0
      %v473 = vsel %vm429, %v375, 0
      %v476 = vsel %vm429, %v376, 0
      %v479 = vsel %vm429, %v377, 0
      %v482 = vsel %vm429, %v378, 0
      %v485 = vsel %vm429, %v379, 0
      %v488 = vsel %vm429, %v380, 0
      %v491 = vsel %vm429, %v381, 0
      %v494 = vsel %vm429, %v382, 0
      %v497 = vsel %vm429, %v383, 0
      %v500 = vsel %vm429, %v384, 0
      %v503 = vsel %vm429, %v385, 0
      %v506 = vsel %vm429, %v386, 0
      %v509 = vsel %vm429, %v387, 0
      %v512 = vsel %vm429, %v388, 0
      %v515 = vsel %vm429, %v389, 0
      %v518 = vsel %vm429, %v390, 0
      %v521 = vsel %vm429, %v391, 0
      %v524 = vsel %vm429, %v392, 0
      %v527 = vsel %vm429, %v393, 0
      %v530 = vsel %vm429, %v394, 0
      %v533 = vsel %vm429, %v395, 0
      %v536 = vsel %vm429, %v396, 0
      %v539 = vsel %vm429, %v397, 0
      %v542 = vsel %vm429, %v398, 0
      %v545 = vsel %vm429, %v399, 0
      %v548 = vsel %vm429, %v400, 0
      %v551 = vsel %vm429, %v401, 0
      %v554 = vsel %vm429, %v402, 0
      %v557 = vsel %vm429, %v403, 0
      %v560 = vsel %vm429, %v404, 0
      %v563 = vsel %vm429, %v405, 0
      %v566 = vsel %vm429, %v406, 0
      %v569 = vsel %vm429, %v407, 0
      %v572 = vsel %vm429, %v408, 0
      %v575 = vsel %vm429, %v409, 0
      %v578 = vsel %vm429, %v410, 0
      %v581 = vsel %vm429, %v411, 0
      %v584 = vsel %vm429, %v412, 0
      %v587 = vsel %vm429, %v413, 0
      %v590 = vsel %vm429, %v414, 0
      %v593 = vsel %vm429, %v415, 0
      %v596 = vsel %vm429, %v416, 0
      %v599 = vsel %vm429, %v417, 0
      %v602 = vsel %vm429, %v418, 0
      %v605 = vsel %vm429, %v419, 0
      %v608 = vsel %vm429, %v420, 0
      %v611 = vsel %vm429, %v421, 0
      %v614 = vsel %vm429, %v422, 0
      %v617 = vsel %vm429, %v423, 0
      %v620 = vsel %vm429, %v424, 0
      %622 = vmatprep.subr.bf16.mxu0 %v434
      %623 = vmatpush1.bf16.msra.mxu0 %v431
      %624 = vmatprep.subr.bf16.mxu0 0
      %625 = vmatpush1.bf16.msra.mxu0 0
      %626 = vmatprep.subr.bf16.mxu0 0
      %627 = vmatpush1.bf16.msra.mxu0 0
      %628 = vmatprep.subr.bf16.mxu0 0
      %629 = vmatpush1.bf16.msra.mxu0 0
      %630 = vmatprep.subr.bf16.mxu0 0
      %631 = vmatpush1.bf16.msra.mxu0 0
      %632 = vmatprep.subr.bf16.mxu0 0
      %633 = vmatpush1.bf16.msra.mxu0 0
      %634 = vmatprep.subr.bf16.mxu0 0
      %635 = vmatpush1.bf16.msra.mxu0 0
      %636 = vmatprep.subr.bf16.mxu0 0
      %637 = vmatpush1.bf16.msra.mxu0 0
      %638 = vmatprep.subr.bf16.mxu0 0
      %639 = vmatpush1.bf16.msra.mxu0 0
      %640 = vmatprep.subr.bf16.mxu0 0
      %641 = vmatpush1.bf16.msra.mxu0 0
      %642 = vmatprep.subr.bf16.mxu0 0
      %643 = vmatpush1.bf16.msra.mxu0 0
      %644 = vmatprep.subr.bf16.mxu0 0
      %645 = vmatpush1.bf16.msra.mxu0 0
      %646 = vmatprep.subr.bf16.mxu0 0
      %647 = vmatpush1.bf16.msra.mxu0 0
      %648 = vmatprep.subr.bf16.mxu0 0
      %649 = vmatpush1.bf16.msra.mxu0 0
      %650 = vmatprep.subr.bf16.mxu0 0
      %651 = vmatpush1.bf16.msra.mxu0 0
      %652 = vmatprep.subr.bf16.mxu0 0
      %653 = vmatpush1.bf16.msra.mxu0 0
      %654 = vmatprep.mubr.bf16.mxu0 0
      %655 = vmatmul.mubr.bf16.gmra.mrb[0].mxu0 %v427
      %v656 = vpop.f32.mrb[0].mxu0
      %v657 = vadd.f32 %v263, %v656
      %v658 = vpop.f32.mrb[0].mxu0
      %v659 = vadd.f32 %v263, %v658
      %v660 = vpop.f32.mrb[0].mxu0
      %v661 = vpop.f32.mrb[0].mxu0
      %662 = vdwg.mxu0
      %663 = vmatprep.subr.bf16.mxu0 %v440
      %664 = vmatpush1.bf16.msra.mxu0 %v437
      %665 = vmatprep.subr.bf16.mxu0 0
      %666 = vmatpush1.bf16.msra.mxu0 0
      %667 = vmatprep.subr.bf16.mxu0 0
      %668 = vmatpush1.bf16.msra.mxu0 0
      %669 = vmatprep.subr.bf16.mxu0 0
      %670 = vmatpush1.bf16.msra.mxu0 0
      %671 = vmatprep.subr.bf16.mxu0 0
      %672 = vmatpush1.bf16.msra.mxu0 0
      %673 = vmatprep.subr.bf16.mxu0 0
      %674 = vmatpush1.bf16.msra.mxu0 0
      %675 = vmatprep.subr.bf16.mxu0 0
      %676 = vmatpush1.bf16.msra.mxu0 0
      %677 = vmatprep.subr.bf16.mxu0 0
      %678 = vmatpush1.bf16.msra.mxu0 0
      %679 = vmatprep.subr.bf16.mxu0 0
      %680 = vmatpush1.bf16.msra.mxu0 0
      %681 = vmatprep.subr.bf16.mxu0 0
      %682 = vmatpush1.bf16.msra.mxu0 0
      %683 = vmatprep.subr.bf16.mxu0 0
      %684 = vmatpush1.bf16.msra.mxu0 0
      %685 = vmatprep.subr.bf16.mxu0 0
      %686 = vmatpush1.bf16.msra.mxu0 0
      %687 = vmatprep.subr.bf16.mxu0 0
      %688 = vmatpush1.bf16.msra.mxu0 0
      %689 = vmatprep.subr.bf16.mxu0 0
      %690 = vmatpush1.bf16.msra.mxu0 0
      %691 = vmatprep.subr.bf16.mxu0 0
      %692 = vmatpush1.bf16.msra.mxu0 0
      %693 = vmatprep.subr.bf16.mxu0 0
      %694 = vmatpush1.bf16.msra.mxu0 0
      %695 = vmatprep.mubr.bf16.mxu0 0
      %696 = vmatmul.mubr.bf16.gmra.mrb[0].mxu0 %v427
      %v697 = vpop.f32.mrb[0].mxu0
      %v698 = vadd.f32 %v263, %v697
      %v699 = vpop.f32.mrb[0].mxu0
      %v700 = vadd.f32 %v263, %v699
      %v701 = vpop.f32.mrb[0].mxu0
      %v702 = vpop.f32.mrb[0].mxu0
      %703 = vdwg.mxu0
      %704 = vmatprep.subr.bf16.mxu0 %v446
      %705 = vmatpush1.bf16.msra.mxu0 %v443
      %706 = vmatprep.subr.bf16.mxu0 0
      %707 = vmatpush1.bf16.msra.mxu0 0
      %708 = vmatprep.subr.bf16.mxu0 0
      %709 = vmatpush1.bf16.msra.mxu0 0
      %710 = vmatprep.subr.bf16.mxu0 0
      %711 = vmatpush1.bf16.msra.mxu0 0
      %712 = vmatprep.subr.bf16.mxu0 0
      %713 = vmatpush1.bf16.msra.mxu0 0
      %714 = vmatprep.subr.bf16.mxu0 0
      %715 = vmatpush1.bf16.msra.mxu0 0
      %716 = vmatprep.subr.bf16.mxu0 0
      %717 = vmatpush1.bf16.msra.mxu0 0
      %718 = vmatprep.subr.bf16.mxu0 0
      %719 = vmatpush1.bf16.msra.mxu0 0
      %720 = vmatprep.subr.bf16.mxu0 0
      %721 = vmatpush1.bf16.msra.mxu0 0
      %722 = vmatprep.subr.bf16.mxu0 0
      %723 = vmatpush1.bf16.msra.mxu0 0
      %724 = vmatprep.subr.bf16.mxu0 0
      %725 = vmatpush1.bf16.msra.mxu0 0
      %726 = vmatprep.subr.bf16.mxu0 0
      %727 = vmatpush1.bf16.msra.mxu0 0
      %728 = vmatprep.subr.bf16.mxu0 0
      %729 = vmatpush1.bf16.msra.mxu0 0
      %730 = vmatprep.subr.bf16.mxu0 0
      %731 = vmatpush1.bf16.msra.mxu0 0
      %732 = vmatprep.subr.bf16.mxu0 0
      %733 = vmatpush1.bf16.msra.mxu0 0
      %734 = vmatprep.subr.bf16.mxu0 0
      %735 = vmatpush1.bf16.msra.mxu0 0
      %736 = vmatprep.mubr.bf16.mxu0 0
      %737 = vmatmul.mubr.bf16.gmra.mrb[0].mxu0 %v427
      %v738 = vpop.f32.mrb[0].mxu0
      %v739 = vadd.f32 %v263, %v738
      %v740 = vpop.f32.mrb[0].mxu0
      %v741 = vadd.f32 %v263, %v740
      %v742 = vpop.f32.mrb[0].mxu0
      %v743 = vpop.f32.mrb[0].mxu0
      %744 = vdwg.mxu0
      %745 = vmatprep.subr.bf16.mxu0 %v452
      %746 = vmatpush1.bf16.msra.mxu0 %v449
      %747 = vmatprep.subr.bf16.mxu0 0
      %748 = vmatpush1.bf16.msra.mxu0 0
      %749 = vmatprep.subr.bf16.mxu0 0
      %750 = vmatpush1.bf16.msra.mxu0 0
      %751 = vmatprep.subr.bf16.mxu0 0
      %752 = vmatpush1.bf16.msra.mxu0 0
      %753 = vmatprep.subr.bf16.mxu0 0
      %754 = vmatpush1.bf16.msra.mxu0 0
      %755 = vmatprep.subr.bf16.mxu0 0
      %756 = vmatpush1.bf16.msra.mxu0 0
      %757 = vmatprep.subr.bf16.mxu0 0
      %758 = vmatpush1.bf16.msra.mxu0 0
      %759 = vmatprep.subr.bf16.mxu0 0
      %760 = vmatpush1.bf16.msra.mxu0 0
      %761 = vmatprep.subr.bf16.mxu0 0
      %762 = vmatpush1.bf16.msra.mxu0 0
      %763 = vmatprep.subr.bf16.mxu0 0
      %764 = vmatpush1.bf16.msra.mxu0 0
      %765 = vmatprep.subr.bf16.mxu0 0
      %766 = vmatpush1.bf16.msra.mxu0 0
      %767 = vmatprep.subr.bf16.mxu0 0
      %768 = vmatpush1.bf16.msra.mxu0 0
      %769 = vmatprep.subr.bf16.mxu0 0
      %770 = vmatpush1.bf16.msra.mxu0 0
      %771 = vmatprep.subr.bf16.mxu0 0
      %772 = vmatpush1.bf16.msra.mxu0 0
      %773 = vmatprep.subr.bf16.mxu0 0
      %774 = vmatpush1.bf16.msra.mxu0 0
      %775 = vmatprep.subr.bf16.mxu0 0
      %776 = vmatpush1.bf16.msra.mxu0 0
      %777 = vmatprep.mubr.bf16.mxu0 0
      %778 = vmatmul.mubr.bf16.gmra.mrb[0].mxu0 %v427
      %v779 = vpop.f32.mrb[0].mxu0
      %v780 = vadd.f32 %v263, %v779
      %v781 = vpop.f32.mrb[0].mxu0
      %v782 = vadd.f32 %v263, %v781
      %v783 = vpop.f32.mrb[0].mxu0
      %v784 = vpop.f32.mrb[0].mxu0
      %785 = vdwg.mxu0
      %786 = vmatprep.subr.bf16.mxu0 %v458
      %787 = vmatpush1.bf16.msra.mxu0 %v455
      %788 = vmatprep.subr.bf16.mxu0 0
      %789 = vmatpush1.bf16.msra.mxu0 0
      %790 = vmatprep.subr.bf16.mxu0 0
      %791 = vmatpush1.bf16.msra.mxu0 0
      %792 = vmatprep.subr.bf16.mxu0 0
      %793 = vmatpush1.bf16.msra.mxu0 0
      %794 = vmatprep.subr.bf16.mxu0 0
      %795 = vmatpush1.bf16.msra.mxu0 0
      %796 = vmatprep.subr.bf16.mxu0 0
      %797 = vmatpush1.bf16.msra.mxu0 0
      %798 = vmatprep.subr.bf16.mxu0 0
      %799 = vmatpush1.bf16.msra.mxu0 0
      %800 = vmatprep.subr.bf16.mxu0 0
      %801 = vmatpush1.bf16.msra.mxu0 0
      %802 = vmatprep.subr.bf16.mxu0 0
      %803 = vmatpush1.bf16.msra.mxu0 0
      %804 = vmatprep.subr.bf16.mxu0 0
      %805 = vmatpush1.bf16.msra.mxu0 0
      %806 = vmatprep.subr.bf16.mxu0 0
      %807 = vmatpush1.bf16.msra.mxu0 0
      %808 = vmatprep.subr.bf16.mxu0 0
      %809 = vmatpush1.bf16.msra.mxu0 0
      %810 = vmatprep.subr.bf16.mxu0 0
      %811 = vmatpush1.bf16.msra.mxu0 0
      %812 = vmatprep.subr.bf16.mxu0 0
      %813 = vmatpush1.bf16.msra.mxu0 0
      %814 = vmatprep.subr.bf16.mxu0 0
      %815 = vmatpush1.bf16.msra.mxu0 0
      %816 = vmatprep.subr.bf16.mxu0 0
      %817 = vmatpush1.bf16.msra.mxu0 0
      %818 = vmatprep.mubr.bf16.mxu0 0
      %819 = vmatmul.mubr.bf16.gmra.mrb[0].mxu0 %v427
      %v820 = vpop.f32.mrb[0].mxu0
      %v821 = vadd.f32 %v263, %v820
      %v822 = vpop.f32.mrb[0].mxu0
      %v823 = vadd.f32 %v263, %v822
      %v824 = vpop.f32.mrb[0].mxu0
      %v825 = vpop.f32.mrb[0].mxu0
      %826 = vdwg.mxu0
      %827 = vmatprep.subr.bf16.mxu0 %v464
      %828 = vmatpush1.bf16.msra.mxu0 %v461
      %829 = vmatprep.subr.bf16.mxu0 0
      %830 = vmatpush1.bf16.msra.mxu0 0
      %831 = vmatprep.subr.bf16.mxu0 0
      %832 = vmatpush1.bf16.msra.mxu0 0
      %833 = vmatprep.subr.bf16.mxu0 0
      %834 = vmatpush1.bf16.msra.mxu0 0
      %835 = vmatprep.subr.bf16.mxu0 0
      %836 = vmatpush1.bf16.msra.mxu0 0
      %837 = vmatprep.subr.bf16.mxu0 0
      %838 = vmatpush1.bf16.msra.mxu0 0
      %839 = vmatprep.subr.bf16.mxu0 0
      %840 = vmatpush1.bf16.msra.mxu0 0
      %841 = vmatprep.subr.bf16.mxu0 0
      %842 = vmatpush1.bf16.msra.mxu0 0
      %843 = vmatprep.subr.bf16.mxu0 0
      %844 = vmatpush1.bf16.msra.mxu0 0
      %845 = vmatprep.subr.bf16.mxu0 0
      %846 = vmatpush1.bf16.msra.mxu0 0
      %847 = vmatprep.subr.bf16.mxu0 0
      %848 = vmatpush1.bf16.msra.mxu0 0
      %849 = vmatprep.subr.bf16.mxu0 0
      %850 = vmatpush1.bf16.msra.mxu0 0
      %851 = vmatprep.subr.bf16.mxu0 0
      %852 = vmatpush1.bf16.msra.mxu0 0
      %853 = vmatprep.subr.bf16.mxu0 0
      %854 = vmatpush1.bf16.msra.mxu0 0
      %855 = vmatprep.subr.bf16.mxu0 0
      %856 = vmatpush1.bf16.msra.mxu0 0
      %857 = vmatprep.subr.bf16.mxu0 0
      %858 = vmatpush1.bf16.msra.mxu0 0
      %859 = vmatprep.mubr.bf16.mxu0 0
      %860 = vmatmul.mubr.bf16.gmra.mrb[0].mxu0 %v427
      %v861 = vpop.f32.mrb[0].mxu0
      %v862 = vadd.f32 %v263, %v861
      %v863 = vpop.f32.mrb[0].mxu0
      %v864 = vadd.f32 %v263, %v863
      %v865 = vpop.f32.mrb[0].mxu0
      %v866 = vpop.f32.mrb[0].mxu0
      %867 = vdwg.mxu0
      %868 = vmatprep.subr.bf16.mxu0 %v470
      %869 = vmatpush1.bf16.msra.mxu0 %v467
      %870 = vmatprep.subr.bf16.mxu0 0
      %871 = vmatpush1.bf16.msra.mxu0 0
      %872 = vmatprep.subr.bf16.mxu0 0
      %873 = vmatpush1.bf16.msra.mxu0 0
      %874 = vmatprep.subr.bf16.mxu0 0
      %875 = vmatpush1.bf16.msra.mxu0 0
      %876 = vmatprep.subr.bf16.mxu0 0
      %877 = vmatpush1.bf16.msra.mxu0 0
      %878 = vmatprep.subr.bf16.mxu0 0
      %879 = vmatpush1.bf16.msra.mxu0 0
      %880 = vmatprep.subr.bf16.mxu0 0
      %881 = vmatpush1.bf16.msra.mxu0 0
      %882 = vmatprep.subr.bf16.mxu0 0
      %883 = vmatpush1.bf16.msra.mxu0 0
      %884 = vmatprep.subr.bf16.mxu0 0
      %885 = vmatpush1.bf16.msra.mxu0 0
      %886 = vmatprep.subr.bf16.mxu0 0
      %887 = vmatpush1.bf16.msra.mxu0 0
      %888 = vmatprep.subr.bf16.mxu0 0
      %889 = vmatpush1.bf16.msra.mxu0 0
      %890 = vmatprep.subr.bf16.mxu0 0
      %891 = vmatpush1.bf16.msra.mxu0 0
      %892 = vmatprep.subr.bf16.mxu0 0
      %893 = vmatpush1.bf16.msra.mxu0 0
      %894 = vmatprep.subr.bf16.mxu0 0
      %895 = vmatpush1.bf16.msra.mxu0 0
      %896 = vmatprep.subr.bf16.mxu0 0
      %897 = vmatpush1.bf16.msra.mxu0 0
      %898 = vmatprep.subr.bf16.mxu0 0
      %899 = vmatpush1.bf16.msra.mxu0 0
      %900 = vmatprep.mubr.bf16.mxu0 0
      %901 = vmatmul.mubr.bf16.gmra.mrb[0].mxu0 %v427
      %v902 = vpop.f32.mrb[0].mxu0
      %v903 = vadd.f32 %v263, %v902
      %v904 = vpop.f32.mrb[0].mxu0
      %v905 = vadd.f32 %v263, %v904
      %v906 = vpop.f32.mrb[0].mxu0
      %v907 = vpop.f32.mrb[0].mxu0
      %908 = vdwg.mxu0
      %909 = vmatprep.subr.bf16.mxu0 %v476
      %910 = vmatpush1.bf16.msra.mxu0 %v473
      %911 = vmatprep.subr.bf16.mxu0 0
      %912 = vmatpush1.bf16.msra.mxu0 0
      %913 = vmatprep.subr.bf16.mxu0 0
      %914 = vmatpush1.bf16.msra.mxu0 0
      %915 = vmatprep.subr.bf16.mxu0 0
      %916 = vmatpush1.bf16.msra.mxu0 0
      %917 = vmatprep.subr.bf16.mxu0 0
      %918 = vmatpush1.bf16.msra.mxu0 0
      %919 = vmatprep.subr.bf16.mxu0 0
      %920 = vmatpush1.bf16.msra.mxu0 0
      %921 = vmatprep.subr.bf16.mxu0 0
      %922 = vmatpush1.bf16.msra.mxu0 0
      %923 = vmatprep.subr.bf16.mxu0 0
      %924 = vmatpush1.bf16.msra.mxu0 0
      %925 = vmatprep.subr.bf16.mxu0 0
      %926 = vmatpush1.bf16.msra.mxu0 0
      %927 = vmatprep.subr.bf16.mxu0 0
      %928 = vmatpush1.bf16.msra.mxu0 0
      %929 = vmatprep.subr.bf16.mxu0 0
      %930 = vmatpush1.bf16.msra.mxu0 0
      %931 = vmatprep.subr.bf16.mxu0 0
      %932 = vmatpush1.bf16.msra.mxu0 0
      %933 = vmatprep.subr.bf16.mxu0 0
      %934 = vmatpush1.bf16.msra.mxu0 0
      %935 = vmatprep.subr.bf16.mxu0 0
      %936 = vmatpush1.bf16.msra.mxu0 0
      %937 = vmatprep.subr.bf16.mxu0 0
      %938 = vmatpush1.bf16.msra.mxu0 0
      %939 = vmatprep.subr.bf16.mxu0 0
      %940 = vmatpush1.bf16.msra.mxu0 0
      %941 = vmatprep.mubr.bf16.mxu0 0
      %942 = vmatmul.mubr.bf16.gmra.mrb[0].mxu0 %v427
      %v943 = vpop.f32.mrb[0].mxu0
      %v944 = vadd.f32 %v263, %v943
      %v945 = vpop.f32.mrb[0].mxu0
      %v946 = vadd.f32 %v263, %v945
      %v947 = vpop.f32.mrb[0].mxu0
      %v948 = vpop.f32.mrb[0].mxu0
      %949 = vdwg.mxu0
      %950 = vmatprep.subr.bf16.mxu0 %v482
      %951 = vmatpush1.bf16.msra.mxu0 %v479
      %952 = vmatprep.subr.bf16.mxu0 0
      %953 = vmatpush1.bf16.msra.mxu0 0
      %954 = vmatprep.subr.bf16.mxu0 0
      %955 = vmatpush1.bf16.msra.mxu0 0
      %956 = vmatprep.subr.bf16.mxu0 0
      %957 = vmatpush1.bf16.msra.mxu0 0
      %958 = vmatprep.subr.bf16.mxu0 0
      %959 = vmatpush1.bf16.msra.mxu0 0
      %960 = vmatprep.subr.bf16.mxu0 0
      %961 = vmatpush1.bf16.msra.mxu0 0
      %962 = vmatprep.subr.bf16.mxu0 0
      %963 = vmatpush1.bf16.msra.mxu0 0
      %964 = vmatprep.subr.bf16.mxu0 0
      %965 = vmatpush1.bf16.msra.mxu0 0
      %966 = vmatprep.subr.bf16.mxu0 0
      %967 = vmatpush1.bf16.msra.mxu0 0
      %968 = vmatprep.subr.bf16.mxu0 0
      %969 = vmatpush1.bf16.msra.mxu0 0
      %970 = vmatprep.subr.bf16.mxu0 0
      %971 = vmatpush1.bf16.msra.mxu0 0
      %972 = vmatprep.subr.bf16.mxu0 0
      %973 = vmatpush1.bf16.msra.mxu0 0
      %974 = vmatprep.subr.bf16.mxu0 0
      %975 = vmatpush1.bf16.msra.mxu0 0
      %976 = vmatprep.subr.bf16.mxu0 0
      %977 = vmatpush1.bf16.msra.mxu0 0
      %978 = vmatprep.subr.bf16.mxu0 0
      %979 = vmatpush1.bf16.msra.mxu0 0
      %980 = vmatprep.subr.bf16.mxu0 0
      %981 = vmatpush1.bf16.msra.mxu0 0
      %982 = vmatprep.mubr.bf16.mxu0 0
      %983 = vmatmul.mubr.bf16.gmra.mrb[0].mxu0 %v427
      %v984 = vpop.f32.mrb[0].mxu0
      %v985 = vadd.f32 %v263, %v984
      %v986 = vpop.f32.mrb[0].mxu0
      %v987 = vadd.f32 %v263, %v986
      %v988 = vpop.f32.mrb[0].mxu0
      %v989 = vpop.f32.mrb[0].mxu0
      %990 = vdwg.mxu0
      %991 = vmatprep.subr.bf16.mxu0 %v488
      %992 = vmatpush1.bf16.msra.mxu0 %v485
      %993 = vmatprep.subr.bf16.mxu0 0
      %994 = vmatpush1.bf16.msra.mxu0 0
      %995 = vmatprep.subr.bf16.mxu0 0
      %996 = vmatpush1.bf16.msra.mxu0 0
      %997 = vmatprep.subr.bf16.mxu0 0
      %998 = vmatpush1.bf16.msra.mxu0 0
      %999 = vmatprep.subr.bf16.mxu0 0
      %1000 = vmatpush1.bf16.msra.mxu0 0
      %1001 = vmatprep.subr.bf16.mxu0 0
      %1002 = vmatpush1.bf16.msra.mxu0 0
      %1003 = vmatprep.subr.bf16.mxu0 0
      %1004 = vmatpush1.bf16.msra.mxu0 0
      %1005 = vmatprep.subr.bf16.mxu0 0
      %1006 = vmatpush1.bf16.msra.mxu0 0
      %1007 = vmatprep.subr.bf16.mxu0 0
      %1008 = vmatpush1.bf16.msra.mxu0 0
      %1009 = vmatprep.subr.bf16.mxu0 0
      %1010 = vmatpush1.bf16.msra.mxu0 0
      %1011 = vmatprep.subr.bf16.mxu0 0
      %1012 = vmatpush1.bf16.msra.mxu0 0
      %1013 = vmatprep.subr.bf16.mxu0 0
      %1014 = vmatpush1.bf16.msra.mxu0 0
      %1015 = vmatprep.subr.bf16.mxu0 0
      %1016 = vmatpush1.bf16.msra.mxu0 0
      %1017 = vmatprep.subr.bf16.mxu0 0
      %1018 = vmatpush1.bf16.msra.mxu0 0
      %1019 = vmatprep.subr.bf16.mxu0 0
      %1020 = vmatpush1.bf16.msra.mxu0 0
      %1021 = vmatprep.subr.bf16.mxu0 0
      %1022 = vmatpush1.bf16.msra.mxu0 0
      %1023 = vmatprep.mubr.bf16.mxu0 0
      %1024 = vmatmul.mubr.bf16.gmra.mrb[0].mxu0 %v427
      %v1025 = vpop.f32.mrb[0].mxu0
      %v1026 = vadd.f32 %v263, %v1025
      %v1027 = vpop.f32.mrb[0].mxu0
      %v1028 = vadd.f32 %v263, %v1027
      %v1029 = vpop.f32.mrb[0].mxu0
      %v1030 = vpop.f32.mrb[0].mxu0
      %1031 = vdwg.mxu0
      %1032 = vmatprep.subr.bf16.mxu0 %v494
      %1033 = vmatpush1.bf16.msra.mxu0 %v491
      %1034 = vmatprep.subr.bf16.mxu0 0
      %1035 = vmatpush1.bf16.msra.mxu0 0
      %1036 = vmatprep.subr.bf16.mxu0 0
      %1037 = vmatpush1.bf16.msra.mxu0 0
      %1038 = vmatprep.subr.bf16.mxu0 0
      %1039 = vmatpush1.bf16.msra.mxu0 0
      %1040 = vmatprep.subr.bf16.mxu0 0
      %1041 = vmatpush1.bf16.msra.mxu0 0
      %1042 = vmatprep.subr.bf16.mxu0 0
      %1043 = vmatpush1.bf16.msra.mxu0 0
      %1044 = vmatprep.subr.bf16.mxu0 0
      %1045 = vmatpush1.bf16.msra.mxu0 0
      %1046 = vmatprep.subr.bf16.mxu0 0
      %1047 = vmatpush1.bf16.msra.mxu0 0
      %1048 = vmatprep.subr.bf16.mxu0 0
      %1049 = vmatpush1.bf16.msra.mxu0 0
      %1050 = vmatprep.subr.bf16.mxu0 0
      %1051 = vmatpush1.bf16.msra.mxu0 0
      %1052 = vmatprep.subr.bf16.mxu0 0
      %1053 = vmatpush1.bf16.msra.mxu0 0
      %1054 = vmatprep.subr.bf16.mxu0 0
      %1055 = vmatpush1.bf16.msra.mxu0 0
      %1056 = vmatprep.subr.bf16.mxu0 0
      %1057 = vmatpush1.bf16.msra.mxu0 0
      %1058 = vmatprep.subr.bf16.mxu0 0
      %1059 = vmatpush1.bf16.msra.mxu0 0
      %1060 = vmatprep.subr.bf16.mxu0 0
      %1061 = vmatpush1.bf16.msra.mxu0 0
      %1062 = vmatprep.subr.bf16.mxu0 0
      %1063 = vmatpush1.bf16.msra.mxu0 0
      %1064 = vmatprep.mubr.bf16.mxu0 0
      %1065 = vmatmul.mubr.bf16.gmra.mrb[0].mxu0 %v427
      %v1066 = vpop.f32.mrb[0].mxu0
      %v1067 = vadd.f32 %v263, %v1066
      %v1068 = vpop.f32.mrb[0].mxu0
      %v1069 = vadd.f32 %v263, %v1068
      %v1070 = vpop.f32.mrb[0].mxu0
      %v1071 = vpop.f32.mrb[0].mxu0
      %1072 = vdwg.mxu0
      %1073 = vmatprep.subr.bf16.mxu0 %v500
      %1074 = vmatpush1.bf16.msra.mxu0 %v497
      %1075 = vmatprep.subr.bf16.mxu0 0
      %1076 = vmatpush1.bf16.msra.mxu0 0
      %1077 = vmatprep.subr.bf16.mxu0 0
      %1078 = vmatpush1.bf16.msra.mxu0 0
      %1079 = vmatprep.subr.bf16.mxu0 0
      %1080 = vmatpush1.bf16.msra.mxu0 0
      %1081 = vmatprep.subr.bf16.mxu0 0
      %1082 = vmatpush1.bf16.msra.mxu0 0
      %1083 = vmatprep.subr.bf16.mxu0 0
      %1084 = vmatpush1.bf16.msra.mxu0 0
      %1085 = vmatprep.subr.bf16.mxu0 0
      %1086 = vmatpush1.bf16.msra.mxu0 0
      %1087 = vmatprep.subr.bf16.mxu0 0
      %1088 = vmatpush1.bf16.msra.mxu0 0
      %1089 = vmatprep.subr.bf16.mxu0 0
      %1090 = vmatpush1.bf16.msra.mxu0 0
      %1091 = vmatprep.subr.bf16.mxu0 0
      %1092 = vmatpush1.bf16.msra.mxu0 0
      %1093 = vmatprep.subr.bf16.mxu0 0
      %1094 = vmatpush1.bf16.msra.mxu0 0
      %1095 = vmatprep.subr.bf16.mxu0 0
      %1096 = vmatpush1.bf16.msra.mxu0 0
      %1097 = vmatprep.subr.bf16.mxu0 0
      %1098 = vmatpush1.bf16.msra.mxu0 0
      %1099 = vmatprep.subr.bf16.mxu0 0
      %1100 = vmatpush1.bf16.msra.mxu0 0
      %1101 = vmatprep.subr.bf16.mxu0 0
      %1102 = vmatpush1.bf16.msra.mxu0 0
      %1103 = vmatprep.subr.bf16.mxu0 0
      %1104 = vmatpush1.bf16.msra.mxu0 0
      %1105 = vmatprep.mubr.bf16.mxu0 0
      %1106 = vmatmul.mubr.bf16.gmra.mrb[0].mxu0 %v427
      %v1107 = vpop.f32.mrb[0].mxu0
      %v1108 = vadd.f32 %v263, %v1107
      %v1109 = vpop.f32.mrb[0].mxu0
      %v1110 = vadd.f32 %v263, %v1109
      %v1111 = vpop.f32.mrb[0].mxu0
      %v1112 = vpop.f32.mrb[0].mxu0
      %1113 = vdwg.mxu0
      %1114 = vmatprep.subr.bf16.mxu0 %v506
      %1115 = vmatpush1.bf16.msra.mxu0 %v503
      %1116 = vmatprep.subr.bf16.mxu0 0
      %1117 = vmatpush1.bf16.msra.mxu0 0
      %1118 = vmatprep.subr.bf16.mxu0 0
      %1119 = vmatpush1.bf16.msra.mxu0 0
      %1120 = vmatprep.subr.bf16.mxu0 0
      %1121 = vmatpush1.bf16.msra.mxu0 0
      %1122 = vmatprep.subr.bf16.mxu0 0
      %1123 = vmatpush1.bf16.msra.mxu0 0
      %1124 = vmatprep.subr.bf16.mxu0 0
      %1125 = vmatpush1.bf16.msra.mxu0 0
      %1126 = vmatprep.subr.bf16.mxu0 0
      %1127 = vmatpush1.bf16.msra.mxu0 0
      %1128 = vmatprep.subr.bf16.mxu0 0
      %1129 = vmatpush1.bf16.msra.mxu0 0
      %1130 = vmatprep.subr.bf16.mxu0 0
      %1131 = vmatpush1.bf16.msra.mxu0 0
      %1132 = vmatprep.subr.bf16.mxu0 0
      %1133 = vmatpush1.bf16.msra.mxu0 0
      %1134 = vmatprep.subr.bf16.mxu0 0
      %1135 = vmatpush1.bf16.msra.mxu0 0
      %1136 = vmatprep.subr.bf16.mxu0 0
      %1137 = vmatpush1.bf16.msra.mxu0 0
      %1138 = vmatprep.subr.bf16.mxu0 0
      %1139 = vmatpush1.bf16.msra.mxu0 0
      %1140 = vmatprep.subr.bf16.mxu0 0
      %1141 = vmatpush1.bf16.msra.mxu0 0
      %1142 = vmatprep.subr.bf16.mxu0 0
      %1143 = vmatpush1.bf16.msra.mxu0 0
      %1144 = vmatprep.subr.bf16.mxu0 0
      %1145 = vmatpush1.bf16.msra.mxu0 0
      %1146 = vmatprep.mubr.bf16.mxu0 0
      %1147 = vmatmul.mubr.bf16.gmra.mrb[0].mxu0 %v427
      %v1148 = vpop.f32.mrb[0].mxu0
      %v1149 = vadd.f32 %v263, %v1148
      %v1150 = vpop.f32.mrb[0].mxu0
      %v1151 = vadd.f32 %v263, %v1150
      %v1152 = vpop.f32.mrb[0].mxu0
      %v1153 = vpop.f32.mrb[0].mxu0
      %1154 = vdwg.mxu0
      %1155 = vmatprep.subr.bf16.mxu0 %v512
      %1156 = vmatpush1.bf16.msra.mxu0 %v509
      %1157 = vmatprep.subr.bf16.mxu0 0
      %1158 = vmatpush1.bf16.msra.mxu0 0
      %1159 = vmatprep.subr.bf16.mxu0 0
      %1160 = vmatpush1.bf16.msra.mxu0 0
      %1161 = vmatprep.subr.bf16.mxu0 0
      %1162 = vmatpush1.bf16.msra.mxu0 0
      %1163 = vmatprep.subr.bf16.mxu0 0
      %1164 = vmatpush1.bf16.msra.mxu0 0
      %1165 = vmatprep.subr.bf16.mxu0 0
      %1166 = vmatpush1.bf16.msra.mxu0 0
      %1167 = vmatprep.subr.bf16.mxu0 0
      %1168 = vmatpush1.bf16.msra.mxu0 0
      %1169 = vmatprep.subr.bf16.mxu0 0
      %1170 = vmatpush1.bf16.msra.mxu0 0
      %1171 = vmatprep.subr.bf16.mxu0 0
      %1172 = vmatpush1.bf16.msra.mxu0 0
      %1173 = vmatprep.subr.bf16.mxu0 0
      %1174 = vmatpush1.bf16.msra.mxu0 0
      %1175 = vmatprep.subr.bf16.mxu0 0
      %1176 = vmatpush1.bf16.msra.mxu0 0
      %1177 = vmatprep.subr.bf16.mxu0 0
      %1178 = vmatpush1.bf16.msra.mxu0 0
      %1179 = vmatprep.subr.bf16.mxu0 0
      %1180 = vmatpush1.bf16.msra.mxu0 0
      %1181 = vmatprep.subr.bf16.mxu0 0
      %1182 = vmatpush1.bf16.msra.mxu0 0
      %1183 = vmatprep.subr.bf16.mxu0 0
      %1184 = vmatpush1.bf16.msra.mxu0 0
      %1185 = vmatprep.subr.bf16.mxu0 0
      %1186 = vmatpush1.bf16.msra.mxu0 0
      %1187 = vmatprep.mubr.bf16.mxu0 0
      %1188 = vmatmul.mubr.bf16.gmra.mrb[0].mxu0 %v427
      %v1189 = vpop.f32.mrb[0].mxu0
      %v1190 = vadd.f32 %v263, %v1189
      %v1191 = vpop.f32.mrb[0].mxu0
      %v1192 = vadd.f32 %v263, %v1191
      %v1193 = vpop.f32.mrb[0].mxu0
      %v1194 = vpop.f32.mrb[0].mxu0
      %1195 = vdwg.mxu0
      %1196 = vmatprep.subr.bf16.mxu0 %v518
      %1197 = vmatpush1.bf16.msra.mxu0 %v515
      %1198 = vmatprep.subr.bf16.mxu0 0
      %1199 = vmatpush1.bf16.msra.mxu0 0
      %1200 = vmatprep.subr.bf16.mxu0 0
      %1201 = vmatpush1.bf16.msra.mxu0 0
      %1202 = vmatprep.subr.bf16.mxu0 0
      %1203 = vmatpush1.bf16.msra.mxu0 0
      %1204 = vmatprep.subr.bf16.mxu0 0
      %1205 = vmatpush1.bf16.msra.mxu0 0
      %1206 = vmatprep.subr.bf16.mxu0 0
      %1207 = vmatpush1.bf16.msra.mxu0 0
      %1208 = vmatprep.subr.bf16.mxu0 0
      %1209 = vmatpush1.bf16.msra.mxu0 0
      %1210 = vmatprep.subr.bf16.mxu0 0
      %1211 = vmatpush1.bf16.msra.mxu0 0
      %1212 = vmatprep.subr.bf16.mxu0 0
      %1213 = vmatpush1.bf16.msra.mxu0 0
      %1214 = vmatprep.subr.bf16.mxu0 0
      %1215 = vmatpush1.bf16.msra.mxu0 0
      %1216 = vmatprep.subr.bf16.mxu0 0
      %1217 = vmatpush1.bf16.msra.mxu0 0
      %1218 = vmatprep.subr.bf16.mxu0 0
      %1219 = vmatpush1.bf16.msra.mxu0 0
      %1220 = vmatprep.subr.bf16.mxu0 0
      %1221 = vmatpush1.bf16.msra.mxu0 0
      %1222 = vmatprep.subr.bf16.mxu0 0
      %1223 = vmatpush1.bf16.msra.mxu0 0
      %1224 = vmatprep.subr.bf16.mxu0 0
      %1225 = vmatpush1.bf16.msra.mxu0 0
      %1226 = vmatprep.subr.bf16.mxu0 0
      %1227 = vmatpush1.bf16.msra.mxu0 0
      %1228 = vmatprep.mubr.bf16.mxu0 0
      %1229 = vmatmul.mubr.bf16.gmra.mrb[0].mxu0 %v427
      %v1230 = vpop.f32.mrb[0].mxu0
      %v1231 = vadd.f32 %v263, %v1230
      %v1232 = vpop.f32.mrb[0].mxu0
      %v1233 = vadd.f32 %v263, %v1232
      %v1234 = vpop.f32.mrb[0].mxu0
      %v1235 = vpop.f32.mrb[0].mxu0
      %1236 = vdwg.mxu0
      %1237 = vmatprep.subr.bf16.mxu0 %v524
      %1238 = vmatpush1.bf16.msra.mxu0 %v521
      %1239 = vmatprep.subr.bf16.mxu0 0
      %1240 = vmatpush1.bf16.msra.mxu0 0
      %1241 = vmatprep.subr.bf16.mxu0 0
      %1242 = vmatpush1.bf16.msra.mxu0 0
      %1243 = vmatprep.subr.bf16.mxu0 0
      %1244 = vmatpush1.bf16.msra.mxu0 0
      %1245 = vmatprep.subr.bf16.mxu0 0
      %1246 = vmatpush1.bf16.msra.mxu0 0
      %1247 = vmatprep.subr.bf16.mxu0 0
      %1248 = vmatpush1.bf16.msra.mxu0 0
      %1249 = vmatprep.subr.bf16.mxu0 0
      %1250 = vmatpush1.bf16.msra.mxu0 0
      %1251 = vmatprep.subr.bf16.mxu0 0
      %1252 = vmatpush1.bf16.msra.mxu0 0
      %1253 = vmatprep.subr.bf16.mxu0 0
      %1254 = vmatpush1.bf16.msra.mxu0 0
      %1255 = vmatprep.subr.bf16.mxu0 0
      %1256 = vmatpush1.bf16.msra.mxu0 0
      %1257 = vmatprep.subr.bf16.mxu0 0
      %1258 = vmatpush1.bf16.msra.mxu0 0
      %1259 = vmatprep.subr.bf16.mxu0 0
      %1260 = vmatpush1.bf16.msra.mxu0 0
      %1261 = vmatprep.subr.bf16.mxu0 0
      %1262 = vmatpush1.bf16.msra.mxu0 0
      %1263 = vmatprep.subr.bf16.mxu0 0
      %1264 = vmatpush1.bf16.msra.mxu0 0
      %1265 = vmatprep.subr.bf16.mxu0 0
      %1266 = vmatpush1.bf16.msra.mxu0 0
      %1267 = vmatprep.subr.bf16.mxu0 0
      %1268 = vmatpush1.bf16.msra.mxu0 0
      %1269 = vmatprep.mubr.bf16.mxu0 0
      %1270 = vmatmul.mubr.bf16.gmra.mrb[0].mxu0 %v427
      %v1271 = vpop.f32.mrb[0].mxu0
      %v1272 = vadd.f32 %v263, %v1271
      %v1273 = vpop.f32.mrb[0].mxu0
      %v1274 = vadd.f32 %v263, %v1273
      %v1275 = vpop.f32.mrb[0].mxu0
      %v1276 = vpop.f32.mrb[0].mxu0
      %1277 = vdwg.mxu0
      %1278 = vmatprep.subr.bf16.mxu0 %v530
      %1279 = vmatpush1.bf16.msra.mxu0 %v527
      %1280 = vmatprep.subr.bf16.mxu0 0
      %1281 = vmatpush1.bf16.msra.mxu0 0
      %1282 = vmatprep.subr.bf16.mxu0 0
      %1283 = vmatpush1.bf16.msra.mxu0 0
      %1284 = vmatprep.subr.bf16.mxu0 0
      %1285 = vmatpush1.bf16.msra.mxu0 0
      %1286 = vmatprep.subr.bf16.mxu0 0
      %1287 = vmatpush1.bf16.msra.mxu0 0
      %1288 = vmatprep.subr.bf16.mxu0 0
      %1289 = vmatpush1.bf16.msra.mxu0 0
      %1290 = vmatprep.subr.bf16.mxu0 0
      %1291 = vmatpush1.bf16.msra.mxu0 0
      %1292 = vmatprep.subr.bf16.mxu0 0
      %1293 = vmatpush1.bf16.msra.mxu0 0
      %1294 = vmatprep.subr.bf16.mxu0 0
      %1295 = vmatpush1.bf16.msra.mxu0 0
      %1296 = vmatprep.subr.bf16.mxu0 0
      %1297 = vmatpush1.bf16.msra.mxu0 0
      %1298 = vmatprep.subr.bf16.mxu0 0
      %1299 = vmatpush1.bf16.msra.mxu0 0
      %1300 = vmatprep.subr.bf16.mxu0 0
      %1301 = vmatpush1.bf16.msra.mxu0 0
      %1302 = vmatprep.subr.bf16.mxu0 0
      %1303 = vmatpush1.bf16.msra.mxu0 0
      %1304 = vmatprep.subr.bf16.mxu0 0
      %1305 = vmatpush1.bf16.msra.mxu0 0
      %1306 = vmatprep.subr.bf16.mxu0 0
      %1307 = vmatpush1.bf16.msra.mxu0 0
      %1308 = vmatprep.subr.bf16.mxu0 0
      %1309 = vmatpush1.bf16.msra.mxu0 0
      %1310 = vmatprep.mubr.bf16.mxu0 0
      %1311 = vmatmul.mubr.bf16.gmra.mrb[0].mxu0 %v427
      %v1312 = vpop.f32.mrb[0].mxu0
      %v1313 = vadd.f32 %v263, %v1312
      %v1314 = vpop.f32.mrb[0].mxu0
      %v1315 = vadd.f32 %v263, %v1314
      %v1316 = vpop.f32.mrb[0].mxu0
      %v1317 = vpop.f32.mrb[0].mxu0
      %1318 = vdwg.mxu0
      %1319 = vmatprep.subr.bf16.mxu0 %v536
      %1320 = vmatpush1.bf16.msra.mxu0 %v533
      %1321 = vmatprep.subr.bf16.mxu0 0
      %1322 = vmatpush1.bf16.msra.mxu0 0
      %1323 = vmatprep.subr.bf16.mxu0 0
      %1324 = vmatpush1.bf16.msra.mxu0 0
      %1325 = vmatprep.subr.bf16.mxu0 0
      %1326 = vmatpush1.bf16.msra.mxu0 0
      %1327 = vmatprep.subr.bf16.mxu0 0
      %1328 = vmatpush1.bf16.msra.mxu0 0
      %1329 = vmatprep.subr.bf16.mxu0 0
      %1330 = vmatpush1.bf16.msra.mxu0 0
      %1331 = vmatprep.subr.bf16.mxu0 0
      %1332 = vmatpush1.bf16.msra.mxu0 0
      %1333 = vmatprep.subr.bf16.mxu0 0
      %1334 = vmatpush1.bf16.msra.mxu0 0
      %1335 = vmatprep.subr.bf16.mxu0 0
      %1336 = vmatpush1.bf16.msra.mxu0 0
      %1337 = vmatprep.subr.bf16.mxu0 0
      %1338 = vmatpush1.bf16.msra.mxu0 0
      %1339 = vmatprep.subr.bf16.mxu0 0
      %1340 = vmatpush1.bf16.msra.mxu0 0
      %1341 = vmatprep.subr.bf16.mxu0 0
      %1342 = vmatpush1.bf16.msra.mxu0 0
      %1343 = vmatprep.subr.bf16.mxu0 0
      %1344 = vmatpush1.bf16.msra.mxu0 0
      %1345 = vmatprep.subr.bf16.mxu0 0
      %1346 = vmatpush1.bf16.msra.mxu0 0
      %1347 = vmatprep.subr.bf16.mxu0 0
      %1348 = vmatpush1.bf16.msra.mxu0 0
      %1349 = vmatprep.subr.bf16.mxu0 0
      %1350 = vmatpush1.bf16.msra.mxu0 0
      %1351 = vmatprep.mubr.bf16.mxu0 0
      %1352 = vmatmul.mubr.bf16.gmra.mrb[0].mxu0 %v427
      %v1353 = vpop.f32.mrb[0].mxu0
      %v1354 = vadd.f32 %v263, %v1353
      %v1355 = vpop.f32.mrb[0].mxu0
      %v1356 = vadd.f32 %v263, %v1355
      %v1357 = vpop.f32.mrb[0].mxu0
      %v1358 = vpop.f32.mrb[0].mxu0
      %1359 = vdwg.mxu0
      %1360 = vmatprep.subr.bf16.mxu0 %v542
      %1361 = vmatpush1.bf16.msra.mxu0 %v539
      %1362 = vmatprep.subr.bf16.mxu0 0
      %1363 = vmatpush1.bf16.msra.mxu0 0
      %1364 = vmatprep.subr.bf16.mxu0 0
      %1365 = vmatpush1.bf16.msra.mxu0 0
      %1366 = vmatprep.subr.bf16.mxu0 0
      %1367 = vmatpush1.bf16.msra.mxu0 0
      %1368 = vmatprep.subr.bf16.mxu0 0
      %1369 = vmatpush1.bf16.msra.mxu0 0
      %1370 = vmatprep.subr.bf16.mxu0 0
      %1371 = vmatpush1.bf16.msra.mxu0 0
      %1372 = vmatprep.subr.bf16.mxu0 0
      %1373 = vmatpush1.bf16.msra.mxu0 0
      %1374 = vmatprep.subr.bf16.mxu0 0
      %1375 = vmatpush1.bf16.msra.mxu0 0
      %1376 = vmatprep.subr.bf16.mxu0 0
      %1377 = vmatpush1.bf16.msra.mxu0 0
      %1378 = vmatprep.subr.bf16.mxu0 0
      %1379 = vmatpush1.bf16.msra.mxu0 0
      %1380 = vmatprep.subr.bf16.mxu0 0
      %1381 = vmatpush1.bf16.msra.mxu0 0
      %1382 = vmatprep.subr.bf16.mxu0 0
      %1383 = vmatpush1.bf16.msra.mxu0 0
      %1384 = vmatprep.subr.bf16.mxu0 0
      %1385 = vmatpush1.bf16.msra.mxu0 0
      %1386 = vmatprep.subr.bf16.mxu0 0
      %1387 = vmatpush1.bf16.msra.mxu0 0
      %1388 = vmatprep.subr.bf16.mxu0 0
      %1389 = vmatpush1.bf16.msra.mxu0 0
      %1390 = vmatprep.subr.bf16.mxu0 0
      %1391 = vmatpush1.bf16.msra.mxu0 0
      %1392 = vmatprep.mubr.bf16.mxu0 0
      %1393 = vmatmul.mubr.bf16.gmra.mrb[0].mxu0 %v427
      %v1394 = vpop.f32.mrb[0].mxu0
      %v1395 = vadd.f32 %v263, %v1394
      %v1396 = vpop.f32.mrb[0].mxu0
      %v1397 = vadd.f32 %v263, %v1396
      %v1398 = vpop.f32.mrb[0].mxu0
      %v1399 = vpop.f32.mrb[0].mxu0
      %1400 = vdwg.mxu0
      %1401 = vmatprep.subr.bf16.mxu0 %v548
      %1402 = vmatpush1.bf16.msra.mxu0 %v545
      %1403 = vmatprep.subr.bf16.mxu0 0
      %1404 = vmatpush1.bf16.msra.mxu0 0
      %1405 = vmatprep.subr.bf16.mxu0 0
      %1406 = vmatpush1.bf16.msra.mxu0 0
      %1407 = vmatprep.subr.bf16.mxu0 0
      %1408 = vmatpush1.bf16.msra.mxu0 0
      %1409 = vmatprep.subr.bf16.mxu0 0
      %1410 = vmatpush1.bf16.msra.mxu0 0
      %1411 = vmatprep.subr.bf16.mxu0 0
      %1412 = vmatpush1.bf16.msra.mxu0 0
      %1413 = vmatprep.subr.bf16.mxu0 0
      %1414 = vmatpush1.bf16.msra.mxu0 0
      %1415 = vmatprep.subr.bf16.mxu0 0
      %1416 = vmatpush1.bf16.msra.mxu0 0
      %1417 = vmatprep.subr.bf16.mxu0 0
      %1418 = vmatpush1.bf16.msra.mxu0 0
      %1419 = vmatprep.subr.bf16.mxu0 0
      %1420 = vmatpush1.bf16.msra.mxu0 0
      %1421 = vmatprep.subr.bf16.mxu0 0
      %1422 = vmatpush1.bf16.msra.mxu0 0
      %1423 = vmatprep.subr.bf16.mxu0 0
      %1424 = vmatpush1.bf16.msra.mxu0 0
      %1425 = vmatprep.subr.bf16.mxu0 0
      %1426 = vmatpush1.bf16.msra.mxu0 0
      %1427 = vmatprep.subr.bf16.mxu0 0
      %1428 = vmatpush1.bf16.msra.mxu0 0
      %1429 = vmatprep.subr.bf16.mxu0 0
      %1430 = vmatpush1.bf16.msra.mxu0 0
      %1431 = vmatprep.subr.bf16.mxu0 0
      %1432 = vmatpush1.bf16.msra.mxu0 0
      %1433 = vmatprep.mubr.bf16.mxu0 0
      %1434 = vmatmul.mubr.bf16.gmra.mrb[0].mxu0 %v427
      %v1435 = vpop.f32.mrb[0].mxu0
      %v1436 = vadd.f32 %v263, %v1435
      %v1437 = vpop.f32.mrb[0].mxu0
      %v1438 = vadd.f32 %v263, %v1437
      %v1439 = vpop.f32.mrb[0].mxu0
      %v1440 = vpop.f32.mrb[0].mxu0
      %1441 = vdwg.mxu0
      %1442 = vmatprep.subr.bf16.mxu0 %v554
      %1443 = vmatpush1.bf16.msra.mxu0 %v551
      %1444 = vmatprep.subr.bf16.mxu0 0
      %1445 = vmatpush1.bf16.msra.mxu0 0
      %1446 = vmatprep.subr.bf16.mxu0 0
      %1447 = vmatpush1.bf16.msra.mxu0 0
      %1448 = vmatprep.subr.bf16.mxu0 0
      %1449 = vmatpush1.bf16.msra.mxu0 0
      %1450 = vmatprep.subr.bf16.mxu0 0
      %1451 = vmatpush1.bf16.msra.mxu0 0
      %1452 = vmatprep.subr.bf16.mxu0 0
      %1453 = vmatpush1.bf16.msra.mxu0 0
      %1454 = vmatprep.subr.bf16.mxu0 0
      %1455 = vmatpush1.bf16.msra.mxu0 0
      %1456 = vmatprep.subr.bf16.mxu0 0
      %1457 = vmatpush1.bf16.msra.mxu0 0
      %1458 = vmatprep.subr.bf16.mxu0 0
      %1459 = vmatpush1.bf16.msra.mxu0 0
      %1460 = vmatprep.subr.bf16.mxu0 0
      %1461 = vmatpush1.bf16.msra.mxu0 0
      %1462 = vmatprep.subr.bf16.mxu0 0
      %1463 = vmatpush1.bf16.msra.mxu0 0
      %1464 = vmatprep.subr.bf16.mxu0 0
      %1465 = vmatpush1.bf16.msra.mxu0 0
      %1466 = vmatprep.subr.bf16.mxu0 0
      %1467 = vmatpush1.bf16.msra.mxu0 0
      %1468 = vmatprep.subr.bf16.mxu0 0
      %1469 = vmatpush1.bf16.msra.mxu0 0
      %1470 = vmatprep.subr.bf16.mxu0 0
      %1471 = vmatpush1.bf16.msra.mxu0 0
      %1472 = vmatprep.subr.bf16.mxu0 0
      %1473 = vmatpush1.bf16.msra.mxu0 0
      %1474 = vmatprep.mubr.bf16.mxu0 0
      %1475 = vmatmul.mubr.bf16.gmra.mrb[0].mxu0 %v427
      %v1476 = vpop.f32.mrb[0].mxu0
      %v1477 = vadd.f32 %v263, %v1476
      %v1478 = vpop.f32.mrb[0].mxu0
      %v1479 = vadd.f32 %v263, %v1478
      %v1480 = vpop.f32.mrb[0].mxu0
      %v1481 = vpop.f32.mrb[0].mxu0
      %1482 = vdwg.mxu0
      %1483 = vmatprep.subr.bf16.mxu0 %v560
      %1484 = vmatpush1.bf16.msra.mxu0 %v557
      %1485 = vmatprep.subr.bf16.mxu0 0
      %1486 = vmatpush1.bf16.msra.mxu0 0
      %1487 = vmatprep.subr.bf16.mxu0 0
      %1488 = vmatpush1.bf16.msra.mxu0 0
      %1489 = vmatprep.subr.bf16.mxu0 0
      %1490 = vmatpush1.bf16.msra.mxu0 0
      %1491 = vmatprep.subr.bf16.mxu0 0
      %1492 = vmatpush1.bf16.msra.mxu0 0
      %1493 = vmatprep.subr.bf16.mxu0 0
      %1494 = vmatpush1.bf16.msra.mxu0 0
      %1495 = vmatprep.subr.bf16.mxu0 0
      %1496 = vmatpush1.bf16.msra.mxu0 0
      %1497 = vmatprep.subr.bf16.mxu0 0
      %1498 = vmatpush1.bf16.msra.mxu0 0
      %1499 = vmatprep.subr.bf16.mxu0 0
      %1500 = vmatpush1.bf16.msra.mxu0 0
      %1501 = vmatprep.subr.bf16.mxu0 0
      %1502 = vmatpush1.bf16.msra.mxu0 0
      %1503 = vmatprep.subr.bf16.mxu0 0
      %1504 = vmatpush1.bf16.msra.mxu0 0
      %1505 = vmatprep.subr.bf16.mxu0 0
      %1506 = vmatpush1.bf16.msra.mxu0 0
      %1507 = vmatprep.subr.bf16.mxu0 0
      %1508 = vmatpush1.bf16.msra.mxu0 0
      %1509 = vmatprep.subr.bf16.mxu0 0
      %1510 = vmatpush1.bf16.msra.mxu0 0
      %1511 = vmatprep.subr.bf16.mxu0 0
      %1512 = vmatpush1.bf16.msra.mxu0 0
      %1513 = vmatprep.subr.bf16.mxu0 0
      %1514 = vmatpush1.bf16.msra.mxu0 0
      %1515 = vmatprep.mubr.bf16.mxu0 0
      %1516 = vmatmul.mubr.bf16.gmra.mrb[0].mxu0 %v427
      %v1517 = vpop.f32.mrb[0].mxu0
      %v1518 = vadd.f32 %v263, %v1517
      %v1519 = vpop.f32.mrb[0].mxu0
      %v1520 = vadd.f32 %v263, %v1519
      %v1521 = vpop.f32.mrb[0].mxu0
      %v1522 = vpop.f32.mrb[0].mxu0
      %1523 = vdwg.mxu0
      %1524 = vmatprep.subr.bf16.mxu0 %v566
      %1525 = vmatpush1.bf16.msra.mxu0 %v563
      %1526 = vmatprep.subr.bf16.mxu0 0
      %1527 = vmatpush1.bf16.msra.mxu0 0
      %1528 = vmatprep.subr.bf16.mxu0 0
      %1529 = vmatpush1.bf16.msra.mxu0 0
      %1530 = vmatprep.subr.bf16.mxu0 0
      %1531 = vmatpush1.bf16.msra.mxu0 0
      %1532 = vmatprep.subr.bf16.mxu0 0
      %1533 = vmatpush1.bf16.msra.mxu0 0
      %1534 = vmatprep.subr.bf16.mxu0 0
      %1535 = vmatpush1.bf16.msra.mxu0 0
      %1536 = vmatprep.subr.bf16.mxu0 0
      %1537 = vmatpush1.bf16.msra.mxu0 0
      %1538 = vmatprep.subr.bf16.mxu0 0
      %1539 = vmatpush1.bf16.msra.mxu0 0
      %1540 = vmatprep.subr.bf16.mxu0 0
      %1541 = vmatpush1.bf16.msra.mxu0 0
      %1542 = vmatprep.subr.bf16.mxu0 0
      %1543 = vmatpush1.bf16.msra.mxu0 0
      %1544 = vmatprep.subr.bf16.mxu0 0
      %1545 = vmatpush1.bf16.msra.mxu0 0
      %1546 = vmatprep.subr.bf16.mxu0 0
      %1547 = vmatpush1.bf16.msra.mxu0 0
      %1548 = vmatprep.subr.bf16.mxu0 0
      %1549 = vmatpush1.bf16.msra.mxu0 0
      %1550 = vmatprep.subr.bf16.mxu0 0
      %1551 = vmatpush1.bf16.msra.mxu0 0
      %1552 = vmatprep.subr.bf16.mxu0 0
      %1553 = vmatpush1.bf16.msra.mxu0 0
      %1554 = vmatprep.subr.bf16.mxu0 0
      %1555 = vmatpush1.bf16.msra.mxu0 0
      %1556 = vmatprep.mubr.bf16.mxu0 0
      %1557 = vmatmul.mubr.bf16.gmra.mrb[0].mxu0 %v427
      %v1558 = vpop.f32.mrb[0].mxu0
      %v1559 = vadd.f32 %v263, %v1558
      %v1560 = vpop.f32.mrb[0].mxu0
      %v1561 = vadd.f32 %v263, %v1560
      %v1562 = vpop.f32.mrb[0].mxu0
      %v1563 = vpop.f32.mrb[0].mxu0
      %1564 = vdwg.mxu0
      %1565 = vmatprep.subr.bf16.mxu0 %v572
      %1566 = vmatpush1.bf16.msra.mxu0 %v569
      %1567 = vmatprep.subr.bf16.mxu0 0
      %1568 = vmatpush1.bf16.msra.mxu0 0
      %1569 = vmatprep.subr.bf16.mxu0 0
      %1570 = vmatpush1.bf16.msra.mxu0 0
      %1571 = vmatprep.subr.bf16.mxu0 0
      %1572 = vmatpush1.bf16.msra.mxu0 0
      %1573 = vmatprep.subr.bf16.mxu0 0
      %1574 = vmatpush1.bf16.msra.mxu0 0
      %1575 = vmatprep.subr.bf16.mxu0 0
      %1576 = vmatpush1.bf16.msra.mxu0 0
      %1577 = vmatprep.subr.bf16.mxu0 0
      %1578 = vmatpush1.bf16.msra.mxu0 0
      %1579 = vmatprep.subr.bf16.mxu0 0
      %1580 = vmatpush1.bf16.msra.mxu0 0
      %1581 = vmatprep.subr.bf16.mxu0 0
      %1582 = vmatpush1.bf16.msra.mxu0 0
      %1583 = vmatprep.subr.bf16.mxu0 0
      %1584 = vmatpush1.bf16.msra.mxu0 0
      %1585 = vmatprep.subr.bf16.mxu0 0
      %1586 = vmatpush1.bf16.msra.mxu0 0
      %1587 = vmatprep.subr.bf16.mxu0 0
      %1588 = vmatpush1.bf16.msra.mxu0 0
      %1589 = vmatprep.subr.bf16.mxu0 0
      %1590 = vmatpush1.bf16.msra.mxu0 0
      %1591 = vmatprep.subr.bf16.mxu0 0
      %1592 = vmatpush1.bf16.msra.mxu0 0
      %1593 = vmatprep.subr.bf16.mxu0 0
      %1594 = vmatpush1.bf16.msra.mxu0 0
      %1595 = vmatprep.subr.bf16.mxu0 0
      %1596 = vmatpush1.bf16.msra.mxu0 0
      %1597 = vmatprep.mubr.bf16.mxu0 0
      %1598 = vmatmul.mubr.bf16.gmra.mrb[0].mxu0 %v427
      %v1599 = vpop.f32.mrb[0].mxu0
      %v1600 = vadd.f32 %v263, %v1599
      %v1601 = vpop.f32.mrb[0].mxu0
      %v1602 = vadd.f32 %v263, %v1601
      %v1603 = vpop.f32.mrb[0].mxu0
      %v1604 = vpop.f32.mrb[0].mxu0
      %1605 = vdwg.mxu0
      %1606 = vmatprep.subr.bf16.mxu0 %v578
      %1607 = vmatpush1.bf16.msra.mxu0 %v575
      %1608 = vmatprep.subr.bf16.mxu0 0
      %1609 = vmatpush1.bf16.msra.mxu0 0
      %1610 = vmatprep.subr.bf16.mxu0 0
      %1611 = vmatpush1.bf16.msra.mxu0 0
      %1612 = vmatprep.subr.bf16.mxu0 0
      %1613 = vmatpush1.bf16.msra.mxu0 0
      %1614 = vmatprep.subr.bf16.mxu0 0
      %1615 = vmatpush1.bf16.msra.mxu0 0
      %1616 = vmatprep.subr.bf16.mxu0 0
      %1617 = vmatpush1.bf16.msra.mxu0 0
      %1618 = vmatprep.subr.bf16.mxu0 0
      %1619 = vmatpush1.bf16.msra.mxu0 0
      %1620 = vmatprep.subr.bf16.mxu0 0
      %1621 = vmatpush1.bf16.msra.mxu0 0
      %1622 = vmatprep.subr.bf16.mxu0 0
      %1623 = vmatpush1.bf16.msra.mxu0 0
      %1624 = vmatprep.subr.bf16.mxu0 0
      %1625 = vmatpush1.bf16.msra.mxu0 0
      %1626 = vmatprep.subr.bf16.mxu0 0
      %1627 = vmatpush1.bf16.msra.mxu0 0
      %1628 = vmatprep.subr.bf16.mxu0 0
      %1629 = vmatpush1.bf16.msra.mxu0 0
      %1630 = vmatprep.subr.bf16.mxu0 0
      %1631 = vmatpush1.bf16.msra.mxu0 0
      %1632 = vmatprep.subr.bf16.mxu0 0
      %1633 = vmatpush1.bf16.msra.mxu0 0
      %1634 = vmatprep.subr.bf16.mxu0 0
      %1635 = vmatpush1.bf16.msra.mxu0 0
      %1636 = vmatprep.subr.bf16.mxu0 0
      %1637 = vmatpush1.bf16.msra.mxu0 0
      %1638 = vmatprep.mubr.bf16.mxu0 0
      %1639 = vmatmul.mubr.bf16.gmra.mrb[0].mxu0 %v427
      %v1640 = vpop.f32.mrb[0].mxu0
      %v1641 = vadd.f32 %v263, %v1640
      %v1642 = vpop.f32.mrb[0].mxu0
      %v1643 = vadd.f32 %v263, %v1642
      %v1644 = vpop.f32.mrb[0].mxu0
      %v1645 = vpop.f32.mrb[0].mxu0
      %1646 = vdwg.mxu0
      %1647 = vmatprep.subr.bf16.mxu0 %v584
      %1648 = vmatpush1.bf16.msra.mxu0 %v581
      %1649 = vmatprep.subr.bf16.mxu0 0
      %1650 = vmatpush1.bf16.msra.mxu0 0
      %1651 = vmatprep.subr.bf16.mxu0 0
      %1652 = vmatpush1.bf16.msra.mxu0 0
      %1653 = vmatprep.subr.bf16.mxu0 0
      %1654 = vmatpush1.bf16.msra.mxu0 0
      %1655 = vmatprep.subr.bf16.mxu0 0
      %1656 = vmatpush1.bf16.msra.mxu0 0
      %1657 = vmatprep.subr.bf16.mxu0 0
      %1658 = vmatpush1.bf16.msra.mxu0 0
      %1659 = vmatprep.subr.bf16.mxu0 0
      %1660 = vmatpush1.bf16.msra.mxu0 0
      %1661 = vmatprep.subr.bf16.mxu0 0
      %1662 = vmatpush1.bf16.msra.mxu0 0
      %1663 = vmatprep.subr.bf16.mxu0 0
      %1664 = vmatpush1.bf16.msra.mxu0 0
      %1665 = vmatprep.subr.bf16.mxu0 0
      %1666 = vmatpush1.bf16.msra.mxu0 0
      %1667 = vmatprep.subr.bf16.mxu0 0
      %1668 = vmatpush1.bf16.msra.mxu0 0
      %1669 = vmatprep.subr.bf16.mxu0 0
      %1670 = vmatpush1.bf16.msra.mxu0 0
      %1671 = vmatprep.subr.bf16.mxu0 0
      %1672 = vmatpush1.bf16.msra.mxu0 0
      %1673 = vmatprep.subr.bf16.mxu0 0
      %1674 = vmatpush1.bf16.msra.mxu0 0
      %1675 = vmatprep.subr.bf16.mxu0 0
      %1676 = vmatpush1.bf16.msra.mxu0 0
      %1677 = vmatprep.subr.bf16.mxu0 0
      %1678 = vmatpush1.bf16.msra.mxu0 0
      %1679 = vmatprep.mubr.bf16.mxu0 0
      %1680 = vmatmul.mubr.bf16.gmra.mrb[0].mxu0 %v427
      %v1681 = vpop.f32.mrb[0].mxu0
      %v1682 = vadd.f32 %v263, %v1681
      %v1683 = vpop.f32.mrb[0].mxu0
      %v1684 = vadd.f32 %v263, %v1683
      %v1685 = vpop.f32.mrb[0].mxu0
      %v1686 = vpop.f32.mrb[0].mxu0
      %1687 = vdwg.mxu0
      %1688 = vmatprep.subr.bf16.mxu0 %v590
      %1689 = vmatpush1.bf16.msra.mxu0 %v587
      %1690 = vmatprep.subr.bf16.mxu0 0
      %1691 = vmatpush1.bf16.msra.mxu0 0
      %1692 = vmatprep.subr.bf16.mxu0 0
      %1693 = vmatpush1.bf16.msra.mxu0 0
      %1694 = vmatprep.subr.bf16.mxu0 0
      %1695 = vmatpush1.bf16.msra.mxu0 0
      %1696 = vmatprep.subr.bf16.mxu0 0
      %1697 = vmatpush1.bf16.msra.mxu0 0
      %1698 = vmatprep.subr.bf16.mxu0 0
      %1699 = vmatpush1.bf16.msra.mxu0 0
      %1700 = vmatprep.subr.bf16.mxu0 0
      %1701 = vmatpush1.bf16.msra.mxu0 0
      %1702 = vmatprep.subr.bf16.mxu0 0
      %1703 = vmatpush1.bf16.msra.mxu0 0
      %1704 = vmatprep.subr.bf16.mxu0 0
      %1705 = vmatpush1.bf16.msra.mxu0 0
      %1706 = vmatprep.subr.bf16.mxu0 0
      %1707 = vmatpush1.bf16.msra.mxu0 0
      %1708 = vmatprep.subr.bf16.mxu0 0
      %1709 = vmatpush1.bf16.msra.mxu0 0
      %1710 = vmatprep.subr.bf16.mxu0 0
      %1711 = vmatpush1.bf16.msra.mxu0 0
      %1712 = vmatprep.subr.bf16.mxu0 0
      %1713 = vmatpush1.bf16.msra.mxu0 0
      %1714 = vmatprep.subr.bf16.mxu0 0
      %1715 = vmatpush1.bf16.msra.mxu0 0
      %1716 = vmatprep.subr.bf16.mxu0 0
      %1717 = vmatpush1.bf16.msra.mxu0 0
      %1718 = vmatprep.subr.bf16.mxu0 0
      %1719 = vmatpush1.bf16.msra.mxu0 0
      %1720 = vmatprep.mubr.bf16.mxu0 0
      %1721 = vmatmul.mubr.bf16.gmra.mrb[0].mxu0 %v427
      %v1722 = vpop.f32.mrb[0].mxu0
      %v1723 = vadd.f32 %v263, %v1722
      %v1724 = vpop.f32.mrb[0].mxu0
      %v1725 = vadd.f32 %v263, %v1724
      %v1726 = vpop.f32.mrb[0].mxu0
      %v1727 = vpop.f32.mrb[0].mxu0
      %1728 = vdwg.mxu0
      %1729 = vmatprep.subr.bf16.mxu0 %v596
      %1730 = vmatpush1.bf16.msra.mxu0 %v593
      %1731 = vmatprep.subr.bf16.mxu0 0
      %1732 = vmatpush1.bf16.msra.mxu0 0
      %1733 = vmatprep.subr.bf16.mxu0 0
      %1734 = vmatpush1.bf16.msra.mxu0 0
      %1735 = vmatprep.subr.bf16.mxu0 0
      %1736 = vmatpush1.bf16.msra.mxu0 0
      %1737 = vmatprep.subr.bf16.mxu0 0
      %1738 = vmatpush1.bf16.msra.mxu0 0
      %1739 = vmatprep.subr.bf16.mxu0 0
      %1740 = vmatpush1.bf16.msra.mxu0 0
      %1741 = vmatprep.subr.bf16.mxu0 0
      %1742 = vmatpush1.bf16.msra.mxu0 0
      %1743 = vmatprep.subr.bf16.mxu0 0
      %1744 = vmatpush1.bf16.msra.mxu0 0
      %1745 = vmatprep.subr.bf16.mxu0 0
      %1746 = vmatpush1.bf16.msra.mxu0 0
      %1747 = vmatprep.subr.bf16.mxu0 0
      %1748 = vmatpush1.bf16.msra.mxu0 0
      %1749 = vmatprep.subr.bf16.mxu0 0
      %1750 = vmatpush1.bf16.msra.mxu0 0
      %1751 = vmatprep.subr.bf16.mxu0 0
      %1752 = vmatpush1.bf16.msra.mxu0 0
      %1753 = vmatprep.subr.bf16.mxu0 0
      %1754 = vmatpush1.bf16.msra.mxu0 0
      %1755 = vmatprep.subr.bf16.mxu0 0
      %1756 = vmatpush1.bf16.msra.mxu0 0
      %1757 = vmatprep.subr.bf16.mxu0 0
      %1758 = vmatpush1.bf16.msra.mxu0 0
      %1759 = vmatprep.subr.bf16.mxu0 0
      %1760 = vmatpush1.bf16.msra.mxu0 0
      %1761 = vmatprep.mubr.bf16.mxu0 0
      %1762 = vmatmul.mubr.bf16.gmra.mrb[0].mxu0 %v427
      %v1763 = vpop.f32.mrb[0].mxu0
      %v1764 = vadd.f32 %v263, %v1763
      %v1765 = vpop.f32.mrb[0].mxu0
      %v1766 = vadd.f32 %v263, %v1765
      %v1767 = vpop.f32.mrb[0].mxu0
      %v1768 = vpop.f32.mrb[0].mxu0
      %1769 = vdwg.mxu0
      %1770 = vmatprep.subr.bf16.mxu0 %v602
      %1771 = vmatpush1.bf16.msra.mxu0 %v599
      %1772 = vmatprep.subr.bf16.mxu0 0
      %1773 = vmatpush1.bf16.msra.mxu0 0
      %1774 = vmatprep.subr.bf16.mxu0 0
      %1775 = vmatpush1.bf16.msra.mxu0 0
      %1776 = vmatprep.subr.bf16.mxu0 0
      %1777 = vmatpush1.bf16.msra.mxu0 0
      %1778 = vmatprep.subr.bf16.mxu0 0
      %1779 = vmatpush1.bf16.msra.mxu0 0
      %1780 = vmatprep.subr.bf16.mxu0 0
      %1781 = vmatpush1.bf16.msra.mxu0 0
      %1782 = vmatprep.subr.bf16.mxu0 0
      %1783 = vmatpush1.bf16.msra.mxu0 0
      %1784 = vmatprep.subr.bf16.mxu0 0
      %1785 = vmatpush1.bf16.msra.mxu0 0
      %1786 = vmatprep.subr.bf16.mxu0 0
      %1787 = vmatpush1.bf16.msra.mxu0 0
      %1788 = vmatprep.subr.bf16.mxu0 0
      %1789 = vmatpush1.bf16.msra.mxu0 0
      %1790 = vmatprep.subr.bf16.mxu0 0
      %1791 = vmatpush1.bf16.msra.mxu0 0
      %1792 = vmatprep.subr.bf16.mxu0 0
      %1793 = vmatpush1.bf16.msra.mxu0 0
      %1794 = vmatprep.subr.bf16.mxu0 0
      %1795 = vmatpush1.bf16.msra.mxu0 0
      %1796 = vmatprep.subr.bf16.mxu0 0
      %1797 = vmatpush1.bf16.msra.mxu0 0
      %1798 = vmatprep.subr.bf16.mxu0 0
      %1799 = vmatpush1.bf16.msra.mxu0 0
      %1800 = vmatprep.subr.bf16.mxu0 0
      %1801 = vmatpush1.bf16.msra.mxu0 0
      %1802 = vmatprep.mubr.bf16.mxu0 0
      %1803 = vmatmul.mubr.bf16.gmra.mrb[0].mxu0 %v427
      %v1804 = vpop.f32.mrb[0].mxu0
      %v1805 = vadd.f32 %v263, %v1804
      %v1806 = vpop.f32.mrb[0].mxu0
      %v1807 = vadd.f32 %v263, %v1806
      %v1808 = vpop.f32.mrb[0].mxu0
      %v1809 = vpop.f32.mrb[0].mxu0
      %1810 = vdwg.mxu0
      %1811 = vmatprep.subr.bf16.mxu0 %v608
      %1812 = vmatpush1.bf16.msra.mxu0 %v605
      %1813 = vmatprep.subr.bf16.mxu0 0
      %1814 = vmatpush1.bf16.msra.mxu0 0
      %1815 = vmatprep.subr.bf16.mxu0 0
      %1816 = vmatpush1.bf16.msra.mxu0 0
      %1817 = vmatprep.subr.bf16.mxu0 0
      %1818 = vmatpush1.bf16.msra.mxu0 0
      %1819 = vmatprep.subr.bf16.mxu0 0
      %1820 = vmatpush1.bf16.msra.mxu0 0
      %1821 = vmatprep.subr.bf16.mxu0 0
      %1822 = vmatpush1.bf16.msra.mxu0 0
      %1823 = vmatprep.subr.bf16.mxu0 0
      %1824 = vmatpush1.bf16.msra.mxu0 0
      %1825 = vmatprep.subr.bf16.mxu0 0
      %1826 = vmatpush1.bf16.msra.mxu0 0
      %1827 = vmatprep.subr.bf16.mxu0 0
      %1828 = vmatpush1.bf16.msra.mxu0 0
      %1829 = vmatprep.subr.bf16.mxu0 0
      %1830 = vmatpush1.bf16.msra.mxu0 0
      %1831 = vmatprep.subr.bf16.mxu0 0
      %1832 = vmatpush1.bf16.msra.mxu0 0
      %1833 = vmatprep.subr.bf16.mxu0 0
      %1834 = vmatpush1.bf16.msra.mxu0 0
      %1835 = vmatprep.subr.bf16.mxu0 0
      %1836 = vmatpush1.bf16.msra.mxu0 0
      %1837 = vmatprep.subr.bf16.mxu0 0
      %1838 = vmatpush1.bf16.msra.mxu0 0
      %1839 = vmatprep.subr.bf16.mxu0 0
      %1840 = vmatpush1.bf16.msra.mxu0 0
      %1841 = vmatprep.subr.bf16.mxu0 0
      %1842 = vmatpush1.bf16.msra.mxu0 0
      %1843 = vmatprep.mubr.bf16.mxu0 0
      %1844 = vmatmul.mubr.bf16.gmra.mrb[0].mxu0 %v427
      %v1845 = vpop.f32.mrb[0].mxu0
      %v1846 = vadd.f32 %v263, %v1845
      %v1847 = vpop.f32.mrb[0].mxu0
      %v1848 = vadd.f32 %v263, %v1847
      %v1849 = vpop.f32.mrb[0].mxu0
      %v1850 = vpop.f32.mrb[0].mxu0
      %1851 = vdwg.mxu0
      %1852 = vmatprep.subr.bf16.mxu0 %v614
      %1853 = vmatpush1.bf16.msra.mxu0 %v611
      %1854 = vmatprep.subr.bf16.mxu0 0
      %1855 = vmatpush1.bf16.msra.mxu0 0
      %1856 = vmatprep.subr.bf16.mxu0 0
      %1857 = vmatpush1.bf16.msra.mxu0 0
      %1858 = vmatprep.subr.bf16.mxu0 0
      %1859 = vmatpush1.bf16.msra.mxu0 0
      %1860 = vmatprep.subr.bf16.mxu0 0
      %1861 = vmatpush1.bf16.msra.mxu0 0
      %1862 = vmatprep.subr.bf16.mxu0 0
      %1863 = vmatpush1.bf16.msra.mxu0 0
      %1864 = vmatprep.subr.bf16.mxu0 0
      %1865 = vmatpush1.bf16.msra.mxu0 0
      %1866 = vmatprep.subr.bf16.mxu0 0
      %1867 = vmatpush1.bf16.msra.mxu0 0
      %1868 = vmatprep.subr.bf16.mxu0 0
      %1869 = vmatpush1.bf16.msra.mxu0 0
      %1870 = vmatprep.subr.bf16.mxu0 0
      %1871 = vmatpush1.bf16.msra.mxu0 0
      %1872 = vmatprep.subr.bf16.mxu0 0
      %1873 = vmatpush1.bf16.msra.mxu0 0
      %1874 = vmatprep.subr.bf16.mxu0 0
      %1875 = vmatpush1.bf16.msra.mxu0 0
      %1876 = vmatprep.subr.bf16.mxu0 0
      %1877 = vmatpush1.bf16.msra.mxu0 0
      %1878 = vmatprep.subr.bf16.mxu0 0
      %1879 = vmatpush1.bf16.msra.mxu0 0
      %1880 = vmatprep.subr.bf16.mxu0 0
      %1881 = vmatpush1.bf16.msra.mxu0 0
      %1882 = vmatprep.subr.bf16.mxu0 0
      %1883 = vmatpush1.bf16.msra.mxu0 0
      %1884 = vmatprep.mubr.bf16.mxu0 0
      %1885 = vmatmul.mubr.bf16.gmra.mrb[0].mxu0 %v427
      %v1886 = vpop.f32.mrb[0].mxu0
      %v1887 = vadd.f32 %v263, %v1886
      %v1888 = vpop.f32.mrb[0].mxu0
      %v1889 = vadd.f32 %v263, %v1888
      %v1890 = vpop.f32.mrb[0].mxu0
      %v1891 = vpop.f32.mrb[0].mxu0
      %1892 = vdwg.mxu0
      %1893 = vmatprep.subr.bf16.mxu0 %v620
      %1894 = vmatpush1.bf16.msra.mxu0 %v617
      %1895 = vmatprep.subr.bf16.mxu0 0
      %1896 = vmatpush1.bf16.msra.mxu0 0
      %1897 = vmatprep.subr.bf16.mxu0 0
      %1898 = vmatpush1.bf16.msra.mxu0 0
      %1899 = vmatprep.subr.bf16.mxu0 0
      %1900 = vmatpush1.bf16.msra.mxu0 0
      %1901 = vmatprep.subr.bf16.mxu0 0
      %1902 = vmatpush1.bf16.msra.mxu0 0
      %1903 = vmatprep.subr.bf16.mxu0 0
      %1904 = vmatpush1.bf16.msra.mxu0 0
      %1905 = vmatprep.subr.bf16.mxu0 0
      %1906 = vmatpush1.bf16.msra.mxu0 0
      %1907 = vmatprep.subr.bf16.mxu0 0
      %1908 = vmatpush1.bf16.msra.mxu0 0
      %1909 = vmatprep.subr.bf16.mxu0 0
      %1910 = vmatpush1.bf16.msra.mxu0 0
      %1911 = vmatprep.subr.bf16.mxu0 0
      %1912 = vmatpush1.bf16.msra.mxu0 0
      %1913 = vmatprep.subr.bf16.mxu0 0
      %1914 = vmatpush1.bf16.msra.mxu0 0
      %1915 = vmatprep.subr.bf16.mxu0 0
      %1916 = vmatpush1.bf16.msra.mxu0 0
      %1917 = vmatprep.subr.bf16.mxu0 0
      %1918 = vmatpush1.bf16.msra.mxu0 0
      %1919 = vmatprep.subr.bf16.mxu0 0
      %1920 = vmatpush1.bf16.msra.mxu0 0
      %1921 = vmatprep.subr.bf16.mxu0 0
      %1922 = vmatpush1.bf16.msra.mxu0 0
      %1923 = vmatprep.subr.bf16.mxu0 0
      %1924 = vmatpush1.bf16.msra.mxu0 0
      %1925 = vmatprep.mubr.bf16.mxu0 0
      %1926 = vmatmul.mubr.bf16.gmra.mrb[0].mxu0 %v427
      %v1927 = vpop.f32.mrb[0].mxu0
      %v1928 = vadd.f32 %v263, %v1927
      %v1929 = vpop.f32.mrb[0].mxu0
      %v1930 = vadd.f32 %v263, %v1929
      %v1931 = vpop.f32.mrb[0].mxu0
      %v1932 = vpop.f32.mrb[0].mxu0
      %1933 = vdwg.mxu0
      %v1934 = vmax.f32 %v657, 0.0
      %v1935 = vmax.f32 %v659, 0.0
      %v1936 = vmax.f32 %v698, 0.0
      %v1937 = vmax.f32 %v700, 0.0
      %v1938 = vmax.f32 %v739, 0.0
      %v1939 = vmax.f32 %v741, 0.0
      %v1940 = vmax.f32 %v780, 0.0
      %v1941 = vmax.f32 %v782, 0.0
      %v1942 = vmax.f32 %v821, 0.0
      %v1943 = vmax.f32 %v823, 0.0
      %v1944 = vmax.f32 %v862, 0.0
      %v1945 = vmax.f32 %v864, 0.0
      %v1946 = vmax.f32 %v903, 0.0
      %v1947 = vmax.f32 %v905, 0.0
      %v1948 = vmax.f32 %v944, 0.0
      %v1949 = vmax.f32 %v946, 0.0
      %v1950 = vmax.f32 %v985, 0.0
      %v1951 = vmax.f32 %v987, 0.0
      %v1952 = vmax.f32 %v1026, 0.0
      %v1953 = vmax.f32 %v1028, 0.0
      %v1954 = vmax.f32 %v1067, 0.0
      %v1955 = vmax.f32 %v1069, 0.0
      %v1956 = vmax.f32 %v1108, 0.0
      %v1957 = vmax.f32 %v1110, 0.0
      %v1958 = vmax.f32 %v1149, 0.0
      %v1959 = vmax.f32 %v1151, 0.0
      %v1960 = vmax.f32 %v1190, 0.0
      %v1961 = vmax.f32 %v1192, 0.0
      %v1962 = vmax.f32 %v1231, 0.0
      %v1963 = vmax.f32 %v1233, 0.0
      %v1964 = vmax.f32 %v1272, 0.0
      %v1965 = vmax.f32 %v1274, 0.0
      %v1966 = vmax.f32 %v1313, 0.0
      %v1967 = vmax.f32 %v1315, 0.0
      %v1968 = vmax.f32 %v1354, 0.0
      %v1969 = vmax.f32 %v1356, 0.0
      %v1970 = vmax.f32 %v1395, 0.0
      %v1971 = vmax.f32 %v1397, 0.0
      %v1972 = vmax.f32 %v1436, 0.0
      %v1973 = vmax.f32 %v1438, 0.0
      %v1974 = vmax.f32 %v1477, 0.0
      %v1975 = vmax.f32 %v1479, 0.0
      %v1976 = vmax.f32 %v1518, 0.0
      %v1977 = vmax.f32 %v1520, 0.0
      %v1978 = vmax.f32 %v1559, 0.0
      %v1979 = vmax.f32 %v1561, 0.0
      %v1980 = vmax.f32 %v1600, 0.0
      %v1981 = vmax.f32 %v1602, 0.0
      %v1982 = vmax.f32 %v1641, 0.0
      %v1983 = vmax.f32 %v1643, 0.0
      %v1984 = vmax.f32 %v1682, 0.0
      %v1985 = vmax.f32 %v1684, 0.0
      %v1986 = vmax.f32 %v1723, 0.0
      %v1987 = vmax.f32 %v1725, 0.0
      %v1988 = vmax.f32 %v1764, 0.0
      %v1989 = vmax.f32 %v1766, 0.0
      %v1990 = vmax.f32 %v1805, 0.0
      %v1991 = vmax.f32 %v1807, 0.0
      %v1992 = vmax.f32 %v1846, 0.0
      %v1993 = vmax.f32 %v1848, 0.0
      %v1994 = vmax.f32 %v1887, 0.0
      %v1995 = vmax.f32 %v1889, 0.0
      %v1996 = vmax.f32 %v1928, 0.0
      %v1997 = vmax.f32 %v1930, 0.0
      %v1998 = vpack.c.bf16 %v1934, %v1934
      %v1999 = vpack.c.bf16 %v1935, %v1935
      %v2000 = vpack.c.bf16 %v1936, %v1936
      %v2001 = vpack.c.bf16 %v1937, %v1937
      %v2002 = vpack.c.bf16 %v1938, %v1938
      %v2003 = vpack.c.bf16 %v1939, %v1939
      %v2004 = vpack.c.bf16 %v1940, %v1940
      %v2005 = vpack.c.bf16 %v1941, %v1941
      %v2006 = vpack.c.bf16 %v1942, %v1942
      %v2007 = vpack.c.bf16 %v1943, %v1943
      %v2008 = vpack.c.bf16 %v1944, %v1944
      %v2009 = vpack.c.bf16 %v1945, %v1945
      %v2010 = vpack.c.bf16 %v1946, %v1946
      %v2011 = vpack.c.bf16 %v1947, %v1947
      %v2012 = vpack.c.bf16 %v1948, %v1948
      %v2013 = vpack.c.bf16 %v1949, %v1949
      %v2014 = vpack.c.bf16 %v1950, %v1950
      %v2015 = vpack.c.bf16 %v1951, %v1951
      %v2016 = vpack.c.bf16 %v1952, %v1952
      %v2017 = vpack.c.bf16 %v1953, %v1953
      %v2018 = vpack.c.bf16 %v1954, %v1954
      %v2019 = vpack.c.bf16 %v1955, %v1955
      %v2020 = vpack.c.bf16 %v1956, %v1956
      %v2021 = vpack.c.bf16 %v1957, %v1957
      %v2022 = vpack.c.bf16 %v1958, %v1958
      %v2023 = vpack.c.bf16 %v1959, %v1959
      %v2024 = vpack.c.bf16 %v1960, %v1960
      %v2025 = vpack.c.bf16 %v1961, %v1961
      %v2026 = vpack.c.bf16 %v1962, %v1962
      %v2027 = vpack.c.bf16 %v1963, %v1963
      %v2028 = vpack.c.bf16 %v1964, %v1964
      %v2029 = vpack.c.bf16 %v1965, %v1965
      %v2030 = vpack.c.bf16 %v1966, %v1966
      %v2031 = vpack.c.bf16 %v1967, %v1967
      %v2032 = vpack.c.bf16 %v1968, %v1968
      %v2033 = vpack.c.bf16 %v1969, %v1969
      %v2034 = vpack.c.bf16 %v1970, %v1970
      %v2035 = vpack.c.bf16 %v1971, %v1971
      %v2036 = vpack.c.bf16 %v1972, %v1972
      %v2037 = vpack.c.bf16 %v1973, %v1973
      %v2038 = vpack.c.bf16 %v1974, %v1974
      %v2039 = vpack.c.bf16 %v1975, %v1975
      %v2040 = vpack.c.bf16 %v1976, %v1976
      %v2041 = vpack.c.bf16 %v1977, %v1977
      %v2042 = vpack.c.bf16 %v1978, %v1978
      %v2043 = vpack.c.bf16 %v1979, %v1979
      %v2044 = vpack.c.bf16 %v1980, %v1980
      %v2045 = vpack.c.bf16 %v1981, %v1981
      %v2046 = vpack.c.bf16 %v1982, %v1982
      %v2047 = vpack.c.bf16 %v1983, %v1983
      %v2048 = vpack.c.bf16 %v1984, %v1984
      %v2049 = vpack.c.bf16 %v1985, %v1985
      %v2050 = vpack.c.bf16 %v1986, %v1986
      %v2051 = vpack.c.bf16 %v1987, %v1987
      %v2052 = vpack.c.bf16 %v1988, %v1988
      %v2053 = vpack.c.bf16 %v1989, %v1989
      %v2054 = vpack.c.bf16 %v1990, %v1990
      %v2055 = vpack.c.bf16 %v1991, %v1991
      %v2056 = vpack.c.bf16 %v1992, %v1992
      %v2057 = vpack.c.bf16 %v1993, %v1993
      %v2058 = vpack.c.bf16 %v1994, %v1994
      %v2059 = vpack.c.bf16 %v1995, %v1995
      %v2060 = vpack.c.bf16 %v1996, %v1996
      %v2061 = vpack.c.bf16 %v1997, %v1997
      %v2062 = vld [vmem:[%s3] sm:$0xf]
      %v2063 = vld [vmem:[%s3 + $0x4] sm:$0xf]
      %v2066 = vunpack.c.l.b16 %v2062
      %v2067 = vunpack.c.l.b16 %v2063
      %v2068 = vpack.c.b16 %v2067, %v2066
      %vm2069 = vcmask 64512
      %v2071 = vsel %vm2069, %v2068, 0
      %vm2073 = vcmask 1043456
      %v2075 = vsel %vm2073, %v1998, 0
      %v2078 = vsel %vm2073, %v1999, 0
      %v2081 = vsel %vm2073, %v2000, 0
      %v2084 = vsel %vm2073, %v2001, 0
      %v2087 = vsel %vm2073, %v2002, 0
      %v2090 = vsel %vm2073, %v2003, 0
      %v2093 = vsel %vm2073, %v2004, 0
      %v2096 = vsel %vm2073, %v2005, 0
      %v2099 = vsel %vm2073, %v2006, 0
      %v2102 = vsel %vm2073, %v2007, 0
      %v2105 = vsel %vm2073, %v2008, 0
      %v2108 = vsel %vm2073, %v2009, 0
      %v2111 = vsel %vm2073, %v2010, 0
      %v2114 = vsel %vm2073, %v2011, 0
      %v2117 = vsel %vm2073, %v2012, 0
      %v2120 = vsel %vm2073, %v2013, 0
      %v2123 = vsel %vm2073, %v2014, 0
      %v2126 = vsel %vm2073, %v2015, 0
      %v2129 = vsel %vm2073, %v2016, 0
      %v2132 = vsel %vm2073, %v2017, 0
      %v2135 = vsel %vm2073, %v2018, 0
      %v2138 = vsel %vm2073, %v2019, 0
      %v2141 = vsel %vm2073, %v2020, 0
      %v2144 = vsel %vm2073, %v2021, 0
      %v2147 = vsel %vm2073, %v2022, 0
      %v2150 = vsel %vm2073, %v2023, 0
      %v2153 = vsel %vm2073, %v2024, 0
      %v2156 = vsel %vm2073, %v2025, 0
      %v2159 = vsel %vm2073, %v2026, 0
      %v2162 = vsel %vm2073, %v2027, 0
      %v2165 = vsel %vm2073, %v2028, 0
      %v2168 = vsel %vm2073, %v2029, 0
      %v2171 = vsel %vm2073, %v2030, 0
      %v2174 = vsel %vm2073, %v2031, 0
      %v2177 = vsel %vm2073, %v2032, 0
      %v2180 = vsel %vm2073, %v2033, 0
      %v2183 = vsel %vm2073, %v2034, 0
      %v2186 = vsel %vm2073, %v2035, 0
      %v2189 = vsel %vm2073, %v2036, 0
      %v2192 = vsel %vm2073, %v2037, 0
      %v2195 = vsel %vm2073, %v2038, 0
      %v2198 = vsel %vm2073, %v2039, 0
      %v2201 = vsel %vm2073, %v2040, 0
      %v2204 = vsel %vm2073, %v2041, 0
      %v2207 = vsel %vm2073, %v2042, 0
      %v2210 = vsel %vm2073, %v2043, 0
      %v2213 = vsel %vm2073, %v2044, 0
      %v2216 = vsel %vm2073, %v2045, 0
      %v2219 = vsel %vm2073, %v2046, 0
      %v2222 = vsel %vm2073, %v2047, 0
      %v2225 = vsel %vm2073, %v2048, 0
      %v2228 = vsel %vm2073, %v2049, 0
      %v2231 = vsel %vm2073, %v2050, 0
      %v2234 = vsel %vm2073, %v2051, 0
      %v2237 = vsel %vm2073, %v2052, 0
      %v2240 = vsel %vm2073, %v2053, 0
      %v2243 = vsel %vm2073, %v2054, 0
      %v2246 = vsel %vm2073, %v2055, 0
      %v2249 = vsel %vm2073, %v2056, 0
      %v2252 = vsel %vm2073, %v2057, 0
      %v2255 = vsel %vm2073, %v2058, 0
      %v2258 = vsel %vm2073, %v2059, 0
      %v2261 = vsel %vm2073, %v2060, 0
      %v2264 = vsel %vm2073, %v2061, 0
      %2266 = vmatprep.subr.bf16.mxu0 %v2078
      %2267 = vmatpush1.bf16.msra.mxu0 %v2075
      %2268 = vmatprep.subr.bf16.mxu0 0
      %2269 = vmatpush1.bf16.msra.mxu0 0
      %2270 = vmatprep.subr.bf16.mxu0 0
      %2271 = vmatpush1.bf16.msra.mxu0 0
      %2272 = vmatprep.subr.bf16.mxu0 0
      %2273 = vmatpush1.bf16.msra.mxu0 0
      %2274 = vmatprep.subr.bf16.mxu0 0
      %2275 = vmatpush1.bf16.msra.mxu0 0
      %2276 = vmatprep.subr.bf16.mxu0 0
      %2277 = vmatpush1.bf16.msra.mxu0 0
      %2278 = vmatprep.subr.bf16.mxu0 0
      %2279 = vmatpush1.bf16.msra.mxu0 0
      %2280 = vmatprep.subr.bf16.mxu0 0
      %2281 = vmatpush1.bf16.msra.mxu0 0
      %2282 = vmatprep.subr.bf16.mxu0 0
      %2283 = vmatpush1.bf16.msra.mxu0 0
      %2284 = vmatprep.subr.bf16.mxu0 0
      %2285 = vmatpush1.bf16.msra.mxu0 0
      %2286 = vmatprep.subr.bf16.mxu0 0
      %2287 = vmatpush1.bf16.msra.mxu0 0
      %2288 = vmatprep.subr.bf16.mxu0 0
      %2289 = vmatpush1.bf16.msra.mxu0 0
      %2290 = vmatprep.subr.bf16.mxu0 0
      %2291 = vmatpush1.bf16.msra.mxu0 0
      %2292 = vmatprep.subr.bf16.mxu0 0
      %2293 = vmatpush1.bf16.msra.mxu0 0
      %2294 = vmatprep.subr.bf16.mxu0 0
      %2295 = vmatpush1.bf16.msra.mxu0 0
      %2296 = vmatprep.subr.bf16.mxu0 0
      %2297 = vmatpush1.bf16.msra.mxu0 0
      %2298 = vmatprep.mubr.bf16.mxu0 0
      %2299 = vmatmul.mubr.bf16.gmra.mrb[0].mxu0 %v2071
      %v2300 = vpop.f32.mrb[0].mxu0
      %v2301 = vadd.f32 0.0, %v2300
      %v2302 = vpop.f32.mrb[0].mxu0
      %v2303 = vadd.f32 0.0, %v2302
      %v2304 = vpop.f32.mrb[0].mxu0
      %v2305 = vadd.f32 0.0, %v2304
      %v2306 = vpop.f32.mrb[0].mxu0
      %v2307 = vadd.f32 0.0, %v2306
      %2308 = vdwg.mxu0
      %2309 = vmatprep.subr.bf16.mxu0 %v2084
      %2310 = vmatpush1.bf16.msra.mxu0 %v2081
      %2311 = vmatprep.subr.bf16.mxu0 0
      %2312 = vmatpush1.bf16.msra.mxu0 0
      %2313 = vmatprep.subr.bf16.mxu0 0
      %2314 = vmatpush1.bf16.msra.mxu0 0
      %2315 = vmatprep.subr.bf16.mxu0 0
      %2316 = vmatpush1.bf16.msra.mxu0 0
      %2317 = vmatprep.subr.bf16.mxu0 0
      %2318 = vmatpush1.bf16.msra.mxu0 0
      %2319 = vmatprep.subr.bf16.mxu0 0
      %2320 = vmatpush1.bf16.msra.mxu0 0
      %2321 = vmatprep.subr.bf16.mxu0 0
      %2322 = vmatpush1.bf16.msra.mxu0 0
      %2323 = vmatprep.subr.bf16.mxu0 0
      %2324 = vmatpush1.bf16.msra.mxu0 0
      %2325 = vmatprep.subr.bf16.mxu0 0
      %2326 = vmatpush1.bf16.msra.mxu0 0
      %2327 = vmatprep.subr.bf16.mxu0 0
      %2328 = vmatpush1.bf16.msra.mxu0 0
      %2329 = vmatprep.subr.bf16.mxu0 0
      %2330 = vmatpush1.bf16.msra.mxu0 0
      %2331 = vmatprep.subr.bf16.mxu0 0
      %2332 = vmatpush1.bf16.msra.mxu0 0
      %2333 = vmatprep.subr.bf16.mxu0 0
      %2334 = vmatpush1.bf16.msra.mxu0 0
      %2335 = vmatprep.subr.bf16.mxu0 0
      %2336 = vmatpush1.bf16.msra.mxu0 0
      %2337 = vmatprep.subr.bf16.mxu0 0
      %2338 = vmatpush1.bf16.msra.mxu0 0
      %2339 = vmatprep.subr.bf16.mxu0 0
      %2340 = vmatpush1.bf16.msra.mxu0 0
      %2341 = vmatprep.mubr.bf16.mxu0 0
      %2342 = vmatmul.mubr.bf16.gmra.mrb[0].mxu0 %v2071
      %v2343 = vpop.f32.mrb[0].mxu0
      %v2344 = vadd.f32 0.0, %v2343
      %v2345 = vpop.f32.mrb[0].mxu0
      %v2346 = vadd.f32 0.0, %v2345
      %v2347 = vpop.f32.mrb[0].mxu0
      %v2348 = vadd.f32 0.0, %v2347
      %v2349 = vpop.f32.mrb[0].mxu0
      %v2350 = vadd.f32 0.0, %v2349
      %2351 = vdwg.mxu0
      %2352 = vmatprep.subr.bf16.mxu0 %v2090
      %2353 = vmatpush1.bf16.msra.mxu0 %v2087
      %2354 = vmatprep.subr.bf16.mxu0 0
      %2355 = vmatpush1.bf16.msra.mxu0 0
      %2356 = vmatprep.subr.bf16.mxu0 0
      %2357 = vmatpush1.bf16.msra.mxu0 0
      %2358 = vmatprep.subr.bf16.mxu0 0
      %2359 = vmatpush1.bf16.msra.mxu0 0
      %2360 = vmatprep.subr.bf16.mxu0 0
      %2361 = vmatpush1.bf16.msra.mxu0 0
      %2362 = vmatprep.subr.bf16.mxu0 0
      %2363 = vmatpush1.bf16.msra.mxu0 0
      %2364 = vmatprep.subr.bf16.mxu0 0
      %2365 = vmatpush1.bf16.msra.mxu0 0
      %2366 = vmatprep.subr.bf16.mxu0 0
      %2367 = vmatpush1.bf16.msra.mxu0 0
      %2368 = vmatprep.subr.bf16.mxu0 0
      %2369 = vmatpush1.bf16.msra.mxu0 0
      %2370 = vmatprep.subr.bf16.mxu0 0
      %2371 = vmatpush1.bf16.msra.mxu0 0
      %2372 = vmatprep.subr.bf16.mxu0 0
      %2373 = vmatpush1.bf16.msra.mxu0 0
      %2374 = vmatprep.subr.bf16.mxu0 0
      %2375 = vmatpush1.bf16.msra.mxu0 0
      %2376 = vmatprep.subr.bf16.mxu0 0
      %2377 = vmatpush1.bf16.msra.mxu0 0
      %2378 = vmatprep.subr.bf16.mxu0 0
      %2379 = vmatpush1.bf16.msra.mxu0 0
      %2380 = vmatprep.subr.bf16.mxu0 0
      %2381 = vmatpush1.bf16.msra.mxu0 0
      %2382 = vmatprep.subr.bf16.mxu0 0
      %2383 = vmatpush1.bf16.msra.mxu0 0
      %2384 = vmatprep.mubr.bf16.mxu0 0
      %2385 = vmatmul.mubr.bf16.gmra.mrb[0].mxu0 %v2071
      %v2386 = vpop.f32.mrb[0].mxu0
      %v2387 = vadd.f32 0.0, %v2386
      %v2388 = vpop.f32.mrb[0].mxu0
      %v2389 = vadd.f32 0.0, %v2388
      %v2390 = vpop.f32.mrb[0].mxu0
      %v2391 = vadd.f32 0.0, %v2390
      %v2392 = vpop.f32.mrb[0].mxu0
      %v2393 = vadd.f32 0.0, %v2392
      %2394 = vdwg.mxu0
      %2395 = vmatprep.subr.bf16.mxu0 %v2096
      %2396 = vmatpush1.bf16.msra.mxu0 %v2093
      %2397 = vmatprep.subr.bf16.mxu0 0
      %2398 = vmatpush1.bf16.msra.mxu0 0
      %2399 = vmatprep.subr.bf16.mxu0 0
      %2400 = vmatpush1.bf16.msra.mxu0 0
      %2401 = vmatprep.subr.bf16.mxu0 0
      %2402 = vmatpush1.bf16.msra.mxu0 0
      %2403 = vmatprep.subr.bf16.mxu0 0
      %2404 = vmatpush1.bf16.msra.mxu0 0
      %2405 = vmatprep.subr.bf16.mxu0 0
      %2406 = vmatpush1.bf16.msra.mxu0 0
      %2407 = vmatprep.subr.bf16.mxu0 0
      %2408 = vmatpush1.bf16.msra.mxu0 0
      %2409 = vmatprep.subr.bf16.mxu0 0
      %2410 = vmatpush1.bf16.msra.mxu0 0
      %2411 = vmatprep.subr.bf16.mxu0 0
      %2412 = vmatpush1.bf16.msra.mxu0 0
      %2413 = vmatprep.subr.bf16.mxu0 0
      %2414 = vmatpush1.bf16.msra.mxu0 0
      %2415 = vmatprep.subr.bf16.mxu0 0
      %2416 = vmatpush1.bf16.msra.mxu0 0
      %2417 = vmatprep.subr.bf16.mxu0 0
      %2418 = vmatpush1.bf16.msra.mxu0 0
      %2419 = vmatprep.subr.bf16.mxu0 0
      %2420 = vmatpush1.bf16.msra.mxu0 0
      %2421 = vmatprep.subr.bf16.mxu0 0
      %2422 = vmatpush1.bf16.msra.mxu0 0
      %2423 = vmatprep.subr.bf16.mxu0 0
      %2424 = vmatpush1.bf16.msra.mxu0 0
      %2425 = vmatprep.subr.bf16.mxu0 0
      %2426 = vmatpush1.bf16.msra.mxu0 0
      %2427 = vmatprep.mubr.bf16.mxu0 0
      %2428 = vmatmul.mubr.bf16.gmra.mrb[0].mxu0 %v2071
      %v2429 = vpop.f32.mrb[0].mxu0
      %v2430 = vadd.f32 0.0, %v2429
      %v2431 = vpop.f32.mrb[0].mxu0
      %v2432 = vadd.f32 0.0, %v2431
      %v2433 = vpop.f32.mrb[0].mxu0
      %v2434 = vadd.f32 0.0, %v2433
      %v2435 = vpop.f32.mrb[0].mxu0
      %v2436 = vadd.f32 0.0, %v2435
      %2437 = vdwg.mxu0
      %2438 = vmatprep.subr.bf16.mxu0 %v2102
      %2439 = vmatpush1.bf16.msra.mxu0 %v2099
      %2440 = vmatprep.subr.bf16.mxu0 0
      %2441 = vmatpush1.bf16.msra.mxu0 0
      %2442 = vmatprep.subr.bf16.mxu0 0
      %2443 = vmatpush1.bf16.msra.mxu0 0
      %2444 = vmatprep.subr.bf16.mxu0 0
      %2445 = vmatpush1.bf16.msra.mxu0 0
      %2446 = vmatprep.subr.bf16.mxu0 0
      %2447 = vmatpush1.bf16.msra.mxu0 0
      %2448 = vmatprep.subr.bf16.mxu0 0
      %2449 = vmatpush1.bf16.msra.mxu0 0
      %2450 = vmatprep.subr.bf16.mxu0 0
      %2451 = vmatpush1.bf16.msra.mxu0 0
      %2452 = vmatprep.subr.bf16.mxu0 0
      %2453 = vmatpush1.bf16.msra.mxu0 0
      %2454 = vmatprep.subr.bf16.mxu0 0
      %2455 = vmatpush1.bf16.msra.mxu0 0
      %2456 = vmatprep.subr.bf16.mxu0 0
      %2457 = vmatpush1.bf16.msra.mxu0 0
      %2458 = vmatprep.subr.bf16.mxu0 0
      %2459 = vmatpush1.bf16.msra.mxu0 0
      %2460 = vmatprep.subr.bf16.mxu0 0
      %2461 = vmatpush1.bf16.msra.mxu0 0
      %2462 = vmatprep.subr.bf16.mxu0 0
      %2463 = vmatpush1.bf16.msra.mxu0 0
      %2464 = vmatprep.subr.bf16.mxu0 0
      %2465 = vmatpush1.bf16.msra.mxu0 0
      %2466 = vmatprep.subr.bf16.mxu0 0
      %2467 = vmatpush1.bf16.msra.mxu0 0
      %2468 = vmatprep.subr.bf16.mxu0 0
      %2469 = vmatpush1.bf16.msra.mxu0 0
      %2470 = vmatprep.mubr.bf16.mxu0 0
      %2471 = vmatmul.mubr.bf16.gmra.mrb[0].mxu0 %v2071
      %v2472 = vpop.f32.mrb[0].mxu0
      %v2473 = vadd.f32 0.0, %v2472
      %v2474 = vpop.f32.mrb[0].mxu0
      %v2475 = vadd.f32 0.0, %v2474
      %v2476 = vpop.f32.mrb[0].mxu0
      %v2477 = vadd.f32 0.0, %v2476
      %v2478 = vpop.f32.mrb[0].mxu0
      %v2479 = vadd.f32 0.0, %v2478
      %2480 = vdwg.mxu0
      %2481 = vmatprep.subr.bf16.mxu0 %v2108
      %2482 = vmatpush1.bf16.msra.mxu0 %v2105
      %2483 = vmatprep.subr.bf16.mxu0 0
      %2484 = vmatpush1.bf16.msra.mxu0 0
      %2485 = vmatprep.subr.bf16.mxu0 0
      %2486 = vmatpush1.bf16.msra.mxu0 0
      %2487 = vmatprep.subr.bf16.mxu0 0
      %2488 = vmatpush1.bf16.msra.mxu0 0
      %2489 = vmatprep.subr.bf16.mxu0 0
      %2490 = vmatpush1.bf16.msra.mxu0 0
      %2491 = vmatprep.subr.bf16.mxu0 0
      %2492 = vmatpush1.bf16.msra.mxu0 0
      %2493 = vmatprep.subr.bf16.mxu0 0
      %2494 = vmatpush1.bf16.msra.mxu0 0
      %2495 = vmatprep.subr.bf16.mxu0 0
      %2496 = vmatpush1.bf16.msra.mxu0 0
      %2497 = vmatprep.subr.bf16.mxu0 0
      %2498 = vmatpush1.bf16.msra.mxu0 0
      %2499 = vmatprep.subr.bf16.mxu0 0
      %2500 = vmatpush1.bf16.msra.mxu0 0
      %2501 = vmatprep.subr.bf16.mxu0 0
      %2502 = vmatpush1.bf16.msra.mxu0 0
      %2503 = vmatprep.subr.bf16.mxu0 0
      %2504 = vmatpush1.bf16.msra.mxu0 0
      %2505 = vmatprep.subr.bf16.mxu0 0
      %2506 = vmatpush1.bf16.msra.mxu0 0
      %2507 = vmatprep.subr.bf16.mxu0 0
      %2508 = vmatpush1.bf16.msra.mxu0 0
      %2509 = vmatprep.subr.bf16.mxu0 0
      %2510 = vmatpush1.bf16.msra.mxu0 0
      %2511 = vmatprep.subr.bf16.mxu0 0
      %2512 = vmatpush1.bf16.msra.mxu0 0
      %2513 = vmatprep.mubr.bf16.mxu0 0
      %2514 = vmatmul.mubr.bf16.gmra.mrb[0].mxu0 %v2071
      %v2515 = vpop.f32.mrb[0].mxu0
      %v2516 = vadd.f32 0.0, %v2515
      %v2517 = vpop.f32.mrb[0].mxu0
      %v2518 = vadd.f32 0.0, %v2517
      %v2519 = vpop.f32.mrb[0].mxu0
      %v2520 = vadd.f32 0.0, %v2519
      %v2521 = vpop.f32.mrb[0].mxu0
      %v2522 = vadd.f32 0.0, %v2521
      %2523 = vdwg.mxu0
      %2524 = vmatprep.subr.bf16.mxu0 %v2114
      %2525 = vmatpush1.bf16.msra.mxu0 %v2111
      %2526 = vmatprep.subr.bf16.mxu0 0
      %2527 = vmatpush1.bf16.msra.mxu0 0
      %2528 = vmatprep.subr.bf16.mxu0 0
      %2529 = vmatpush1.bf16.msra.mxu0 0
      %2530 = vmatprep.subr.bf16.mxu0 0
      %2531 = vmatpush1.bf16.msra.mxu0 0
      %2532 = vmatprep.subr.bf16.mxu0 0
      %2533 = vmatpush1.bf16.msra.mxu0 0
      %2534 = vmatprep.subr.bf16.mxu0 0
      %2535 = vmatpush1.bf16.msra.mxu0 0
      %2536 = vmatprep.subr.bf16.mxu0 0
      %2537 = vmatpush1.bf16.msra.mxu0 0
      %2538 = vmatprep.subr.bf16.mxu0 0
      %2539 = vmatpush1.bf16.msra.mxu0 0
      %2540 = vmatprep.subr.bf16.mxu0 0
      %2541 = vmatpush1.bf16.msra.mxu0 0
      %2542 = vmatprep.subr.bf16.mxu0 0
      %2543 = vmatpush1.bf16.msra.mxu0 0
      %2544 = vmatprep.subr.bf16.mxu0 0
      %2545 = vmatpush1.bf16.msra.mxu0 0
      %2546 = vmatprep.subr.bf16.mxu0 0
      %2547 = vmatpush1.bf16.msra.mxu0 0
      %2548 = vmatprep.subr.bf16.mxu0 0
      %2549 = vmatpush1.bf16.msra.mxu0 0
      %2550 = vmatprep.subr.bf16.mxu0 0
      %2551 = vmatpush1.bf16.msra.mxu0 0
      %2552 = vmatprep.subr.bf16.mxu0 0
      %2553 = vmatpush1.bf16.msra.mxu0 0
      %2554 = vmatprep.subr.bf16.mxu0 0
      %2555 = vmatpush1.bf16.msra.mxu0 0
      %2556 = vmatprep.mubr.bf16.mxu0 0
      %2557 = vmatmul.mubr.bf16.gmra.mrb[0].mxu0 %v2071
      %v2558 = vpop.f32.mrb[0].mxu0
      %v2559 = vadd.f32 0.0, %v2558
      %v2560 = vpop.f32.mrb[0].mxu0
      %v2561 = vadd.f32 0.0, %v2560
      %v2562 = vpop.f32.mrb[0].mxu0
      %v2563 = vadd.f32 0.0, %v2562
      %v2564 = vpop.f32.mrb[0].mxu0
      %v2565 = vadd.f32 0.0, %v2564
      %2566 = vdwg.mxu0
      %2567 = vmatprep.subr.bf16.mxu0 %v2120
      %2568 = vmatpush1.bf16.msra.mxu0 %v2117
      %2569 = vmatprep.subr.bf16.mxu0 0
      %2570 = vmatpush1.bf16.msra.mxu0 0
      %2571 = vmatprep.subr.bf16.mxu0 0
      %2572 = vmatpush1.bf16.msra.mxu0 0
      %2573 = vmatprep.subr.bf16.mxu0 0
      %2574 = vmatpush1.bf16.msra.mxu0 0
      %2575 = vmatprep.subr.bf16.mxu0 0
      %2576 = vmatpush1.bf16.msra.mxu0 0
      %2577 = vmatprep.subr.bf16.mxu0 0
      %2578 = vmatpush1.bf16.msra.mxu0 0
      %2579 = vmatprep.subr.bf16.mxu0 0
      %2580 = vmatpush1.bf16.msra.mxu0 0
      %2581 = vmatprep.subr.bf16.mxu0 0
      %2582 = vmatpush1.bf16.msra.mxu0 0
      %2583 = vmatprep.subr.bf16.mxu0 0
      %2584 = vmatpush1.bf16.msra.mxu0 0
      %2585 = vmatprep.subr.bf16.mxu0 0
      %2586 = vmatpush1.bf16.msra.mxu0 0
      %2587 = vmatprep.subr.bf16.mxu0 0
      %2588 = vmatpush1.bf16.msra.mxu0 0
      %2589 = vmatprep.subr.bf16.mxu0 0
      %2590 = vmatpush1.bf16.msra.mxu0 0
      %2591 = vmatprep.subr.bf16.mxu0 0
      %2592 = vmatpush1.bf16.msra.mxu0 0
      %2593 = vmatprep.subr.bf16.mxu0 0
      %2594 = vmatpush1.bf16.msra.mxu0 0
      %2595 = vmatprep.subr.bf16.mxu0 0
      %2596 = vmatpush1.bf16.msra.mxu0 0
      %2597 = vmatprep.subr.bf16.mxu0 0
      %2598 = vmatpush1.bf16.msra.mxu0 0
      %2599 = vmatprep.mubr.bf16.mxu0 0
      %2600 = vmatmul.mubr.bf16.gmra.mrb[0].mxu0 %v2071
      %v2601 = vpop.f32.mrb[0].mxu0
      %v2602 = vadd.f32 0.0, %v2601
      %v2603 = vpop.f32.mrb[0].mxu0
      %v2604 = vadd.f32 0.0, %v2603
      %v2605 = vpop.f32.mrb[0].mxu0
      %v2606 = vadd.f32 0.0, %v2605
      %v2607 = vpop.f32.mrb[0].mxu0
      %v2608 = vadd.f32 0.0, %v2607
      %2609 = vdwg.mxu0
      %2610 = vmatprep.subr.bf16.mxu0 %v2126
      %2611 = vmatpush1.bf16.msra.mxu0 %v2123
      %2612 = vmatprep.subr.bf16.mxu0 0
      %2613 = vmatpush1.bf16.msra.mxu0 0
      %2614 = vmatprep.subr.bf16.mxu0 0
      %2615 = vmatpush1.bf16.msra.mxu0 0
      %2616 = vmatprep.subr.bf16.mxu0 0
      %2617 = vmatpush1.bf16.msra.mxu0 0
      %2618 = vmatprep.subr.bf16.mxu0 0
      %2619 = vmatpush1.bf16.msra.mxu0 0
      %2620 = vmatprep.subr.bf16.mxu0 0
      %2621 = vmatpush1.bf16.msra.mxu0 0
      %2622 = vmatprep.subr.bf16.mxu0 0
      %2623 = vmatpush1.bf16.msra.mxu0 0
      %2624 = vmatprep.subr.bf16.mxu0 0
      %2625 = vmatpush1.bf16.msra.mxu0 0
      %2626 = vmatprep.subr.bf16.mxu0 0
      %2627 = vmatpush1.bf16.msra.mxu0 0
      %2628 = vmatprep.subr.bf16.mxu0 0
      %2629 = vmatpush1.bf16.msra.mxu0 0
      %2630 = vmatprep.subr.bf16.mxu0 0
      %2631 = vmatpush1.bf16.msra.mxu0 0
      %2632 = vmatprep.subr.bf16.mxu0 0
      %2633 = vmatpush1.bf16.msra.mxu0 0
      %2634 = vmatprep.subr.bf16.mxu0 0
      %2635 = vmatpush1.bf16.msra.mxu0 0
      %2636 = vmatprep.subr.bf16.mxu0 0
      %2637 = vmatpush1.bf16.msra.mxu0 0
      %2638 = vmatprep.subr.bf16.mxu0 0
      %2639 = vmatpush1.bf16.msra.mxu0 0
      %2640 = vmatprep.subr.bf16.mxu0 0
      %2641 = vmatpush1.bf16.msra.mxu0 0
      %2642 = vmatprep.mubr.bf16.mxu0 0
      %2643 = vmatmul.mubr.bf16.gmra.mrb[0].mxu0 %v2071
      %v2644 = vpop.f32.mrb[0].mxu0
      %v2645 = vadd.f32 0.0, %v2644
      %v2646 = vpop.f32.mrb[0].mxu0
      %v2647 = vadd.f32 0.0, %v2646
      %v2648 = vpop.f32.mrb[0].mxu0
      %v2649 = vadd.f32 0.0, %v2648
      %v2650 = vpop.f32.mrb[0].mxu0
      %v2651 = vadd.f32 0.0, %v2650
      %2652 = vdwg.mxu0
      %2653 = vmatprep.subr.bf16.mxu0 %v2132
      %2654 = vmatpush1.bf16.msra.mxu0 %v2129
      %2655 = vmatprep.subr.bf16.mxu0 0
      %2656 = vmatpush1.bf16.msra.mxu0 0
      %2657 = vmatprep.subr.bf16.mxu0 0
      %2658 = vmatpush1.bf16.msra.mxu0 0
      %2659 = vmatprep.subr.bf16.mxu0 0
      %2660 = vmatpush1.bf16.msra.mxu0 0
      %2661 = vmatprep.subr.bf16.mxu0 0
      %2662 = vmatpush1.bf16.msra.mxu0 0
      %2663 = vmatprep.subr.bf16.mxu0 0
      %2664 = vmatpush1.bf16.msra.mxu0 0
      %2665 = vmatprep.subr.bf16.mxu0 0
      %2666 = vmatpush1.bf16.msra.mxu0 0
      %2667 = vmatprep.subr.bf16.mxu0 0
      %2668 = vmatpush1.bf16.msra.mxu0 0
      %2669 = vmatprep.subr.bf16.mxu0 0
      %2670 = vmatpush1.bf16.msra.mxu0 0
      %2671 = vmatprep.subr.bf16.mxu0 0
      %2672 = vmatpush1.bf16.msra.mxu0 0
      %2673 = vmatprep.subr.bf16.mxu0 0
      %2674 = vmatpush1.bf16.msra.mxu0 0
      %2675 = vmatprep.subr.bf16.mxu0 0
      %2676 = vmatpush1.bf16.msra.mxu0 0
      %2677 = vmatprep.subr.bf16.mxu0 0
      %2678 = vmatpush1.bf16.msra.mxu0 0
      %2679 = vmatprep.subr.bf16.mxu0 0
      %2680 = vmatpush1.bf16.msra.mxu0 0
      %2681 = vmatprep.subr.bf16.mxu0 0
      %2682 = vmatpush1.bf16.msra.mxu0 0
      %2683 = vmatprep.subr.bf16.mxu0 0
      %2684 = vmatpush1.bf16.msra.mxu0 0
      %2685 = vmatprep.mubr.bf16.mxu0 0
      %2686 = vmatmul.mubr.bf16.gmra.mrb[0].mxu0 %v2071
      %v2687 = vpop.f32.mrb[0].mxu0
      %v2688 = vadd.f32 0.0, %v2687
      %v2689 = vpop.f32.mrb[0].mxu0
      %v2690 = vadd.f32 0.0, %v2689
      %v2691 = vpop.f32.mrb[0].mxu0
      %v2692 = vadd.f32 0.0, %v2691
      %v2693 = vpop.f32.mrb[0].mxu0
      %v2694 = vadd.f32 0.0, %v2693
      %2695 = vdwg.mxu0
      %2696 = vmatprep.subr.bf16.mxu0 %v2138
      %2697 = vmatpush1.bf16.msra.mxu0 %v2135
      %2698 = vmatprep.subr.bf16.mxu0 0
      %2699 = vmatpush1.bf16.msra.mxu0 0
      %2700 = vmatprep.subr.bf16.mxu0 0
      %2701 = vmatpush1.bf16.msra.mxu0 0
      %2702 = vmatprep.subr.bf16.mxu0 0
      %2703 = vmatpush1.bf16.msra.mxu0 0
      %2704 = vmatprep.subr.bf16.mxu0 0
      %2705 = vmatpush1.bf16.msra.mxu0 0
      %2706 = vmatprep.subr.bf16.mxu0 0
      %2707 = vmatpush1.bf16.msra.mxu0 0
      %2708 = vmatprep.subr.bf16.mxu0 0
      %2709 = vmatpush1.bf16.msra.mxu0 0
      %2710 = vmatprep.subr.bf16.mxu0 0
      %2711 = vmatpush1.bf16.msra.mxu0 0
      %2712 = vmatprep.subr.bf16.mxu0 0
      %2713 = vmatpush1.bf16.msra.mxu0 0
      %2714 = vmatprep.subr.bf16.mxu0 0
      %2715 = vmatpush1.bf16.msra.mxu0 0
      %2716 = vmatprep.subr.bf16.mxu0 0
      %2717 = vmatpush1.bf16.msra.mxu0 0
      %2718 = vmatprep.subr.bf16.mxu0 0
      %2719 = vmatpush1.bf16.msra.mxu0 0
      %2720 = vmatprep.subr.bf16.mxu0 0
      %2721 = vmatpush1.bf16.msra.mxu0 0
      %2722 = vmatprep.subr.bf16.mxu0 0
      %2723 = vmatpush1.bf16.msra.mxu0 0
      %2724 = vmatprep.subr.bf16.mxu0 0
      %2725 = vmatpush1.bf16.msra.mxu0 0
      %2726 = vmatprep.subr.bf16.mxu0 0
      %2727 = vmatpush1.bf16.msra.mxu0 0
      %2728 = vmatprep.mubr.bf16.mxu0 0
      %2729 = vmatmul.mubr.bf16.gmra.mrb[0].mxu0 %v2071
      %v2730 = vpop.f32.mrb[0].mxu0
      %v2731 = vadd.f32 0.0, %v2730
      %v2732 = vpop.f32.mrb[0].mxu0
      %v2733 = vadd.f32 0.0, %v2732
      %v2734 = vpop.f32.mrb[0].mxu0
      %v2735 = vadd.f32 0.0, %v2734
      %v2736 = vpop.f32.mrb[0].mxu0
      %v2737 = vadd.f32 0.0, %v2736
      %2738 = vdwg.mxu0
      %2739 = vmatprep.subr.bf16.mxu0 %v2144
      %2740 = vmatpush1.bf16.msra.mxu0 %v2141
      %2741 = vmatprep.subr.bf16.mxu0 0
      %2742 = vmatpush1.bf16.msra.mxu0 0
      %2743 = vmatprep.subr.bf16.mxu0 0
      %2744 = vmatpush1.bf16.msra.mxu0 0
      %2745 = vmatprep.subr.bf16.mxu0 0
      %2746 = vmatpush1.bf16.msra.mxu0 0
      %2747 = vmatprep.subr.bf16.mxu0 0
      %2748 = vmatpush1.bf16.msra.mxu0 0
      %2749 = vmatprep.subr.bf16.mxu0 0
      %2750 = vmatpush1.bf16.msra.mxu0 0
      %2751 = vmatprep.subr.bf16.mxu0 0
      %2752 = vmatpush1.bf16.msra.mxu0 0
      %2753 = vmatprep.subr.bf16.mxu0 0
      %2754 = vmatpush1.bf16.msra.mxu0 0
      %2755 = vmatprep.subr.bf16.mxu0 0
      %2756 = vmatpush1.bf16.msra.mxu0 0
      %2757 = vmatprep.subr.bf16.mxu0 0
      %2758 = vmatpush1.bf16.msra.mxu0 0
      %2759 = vmatprep.subr.bf16.mxu0 0
      %2760 = vmatpush1.bf16.msra.mxu0 0
      %2761 = vmatprep.subr.bf16.mxu0 0
      %2762 = vmatpush1.bf16.msra.mxu0 0
      %2763 = vmatprep.subr.bf16.mxu0 0
      %2764 = vmatpush1.bf16.msra.mxu0 0
      %2765 = vmatprep.subr.bf16.mxu0 0
      %2766 = vmatpush1.bf16.msra.mxu0 0
      %2767 = vmatprep.subr.bf16.mxu0 0
      %2768 = vmatpush1.bf16.msra.mxu0 0
      %2769 = vmatprep.subr.bf16.mxu0 0
      %2770 = vmatpush1.bf16.msra.mxu0 0
      %2771 = vmatprep.mubr.bf16.mxu0 0
      %2772 = vmatmul.mubr.bf16.gmra.mrb[0].mxu0 %v2071
      %v2773 = vpop.f32.mrb[0].mxu0
      %v2774 = vadd.f32 0.0, %v2773
      %v2775 = vpop.f32.mrb[0].mxu0
      %v2776 = vadd.f32 0.0, %v2775
      %v2777 = vpop.f32.mrb[0].mxu0
      %v2778 = vadd.f32 0.0, %v2777
      %v2779 = vpop.f32.mrb[0].mxu0
      %v2780 = vadd.f32 0.0, %v2779
      %2781 = vdwg.mxu0
      %2782 = vmatprep.subr.bf16.mxu0 %v2150
      %2783 = vmatpush1.bf16.msra.mxu0 %v2147
      %2784 = vmatprep.subr.bf16.mxu0 0
      %2785 = vmatpush1.bf16.msra.mxu0 0
      %2786 = vmatprep.subr.bf16.mxu0 0
      %2787 = vmatpush1.bf16.msra.mxu0 0
      %2788 = vmatprep.subr.bf16.mxu0 0
      %2789 = vmatpush1.bf16.msra.mxu0 0
      %2790 = vmatprep.subr.bf16.mxu0 0
      %2791 = vmatpush1.bf16.msra.mxu0 0
      %2792 = vmatprep.subr.bf16.mxu0 0
      %2793 = vmatpush1.bf16.msra.mxu0 0
      %2794 = vmatprep.subr.bf16.mxu0 0
      %2795 = vmatpush1.bf16.msra.mxu0 0
      %2796 = vmatprep.subr.bf16.mxu0 0
      %2797 = vmatpush1.bf16.msra.mxu0 0
      %2798 = vmatprep.subr.bf16.mxu0 0
      %2799 = vmatpush1.bf16.msra.mxu0 0
      %2800 = vmatprep.subr.bf16.mxu0 0
      %2801 = vmatpush1.bf16.msra.mxu0 0
      %2802 = vmatprep.subr.bf16.mxu0 0
      %2803 = vmatpush1.bf16.msra.mxu0 0
      %2804 = vmatprep.subr.bf16.mxu0 0
      %2805 = vmatpush1.bf16.msra.mxu0 0
      %2806 = vmatprep.subr.bf16.mxu0 0
      %2807 = vmatpush1.bf16.msra.mxu0 0
      %2808 = vmatprep.subr.bf16.mxu0 0
      %2809 = vmatpush1.bf16.msra.mxu0 0
      %2810 = vmatprep.subr.bf16.mxu0 0
      %2811 = vmatpush1.bf16.msra.mxu0 0
      %2812 = vmatprep.subr.bf16.mxu0 0
      %2813 = vmatpush1.bf16.msra.mxu0 0
      %2814 = vmatprep.mubr.bf16.mxu0 0
      %2815 = vmatmul.mubr.bf16.gmra.mrb[0].mxu0 %v2071
      %v2816 = vpop.f32.mrb[0].mxu0
      %v2817 = vadd.f32 0.0, %v2816
      %v2818 = vpop.f32.mrb[0].mxu0
      %v2819 = vadd.f32 0.0, %v2818
      %v2820 = vpop.f32.mrb[0].mxu0
      %v2821 = vadd.f32 0.0, %v2820
      %v2822 = vpop.f32.mrb[0].mxu0
      %v2823 = vadd.f32 0.0, %v2822
      %2824 = vdwg.mxu0
      %2825 = vmatprep.subr.bf16.mxu0 %v2156
      %2826 = vmatpush1.bf16.msra.mxu0 %v2153
      %2827 = vmatprep.subr.bf16.mxu0 0
      %2828 = vmatpush1.bf16.msra.mxu0 0
      %2829 = vmatprep.subr.bf16.mxu0 0
      %2830 = vmatpush1.bf16.msra.mxu0 0
      %2831 = vmatprep.subr.bf16.mxu0 0
      %2832 = vmatpush1.bf16.msra.mxu0 0
      %2833 = vmatprep.subr.bf16.mxu0 0
      %2834 = vmatpush1.bf16.msra.mxu0 0
      %2835 = vmatprep.subr.bf16.mxu0 0
      %2836 = vmatpush1.bf16.msra.mxu0 0
      %2837 = vmatprep.subr.bf16.mxu0 0
      %2838 = vmatpush1.bf16.msra.mxu0 0
      %2839 = vmatprep.subr.bf16.mxu0 0
      %2840 = vmatpush1.bf16.msra.mxu0 0
      %2841 = vmatprep.subr.bf16.mxu0 0
      %2842 = vmatpush1.bf16.msra.mxu0 0
      %2843 = vmatprep.subr.bf16.mxu0 0
      %2844 = vmatpush1.bf16.msra.mxu0 0
      %2845 = vmatprep.subr.bf16.mxu0 0
      %2846 = vmatpush1.bf16.msra.mxu0 0
      %2847 = vmatprep.subr.bf16.mxu0 0
      %2848 = vmatpush1.bf16.msra.mxu0 0
      %2849 = vmatprep.subr.bf16.mxu0 0
      %2850 = vmatpush1.bf16.msra.mxu0 0
      %2851 = vmatprep.subr.bf16.mxu0 0
      %2852 = vmatpush1.bf16.msra.mxu0 0
      %2853 = vmatprep.subr.bf16.mxu0 0
      %2854 = vmatpush1.bf16.msra.mxu0 0
      %2855 = vmatprep.subr.bf16.mxu0 0
      %2856 = vmatpush1.bf16.msra.mxu0 0
      %2857 = vmatprep.mubr.bf16.mxu0 0
      %2858 = vmatmul.mubr.bf16.gmra.mrb[0].mxu0 %v2071
      %v2859 = vpop.f32.mrb[0].mxu0
      %v2860 = vadd.f32 0.0, %v2859
      %v2861 = vpop.f32.mrb[0].mxu0
      %v2862 = vadd.f32 0.0, %v2861
      %v2863 = vpop.f32.mrb[0].mxu0
      %v2864 = vadd.f32 0.0, %v2863
      %v2865 = vpop.f32.mrb[0].mxu0
      %v2866 = vadd.f32 0.0, %v2865
      %2867 = vdwg.mxu0
      %2868 = vmatprep.subr.bf16.mxu0 %v2162
      %2869 = vmatpush1.bf16.msra.mxu0 %v2159
      %2870 = vmatprep.subr.bf16.mxu0 0
      %2871 = vmatpush1.bf16.msra.mxu0 0
      %2872 = vmatprep.subr.bf16.mxu0 0
      %2873 = vmatpush1.bf16.msra.mxu0 0
      %2874 = vmatprep.subr.bf16.mxu0 0
      %2875 = vmatpush1.bf16.msra.mxu0 0
      %2876 = vmatprep.subr.bf16.mxu0 0
      %2877 = vmatpush1.bf16.msra.mxu0 0
      %2878 = vmatprep.subr.bf16.mxu0 0
      %2879 = vmatpush1.bf16.msra.mxu0 0
      %2880 = vmatprep.subr.bf16.mxu0 0
      %2881 = vmatpush1.bf16.msra.mxu0 0
      %2882 = vmatprep.subr.bf16.mxu0 0
      %2883 = vmatpush1.bf16.msra.mxu0 0
      %2884 = vmatprep.subr.bf16.mxu0 0
      %2885 = vmatpush1.bf16.msra.mxu0 0
      %2886 = vmatprep.subr.bf16.mxu0 0
      %2887 = vmatpush1.bf16.msra.mxu0 0
      %2888 = vmatprep.subr.bf16.mxu0 0
      %2889 = vmatpush1.bf16.msra.mxu0 0
      %2890 = vmatprep.subr.bf16.mxu0 0
      %2891 = vmatpush1.bf16.msra.mxu0 0
      %2892 = vmatprep.subr.bf16.mxu0 0
      %2893 = vmatpush1.bf16.msra.mxu0 0
      %2894 = vmatprep.subr.bf16.mxu0 0
      %2895 = vmatpush1.bf16.msra.mxu0 0
      %2896 = vmatprep.subr.bf16.mxu0 0
      %2897 = vmatpush1.bf16.msra.mxu0 0
      %2898 = vmatprep.subr.bf16.mxu0 0
      %2899 = vmatpush1.bf16.msra.mxu0 0
      %2900 = vmatprep.mubr.bf16.mxu0 0
      %2901 = vmatmul.mubr.bf16.gmra.mrb[0].mxu0 %v2071
      %v2902 = vpop.f32.mrb[0].mxu0
      %v2903 = vadd.f32 0.0, %v2902
      %v2904 = vpop.f32.mrb[0].mxu0
      %v2905 = vadd.f32 0.0, %v2904
      %v2906 = vpop.f32.mrb[0].mxu0
      %v2907 = vadd.f32 0.0, %v2906
      %v2908 = vpop.f32.mrb[0].mxu0
      %v2909 = vadd.f32 0.0, %v2908
      %2910 = vdwg.mxu0
      %2911 = vmatprep.subr.bf16.mxu0 %v2168
      %2912 = vmatpush1.bf16.msra.mxu0 %v2165
      %2913 = vmatprep.subr.bf16.mxu0 0
      %2914 = vmatpush1.bf16.msra.mxu0 0
      %2915 = vmatprep.subr.bf16.mxu0 0
      %2916 = vmatpush1.bf16.msra.mxu0 0
      %2917 = vmatprep.subr.bf16.mxu0 0
      %2918 = vmatpush1.bf16.msra.mxu0 0
      %2919 = vmatprep.subr.bf16.mxu0 0
      %2920 = vmatpush1.bf16.msra.mxu0 0
      %2921 = vmatprep.subr.bf16.mxu0 0
      %2922 = vmatpush1.bf16.msra.mxu0 0
      %2923 = vmatprep.subr.bf16.mxu0 0
      %2924 = vmatpush1.bf16.msra.mxu0 0
      %2925 = vmatprep.subr.bf16.mxu0 0
      %2926 = vmatpush1.bf16.msra.mxu0 0
      %2927 = vmatprep.subr.bf16.mxu0 0
      %2928 = vmatpush1.bf16.msra.mxu0 0
      %2929 = vmatprep.subr.bf16.mxu0 0
      %2930 = vmatpush1.bf16.msra.mxu0 0
      %2931 = vmatprep.subr.bf16.mxu0 0
      %2932 = vmatpush1.bf16.msra.mxu0 0
      %2933 = vmatprep.subr.bf16.mxu0 0
      %2934 = vmatpush1.bf16.msra.mxu0 0
      %2935 = vmatprep.subr.bf16.mxu0 0
      %2936 = vmatpush1.bf16.msra.mxu0 0
      %2937 = vmatprep.subr.bf16.mxu0 0
      %2938 = vmatpush1.bf16.msra.mxu0 0
      %2939 = vmatprep.subr.bf16.mxu0 0
      %2940 = vmatpush1.bf16.msra.mxu0 0
      %2941 = vmatprep.subr.bf16.mxu0 0
      %2942 = vmatpush1.bf16.msra.mxu0 0
      %2943 = vmatprep.mubr.bf16.mxu0 0
      %2944 = vmatmul.mubr.bf16.gmra.mrb[0].mxu0 %v2071
      %v2945 = vpop.f32.mrb[0].mxu0
      %v2946 = vadd.f32 0.0, %v2945
      %v2947 = vpop.f32.mrb[0].mxu0
      %v2948 = vadd.f32 0.0, %v2947
      %v2949 = vpop.f32.mrb[0].mxu0
      %v2950 = vadd.f32 0.0, %v2949
      %v2951 = vpop.f32.mrb[0].mxu0
      %v2952 = vadd.f32 0.0, %v2951
      %2953 = vdwg.mxu0
      %2954 = vmatprep.subr.bf16.mxu0 %v2174
      %2955 = vmatpush1.bf16.msra.mxu0 %v2171
      %2956 = vmatprep.subr.bf16.mxu0 0
      %2957 = vmatpush1.bf16.msra.mxu0 0
      %2958 = vmatprep.subr.bf16.mxu0 0
      %2959 = vmatpush1.bf16.msra.mxu0 0
      %2960 = vmatprep.subr.bf16.mxu0 0
      %2961 = vmatpush1.bf16.msra.mxu0 0
      %2962 = vmatprep.subr.bf16.mxu0 0
      %2963 = vmatpush1.bf16.msra.mxu0 0
      %2964 = vmatprep.subr.bf16.mxu0 0
      %2965 = vmatpush1.bf16.msra.mxu0 0
      %2966 = vmatprep.subr.bf16.mxu0 0
      %2967 = vmatpush1.bf16.msra.mxu0 0
      %2968 = vmatprep.subr.bf16.mxu0 0
      %2969 = vmatpush1.bf16.msra.mxu0 0
      %2970 = vmatprep.subr.bf16.mxu0 0
      %2971 = vmatpush1.bf16.msra.mxu0 0
      %2972 = vmatprep.subr.bf16.mxu0 0
      %2973 = vmatpush1.bf16.msra.mxu0 0
      %2974 = vmatprep.subr.bf16.mxu0 0
      %2975 = vmatpush1.bf16.msra.mxu0 0
      %2976 = vmatprep.subr.bf16.mxu0 0
      %2977 = vmatpush1.bf16.msra.mxu0 0
      %2978 = vmatprep.subr.bf16.mxu0 0
      %2979 = vmatpush1.bf16.msra.mxu0 0
      %2980 = vmatprep.subr.bf16.mxu0 0
      %2981 = vmatpush1.bf16.msra.mxu0 0
      %2982 = vmatprep.subr.bf16.mxu0 0
      %2983 = vmatpush1.bf16.msra.mxu0 0
      %2984 = vmatprep.subr.bf16.mxu0 0
      %2985 = vmatpush1.bf16.msra.mxu0 0
      %2986 = vmatprep.mubr.bf16.mxu0 0
      %2987 = vmatmul.mubr.bf16.gmra.mrb[0].mxu0 %v2071
      %v2988 = vpop.f32.mrb[0].mxu0
      %v2989 = vadd.f32 0.0, %v2988
      %v2990 = vpop.f32.mrb[0].mxu0
      %v2991 = vadd.f32 0.0, %v2990
      %v2992 = vpop.f32.mrb[0].mxu0
      %v2993 = vadd.f32 0.0, %v2992
      %v2994 = vpop.f32.mrb[0].mxu0
      %v2995 = vadd.f32 0.0, %v2994
      %2996 = vdwg.mxu0
      %2997 = vmatprep.subr.bf16.mxu0 %v2180
      %2998 = vmatpush1.bf16.msra.mxu0 %v2177
      %2999 = vmatprep.subr.bf16.mxu0 0
      %3000 = vmatpush1.bf16.msra.mxu0 0
      %3001 = vmatprep.subr.bf16.mxu0 0
      %3002 = vmatpush1.bf16.msra.mxu0 0
      %3003 = vmatprep.subr.bf16.mxu0 0
      %3004 = vmatpush1.bf16.msra.mxu0 0
      %3005 = vmatprep.subr.bf16.mxu0 0
      %3006 = vmatpush1.bf16.msra.mxu0 0
      %3007 = vmatprep.subr.bf16.mxu0 0
      %3008 = vmatpush1.bf16.msra.mxu0 0
      %3009 = vmatprep.subr.bf16.mxu0 0
      %3010 = vmatpush1.bf16.msra.mxu0 0
      %3011 = vmatprep.subr.bf16.mxu0 0
      %3012 = vmatpush1.bf16.msra.mxu0 0
      %3013 = vmatprep.subr.bf16.mxu0 0
      %3014 = vmatpush1.bf16.msra.mxu0 0
      %3015 = vmatprep.subr.bf16.mxu0 0
      %3016 = vmatpush1.bf16.msra.mxu0 0
      %3017 = vmatprep.subr.bf16.mxu0 0
      %3018 = vmatpush1.bf16.msra.mxu0 0
      %3019 = vmatprep.subr.bf16.mxu0 0
      %3020 = vmatpush1.bf16.msra.mxu0 0
      %3021 = vmatprep.subr.bf16.mxu0 0
      %3022 = vmatpush1.bf16.msra.mxu0 0
      %3023 = vmatprep.subr.bf16.mxu0 0
      %3024 = vmatpush1.bf16.msra.mxu0 0
      %3025 = vmatprep.subr.bf16.mxu0 0
      %3026 = vmatpush1.bf16.msra.mxu0 0
      %3027 = vmatprep.subr.bf16.mxu0 0
      %3028 = vmatpush1.bf16.msra.mxu0 0
      %3029 = vmatprep.mubr.bf16.mxu0 0
      %3030 = vmatmul.mubr.bf16.gmra.mrb[0].mxu0 %v2071
      %v3031 = vpop.f32.mrb[0].mxu0
      %v3032 = vadd.f32 0.0, %v3031
      %v3033 = vpop.f32.mrb[0].mxu0
      %v3034 = vadd.f32 0.0, %v3033
      %v3035 = vpop.f32.mrb[0].mxu0
      %v3036 = vadd.f32 0.0, %v3035
      %v3037 = vpop.f32.mrb[0].mxu0
      %v3038 = vadd.f32 0.0, %v3037
      %3039 = vdwg.mxu0
      %3040 = vmatprep.subr.bf16.mxu0 %v2186
      %3041 = vmatpush1.bf16.msra.mxu0 %v2183
      %3042 = vmatprep.subr.bf16.mxu0 0
      %3043 = vmatpush1.bf16.msra.mxu0 0
      %3044 = vmatprep.subr.bf16.mxu0 0
      %3045 = vmatpush1.bf16.msra.mxu0 0
      %3046 = vmatprep.subr.bf16.mxu0 0
      %3047 = vmatpush1.bf16.msra.mxu0 0
      %3048 = vmatprep.subr.bf16.mxu0 0
      %3049 = vmatpush1.bf16.msra.mxu0 0
      %3050 = vmatprep.subr.bf16.mxu0 0
      %3051 = vmatpush1.bf16.msra.mxu0 0
      %3052 = vmatprep.subr.bf16.mxu0 0
      %3053 = vmatpush1.bf16.msra.mxu0 0
      %3054 = vmatprep.subr.bf16.mxu0 0
      %3055 = vmatpush1.bf16.msra.mxu0 0
      %3056 = vmatprep.subr.bf16.mxu0 0
      %3057 = vmatpush1.bf16.msra.mxu0 0
      %3058 = vmatprep.subr.bf16.mxu0 0
      %3059 = vmatpush1.bf16.msra.mxu0 0
      %3060 = vmatprep.subr.bf16.mxu0 0
      %3061 = vmatpush1.bf16.msra.mxu0 0
      %3062 = vmatprep.subr.bf16.mxu0 0
      %3063 = vmatpush1.bf16.msra.mxu0 0
      %3064 = vmatprep.subr.bf16.mxu0 0
      %3065 = vmatpush1.bf16.msra.mxu0 0
      %3066 = vmatprep.subr.bf16.mxu0 0
      %3067 = vmatpush1.bf16.msra.mxu0 0
      %3068 = vmatprep.subr.bf16.mxu0 0
      %3069 = vmatpush1.bf16.msra.mxu0 0
      %3070 = vmatprep.subr.bf16.mxu0 0
      %3071 = vmatpush1.bf16.msra.mxu0 0
      %3072 = vmatprep.mubr.bf16.mxu0 0
      %3073 = vmatmul.mubr.bf16.gmra.mrb[0].mxu0 %v2071
      %v3074 = vpop.f32.mrb[0].mxu0
      %v3075 = vadd.f32 0.0, %v3074
      %v3076 = vpop.f32.mrb[0].mxu0
      %v3077 = vadd.f32 0.0, %v3076
      %v3078 = vpop.f32.mrb[0].mxu0
      %v3079 = vadd.f32 0.0, %v3078
      %v3080 = vpop.f32.mrb[0].mxu0
      %v3081 = vadd.f32 0.0, %v3080
      %3082 = vdwg.mxu0
      %3083 = vmatprep.subr.bf16.mxu0 %v2192
      %3084 = vmatpush1.bf16.msra.mxu0 %v2189
      %3085 = vmatprep.subr.bf16.mxu0 0
      %3086 = vmatpush1.bf16.msra.mxu0 0
      %3087 = vmatprep.subr.bf16.mxu0 0
      %3088 = vmatpush1.bf16.msra.mxu0 0
      %3089 = vmatprep.subr.bf16.mxu0 0
      %3090 = vmatpush1.bf16.msra.mxu0 0
      %3091 = vmatprep.subr.bf16.mxu0 0
      %3092 = vmatpush1.bf16.msra.mxu0 0
      %3093 = vmatprep.subr.bf16.mxu0 0
      %3094 = vmatpush1.bf16.msra.mxu0 0
      %3095 = vmatprep.subr.bf16.mxu0 0
      %3096 = vmatpush1.bf16.msra.mxu0 0
      %3097 = vmatprep.subr.bf16.mxu0 0
      %3098 = vmatpush1.bf16.msra.mxu0 0
      %3099 = vmatprep.subr.bf16.mxu0 0
      %3100 = vmatpush1.bf16.msra.mxu0 0
      %3101 = vmatprep.subr.bf16.mxu0 0
      %3102 = vmatpush1.bf16.msra.mxu0 0
      %3103 = vmatprep.subr.bf16.mxu0 0
      %3104 = vmatpush1.bf16.msra.mxu0 0
      %3105 = vmatprep.subr.bf16.mxu0 0
      %3106 = vmatpush1.bf16.msra.mxu0 0
      %3107 = vmatprep.subr.bf16.mxu0 0
      %3108 = vmatpush1.bf16.msra.mxu0 0
      %3109 = vmatprep.subr.bf16.mxu0 0
      %3110 = vmatpush1.bf16.msra.mxu0 0
      %3111 = vmatprep.subr.bf16.mxu0 0
      %3112 = vmatpush1.bf16.msra.mxu0 0
      %3113 = vmatprep.subr.bf16.mxu0 0
      %3114 = vmatpush1.bf16.msra.mxu0 0
      %3115 = vmatprep.mubr.bf16.mxu0 0
      %3116 = vmatmul.mubr.bf16.gmra.mrb[0].mxu0 %v2071
      %v3117 = vpop.f32.mrb[0].mxu0
      %v3118 = vadd.f32 0.0, %v3117
      %v3119 = vpop.f32.mrb[0].mxu0
      %v3120 = vadd.f32 0.0, %v3119
      %v3121 = vpop.f32.mrb[0].mxu0
      %v3122 = vadd.f32 0.0, %v3121
      %v3123 = vpop.f32.mrb[0].mxu0
      %v3124 = vadd.f32 0.0, %v3123
      %3125 = vdwg.mxu0
      %3126 = vmatprep.subr.bf16.mxu0 %v2198
      %3127 = vmatpush1.bf16.msra.mxu0 %v2195
      %3128 = vmatprep.subr.bf16.mxu0 0
      %3129 = vmatpush1.bf16.msra.mxu0 0
      %3130 = vmatprep.subr.bf16.mxu0 0
      %3131 = vmatpush1.bf16.msra.mxu0 0
      %3132 = vmatprep.subr.bf16.mxu0 0
      %3133 = vmatpush1.bf16.msra.mxu0 0
      %3134 = vmatprep.subr.bf16.mxu0 0
      %3135 = vmatpush1.bf16.msra.mxu0 0
      %3136 = vmatprep.subr.bf16.mxu0 0
      %3137 = vmatpush1.bf16.msra.mxu0 0
      %3138 = vmatprep.subr.bf16.mxu0 0
      %3139 = vmatpush1.bf16.msra.mxu0 0
      %3140 = vmatprep.subr.bf16.mxu0 0
      %3141 = vmatpush1.bf16.msra.mxu0 0
      %3142 = vmatprep.subr.bf16.mxu0 0
      %3143 = vmatpush1.bf16.msra.mxu0 0
      %3144 = vmatprep.subr.bf16.mxu0 0
      %3145 = vmatpush1.bf16.msra.mxu0 0
      %3146 = vmatprep.subr.bf16.mxu0 0
      %3147 = vmatpush1.bf16.msra.mxu0 0
      %3148 = vmatprep.subr.bf16.mxu0 0
      %3149 = vmatpush1.bf16.msra.mxu0 0
      %3150 = vmatprep.subr.bf16.mxu0 0
      %3151 = vmatpush1.bf16.msra.mxu0 0
      %3152 = vmatprep.subr.bf16.mxu0 0
      %3153 = vmatpush1.bf16.msra.mxu0 0
      %3154 = vmatprep.subr.bf16.mxu0 0
      %3155 = vmatpush1.bf16.msra.mxu0 0
      %3156 = vmatprep.subr.bf16.mxu0 0
      %3157 = vmatpush1.bf16.msra.mxu0 0
      %3158 = vmatprep.mubr.bf16.mxu0 0
      %3159 = vmatmul.mubr.bf16.gmra.mrb[0].mxu0 %v2071
      %v3160 = vpop.f32.mrb[0].mxu0
      %v3161 = vadd.f32 0.0, %v3160
      %v3162 = vpop.f32.mrb[0].mxu0
      %v3163 = vadd.f32 0.0, %v3162
      %v3164 = vpop.f32.mrb[0].mxu0
      %v3165 = vadd.f32 0.0, %v3164
      %v3166 = vpop.f32.mrb[0].mxu0
      %v3167 = vadd.f32 0.0, %v3166
      %3168 = vdwg.mxu0
      %3169 = vmatprep.subr.bf16.mxu0 %v2204
      %3170 = vmatpush1.bf16.msra.mxu0 %v2201
      %3171 = vmatprep.subr.bf16.mxu0 0
      %3172 = vmatpush1.bf16.msra.mxu0 0
      %3173 = vmatprep.subr.bf16.mxu0 0
      %3174 = vmatpush1.bf16.msra.mxu0 0
      %3175 = vmatprep.subr.bf16.mxu0 0
      %3176 = vmatpush1.bf16.msra.mxu0 0
      %3177 = vmatprep.subr.bf16.mxu0 0
      %3178 = vmatpush1.bf16.msra.mxu0 0
      %3179 = vmatprep.subr.bf16.mxu0 0
      %3180 = vmatpush1.bf16.msra.mxu0 0
      %3181 = vmatprep.subr.bf16.mxu0 0
      %3182 = vmatpush1.bf16.msra.mxu0 0
      %3183 = vmatprep.subr.bf16.mxu0 0
      %3184 = vmatpush1.bf16.msra.mxu0 0
      %3185 = vmatprep.subr.bf16.mxu0 0
      %3186 = vmatpush1.bf16.msra.mxu0 0
      %3187 = vmatprep.subr.bf16.mxu0 0
      %3188 = vmatpush1.bf16.msra.mxu0 0
      %3189 = vmatprep.subr.bf16.mxu0 0
      %3190 = vmatpush1.bf16.msra.mxu0 0
      %3191 = vmatprep.subr.bf16.mxu0 0
      %3192 = vmatpush1.bf16.msra.mxu0 0
      %3193 = vmatprep.subr.bf16.mxu0 0
      %3194 = vmatpush1.bf16.msra.mxu0 0
      %3195 = vmatprep.subr.bf16.mxu0 0
      %3196 = vmatpush1.bf16.msra.mxu0 0
      %3197 = vmatprep.subr.bf16.mxu0 0
      %3198 = vmatpush1.bf16.msra.mxu0 0
      %3199 = vmatprep.subr.bf16.mxu0 0
      %3200 = vmatpush1.bf16.msra.mxu0 0
      %3201 = vmatprep.mubr.bf16.mxu0 0
      %3202 = vmatmul.mubr.bf16.gmra.mrb[0].mxu0 %v2071
      %v3203 = vpop.f32.mrb[0].mxu0
      %v3204 = vadd.f32 0.0, %v3203
      %v3205 = vpop.f32.mrb[0].mxu0
      %v3206 = vadd.f32 0.0, %v3205
      %v3207 = vpop.f32.mrb[0].mxu0
      %v3208 = vadd.f32 0.0, %v3207
      %v3209 = vpop.f32.mrb[0].mxu0
      %v3210 = vadd.f32 0.0, %v3209
      %3211 = vdwg.mxu0
      %3212 = vmatprep.subr.bf16.mxu0 %v2210
      %3213 = vmatpush1.bf16.msra.mxu0 %v2207
      %3214 = vmatprep.subr.bf16.mxu0 0
      %3215 = vmatpush1.bf16.msra.mxu0 0
      %3216 = vmatprep.subr.bf16.mxu0 0
      %3217 = vmatpush1.bf16.msra.mxu0 0
      %3218 = vmatprep.subr.bf16.mxu0 0
      %3219 = vmatpush1.bf16.msra.mxu0 0
      %3220 = vmatprep.subr.bf16.mxu0 0
      %3221 = vmatpush1.bf16.msra.mxu0 0
      %3222 = vmatprep.subr.bf16.mxu0 0
      %3223 = vmatpush1.bf16.msra.mxu0 0
      %3224 = vmatprep.subr.bf16.mxu0 0
      %3225 = vmatpush1.bf16.msra.mxu0 0
      %3226 = vmatprep.subr.bf16.mxu0 0
      %3227 = vmatpush1.bf16.msra.mxu0 0
      %3228 = vmatprep.subr.bf16.mxu0 0
      %3229 = vmatpush1.bf16.msra.mxu0 0
      %3230 = vmatprep.subr.bf16.mxu0 0
      %3231 = vmatpush1.bf16.msra.mxu0 0
      %3232 = vmatprep.subr.bf16.mxu0 0
      %3233 = vmatpush1.bf16.msra.mxu0 0
      %3234 = vmatprep.subr.bf16.mxu0 0
      %3235 = vmatpush1.bf16.msra.mxu0 0
      %3236 = vmatprep.subr.bf16.mxu0 0
      %3237 = vmatpush1.bf16.msra.mxu0 0
      %3238 = vmatprep.subr.bf16.mxu0 0
      %3239 = vmatpush1.bf16.msra.mxu0 0
      %3240 = vmatprep.subr.bf16.mxu0 0
      %3241 = vmatpush1.bf16.msra.mxu0 0
      %3242 = vmatprep.subr.bf16.mxu0 0
      %3243 = vmatpush1.bf16.msra.mxu0 0
      %3244 = vmatprep.mubr.bf16.mxu0 0
      %3245 = vmatmul.mubr.bf16.gmra.mrb[0].mxu0 %v2071
      %v3246 = vpop.f32.mrb[0].mxu0
      %v3247 = vadd.f32 0.0, %v3246
      %v3248 = vpop.f32.mrb[0].mxu0
      %v3249 = vadd.f32 0.0, %v3248
      %v3250 = vpop.f32.mrb[0].mxu0
      %v3251 = vadd.f32 0.0, %v3250
      %v3252 = vpop.f32.mrb[0].mxu0
      %v3253 = vadd.f32 0.0, %v3252
      %3254 = vdwg.mxu0
      %3255 = vmatprep.subr.bf16.mxu0 %v2216
      %3256 = vmatpush1.bf16.msra.mxu0 %v2213
      %3257 = vmatprep.subr.bf16.mxu0 0
      %3258 = vmatpush1.bf16.msra.mxu0 0
      %3259 = vmatprep.subr.bf16.mxu0 0
      %3260 = vmatpush1.bf16.msra.mxu0 0
      %3261 = vmatprep.subr.bf16.mxu0 0
      %3262 = vmatpush1.bf16.msra.mxu0 0
      %3263 = vmatprep.subr.bf16.mxu0 0
      %3264 = vmatpush1.bf16.msra.mxu0 0
      %3265 = vmatprep.subr.bf16.mxu0 0
      %3266 = vmatpush1.bf16.msra.mxu0 0
      %3267 = vmatprep.subr.bf16.mxu0 0
      %3268 = vmatpush1.bf16.msra.mxu0 0
      %3269 = vmatprep.subr.bf16.mxu0 0
      %3270 = vmatpush1.bf16.msra.mxu0 0
      %3271 = vmatprep.subr.bf16.mxu0 0
      %3272 = vmatpush1.bf16.msra.mxu0 0
      %3273 = vmatprep.subr.bf16.mxu0 0
      %3274 = vmatpush1.bf16.msra.mxu0 0
      %3275 = vmatprep.subr.bf16.mxu0 0
      %3276 = vmatpush1.bf16.msra.mxu0 0
      %3277 = vmatprep.subr.bf16.mxu0 0
      %3278 = vmatpush1.bf16.msra.mxu0 0
      %3279 = vmatprep.subr.bf16.mxu0 0
      %3280 = vmatpush1.bf16.msra.mxu0 0
      %3281 = vmatprep.subr.bf16.mxu0 0
      %3282 = vmatpush1.bf16.msra.mxu0 0
      %3283 = vmatprep.subr.bf16.mxu0 0
      %3284 = vmatpush1.bf16.msra.mxu0 0
      %3285 = vmatprep.subr.bf16.mxu0 0
      %3286 = vmatpush1.bf16.msra.mxu0 0
      %3287 = vmatprep.mubr.bf16.mxu0 0
      %3288 = vmatmul.mubr.bf16.gmra.mrb[0].mxu0 %v2071
      %v3289 = vpop.f32.mrb[0].mxu0
      %v3290 = vadd.f32 0.0, %v3289
      %v3291 = vpop.f32.mrb[0].mxu0
      %v3292 = vadd.f32 0.0, %v3291
      %v3293 = vpop.f32.mrb[0].mxu0
      %v3294 = vadd.f32 0.0, %v3293
      %v3295 = vpop.f32.mrb[0].mxu0
      %v3296 = vadd.f32 0.0, %v3295
      %3297 = vdwg.mxu0
      %3298 = vmatprep.subr.bf16.mxu0 %v2222
      %3299 = vmatpush1.bf16.msra.mxu0 %v2219
      %3300 = vmatprep.subr.bf16.mxu0 0
      %3301 = vmatpush1.bf16.msra.mxu0 0
      %3302 = vmatprep.subr.bf16.mxu0 0
      %3303 = vmatpush1.bf16.msra.mxu0 0
      %3304 = vmatprep.subr.bf16.mxu0 0
      %3305 = vmatpush1.bf16.msra.mxu0 0
      %3306 = vmatprep.subr.bf16.mxu0 0
      %3307 = vmatpush1.bf16.msra.mxu0 0
      %3308 = vmatprep.subr.bf16.mxu0 0
      %3309 = vmatpush1.bf16.msra.mxu0 0
      %3310 = vmatprep.subr.bf16.mxu0 0
      %3311 = vmatpush1.bf16.msra.mxu0 0
      %3312 = vmatprep.subr.bf16.mxu0 0
      %3313 = vmatpush1.bf16.msra.mxu0 0
      %3314 = vmatprep.subr.bf16.mxu0 0
      %3315 = vmatpush1.bf16.msra.mxu0 0
      %3316 = vmatprep.subr.bf16.mxu0 0
      %3317 = vmatpush1.bf16.msra.mxu0 0
      %3318 = vmatprep.subr.bf16.mxu0 0
      %3319 = vmatpush1.bf16.msra.mxu0 0
      %3320 = vmatprep.subr.bf16.mxu0 0
      %3321 = vmatpush1.bf16.msra.mxu0 0
      %3322 = vmatprep.subr.bf16.mxu0 0
      %3323 = vmatpush1.bf16.msra.mxu0 0
      %3324 = vmatprep.subr.bf16.mxu0 0
      %3325 = vmatpush1.bf16.msra.mxu0 0
      %3326 = vmatprep.subr.bf16.mxu0 0
      %3327 = vmatpush1.bf16.msra.mxu0 0
      %3328 = vmatprep.subr.bf16.mxu0 0
      %3329 = vmatpush1.bf16.msra.mxu0 0
      %3330 = vmatprep.mubr.bf16.mxu0 0
      %3331 = vmatmul.mubr.bf16.gmra.mrb[0].mxu0 %v2071
      %v3332 = vpop.f32.mrb[0].mxu0
      %v3333 = vadd.f32 0.0, %v3332
      %v3334 = vpop.f32.mrb[0].mxu0
      %v3335 = vadd.f32 0.0, %v3334
      %v3336 = vpop.f32.mrb[0].mxu0
      %v3337 = vadd.f32 0.0, %v3336
      %v3338 = vpop.f32.mrb[0].mxu0
      %v3339 = vadd.f32 0.0, %v3338
      %3340 = vdwg.mxu0
      %3341 = vmatprep.subr.bf16.mxu0 %v2228
      %3342 = vmatpush1.bf16.msra.mxu0 %v2225
      %3343 = vmatprep.subr.bf16.mxu0 0
      %3344 = vmatpush1.bf16.msra.mxu0 0
      %3345 = vmatprep.subr.bf16.mxu0 0
      %3346 = vmatpush1.bf16.msra.mxu0 0
      %3347 = vmatprep.subr.bf16.mxu0 0
      %3348 = vmatpush1.bf16.msra.mxu0 0
      %3349 = vmatprep.subr.bf16.mxu0 0
      %3350 = vmatpush1.bf16.msra.mxu0 0
      %3351 = vmatprep.subr.bf16.mxu0 0
      %3352 = vmatpush1.bf16.msra.mxu0 0
      %3353 = vmatprep.subr.bf16.mxu0 0
      %3354 = vmatpush1.bf16.msra.mxu0 0
      %3355 = vmatprep.subr.bf16.mxu0 0
      %3356 = vmatpush1.bf16.msra.mxu0 0
      %3357 = vmatprep.subr.bf16.mxu0 0
      %3358 = vmatpush1.bf16.msra.mxu0 0
      %3359 = vmatprep.subr.bf16.mxu0 0
      %3360 = vmatpush1.bf16.msra.mxu0 0
      %3361 = vmatprep.subr.bf16.mxu0 0
      %3362 = vmatpush1.bf16.msra.mxu0 0
      %3363 = vmatprep.subr.bf16.mxu0 0
      %3364 = vmatpush1.bf16.msra.mxu0 0
      %3365 = vmatprep.subr.bf16.mxu0 0
      %3366 = vmatpush1.bf16.msra.mxu0 0
      %3367 = vmatprep.subr.bf16.mxu0 0
      %3368 = vmatpush1.bf16.msra.mxu0 0
      %3369 = vmatprep.subr.bf16.mxu0 0
      %3370 = vmatpush1.bf16.msra.mxu0 0
      %3371 = vmatprep.subr.bf16.mxu0 0
      %3372 = vmatpush1.bf16.msra.mxu0 0
      %3373 = vmatprep.mubr.bf16.mxu0 0
      %3374 = vmatmul.mubr.bf16.gmra.mrb[0].mxu0 %v2071
      %v3375 = vpop.f32.mrb[0].mxu0
      %v3376 = vadd.f32 0.0, %v3375
      %v3377 = vpop.f32.mrb[0].mxu0
      %v3378 = vadd.f32 0.0, %v3377
      %v3379 = vpop.f32.mrb[0].mxu0
      %v3380 = vadd.f32 0.0, %v3379
      %v3381 = vpop.f32.mrb[0].mxu0
      %v3382 = vadd.f32 0.0, %v3381
      %3383 = vdwg.mxu0
      %3384 = vmatprep.subr.bf16.mxu0 %v2234
      %3385 = vmatpush1.bf16.msra.mxu0 %v2231
      %3386 = vmatprep.subr.bf16.mxu0 0
      %3387 = vmatpush1.bf16.msra.mxu0 0
      %3388 = vmatprep.subr.bf16.mxu0 0
      %3389 = vmatpush1.bf16.msra.mxu0 0
      %3390 = vmatprep.subr.bf16.mxu0 0
      %3391 = vmatpush1.bf16.msra.mxu0 0
      %3392 = vmatprep.subr.bf16.mxu0 0
      %3393 = vmatpush1.bf16.msra.mxu0 0
      %3394 = vmatprep.subr.bf16.mxu0 0
      %3395 = vmatpush1.bf16.msra.mxu0 0
      %3396 = vmatprep.subr.bf16.mxu0 0
      %3397 = vmatpush1.bf16.msra.mxu0 0
      %3398 = vmatprep.subr.bf16.mxu0 0
      %3399 = vmatpush1.bf16.msra.mxu0 0
      %3400 = vmatprep.subr.bf16.mxu0 0
      %3401 = vmatpush1.bf16.msra.mxu0 0
      %3402 = vmatprep.subr.bf16.mxu0 0
      %3403 = vmatpush1.bf16.msra.mxu0 0
      %3404 = vmatprep.subr.bf16.mxu0 0
      %3405 = vmatpush1.bf16.msra.mxu0 0
      %3406 = vmatprep.subr.bf16.mxu0 0
      %3407 = vmatpush1.bf16.msra.mxu0 0
      %3408 = vmatprep.subr.bf16.mxu0 0
      %3409 = vmatpush1.bf16.msra.mxu0 0
      %3410 = vmatprep.subr.bf16.mxu0 0
      %3411 = vmatpush1.bf16.msra.mxu0 0
      %3412 = vmatprep.subr.bf16.mxu0 0
      %3413 = vmatpush1.bf16.msra.mxu0 0
      %3414 = vmatprep.subr.bf16.mxu0 0
      %3415 = vmatpush1.bf16.msra.mxu0 0
      %3416 = vmatprep.mubr.bf16.mxu0 0
      %3417 = vmatmul.mubr.bf16.gmra.mrb[0].mxu0 %v2071
      %v3418 = vpop.f32.mrb[0].mxu0
      %v3419 = vadd.f32 0.0, %v3418
      %v3420 = vpop.f32.mrb[0].mxu0
      %v3421 = vadd.f32 0.0, %v3420
      %v3422 = vpop.f32.mrb[0].mxu0
      %v3423 = vadd.f32 0.0, %v3422
      %v3424 = vpop.f32.mrb[0].mxu0
      %v3425 = vadd.f32 0.0, %v3424
      %3426 = vdwg.mxu0
      %3427 = vmatprep.subr.bf16.mxu0 %v2240
      %3428 = vmatpush1.bf16.msra.mxu0 %v2237
      %3429 = vmatprep.subr.bf16.mxu0 0
      %3430 = vmatpush1.bf16.msra.mxu0 0
      %3431 = vmatprep.subr.bf16.mxu0 0
      %3432 = vmatpush1.bf16.msra.mxu0 0
      %3433 = vmatprep.subr.bf16.mxu0 0
      %3434 = vmatpush1.bf16.msra.mxu0 0
      %3435 = vmatprep.subr.bf16.mxu0 0
      %3436 = vmatpush1.bf16.msra.mxu0 0
      %3437 = vmatprep.subr.bf16.mxu0 0
      %3438 = vmatpush1.bf16.msra.mxu0 0
      %3439 = vmatprep.subr.bf16.mxu0 0
      %3440 = vmatpush1.bf16.msra.mxu0 0
      %3441 = vmatprep.subr.bf16.mxu0 0
      %3442 = vmatpush1.bf16.msra.mxu0 0
      %3443 = vmatprep.subr.bf16.mxu0 0
      %3444 = vmatpush1.bf16.msra.mxu0 0
      %3445 = vmatprep.subr.bf16.mxu0 0
      %3446 = vmatpush1.bf16.msra.mxu0 0
      %3447 = vmatprep.subr.bf16.mxu0 0
      %3448 = vmatpush1.bf16.msra.mxu0 0
      %3449 = vmatprep.subr.bf16.mxu0 0
      %3450 = vmatpush1.bf16.msra.mxu0 0
      %3451 = vmatprep.subr.bf16.mxu0 0
      %3452 = vmatpush1.bf16.msra.mxu0 0
      %3453 = vmatprep.subr.bf16.mxu0 0
      %3454 = vmatpush1.bf16.msra.mxu0 0
      %3455 = vmatprep.subr.bf16.mxu0 0
      %3456 = vmatpush1.bf16.msra.mxu0 0
      %3457 = vmatprep.subr.bf16.mxu0 0
      %3458 = vmatpush1.bf16.msra.mxu0 0
      %3459 = vmatprep.mubr.bf16.mxu0 0
      %3460 = vmatmul.mubr.bf16.gmra.mrb[0].mxu0 %v2071
      %v3461 = vpop.f32.mrb[0].mxu0
      %v3462 = vadd.f32 0.0, %v3461
      %v3463 = vpop.f32.mrb[0].mxu0
      %v3464 = vadd.f32 0.0, %v3463
      %v3465 = vpop.f32.mrb[0].mxu0
      %v3466 = vadd.f32 0.0, %v3465
      %v3467 = vpop.f32.mrb[0].mxu0
      %v3468 = vadd.f32 0.0, %v3467
      %3469 = vdwg.mxu0
      %3470 = vmatprep.subr.bf16.mxu0 %v2246
      %3471 = vmatpush1.bf16.msra.mxu0 %v2243
      %3472 = vmatprep.subr.bf16.mxu0 0
      %3473 = vmatpush1.bf16.msra.mxu0 0
      %3474 = vmatprep.subr.bf16.mxu0 0
      %3475 = vmatpush1.bf16.msra.mxu0 0
      %3476 = vmatprep.subr.bf16.mxu0 0
      %3477 = vmatpush1.bf16.msra.mxu0 0
      %3478 = vmatprep.subr.bf16.mxu0 0
      %3479 = vmatpush1.bf16.msra.mxu0 0
      %3480 = vmatprep.subr.bf16.mxu0 0
      %3481 = vmatpush1.bf16.msra.mxu0 0
      %3482 = vmatprep.subr.bf16.mxu0 0
      %3483 = vmatpush1.bf16.msra.mxu0 0
      %3484 = vmatprep.subr.bf16.mxu0 0
      %3485 = vmatpush1.bf16.msra.mxu0 0
      %3486 = vmatprep.subr.bf16.mxu0 0
      %3487 = vmatpush1.bf16.msra.mxu0 0
      %3488 = vmatprep.subr.bf16.mxu0 0
      %3489 = vmatpush1.bf16.msra.mxu0 0
      %3490 = vmatprep.subr.bf16.mxu0 0
      %3491 = vmatpush1.bf16.msra.mxu0 0
      %3492 = vmatprep.subr.bf16.mxu0 0
      %3493 = vmatpush1.bf16.msra.mxu0 0
      %3494 = vmatprep.subr.bf16.mxu0 0
      %3495 = vmatpush1.bf16.msra.mxu0 0
      %3496 = vmatprep.subr.bf16.mxu0 0
      %3497 = vmatpush1.bf16.msra.mxu0 0
      %3498 = vmatprep.subr.bf16.mxu0 0
      %3499 = vmatpush1.bf16.msra.mxu0 0
      %3500 = vmatprep.subr.bf16.mxu0 0
      %3501 = vmatpush1.bf16.msra.mxu0 0
      %3502 = vmatprep.mubr.bf16.mxu0 0
      %3503 = vmatmul.mubr.bf16.gmra.mrb[0].mxu0 %v2071
      %v3504 = vpop.f32.mrb[0].mxu0
      %v3505 = vadd.f32 0.0, %v3504
      %v3506 = vpop.f32.mrb[0].mxu0
      %v3507 = vadd.f32 0.0, %v3506
      %v3508 = vpop.f32.mrb[0].mxu0
      %v3509 = vadd.f32 0.0, %v3508
      %v3510 = vpop.f32.mrb[0].mxu0
      %v3511 = vadd.f32 0.0, %v3510
      %3512 = vdwg.mxu0
      %3513 = vmatprep.subr.bf16.mxu0 %v2252
      %3514 = vmatpush1.bf16.msra.mxu0 %v2249
      %3515 = vmatprep.subr.bf16.mxu0 0
      %3516 = vmatpush1.bf16.msra.mxu0 0
      %3517 = vmatprep.subr.bf16.mxu0 0
      %3518 = vmatpush1.bf16.msra.mxu0 0
      %3519 = vmatprep.subr.bf16.mxu0 0
      %3520 = vmatpush1.bf16.msra.mxu0 0
      %3521 = vmatprep.subr.bf16.mxu0 0
      %3522 = vmatpush1.bf16.msra.mxu0 0
      %3523 = vmatprep.subr.bf16.mxu0 0
      %3524 = vmatpush1.bf16.msra.mxu0 0
      %3525 = vmatprep.subr.bf16.mxu0 0
      %3526 = vmatpush1.bf16.msra.mxu0 0
      %3527 = vmatprep.subr.bf16.mxu0 0
      %3528 = vmatpush1.bf16.msra.mxu0 0
      %3529 = vmatprep.subr.bf16.mxu0 0
      %3530 = vmatpush1.bf16.msra.mxu0 0
      %3531 = vmatprep.subr.bf16.mxu0 0
      %3532 = vmatpush1.bf16.msra.mxu0 0
      %3533 = vmatprep.subr.bf16.mxu0 0
      %3534 = vmatpush1.bf16.msra.mxu0 0
      %3535 = vmatprep.subr.bf16.mxu0 0
      %3536 = vmatpush1.bf16.msra.mxu0 0
      %3537 = vmatprep.subr.bf16.mxu0 0
      %3538 = vmatpush1.bf16.msra.mxu0 0
      %3539 = vmatprep.subr.bf16.mxu0 0
      %3540 = vmatpush1.bf16.msra.mxu0 0
      %3541 = vmatprep.subr.bf16.mxu0 0
      %3542 = vmatpush1.bf16.msra.mxu0 0
      %3543 = vmatprep.subr.bf16.mxu0 0
      %3544 = vmatpush1.bf16.msra.mxu0 0
      %3545 = vmatprep.mubr.bf16.mxu0 0
      %3546 = vmatmul.mubr.bf16.gmra.mrb[0].mxu0 %v2071
      %v3547 = vpop.f32.mrb[0].mxu0
      %v3548 = vadd.f32 0.0, %v3547
      %v3549 = vpop.f32.mrb[0].mxu0
      %v3550 = vadd.f32 0.0, %v3549
      %v3551 = vpop.f32.mrb[0].mxu0
      %v3552 = vadd.f32 0.0, %v3551
      %v3553 = vpop.f32.mrb[0].mxu0
      %v3554 = vadd.f32 0.0, %v3553
      %3555 = vdwg.mxu0
      %3556 = vmatprep.subr.bf16.mxu0 %v2258
      %3557 = vmatpush1.bf16.msra.mxu0 %v2255
      %3558 = vmatprep.subr.bf16.mxu0 0
      %3559 = vmatpush1.bf16.msra.mxu0 0
      %3560 = vmatprep.subr.bf16.mxu0 0
      %3561 = vmatpush1.bf16.msra.mxu0 0
      %3562 = vmatprep.subr.bf16.mxu0 0
      %3563 = vmatpush1.bf16.msra.mxu0 0
      %3564 = vmatprep.subr.bf16.mxu0 0
      %3565 = vmatpush1.bf16.msra.mxu0 0
      %3566 = vmatprep.subr.bf16.mxu0 0
      %3567 = vmatpush1.bf16.msra.mxu0 0
      %3568 = vmatprep.subr.bf16.mxu0 0
      %3569 = vmatpush1.bf16.msra.mxu0 0
      %3570 = vmatprep.subr.bf16.mxu0 0
      %3571 = vmatpush1.bf16.msra.mxu0 0
      %3572 = vmatprep.subr.bf16.mxu0 0
      %3573 = vmatpush1.bf16.msra.mxu0 0
      %3574 = vmatprep.subr.bf16.mxu0 0
      %3575 = vmatpush1.bf16.msra.mxu0 0
      %3576 = vmatprep.subr.bf16.mxu0 0
      %3577 = vmatpush1.bf16.msra.mxu0 0
      %3578 = vmatprep.subr.bf16.mxu0 0
      %3579 = vmatpush1.bf16.msra.mxu0 0
      %3580 = vmatprep.subr.bf16.mxu0 0
      %3581 = vmatpush1.bf16.msra.mxu0 0
      %3582 = vmatprep.subr.bf16.mxu0 0
      %3583 = vmatpush1.bf16.msra.mxu0 0
      %3584 = vmatprep.subr.bf16.mxu0 0
      %3585 = vmatpush1.bf16.msra.mxu0 0
      %3586 = vmatprep.subr.bf16.mxu0 0
      %3587 = vmatpush1.bf16.msra.mxu0 0
      %3588 = vmatprep.mubr.bf16.mxu0 0
      %3589 = vmatmul.mubr.bf16.gmra.mrb[0].mxu0 %v2071
      %v3590 = vpop.f32.mrb[0].mxu0
      %v3591 = vadd.f32 0.0, %v3590
      %v3592 = vpop.f32.mrb[0].mxu0
      %v3593 = vadd.f32 0.0, %v3592
      %v3594 = vpop.f32.mrb[0].mxu0
      %v3595 = vadd.f32 0.0, %v3594
      %v3596 = vpop.f32.mrb[0].mxu0
      %v3597 = vadd.f32 0.0, %v3596
      %3598 = vdwg.mxu0
      %3599 = vmatprep.subr.bf16.mxu0 %v2264
      %3600 = vmatpush1.bf16.msra.mxu0 %v2261
      %3601 = vmatprep.subr.bf16.mxu0 0
      %3602 = vmatpush1.bf16.msra.mxu0 0
      %3603 = vmatprep.subr.bf16.mxu0 0
      %3604 = vmatpush1.bf16.msra.mxu0 0
      %3605 = vmatprep.subr.bf16.mxu0 0
      %3606 = vmatpush1.bf16.msra.mxu0 0
      %3607 = vmatprep.subr.bf16.mxu0 0
      %3608 = vmatpush1.bf16.msra.mxu0 0
      %3609 = vmatprep.subr.bf16.mxu0 0
      %3610 = vmatpush1.bf16.msra.mxu0 0
      %3611 = vmatprep.subr.bf16.mxu0 0
      %3612 = vmatpush1.bf16.msra.mxu0 0
      %3613 = vmatprep.subr.bf16.mxu0 0
      %3614 = vmatpush1.bf16.msra.mxu0 0
      %3615 = vmatprep.subr.bf16.mxu0 0
      %3616 = vmatpush1.bf16.msra.mxu0 0
      %3617 = vmatprep.subr.bf16.mxu0 0
      %3618 = vmatpush1.bf16.msra.mxu0 0
      %3619 = vmatprep.subr.bf16.mxu0 0
      %3620 = vmatpush1.bf16.msra.mxu0 0
      %3621 = vmatprep.subr.bf16.mxu0 0
      %3622 = vmatpush1.bf16.msra.mxu0 0
      %3623 = vmatprep.subr.bf16.mxu0 0
      %3624 = vmatpush1.bf16.msra.mxu0 0
      %3625 = vmatprep.subr.bf16.mxu0 0
      %3626 = vmatpush1.bf16.msra.mxu0 0
      %3627 = vmatprep.subr.bf16.mxu0 0
      %3628 = vmatpush1.bf16.msra.mxu0 0
      %3629 = vmatprep.subr.bf16.mxu0 0
      %3630 = vmatpush1.bf16.msra.mxu0 0
      %3631 = vmatprep.mubr.bf16.mxu0 0
      %3632 = vmatmul.mubr.bf16.gmra.mrb[0].mxu0 %v2071
      %v3633 = vpop.f32.mrb[0].mxu0
      %v3634 = vadd.f32 0.0, %v3633
      %v3635 = vpop.f32.mrb[0].mxu0
      %v3636 = vadd.f32 0.0, %v3635
      %v3637 = vpop.f32.mrb[0].mxu0
      %v3638 = vadd.f32 0.0, %v3637
      %v3639 = vpop.f32.mrb[0].mxu0
      %v3640 = vadd.f32 0.0, %v3639
      %3641 = vdwg.mxu0
      %v3642 = vmax.f32 %v2301, %v2344
      %v3643 = vmax.f32 %v2303, %v2346
      %v3644 = vmax.f32 %v2305, %v2348
      %v3645 = vmax.f32 %v2307, %v2350
      %v3646 = vmax.f32 %v2387, %v2430
      %v3647 = vmax.f32 %v2389, %v2432
      %v3648 = vmax.f32 %v2391, %v2434
      %v3649 = vmax.f32 %v2393, %v2436
      %v3650 = vmax.f32 %v2473, %v2516
      %v3651 = vmax.f32 %v2475, %v2518
      %v3652 = vmax.f32 %v2477, %v2520
      %v3653 = vmax.f32 %v2479, %v2522
      %v3654 = vmax.f32 %v2559, %v2602
      %v3655 = vmax.f32 %v2561, %v2604
      %v3656 = vmax.f32 %v2563, %v2606
      %v3657 = vmax.f32 %v2565, %v2608
      %v3658 = vmax.f32 %v2645, %v2688
      %v3659 = vmax.f32 %v2647, %v2690
      %v3660 = vmax.f32 %v2649, %v2692
      %v3661 = vmax.f32 %v2651, %v2694
      %v3662 = vmax.f32 %v2731, %v2774
      %v3663 = vmax.f32 %v2733, %v2776
      %v3664 = vmax.f32 %v2735, %v2778
      %v3665 = vmax.f32 %v2737, %v2780
      %v3666 = vmax.f32 %v2817, %v2860
      %v3667 = vmax.f32 %v2819, %v2862
      %v3668 = vmax.f32 %v2821, %v2864
      %v3669 = vmax.f32 %v2823, %v2866
      %v3670 = vmax.f32 %v2903, %v2946
      %v3671 = vmax.f32 %v2905, %v2948
      %v3672 = vmax.f32 %v2907, %v2950
      %v3673 = vmax.f32 %v2909, %v2952
      %v3674 = vmax.f32 %v2989, %v3032
      %v3675 = vmax.f32 %v2991, %v3034
      %v3676 = vmax.f32 %v2993, %v3036
      %v3677 = vmax.f32 %v2995, %v3038
      %v3678 = vmax.f32 %v3075, %v3118
      %v3679 = vmax.f32 %v3077, %v3120
      %v3680 = vmax.f32 %v3079, %v3122
      %v3681 = vmax.f32 %v3081, %v3124
      %v3682 = vmax.f32 %v3161, %v3204
      %v3683 = vmax.f32 %v3163, %v3206
      %v3684 = vmax.f32 %v3165, %v3208
      %v3685 = vmax.f32 %v3167, %v3210
      %v3686 = vmax.f32 %v3247, %v3290
      %v3687 = vmax.f32 %v3249, %v3292
      %v3688 = vmax.f32 %v3251, %v3294
      %v3689 = vmax.f32 %v3253, %v3296
      %v3690 = vmax.f32 %v3333, %v3376
      %v3691 = vmax.f32 %v3335, %v3378
      %v3692 = vmax.f32 %v3337, %v3380
      %v3693 = vmax.f32 %v3339, %v3382
      %v3694 = vmax.f32 %v3419, %v3462
      %v3695 = vmax.f32 %v3421, %v3464
      %v3696 = vmax.f32 %v3423, %v3466
      %v3697 = vmax.f32 %v3425, %v3468
      %v3698 = vmax.f32 %v3505, %v3548
      %v3699 = vmax.f32 %v3507, %v3550
      %v3700 = vmax.f32 %v3509, %v3552
      %v3701 = vmax.f32 %v3511, %v3554
      %v3702 = vmax.f32 %v3591, %v3634
      %v3703 = vmax.f32 %v3593, %v3636
      %v3704 = vmax.f32 %v3595, %v3638
      %v3705 = vmax.f32 %v3597, %v3640
      %v3706 = vmax.f32 %v3642, %v3646
      %v3707 = vmax.f32 %v3643, %v3647
      %v3708 = vmax.f32 %v3644, %v3648
      %v3709 = vmax.f32 %v3645, %v3649
      %v3710 = vmax.f32 %v3650, %v3654
      %v3711 = vmax.f32 %v3651, %v3655
      %v3712 = vmax.f32 %v3652, %v3656
      %v3713 = vmax.f32 %v3653, %v3657
      %v3714 = vmax.f32 %v3658, %v3662
      %v3715 = vmax.f32 %v3659, %v3663
      %v3716 = vmax.f32 %v3660, %v3664
      %v3717 = vmax.f32 %v3661, %v3665
      %v3718 = vmax.f32 %v3666, %v3670
      %v3719 = vmax.f32 %v3667, %v3671
      %v3720 = vmax.f32 %v3668, %v3672
      %v3721 = vmax.f32 %v3669, %v3673
      %v3722 = vmax.f32 %v3674, %v3678
      %v3723 = vmax.f32 %v3675, %v3679
      %v3724 = vmax.f32 %v3676, %v3680
      %v3725 = vmax.f32 %v3677, %v3681
      %v3726 = vmax.f32 %v3682, %v3686
      %v3727 = vmax.f32 %v3683, %v3687
      %v3728 = vmax.f32 %v3684, %v3688
      %v3729 = vmax.f32 %v3685, %v3689
      %v3730 = vmax.f32 %v3690, %v3694
      %v3731 = vmax.f32 %v3691, %v3695
      %v3732 = vmax.f32 %v3692, %v3696
      %v3733 = vmax.f32 %v3693, %v3697
      %v3734 = vmax.f32 %v3698, %v3702
      %v3735 = vmax.f32 %v3699, %v3703
      %v3736 = vmax.f32 %v3700, %v3704
      %v3737 = vmax.f32 %v3701, %v3705
      %v3738 = vmax.f32 %v3706, %v3710
      %v3739 = vmax.f32 %v3707, %v3711
      %v3740 = vmax.f32 %v3708, %v3712
      %v3741 = vmax.f32 %v3709, %v3713
      %v3742 = vmax.f32 %v3714, %v3718
      %v3743 = vmax.f32 %v3715, %v3719
      %v3744 = vmax.f32 %v3716, %v3720
      %v3745 = vmax.f32 %v3717, %v3721
      %v3746 = vmax.f32 %v3722, %v3726
      %v3747 = vmax.f32 %v3723, %v3727
      %v3748 = vmax.f32 %v3724, %v3728
      %v3749 = vmax.f32 %v3725, %v3729
      %v3750 = vmax.f32 %v3730, %v3734
      %v3751 = vmax.f32 %v3731, %v3735
      %v3752 = vmax.f32 %v3732, %v3736
      %v3753 = vmax.f32 %v3733, %v3737
      %v3754 = vmax.f32 %v3738, %v3742
      %v3755 = vmax.f32 %v3739, %v3743
      %v3756 = vmax.f32 %v3740, %v3744
      %v3757 = vmax.f32 %v3741, %v3745
      %v3758 = vmax.f32 %v3746, %v3750
      %v3759 = vmax.f32 %v3747, %v3751
      %v3760 = vmax.f32 %v3748, %v3752
      %v3761 = vmax.f32 %v3749, %v3753
      %v3762 = vmax.f32 %v3754, %v3758
      %v3763 = vmax.f32 %v3755, %v3759
      %v3764 = vmax.f32 %v3756, %v3760
      %v3765 = vmax.f32 %v3757, %v3761
      %v3766 = vld [vmem:[%s4] sm:$0xff]
      %v3767 = vld [vmem:[%s4 + $0x8] sm:$0xff]
      %3769 = vset.pattern.permute.xlu0 0
      %3770 = vperm.xlu0 %3769, %v3766
      %v3771 = vpop.permute.xlu0 %3770
      %3774 = vset.pattern.permute.xlu0 0
      %3775 = vperm.xlu0 %3774, %v3767
      %v3776 = vpop.permute.xlu0 %3775
      %v3778 = vadd.f32 %v3762, %v3771
      %v3779 = vadd.f32 %v3763, %v3771
      %v3780 = vadd.f32 %v3764, %v3776
      %v3781 = vadd.f32 %v3765, %v3776
      %v3782 = vmax.f32 %v3778, 0.0
      %v3783 = vmax.f32 %v3779, 0.0
      %v3784 = vmax.f32 %v3780, 0.0
      %v3785 = vmax.f32 %v3781, 0.0
      %v3786 = vpack.c.bf16 %v3784, %v3782
      %v3787 = vpack.c.bf16 %v3785, %v3783
      %v3790 = vunpack.c.l.b16 %v3786
      %v3791 = vunpack.c.l.b16 %v3787
      %v3792 = vunpack.c.h.b16 %v3786
      %v3793 = vunpack.c.h.b16 %v3787
      %v3794 = vpack.c.b16 %v3791, %v3790
      %v3795 = vpack.c.b16 %v3793, %v3792
      %3798 = vst [vmem:[%s224] sm:$0xff] %v3794
      %3799 = vst [vmem:[%s224 + $0x8] sm:$0xff] %v3795
      %p3800 = scmp.lt.s32.totalorder %s16, 1
      %s3801 = scalar_select %p3800, %s16, 1
      %s3802 = smul.addr %s3801, 4
      %s3803 = smul.addr %s3802, 4
      %s3804 = scalar_lea.vmem %s5, %s3803
      // Predicated region
      $region41: #{pointnet_encoder.5} parent=39 // pred_check
        %p3805 = pneg %p144
      $region42: #{pointnet_encoder.5} parent=39 // pred_check_branch
        %3807 = sbr.rel (%p3805) target = $region44
      $region43: #{pointnet_encoder.5} parent=39 // pred_region
        _
      $region44: #{pointnet_encoder.5} parent=39 // pred_fallthru
        _
    $region40: #{pointnet_encoder.5} parent=5 // pred_fallthru
      _
    %p3808 = scmp.le.s32.totalorder 2, %s11
    // Predicated region
    $region45: #{pointnet_encoder.5} parent=5 // pred_check
      %p3809 = pneg %p3808
    $region46: #{pointnet_encoder.5} parent=5 // pred_check_branch
      %3811 = sbr.rel (%p3809) target = $region48
    $region47: #{pointnet_encoder.5} parent=5 // pred_region
      %s3812 = ssub.s32 %s11, 2
      // Predicated region
      $region49: #{pointnet_encoder.5} parent=47 // pred_check
        %p3813 = pneg %p150
      $region50: #{pointnet_encoder.5} parent=47 // pred_check_branch
        %3815 = sbr.rel (%p3813) target = $region52
      $region51: #{pointnet_encoder.5} parent=47 // pred_region
        %p3816 = scmp.lt.s32.totalorder %s17, 1
        %s3817 = scalar_select %p3816, %s17, 1
        %s3818 = smul.addr %s3817, 4
        %s3819 = smul.addr %s3818, 4
        %s3820 = scalar_lea.vmem %s5, %s3819
      $region52: #{pointnet_encoder.5} parent=47 // pred_fallthru
        _
    $region48: #{pointnet_encoder.5} parent=5 // pred_fallthru
      _
  $region6: #{pointnet_encoder.5} parent=0 // loop_footer
    %s15 = sadd.s32 1, %s11
  $region7: #{pointnet_encoder.5} parent=0 // loop_footer_branch
    %10 = sbr.rel target = $region3
  $region8: #{pointnet_encoder.5} parent=0 // loop_exit
    _

// kernel: pointnet_encoder.7
$region0: #{pointnet_encoder.7}
  #allocation0 [shape = 'u32[]', space=smem, size = 0x4, offset = 0x4, fixed_abs, tag = 'smem constant byte address 0x4 - core index']
  #allocation1 [shape = 'u32[144,128]{1,0:T(1,128)}', space=vmem, size = 0x12000, scoped, tag = 'internal scratch']
  %s0 = inlined_call_operand.vmem [shape: bf16[2,19,8192], index: 0, kind: input, shape index: {}]
  %s1 = inlined_call_operand.vmem [shape: bf16[16,19], index: 1, kind: input, shape index: {}]
  %s2 = inlined_call_operand.vmem [shape: f32[16,1], index: 2, kind: input, shape index: {}]
  %s3 = inlined_call_operand.vmem [shape: bf16[32,16], index: 3, kind: input, shape index: {}]
  %s4 = inlined_call_operand.vmem [shape: f32[32,1], index: 4, kind: input, shape index: {}]
  %s5 = inlined_call_operand.vmem [shape: bf16[2,32,128], index: 5, kind: output, shape index: {}]
  %s6 = sld [smem:[#allocation0]]
  $region53: #{pointnet_encoder.7} parent=0
    _
  %s8 = ssub.s32 1, %s6
  %s9 = scalar_select 0, %s8, %s6
  loop: start=0, step=1, limit=4
  $region2: #{pointnet_encoder.7} parent=0 // loop_pre_header
    _
  $region3: #{pointnet_encoder.7} parent=0 // loop_header
    %s11 = sphi 0, %s15
    %p12 = scmp.ge.s32.totalorder %s11, 4
    %s21 = sphi 0, %s23
    %s24 = sphi 0, %s21
    %s25 = sphi 0, %s24
    %s41 = sphi 0, %s25
    %s45 = sphi 0, %s45
    %s47 = sphi 0, %s45
    %s48 = sphi 0, %s47
    %s62 = sphi 0, %s48
    %s66 = sphi 0, %s66
    %s68 = sphi 0, %s66
    %s69 = sphi 0, %s68
    %s83 = sphi 0, %s69
    %s87 = sphi 0, %s87
    %s89 = sphi 0, %s87
    %s90 = sphi 0, %s89
    %s104 = sphi 0, %s90
    %s108 = sphi 0, %s108
    %s110 = sphi 0, %s108
    %s111 = sphi 0, %s110
    %s125 = sphi 0, %s111
    %s131 = sphi 0, %s133
    %s134 = sphi 0, %s131
    %s135 = sphi 0, %s134
    %s151 = sphi 0, %s135
  $region4: #{pointnet_encoder.7} parent=0 // loop_header_branch
    %14 = sbr.rel (%p12) target = $region8
  $region5: #{pointnet_encoder.7} parent=0 // loop_body
    %s16 = ssub.s32 %s11, 1
    %s17 = ssub.s32 %s11, 2
    %s18 = sadd.s32 %s11, 1
    %s19 = ssub.s32 %s11, %s18
    %p20 = scmp.eq.s32.totalorder %s19, 0
    %s22 = sadd.s32 %s21, 1
    %s23 = scalar_select %p20, %s21, %s22
    %p26 = pneg %p20
    %p27 = scmp.eq.s32.totalorder %s11, 1
    %p28 = por %p26, %p27
    %p29 = scmp.ne.s32.totalorder %s21, %s24
    %p30 = scmp.eq.s32.totalorder %s11, 0
    %p31 = por %p29, %p30
    %p32 = scmp.ne.s32.totalorder %s21, %s24
    %p33 = scmp.eq.s32.totalorder %s16, 1
    %p34 = por %p32, %p33
    %p35 = scmp.ne.s32.totalorder %s24, %s25
    %p36 = scmp.eq.s32.totalorder %s16, 0
    %p37 = por %p35, %p36
    %p38 = scmp.ne.s32.totalorder %s24, %s25
    %p39 = scmp.eq.s32.totalorder %s17, 1
    %p40 = por %p38, %p39
    %p42 = scmp.ne.s32.totalorder %s25, %s41
    %p43 = scmp.eq.s32.totalorder %s17, 0
    %p44 = por %p42, %p43
    %s46 = sadd.s32 %s45, 1
    %p49 = scmp.eq.s32.totalorder %s11, 1
    %p50 = scmp.ne.s32.totalorder %s45, %s47
    %p51 = scmp.eq.s32.totalorder %s11, 0
    %p52 = por %p50, %p51
    %p53 = scmp.ne.s32.totalorder %s45, %s47
    %p54 = scmp.eq.s32.totalorder %s16, 1
    %p55 = por %p53, %p54
    %p56 = scmp.ne.s32.totalorder %s47, %s48
    %p57 = scmp.eq.s32.totalorder %s16, 0
    %p58 = por %p56, %p57
    %p59 = scmp.ne.s32.totalorder %s47, %s48
    %p60 = scmp.eq.s32.totalorder %s17, 1
    %p61 = por %p59, %p60
    %p63 = scmp.ne.s32.totalorder %s48, %s62
    %p64 = scmp.eq.s32.totalorder %s17, 0
    %p65 = por %p63, %p64
    %s67 = sadd.s32 %s66, 1
    %p70 = scmp.eq.s32.totalorder %s11, 1
    %p71 = scmp.ne.s32.totalorder %s66, %s68
    %p72 = scmp.eq.s32.totalorder %s11, 0
    %p73 = por %p71, %p72
    %p74 = scmp.ne.s32.totalorder %s66, %s68
    %p75 = scmp.eq.s32.totalorder %s16, 1
    %p76 = por %p74, %p75
    %p77 = scmp.ne.s32.totalorder %s68, %s69
    %p78 = scmp.eq.s32.totalorder %s16, 0
    %p79 = por %p77, %p78
    %p80 = scmp.ne.s32.totalorder %s68, %s69
    %p81 = scmp.eq.s32.totalorder %s17, 1
    %p82 = por %p80, %p81
    %p84 = scmp.ne.s32.totalorder %s69, %s83
    %p85 = scmp.eq.s32.totalorder %s17, 0
    %p86 = por %p84, %p85
    %s88 = sadd.s32 %s87, 1
    %p91 = scmp.eq.s32.totalorder %s11, 1
    %p92 = scmp.ne.s32.totalorder %s87, %s89
    %p93 = scmp.eq.s32.totalorder %s11, 0
    %p94 = por %p92, %p93
    %p95 = scmp.ne.s32.totalorder %s87, %s89
    %p96 = scmp.eq.s32.totalorder %s16, 1
    %p97 = por %p95, %p96
    %p98 = scmp.ne.s32.totalorder %s89, %s90
    %p99 = scmp.eq.s32.totalorder %s16, 0
    %p100 = por %p98, %p99
    %p101 = scmp.ne.s32.totalorder %s89, %s90
    %p102 = scmp.eq.s32.totalorder %s17, 1
    %p103 = por %p101, %p102
    %p105 = scmp.ne.s32.totalorder %s90, %s104
    %p106 = scmp.eq.s32.totalorder %s17, 0
    %p107 = por %p105, %p106
    %s109 = sadd.s32 %s108, 1
    %p112 = scmp.eq.s32.totalorder %s11, 1
    %p113 = scmp.ne.s32.totalorder %s108, %s110
    %p114 = scmp.eq.s32.totalorder %s11, 0
    %p115 = por %p113, %p114
    %p116 = scmp.ne.s32.totalorder %s108, %s110
    %p117 = scmp.eq.s32.totalorder %s16, 1
    %p118 = por %p116, %p117
    %p119 = scmp.ne.s32.totalorder %s110, %s111
    %p120 = scmp.eq.s32.totalorder %s16, 0
    %p121 = por %p119, %p120
    %p122 = scmp.ne.s32.totalorder %s110, %s111
    %p123 = scmp.eq.s32.totalorder %s17, 1
    %p124 = por %p122, %p123
    %p126 = scmp.ne.s32.totalorder %s111, %s125
    %p127 = scmp.eq.s32.totalorder %s17, 0
    %p128 = por %p126, %p127
    %s129 = ssub.s32 %s11, %s18
    %p130 = scmp.eq.s32.totalorder %s129, 0
    %s132 = sadd.s32 %s131, 1
    %s133 = scalar_select %p130, %s131, %s132
    %p136 = pneg %p130
    %p137 = scmp.eq.s32.totalorder %s11, 1
    %p138 = por %p136, %p137
    %p139 = scmp.ne.s32.totalorder %s131, %s134
    %p140 = scmp.eq.s32.totalorder %s11, 0
    %p141 = por %p139, %p140
    %p142 = scmp.ne.s32.totalorder %s131, %s134
    %p143 = scmp.eq.s32.totalorder %s16, 1
    %p144 = por %p142, %p143
    %p145 = scmp.ne.s32.totalorder %s134, %s135
    %p146 = scmp.eq.s32.totalorder %s16, 0
    %p147 = por %p145, %p146
    %p148 = scmp.ne.s32.totalorder %s134, %s135
    %p149 = scmp.eq.s32.totalorder %s17, 1
    %p150 = por %p148, %p149
    %p152 = scmp.ne.s32.totalorder %s135, %s151
    %p153 = scmp.eq.s32.totalorder %s17, 0
    %p154 = por %p152, %p153
    %p155 = scmp.le.s32.totalorder 1, %s11
    %p156 = scmp.lt.s32.totalorder %s11, 3
    %p157 = pnand %p155, %p156
    %p158 = pneg %p157
    // Predicated region
    $region9: #{pointnet_encoder.7} parent=5 // pred_check
      _
    $region10: #{pointnet_encoder.7} parent=5 // pred_check_branch
      %160 = sbr.rel (%p157) target = $region12
    $region11: #{pointnet_encoder.7} parent=5 // pred_region
      %s161 = ssub.s32 %s11, 1
      // Predicated region
      $region13: #{pointnet_encoder.7} parent=11 // pred_check
        %p162 = pneg %p58
      $region14: #{pointnet_encoder.7} parent=11 // pred_check_branch
        %164 = sbr.rel (%p162) target = $region16
      $region15: #{pointnet_encoder.7} parent=11 // pred_region
        _
      $region16: #{pointnet_encoder.7} parent=11 // pred_fallthru
        _
      // Predicated region
      $region17: #{pointnet_encoder.7} parent=11 // pred_check
        %p165 = pneg %p79
      $region18: #{pointnet_encoder.7} parent=11 // pred_check_branch
        %167 = sbr.rel (%p165) target = $region20
      $region19: #{pointnet_encoder.7} parent=11 // pred_region
        _
      $region20: #{pointnet_encoder.7} parent=11 // pred_fallthru
        _
      // Predicated region
      $region21: #{pointnet_encoder.7} parent=11 // pred_check
        %p168 = pneg %p100
      $region22: #{pointnet_encoder.7} parent=11 // pred_check_branch
        %170 = sbr.rel (%p168) target = $region24
      $region23: #{pointnet_encoder.7} parent=11 // pred_region
        _
      $region24: #{pointnet_encoder.7} parent=11 // pred_fallthru
        _
      // Predicated region
      $region25: #{pointnet_encoder.7} parent=11 // pred_check
        %p171 = pneg %p121
      $region26: #{pointnet_encoder.7} parent=11 // pred_check_branch
        %173 = sbr.rel (%p171) target = $region28
      $region27: #{pointnet_encoder.7} parent=11 // pred_region
        _
      $region28: #{pointnet_encoder.7} parent=11 // pred_fallthru
        _
    $region12: #{pointnet_encoder.7} parent=5 // pred_fallthru
      _
    %p174 = scmp.lt.s32.totalorder %s11, 2
    // Predicated region
    $region29: #{pointnet_encoder.7} parent=5 // pred_check
      %p175 = pneg %p174
    $region30: #{pointnet_encoder.7} parent=5 // pred_check_branch
      %177 = sbr.rel (%p175) target = $region32
    $region31: #{pointnet_encoder.7} parent=5 // pred_region
      // Predicated region
      $region33: #{pointnet_encoder.7} parent=31 // pred_check
        %p178 = pneg %p31
      $region34: #{pointnet_encoder.7} parent=31 // pred_check_branch
        %180 = sbr.rel (%p178) target = $region36
      $region35: #{pointnet_encoder.7} parent=31 // pred_region
        %p181 = scmp.lt.s32.totalorder %s11, 1
        %s182 = scalar_select %p181, %s11, 1
        %s183 = smul.addr %s182, 192
        %s184 = smul.addr %s183, 4
        %s185 = scalar_lea.vmem %s0, %s184
      $region36: #{pointnet_encoder.7} parent=31 // pred_fallthru
        _
    $region32: #{pointnet_encoder.7} parent=5 // pred_fallthru
      _
    %p186 = scmp.le.s32.totalorder 1, %s11
    %p187 = scmp.lt.s32.totalorder %s11, 3
    %p188 = pnand %p186, %p187
    %p189 = pneg %p188
    // Predicated region
    $region37: #{pointnet_encoder.7} parent=5 // pred_check
      _
    $region38: #{pointnet_encoder.7} parent=5 // pred_check_branch
      %191 = sbr.rel (%p188) target = $region40
    $region39: #{pointnet_encoder.7} parent=5 // pred_region
      %s192 = ssub.s32 %s11, 1
      %p193 = scmp.lt.s32.totalorder %s16, 1
      %s194 = scalar_select %p193, %s16, 1
      %s195 = smul.addr %s194, 192
      %s196 = smul.addr %s195, 4
      %s197 = scalar_lea.vmem %s0, %s196
      %p198 = pneg %p37
      %p199 = pneg %p34
      %p200 = pneg %p58
      %p201 = pneg %p55
      %p202 = pneg %p79
      %p203 = pneg %p76
      %p204 = pneg %p100
      %p205 = pneg %p97
      %p206 = pneg %p121
      %p207 = pneg %p118
      %p208 = pneg %p147
      %p209 = pneg %p144
      %p210 = scmp.lt.s32.totalorder %s16, 1
      %s211 = scalar_select %p210, %s16, 1
      %s212 = smul.addr %s211, 4
      %s213 = smul.addr %s212, 4
      %s214 = scalar_lea.vmem %s5, %s213
      %p215 = scmp.lt.s32.totalorder %s16, 1
      %s216 = scalar_select %p215, %s16, 1
      %s217 = smul.addr %s216, 192
      %s218 = smul.addr %s217, 4
      %s219 = scalar_lea.vmem %s0, %s218
      %p220 = scmp.lt.s32.totalorder %s16, 1
      %s221 = scalar_select %p220, %s16, 1
      %s222 = smul.addr %s221, 4
      %s223 = smul.addr %s222, 4
      %s224 = scalar_lea.vmem %s5, %s223
      %v226 = vld [vmem:[%s219] sm:$0xff]
      %v227 = vld [vmem:[%s219 + $0x8] sm:$0xff]
      %v228 = vld [vmem:[%s219 + $0x10] sm:$0xff]
      %v229 = vld [vmem:[%s219 + $0x18] sm:$0xff]
      %v230 = vld [vmem:[%s219 + $0x20] sm:$0xff]
      %v231 = vld [vmem:[%s219 + $0x28] sm:$0xff]
      %v232 = vld [vmem:[%s219 + $0x30] sm:$0xff]
      %v233 = vld [vmem:[%s219 + $0x38] sm:$0xff]
      %v234 = vld [vmem:[%s219 + $0x40] sm:$0xff]
      %v235 = vld [vmem:[%s219 + $0x48] sm:$0xff]
      %v236 = vld [vmem:[%s219 + $0x50] sm:$0xff]
      %v237 = vld [vmem:[%s219 + $0x58] sm:$0xff]
      %v238 = vld [vmem:[%s219 + $0x60] sm:$0xff]
      %v239 = vld [vmem:[%s219 + $0x68] sm:$0xff]
      %v240 = vld [vmem:[%s219 + $0x70] sm:$0xff]
      %v241 = vld [vmem:[%s219 + $0x78] sm:$0xff]
      %v242 = vld [vmem:[%s219 + $0x80] sm:$0xff]
      %v243 = vld [vmem:[%s219 + $0x88] sm:$0xff]
      %v244 = vld [vmem:[%s219 + $0x90] sm:$0xff]
      %v245 = vld [vmem:[%s219 + $0x98] sm:$0xff]
      %v246 = vld [vmem:[%s219 + $0xa0] sm:$0xff]
      %v247 = vld [vmem:[%s219 + $0xa8] sm:$0xff]
      %v248 = vld [vmem:[%s219 + $0xb0] sm:$0xff]
      %v249 = vld [vmem:[%s219 + $0xb8] sm:$0xff]
      %v250 = vld [vmem:[%s219 + $0xc0] sm:$0xff]
      %v251 = vld [vmem:[%s219 + $0xc8] sm:$0xff]
      %v252 = vld [vmem:[%s219 + $0xd0] sm:$0xff]
      %v253 = vld [vmem:[%s219 + $0xd8] sm:$0xff]
      %v254 = vld [vmem:[%s219 + $0xe0] sm:$0xff]
      %v255 = vld [vmem:[%s219 + $0xe8] sm:$0xff]
      %v256 = vld [vmem:[%s219 + $0xf0] sm:$0xff]
      %v257 = vld [vmem:[%s219 + $0xf8] sm:$0xff]
      %v258 = vld [vmem:[%s219 + $0x100] sm:$0xff]
      %v259 = vld [vmem:[%s219 + $0x108] sm:$0xff]
      %v260 = vld [vmem:[%s219 + $0x110] sm:$0xff]
      %v261 = vld [vmem:[%s219 + $0x118] sm:$0xff]
      %v262 = vld [vmem:[%s219 + $0x120] sm:$0xff]
      %v263 = vld [vmem:[%s219 + $0x128] sm:$0xff]
      %v264 = vld [vmem:[%s219 + $0x130] sm:$0xff]
      %v265 = vld [vmem:[%s219 + $0x138] sm:$0xff]
      %v266 = vld [vmem:[%s219 + $0x140] sm:$0xff]
      %v267 = vld [vmem:[%s219 + $0x148] sm:$0xff]
      %v268 = vld [vmem:[%s219 + $0x150] sm:$0xff]
      %v269 = vld [vmem:[%s219 + $0x158] sm:$0xff]
      %v270 = vld [vmem:[%s219 + $0x160] sm:$0xff]
      %v271 = vld [vmem:[%s219 + $0x168] sm:$0xff]
      %v272 = vld [vmem:[%s219 + $0x170] sm:$0xff]
      %v273 = vld [vmem:[%s219 + $0x178] sm:$0xff]
      %v274 = vld [vmem:[%s219 + $0x180] sm:$0xff]
      %v275 = vld [vmem:[%s219 + $0x188] sm:$0xff]
      %v276 = vld [vmem:[%s219 + $0x190] sm:$0xff]
      %v277 = vld [vmem:[%s219 + $0x198] sm:$0xff]
      %v278 = vld [vmem:[%s219 + $0x1a0] sm:$0xff]
      %v279 = vld [vmem:[%s219 + $0x1a8] sm:$0xff]
      %v280 = vld [vmem:[%s219 + $0x1b0] sm:$0xff]
      %v281 = vld [vmem:[%s219 + $0x1b8] sm:$0xff]
      %v282 = vld [vmem:[%s219 + $0x1c0] sm:$0xff]
      %v283 = vld [vmem:[%s219 + $0x1c8] sm:$0xff]
      %v284 = vld [vmem:[%s219 + $0x1d0] sm:$0xff]
      %v285 = vld [vmem:[%s219 + $0x1d8] sm:$0xff]
      %v286 = vld [vmem:[%s219 + $0x1e0] sm:$0xff]
      %v287 = vld [vmem:[%s219 + $0x1e8] sm:$0xff]
      %v288 = vld [vmem:[%s219 + $0x1f0] sm:$0xff]
      %v289 = vld [vmem:[%s219 + $0x1f8] sm:$0xff]
      %v290 = vld [vmem:[%s219 + $0x200] sm:$0x33]
      %v291 = vld [vmem:[%s219 + $0x208] sm:$0x33]
      %v292 = vld [vmem:[%s219 + $0x210] sm:$0x33]
      %v293 = vld [vmem:[%s219 + $0x218] sm:$0x33]
      %v294 = vld [vmem:[%s219 + $0x220] sm:$0x33]
      %v295 = vld [vmem:[%s219 + $0x228] sm:$0x33]
      %v296 = vld [vmem:[%s219 + $0x230] sm:$0x33]
      %v297 = vld [vmem:[%s219 + $0x238] sm:$0x33]
      %v298 = vld [vmem:[%s219 + $0x240] sm:$0x33]
      %v299 = vld [vmem:[%s219 + $0x248] sm:$0x33]
      %v300 = vld [vmem:[%s219 + $0x250] sm:$0x33]
      %v301 = vld [vmem:[%s219 + $0x258] sm:$0x33]
      %v302 = vld [vmem:[%s219 + $0x260] sm:$0x33]
      %v303 = vld [vmem:[%s219 + $0x268] sm:$0x33]
      %v304 = vld [vmem:[%s219 + $0x270] sm:$0x33]
      %v305 = vld [vmem:[%s219 + $0x278] sm:$0x33]
      %v306 = vld [vmem:[%s219 + $0x280] sm:$0x33]
      %v307 = vld [vmem:[%s219 + $0x288] sm:$0x33]
      %v308 = vld [vmem:[%s219 + $0x290] sm:$0x33]
      %v309 = vld [vmem:[%s219 + $0x298] sm:$0x33]
      %v310 = vld [vmem:[%s219 + $0x2a0] sm:$0x33]
      %v311 = vld [vmem:[%s219 + $0x2a8] sm:$0x33]
      %v312 = vld [vmem:[%s219 + $0x2b0] sm:$0x33]
      %v313 = vld [vmem:[%s219 + $0x2b8] sm:$0x33]
      %v314 = vld [vmem:[%s219 + $0x2c0] sm:$0x33]
      %v315 = vld [vmem:[%s219 + $0x2c8] sm:$0x33]
      %v316 = vld [vmem:[%s219 + $0x2d0] sm:$0x33]
      %v317 = vld [vmem:[%s219 + $0x2d8] sm:$0x33]
      %v318 = vld [vmem:[%s219 + $0x2e0] sm:$0x33]
      %v319 = vld [vmem:[%s219 + $0x2e8] sm:$0x33]
      %v320 = vld [vmem:[%s219 + $0x2f0] sm:$0x33]
      %v321 = vld [vmem:[%s219 + $0x2f8] sm:$0x33]
      %v322 = vld [vmem:[%s1] sm:$0xf]
      %v323 = vld [vmem:[%s1 + $0x4] sm:$0xf]
      %v324 = vld [vmem:[%s2] sm:$0xff]
      %v325 = vld [vmem:[%s2 + $0x8] sm:$0xff]
      %327 = vset.pattern.permute.xlu0 0
      %328 = vperm.xlu0 %327, %v324
      %v329 = vpop.permute.xlu0 %328
      %332 = vset.pattern.permute.xlu0 0
      %333 = vperm.xlu0 %332, %v325
      %v334 = vpop.permute.xlu0 %333
      %v338 = vunpack.c.l.b16 %v322
      %v339 = vunpack.c.l.b16 %v323
      %v340 = vpack.c.b16 %v339, %v338
      %v437 = vunpack.c.l.b16 %v226
      %v438 = vunpack.c.h.b16 %v226
      %v439 = vunpack.c.l.b16 %v227
      %v440 = vunpack.c.h.b16 %v227
      %v441 = vunpack.c.l.b16 %v228
      %v442 = vunpack.c.h.b16 %v228
      %v443 = vunpack.c.l.b16 %v229
      %v444 = vunpack.c.h.b16 %v229
      %v445 = vunpack.c.l.b16 %v230
      %v446 = vunpack.c.h.b16 %v230
      %v447 = vunpack.c.l.b16 %v231
      %v448 = vunpack.c.h.b16 %v231
      %v449 = vunpack.c.l.b16 %v232
      %v450 = vunpack.c.h.b16 %v232
      %v451 = vunpack.c.l.b16 %v233
      %v452 = vunpack.c.h.b16 %v233
      %v453 = vunpack.c.l.b16 %v234
      %v454 = vunpack.c.h.b16 %v234
      %v455 = vunpack.c.l.b16 %v235
      %v456 = vunpack.c.h.b16 %v235
      %v457 = vunpack.c.l.b16 %v236
      %v458 = vunpack.c.h.b16 %v236
      %v459 = vunpack.c.l.b16 %v237
      %v460 = vunpack.c.h.b16 %v237
      %v461 = vunpack.c.l.b16 %v238
      %v462 = vunpack.c.h.b16 %v238
      %v463 = vunpack.c.l.b16 %v239
      %v464 = vunpack.c.h.b16 %v239
      %v465 = vunpack.c.l.b16 %v240
      %v466 = vunpack.c.h.b16 %v240
      %v467 = vunpack.c.l.b16 %v241
      %v468 = vunpack.c.h.b16 %v241
      %v469 = vunpack.c.l.b16 %v242
      %v470 = vunpack.c.h.b16 %v242
      %v471 = vunpack.c.l.b16 %v243
      %v472 = vunpack.c.h.b16 %v243
      %v473 = vunpack.c.l.b16 %v244
      %v474 = vunpack.c.h.b16 %v244
      %v475 = vunpack.c.l.b16 %v245
      %v476 = vunpack.c.h.b16 %v245
      %v477 = vunpack.c.l.b16 %v246
      %v478 = vunpack.c.h.b16 %v246
      %v479 = vunpack.c.l.b16 %v247
      %v480 = vunpack.c.h.b16 %v247
      %v481 = vunpack.c.l.b16 %v248
      %v482 = vunpack.c.h.b16 %v248
      %v483 = vunpack.c.l.b16 %v249
      %v484 = vunpack.c.h.b16 %v249
      %v485 = vunpack.c.l.b16 %v250
      %v486 = vunpack.c.h.b16 %v250
      %v487 = vunpack.c.l.b16 %v251
      %v488 = vunpack.c.h.b16 %v251
      %v489 = vunpack.c.l.b16 %v252
      %v490 = vunpack.c.h.b16 %v252
      %v491 = vunpack.c.l.b16 %v253
      %v492 = vunpack.c.h.b16 %v253
      %v493 = vunpack.c.l.b16 %v254
      %v494 = vunpack.c.h.b16 %v254
      %v495 = vunpack.c.l.b16 %v255
      %v496 = vunpack.c.h.b16 %v255
      %v497 = vunpack.c.l.b16 %v256
      %v498 = vunpack.c.h.b16 %v256
      %v499 = vunpack.c.l.b16 %v257
      %v500 = vunpack.c.h.b16 %v257
      %v501 = vunpack.c.l.b16 %v258
      %v502 = vunpack.c.h.b16 %v258
      %v503 = vunpack.c.l.b16 %v259
      %v504 = vunpack.c.h.b16 %v259
      %v505 = vunpack.c.l.b16 %v260
      %v506 = vunpack.c.h.b16 %v260
      %v507 = vunpack.c.l.b16 %v261
      %v508 = vunpack.c.h.b16 %v261
      %v509 = vunpack.c.l.b16 %v262
      %v510 = vunpack.c.h.b16 %v262
      %v511 = vunpack.c.l.b16 %v263
      %v512 = vunpack.c.h.b16 %v263
      %v513 = vunpack.c.l.b16 %v264
      %v514 = vunpack.c.h.b16 %v264
      %v515 = vunpack.c.l.b16 %v265
      %v516 = vunpack.c.h.b16 %v265
      %v517 = vunpack.c.l.b16 %v266
      %v518 = vunpack.c.h.b16 %v266
      %v519 = vunpack.c.l.b16 %v267
      %v520 = vunpack.c.h.b16 %v267
      %v521 = vunpack.c.l.b16 %v268
      %v522 = vunpack.c.h.b16 %v268
      %v523 = vunpack.c.l.b16 %v269
      %v524 = vunpack.c.h.b16 %v269
      %v525 = vunpack.c.l.b16 %v270
      %v526 = vunpack.c.h.b16 %v270
      %v527 = vunpack.c.l.b16 %v271
      %v528 = vunpack.c.h.b16 %v271
      %v529 = vunpack.c.l.b16 %v272
      %v530 = vunpack.c.h.b16 %v272
      %v531 = vunpack.c.l.b16 %v273
      %v532 = vunpack.c.h.b16 %v273
      %v533 = vunpack.c.l.b16 %v274
      %v534 = vunpack.c.h.b16 %v274
      %v535 = vunpack.c.l.b16 %v275
      %v536 = vunpack.c.h.b16 %v275
      %v537 = vunpack.c.l.b16 %v276
      %v538 = vunpack.c.h.b16 %v276
      %v539 = vunpack.c.l.b16 %v277
      %v540 = vunpack.c.h.b16 %v277
      %v541 = vunpack.c.l.b16 %v278
      %v542 = vunpack.c.h.b16 %v278
      %v543 = vunpack.c.l.b16 %v279
      %v544 = vunpack.c.h.b16 %v279
      %v545 = vunpack.c.l.b16 %v280
      %v546 = vunpack.c.h.b16 %v280
      %v547 = vunpack.c.l.b16 %v281
      %v548 = vunpack.c.h.b16 %v281
      %v549 = vunpack.c.l.b16 %v282
      %v550 = vunpack.c.h.b16 %v282
      %v551 = vunpack.c.l.b16 %v283
      %v552 = vunpack.c.h.b16 %v283
      %v553 = vunpack.c.l.b16 %v284
      %v554 = vunpack.c.h.b16 %v284
      %v555 = vunpack.c.l.b16 %v285
      %v556 = vunpack.c.h.b16 %v285
      %v557 = vunpack.c.l.b16 %v286
      %v558 = vunpack.c.h.b16 %v286
      %v559 = vunpack.c.l.b16 %v287
      %v560 = vunpack.c.h.b16 %v287
      %v561 = vunpack.c.l.b16 %v288
      %v562 = vunpack.c.h.b16 %v288
      %v563 = vunpack.c.l.b16 %v289
      %v564 = vunpack.c.h.b16 %v289
      %v565 = vunpack.c.l.b16 %v290
      %v566 = vunpack.c.h.b16 %v290
      %v567 = vunpack.c.l.b16 %v291
      %v568 = vunpack.c.h.b16 %v291
      %v569 = vunpack.c.l.b16 %v292
      %v570 = vunpack.c.h.b16 %v292
      %v571 = vunpack.c.l.b16 %v293
      %v572 = vunpack.c.h.b16 %v293
      %v573 = vunpack.c.l.b16 %v294
      %v574 = vunpack.c.h.b16 %v294
      %v575 = vunpack.c.l.b16 %v295
      %v576 = vunpack.c.h.b16 %v295
      %v577 = vunpack.c.l.b16 %v296
      %v578 = vunpack.c.h.b16 %v296
      %v579 = vunpack.c.l.b16 %v297
      %v580 = vunpack.c.h.b16 %v297
      %v581 = vunpack.c.l.b16 %v298
      %v582 = vunpack.c.h.b16 %v298
      %v583 = vunpack.c.l.b16 %v299
      %v584 = vunpack.c.h.b16 %v299
      %v585 = vunpack.c.l.b16 %v300
      %v586 = vunpack.c.h.b16 %v300
      %v587 = vunpack.c.l.b16 %v301
      %v588 = vunpack.c.h.b16 %v301
      %v589 = vunpack.c.l.b16 %v302
      %v590 = vunpack.c.h.b16 %v302
      %v591 = vunpack.c.l.b16 %v303
      %v592 = vunpack.c.h.b16 %v303
      %v593 = vunpack.c.l.b16 %v304
      %v594 = vunpack.c.h.b16 %v304
      %v595 = vunpack.c.l.b16 %v305
      %v596 = vunpack.c.h.b16 %v305
      %v597 = vunpack.c.l.b16 %v306
      %v598 = vunpack.c.h.b16 %v306
      %v599 = vunpack.c.l.b16 %v307
      %v600 = vunpack.c.h.b16 %v307
      %v601 = vunpack.c.l.b16 %v308
      %v602 = vunpack.c.h.b16 %v308
      %v603 = vunpack.c.l.b16 %v309
      %v604 = vunpack.c.h.b16 %v309
      %v605 = vunpack.c.l.b16 %v310
      %v606 = vunpack.c.h.b16 %v310
      %v607 = vunpack.c.l.b16 %v311
      %v608 = vunpack.c.h.b16 %v311
      %v609 = vunpack.c.l.b16 %v312
      %v610 = vunpack.c.h.b16 %v312
      %v611 = vunpack.c.l.b16 %v313
      %v612 = vunpack.c.h.b16 %v313
      %v613 = vunpack.c.l.b16 %v314
      %v614 = vunpack.c.h.b16 %v314
      %v615 = vunpack.c.l.b16 %v315
      %v616 = vunpack.c.h.b16 %v315
      %v617 = vunpack.c.l.b16 %v316
      %v618 = vunpack.c.h.b16 %v316
      %v619 = vunpack.c.l.b16 %v317
      %v620 = vunpack.c.h.b16 %v317
      %v621 = vunpack.c.l.b16 %v318
      %v622 = vunpack.c.h.b16 %v318
      %v623 = vunpack.c.l.b16 %v319
      %v624 = vunpack.c.h.b16 %v319
      %v625 = vunpack.c.l.b16 %v320
      %v626 = vunpack.c.h.b16 %v320
      %v627 = vunpack.c.l.b16 %v321
      %v628 = vunpack.c.h.b16 %v321
      %v629 = vpack.c.b16 %v501, %v437
      %v630 = vpack.c.b16 %v502, %v438
      %v631 = vpack.c.b16 %v503, %v439
      %v632 = vpack.c.b16 %v504, %v440
      %v633 = vpack.c.b16 %v505, %v441
      %v634 = vpack.c.b16 %v506, %v442
      %v635 = vpack.c.b16 %v507, %v443
      %v636 = vpack.c.b16 %v508, %v444
      %v637 = vpack.c.b16 %v509, %v445
      %v638 = vpack.c.b16 %v510, %v446
      %v639 = vpack.c.b16 %v511, %v447
      %v640 = vpack.c.b16 %v512, %v448
      %v641 = vpack.c.b16 %v513, %v449
      %v642 = vpack.c.b16 %v514, %v450
      %v643 = vpack.c.b16 %v515, %v451
      %v644 = vpack.c.b16 %v516, %v452
      %v645 = vpack.c.b16 %v517, %v453
      %v646 = vpack.c.b16 %v518, %v454
      %v647 = vpack.c.b16 %v519, %v455
      %v648 = vpack.c.b16 %v520, %v456
      %v649 = vpack.c.b16 %v521, %v457
      %v650 = vpack.c.b16 %v522, %v458
      %v651 = vpack.c.b16 %v523, %v459
      %v652 = vpack.c.b16 %v524, %v460
      %v653 = vpack.c.b16 %v525, %v461
      %v654 = vpack.c.b16 %v526, %v462
      %v655 = vpack.c.b16 %v527, %v463
      %v656 = vpack.c.b16 %v528, %v464
      %v657 = vpack.c.b16 %v529, %v465
      %v658 = vpack.c.b16 %v530, %v466
      %v659 = vpack.c.b16 %v531, %v467
      %v660 = vpack.c.b16 %v532, %v468
      %v661 = vpack.c.b16 %v533, %v469
      %v662 = vpack.c.b16 %v534, %v470
      %v663 = vpack.c.b16 %v535, %v471
      %v664 = vpack.c.b16 %v536, %v472
      %v665 = vpack.c.b16 %v537, %v473
      %v666 = vpack.c.b16 %v538, %v474
      %v667 = vpack.c.b16 %v539, %v475
      %v668 = vpack.c.b16 %v540, %v476
      %v669 = vpack.c.b16 %v541, %v477
      %v670 = vpack.c.b16 %v542, %v478
      %v671 = vpack.c.b16 %v543, %v479
      %v672 = vpack.c.b16 %v544, %v480
      %v673 = vpack.c.b16 %v545, %v481
      %v674 = vpack.c.b16 %v546, %v482
      %v675 = vpack.c.b16 %v547, %v483
      %v676 = vpack.c.b16 %v548, %v484
      %v677 = vpack.c.b16 %v549, %v485
      %v678 = vpack.c.b16 %v550, %v486
      %v679 = vpack.c.b16 %v551, %v487
      %v680 = vpack.c.b16 %v552, %v488
      %v681 = vpack.c.b16 %v553, %v489
      %v682 = vpack.c.b16 %v554, %v490
      %v683 = vpack.c.b16 %v555, %v491
      %v684 = vpack.c.b16 %v556, %v492
      %v685 = vpack.c.b16 %v557, %v493
      %v686 = vpack.c.b16 %v558, %v494
      %v687 = vpack.c.b16 %v559, %v495
      %v688 = vpack.c.b16 %v560, %v496
      %v689 = vpack.c.b16 %v561, %v497
      %v690 = vpack.c.b16 %v562, %v498
      %v691 = vpack.c.b16 %v563, %v499
      %v692 = vpack.c.b16 %v564, %v500
      %v693 = vpack.c.b16 %v565, %v565
      %v694 = vpack.c.b16 %v566, %v566
      %v695 = vpack.c.b16 %v567, %v567
      %v696 = vpack.c.b16 %v568, %v568
      %v697 = vpack.c.b16 %v569, %v569
      %v698 = vpack.c.b16 %v570, %v570
      %v699 = vpack.c.b16 %v571, %v571
      %v700 = vpack.c.b16 %v572, %v572
      %v701 = vpack.c.b16 %v573, %v573
      %v702 = vpack.c.b16 %v574, %v574
      %v703 = vpack.c.b16 %v575, %v575
      %v704 = vpack.c.b16 %v576, %v576
      %v705 = vpack.c.b16 %v577, %v577
      %v706 = vpack.c.b16 %v578, %v578
      %v707 = vpack.c.b16 %v579, %v579
      %v708 = vpack.c.b16 %v580, %v580
      %v709 = vpack.c.b16 %v581, %v581
      %v710 = vpack.c.b16 %v582, %v582
      %v711 = vpack.c.b16 %v583, %v583
      %v712 = vpack.c.b16 %v584, %v584
      %v713 = vpack.c.b16 %v585, %v585
      %v714 = vpack.c.b16 %v586, %v586
      %v715 = vpack.c.b16 %v587, %v587
      %v716 = vpack.c.b16 %v588, %v588
      %v717 = vpack.c.b16 %v589, %v589
      %v718 = vpack.c.b16 %v590, %v590
      %v719 = vpack.c.b16 %v591, %v591
      %v720 = vpack.c.b16 %v592, %v592
      %v721 = vpack.c.b16 %v593, %v593
      %v722 = vpack.c.b16 %v594, %v594
      %v723 = vpack.c.b16 %v595, %v595
      %v724 = vpack.c.b16 %v596, %v596
      %v725 = vpack.c.b16 %v597, %v597
      %v726 = vpack.c.b16 %v598, %v598
      %v727 = vpack.c.b16 %v599, %v599
      %v728 = vpack.c.b16 %v600, %v600
      %v729 = vpack.c.b16 %v601, %v601
      %v730 = vpack.c.b16 %v602, %v602
      %v731 = vpack.c.b16 %v603, %v603
      %v732 = vpack.c.b16 %v604, %v604
      %v733 = vpack.c.b16 %v605, %v605
      %v734 = vpack.c.b16 %v606, %v606
      %v735 = vpack.c.b16 %v607, %v607
      %v736 = vpack.c.b16 %v608, %v608
      %v737 = vpack.c.b16 %v609, %v609
      %v738 = vpack.c.b16 %v610, %v610
      %v739 = vpack.c.b16 %v611, %v611
      %v740 = vpack.c.b16 %v612, %v612
      %v741 = vpack.c.b16 %v613, %v613
      %v742 = vpack.c.b16 %v614, %v614
      %v743 = vpack.c.b16 %v615, %v615
      %v744 = vpack.c.b16 %v616, %v616
      %v745 = vpack.c.b16 %v617, %v617
      %v746 = vpack.c.b16 %v618, %v618
      %v747 = vpack.c.b16 %v619, %v619
      %v748 = vpack.c.b16 %v620, %v620
      %v749 = vpack.c.b16 %v621, %v621
      %v750 = vpack.c.b16 %v622, %v622
      %v751 = vpack.c.b16 %v623, %v623
      %v752 = vpack.c.b16 %v624, %v624
      %v753 = vpack.c.b16 %v625, %v625
      %v754 = vpack.c.b16 %v626, %v626
      %v755 = vpack.c.b16 %v627, %v627
      %v756 = vpack.c.b16 %v628, %v628
      %vm821 = vcmask 154624
      %v823 = vsel %vm821, %v340, 0
      %vm825 = vcmask 1040384
      %vm826 = vcmask 1041408
      %v827 = vsel %vm825, 4294967295, 65535
      %v828 = vsel %vm826, %v827, 0
      %v830 = vand.u32 %v693, %v828
      %v833 = vand.u32 %v694, %v828
      %v836 = vand.u32 %v695, %v828
      %v839 = vand.u32 %v696, %v828
      %v842 = vand.u32 %v697, %v828
      %v845 = vand.u32 %v698, %v828
      %v848 = vand.u32 %v699, %v828
      %v851 = vand.u32 %v700, %v828
      %v854 = vand.u32 %v701, %v828
      %v857 = vand.u32 %v702, %v828
      %v860 = vand.u32 %v703, %v828
      %v863 = vand.u32 %v704, %v828
      %v866 = vand.u32 %v705, %v828
      %v869 = vand.u32 %v706, %v828
      %v872 = vand.u32 %v707, %v828
      %v875 = vand.u32 %v708, %v828
      %v878 = vand.u32 %v709, %v828
      %v881 = vand.u32 %v710, %v828
      %v884 = vand.u32 %v711, %v828
      %v887 = vand.u32 %v712, %v828
      %v890 = vand.u32 %v713, %v828
      %v893 = vand.u32 %v714, %v828
      %v896 = vand.u32 %v715, %v828
      %v899 = vand.u32 %v716, %v828
      %v902 = vand.u32 %v717, %v828
      %v905 = vand.u32 %v718, %v828
      %v908 = vand.u32 %v719, %v828
      %v911 = vand.u32 %v720, %v828
      %v914 = vand.u32 %v721, %v828
      %v917 = vand.u32 %v722, %v828
      %v920 = vand.u32 %v723, %v828
      %v923 = vand.u32 %v724, %v828
      %v926 = vand.u32 %v725, %v828
      %v929 = vand.u32 %v726, %v828
      %v932 = vand.u32 %v727, %v828
      %v935 = vand.u32 %v728, %v828
      %v938 = vand.u32 %v729, %v828
      %v941 = vand.u32 %v730, %v828
      %v944 = vand.u32 %v731, %v828
      %v947 = vand.u32 %v732, %v828
      %v950 = vand.u32 %v733, %v828
      %v953 = vand.u32 %v734, %v828
      %v956 = vand.u32 %v735, %v828
      %v959 = vand.u32 %v736, %v828
      %v962 = vand.u32 %v737, %v828
      %v965 = vand.u32 %v738, %v828
      %v968 = vand.u32 %v739, %v828
      %v971 = vand.u32 %v740, %v828
      %v974 = vand.u32 %v741, %v828
      %v977 = vand.u32 %v742, %v828
      %v980 = vand.u32 %v743, %v828
      %v983 = vand.u32 %v744, %v828
      %v986 = vand.u32 %v745, %v828
      %v989 = vand.u32 %v746, %v828
      %v992 = vand.u32 %v747, %v828
      %v995 = vand.u32 %v748, %v828
      %v998 = vand.u32 %v749, %v828
      %v1001 = vand.u32 %v750, %v828
      %v1004 = vand.u32 %v751, %v828
      %v1007 = vand.u32 %v752, %v828
      %v1010 = vand.u32 %v753, %v828
      %v1013 = vand.u32 %v754, %v828
      %v1016 = vand.u32 %v755, %v828
      %v1019 = vand.u32 %v756, %v828
      %1021 = vmatprep.subr.bf16.mxu0 %v630
      %1022 = vmatpush1.bf16.msra.mxu0 %v629
      %1023 = vmatprep.subr.bf16.mxu0 %v833
      %1024 = vmatpush1.bf16.msra.mxu0 %v830
      %1025 = vmatprep.subr.bf16.mxu0 0
      %1026 = vmatpush1.bf16.msra.mxu0 0
      %1027 = vmatprep.subr.bf16.mxu0 0
      %1028 = vmatpush1.bf16.msra.mxu0 0
      %1029 = vmatprep.subr.bf16.mxu0 0
      %1030 = vmatpush1.bf16.msra.mxu0 0
      %1031 = vmatprep.subr.bf16.mxu0 0
      %1032 = vmatpush1.bf16.msra.mxu0 0
      %1033 = vmatprep.subr.bf16.mxu0 0
      %1034 = vmatpush1.bf16.msra.mxu0 0
      %1035 = vmatprep.subr.bf16.mxu0 0
      %1036 = vmatpush1.bf16.msra.mxu0 0
      %1037 = vmatprep.subr.bf16.mxu0 0
      %1038 = vmatpush1.bf16.msra.mxu0 0
      %1039 = vmatprep.subr.bf16.mxu0 0
      %1040 = vmatpush1.bf16.msra.mxu0 0
      %1041 = vmatprep.subr.bf16.mxu0 0
      %1042 = vmatpush1.bf16.msra.mxu0 0
      %1043 = vmatprep.subr.bf16.mxu0 0
      %1044 = vmatpush1.bf16.msra.mxu0 0
      %1045 = vmatprep.subr.bf16.mxu0 0
      %1046 = vmatpush1.bf16.msra.mxu0 0
      %1047 = vmatprep.subr.bf16.mxu0 0
      %1048 = vmatpush1.bf16.msra.mxu0 0
      %1049 = vmatprep.subr.bf16.mxu0 0
      %1050 = vmatpush1.bf16.msra.mxu0 0
      %1051 = vmatprep.subr.bf16.mxu0 0
      %1052 = vmatpush1.bf16.msra.mxu0 0
      %1053 = vmatprep.mubr.bf16.mxu0 0
      %1054 = vmatmul.mubr.bf16.gmra.mrb[0].mxu0 %v823
      %v1055 = vpop.f32.mrb[0].mxu0
      %v1056 = vadd.f32 %v329, %v1055
      %v1057 = vpop.f32.mrb[0].mxu0
      %v1058 = vadd.f32 %v329, %v1057
      %v1059 = vpop.f32.mrb[0].mxu0
      %v1060 = vadd.f32 %v334, %v1059
      %v1061 = vpop.f32.mrb[0].mxu0
      %v1062 = vadd.f32 %v334, %v1061
      %1063 = vdwg.mxu0
      %1064 = vmatprep.subr.bf16.mxu0 %v632
      %1065 = vmatpush1.bf16.msra.mxu0 %v631
      %1066 = vmatprep.subr.bf16.mxu0 %v839
      %1067 = vmatpush1.bf16.msra.mxu0 %v836
      %1068 = vmatprep.subr.bf16.mxu0 0
      %1069 = vmatpush1.bf16.msra.mxu0 0
      %1070 = vmatprep.subr.bf16.mxu0 0
      %1071 = vmatpush1.bf16.msra.mxu0 0
      %1072 = vmatprep.subr.bf16.mxu0 0
      %1073 = vmatpush1.bf16.msra.mxu0 0
      %1074 = vmatprep.subr.bf16.mxu0 0
      %1075 = vmatpush1.bf16.msra.mxu0 0
      %1076 = vmatprep.subr.bf16.mxu0 0
      %1077 = vmatpush1.bf16.msra.mxu0 0
      %1078 = vmatprep.subr.bf16.mxu0 0
      %1079 = vmatpush1.bf16.msra.mxu0 0
      %1080 = vmatprep.subr.bf16.mxu0 0
      %1081 = vmatpush1.bf16.msra.mxu0 0
      %1082 = vmatprep.subr.bf16.mxu0 0
      %1083 = vmatpush1.bf16.msra.mxu0 0
      %1084 = vmatprep.subr.bf16.mxu0 0
      %1085 = vmatpush1.bf16.msra.mxu0 0
      %1086 = vmatprep.subr.bf16.mxu0 0
      %1087 = vmatpush1.bf16.msra.mxu0 0
      %1088 = vmatprep.subr.bf16.mxu0 0
      %1089 = vmatpush1.bf16.msra.mxu0 0
      %1090 = vmatprep.subr.bf16.mxu0 0
      %1091 = vmatpush1.bf16.msra.mxu0 0
      %1092 = vmatprep.subr.bf16.mxu0 0
      %1093 = vmatpush1.bf16.msra.mxu0 0
      %1094 = vmatprep.subr.bf16.mxu0 0
      %1095 = vmatpush1.bf16.msra.mxu0 0
      %1096 = vmatprep.mubr.bf16.mxu0 0
      %1097 = vmatmul.mubr.bf16.gmra.mrb[0].mxu0 %v823
      %v1098 = vpop.f32.mrb[0].mxu0
      %v1099 = vadd.f32 %v329, %v1098
      %v1100 = vpop.f32.mrb[0].mxu0
      %v1101 = vadd.f32 %v329, %v1100
      %v1102 = vpop.f32.mrb[0].mxu0
      %v1103 = vadd.f32 %v334, %v1102
      %v1104 = vpop.f32.mrb[0].mxu0
      %v1105 = vadd.f32 %v334, %v1104
      %1106 = vdwg.mxu0
      %1107 = vmatprep.subr.bf16.mxu0 %v634
      %1108 = vmatpush1.bf16.msra.mxu0 %v633
      %1109 = vmatprep.subr.bf16.mxu0 %v845
      %1110 = vmatpush1.bf16.msra.mxu0 %v842
      %1111 = vmatprep.subr.bf16.mxu0 0
      %1112 = vmatpush1.bf16.msra.mxu0 0
      %1113 = vmatprep.subr.bf16.mxu0 0
      %1114 = vmatpush1.bf16.msra.mxu0 0
      %1115 = vmatprep.subr.bf16.mxu0 0
      %1116 = vmatpush1.bf16.msra.mxu0 0
      %1117 = vmatprep.subr.bf16.mxu0 0
      %1118 = vmatpush1.bf16.msra.mxu0 0
      %1119 = vmatprep.subr.bf16.mxu0 0
      %1120 = vmatpush1.bf16.msra.mxu0 0
      %1121 = vmatprep.subr.bf16.mxu0 0
      %1122 = vmatpush1.bf16.msra.mxu0 0
      %1123 = vmatprep.subr.bf16.mxu0 0
      %1124 = vmatpush1.bf16.msra.mxu0 0
      %1125 = vmatprep.subr.bf16.mxu0 0
      %1126 = vmatpush1.bf16.msra.mxu0 0
      %1127 = vmatprep.subr.bf16.mxu0 0
      %1128 = vmatpush1.bf16.msra.mxu0 0
      %1129 = vmatprep.subr.bf16.mxu0 0
      %1130 = vmatpush1.bf16.msra.mxu0 0
      %1131 = vmatprep.subr.bf16.mxu0 0
      %1132 = vmatpush1.bf16.msra.mxu0 0
      %1133 = vmatprep.subr.bf16.mxu0 0
      %1134 = vmatpush1.bf16.msra.mxu0 0
      %1135 = vmatprep.subr.bf16.mxu0 0
      %1136 = vmatpush1.bf16.msra.mxu0 0
      %1137 = vmatprep.subr.bf16.mxu0 0
      %1138 = vmatpush1.bf16.msra.mxu0 0
      %1139 = vmatprep.mubr.bf16.mxu0 0
      %1140 = vmatmul.mubr.bf16.gmra.mrb[0].mxu0 %v823
      %v1141 = vpop.f32.mrb[0].mxu0
      %v1142 = vadd.f32 %v329, %v1141
      %v1143 = vpop.f32.mrb[0].mxu0
      %v1144 = vadd.f32 %v329, %v1143
      %v1145 = vpop.f32.mrb[0].mxu0
      %v1146 = vadd.f32 %v334, %v1145
      %v1147 = vpop.f32.mrb[0].mxu0
      %v1148 = vadd.f32 %v334, %v1147
      %1149 = vdwg.mxu0
      %1150 = vmatprep.subr.bf16.mxu0 %v636
      %1151 = vmatpush1.bf16.msra.mxu0 %v635
      %1152 = vmatprep.subr.bf16.mxu0 %v851
      %1153 = vmatpush1.bf16.msra.mxu0 %v848
      %1154 = vmatprep.subr.bf16.mxu0 0
      %1155 = vmatpush1.bf16.msra.mxu0 0
      %1156 = vmatprep.subr.bf16.mxu0 0
      %1157 = vmatpush1.bf16.msra.mxu0 0
      %1158 = vmatprep.subr.bf16.mxu0 0
      %1159 = vmatpush1.bf16.msra.mxu0 0
      %1160 = vmatprep.subr.bf16.mxu0 0
      %1161 = vmatpush1.bf16.msra.mxu0 0
      %1162 = vmatprep.subr.bf16.mxu0 0
      %1163 = vmatpush1.bf16.msra.mxu0 0
      %1164 = vmatprep.subr.bf16.mxu0 0
      %1165 = vmatpush1.bf16.msra.mxu0 0
      %1166 = vmatprep.subr.bf16.mxu0 0
      %1167 = vmatpush1.bf16.msra.mxu0 0
      %1168 = vmatprep.subr.bf16.mxu0 0
      %1169 = vmatpush1.bf16.msra.mxu0 0
      %1170 = vmatprep.subr.bf16.mxu0 0
      %1171 = vmatpush1.bf16.msra.mxu0 0
      %1172 = vmatprep.subr.bf16.mxu0 0
      %1173 = vmatpush1.bf16.msra.mxu0 0
      %1174 = vmatprep.subr.bf16.mxu0 0
      %1175 = vmatpush1.bf16.msra.mxu0 0
      %1176 = vmatprep.subr.bf16.mxu0 0
      %1177 = vmatpush1.bf16.msra.mxu0 0
      %1178 = vmatprep.subr.bf16.mxu0 0
      %1179 = vmatpush1.bf16.msra.mxu0 0
      %1180 = vmatprep.subr.bf16.mxu0 0
      %1181 = vmatpush1.bf16.msra.mxu0 0
      %1182 = vmatprep.mubr.bf16.mxu0 0
      %1183 = vmatmul.mubr.bf16.gmra.mrb[0].mxu0 %v823
      %v1184 = vpop.f32.mrb[0].mxu0
      %v1185 = vadd.f32 %v329, %v1184
      %v1186 = vpop.f32.mrb[0].mxu0
      %v1187 = vadd.f32 %v329, %v1186
      %v1188 = vpop.f32.mrb[0].mxu0
      %v1189 = vadd.f32 %v334, %v1188
      %v1190 = vpop.f32.mrb[0].mxu0
      %v1191 = vadd.f32 %v334, %v1190
      %1192 = vdwg.mxu0
      %1193 = vmatprep.subr.bf16.mxu0 %v638
      %1194 = vmatpush1.bf16.msra.mxu0 %v637
      %1195 = vmatprep.subr.bf16.mxu0 %v857
      %1196 = vmatpush1.bf16.msra.mxu0 %v854
      %1197 = vmatprep.subr.bf16.mxu0 0
      %1198 = vmatpush1.bf16.msra.mxu0 0
      %1199 = vmatprep.subr.bf16.mxu0 0
      %1200 = vmatpush1.bf16.msra.mxu0 0
      %1201 = vmatprep.subr.bf16.mxu0 0
      %1202 = vmatpush1.bf16.msra.mxu0 0
      %1203 = vmatprep.subr.bf16.mxu0 0
      %1204 = vmatpush1.bf16.msra.mxu0 0
      %1205 = vmatprep.subr.bf16.mxu0 0
      %1206 = vmatpush1.bf16.msra.mxu0 0
      %1207 = vmatprep.subr.bf16.mxu0 0
      %1208 = vmatpush1.bf16.msra.mxu0 0
      %1209 = vmatprep.subr.bf16.mxu0 0
      %1210 = vmatpush1.bf16.msra.mxu0 0
      %1211 = vmatprep.subr.bf16.mxu0 0
      %1212 = vmatpush1.bf16.msra.mxu0 0
      %1213 = vmatprep.subr.bf16.mxu0 0
      %1214 = vmatpush1.bf16.msra.mxu0 0
      %1215 = vmatprep.subr.bf16.mxu0 0
      %1216 = vmatpush1.bf16.msra.mxu0 0
      %1217 = vmatprep.subr.bf16.mxu0 0
      %1218 = vmatpush1.bf16.msra.mxu0 0
      %1219 = vmatprep.subr.bf16.mxu0 0
      %1220 = vmatpush1.bf16.msra.mxu0 0
      %1221 = vmatprep.subr.bf16.mxu0 0
      %1222 = vmatpush1.bf16.msra.mxu0 0
      %1223 = vmatprep.subr.bf16.mxu0 0
      %1224 = vmatpush1.bf16.msra.mxu0 0
      %1225 = vmatprep.mubr.bf16.mxu0 0
      %1226 = vmatmul.mubr.bf16.gmra.mrb[0].mxu0 %v823
      %v1227 = vpop.f32.mrb[0].mxu0
      %v1228 = vadd.f32 %v329, %v1227
      %v1229 = vpop.f32.mrb[0].mxu0
      %v1230 = vadd.f32 %v329, %v1229
      %v1231 = vpop.f32.mrb[0].mxu0
      %v1232 = vadd.f32 %v334, %v1231
      %v1233 = vpop.f32.mrb[0].mxu0
      %v1234 = vadd.f32 %v334, %v1233
      %1235 = vdwg.mxu0
      %1236 = vmatprep.subr.bf16.mxu0 %v640
      %1237 = vmatpush1.bf16.msra.mxu0 %v639
      %1238 = vmatprep.subr.bf16.mxu0 %v863
      %1239 = vmatpush1.bf16.msra.mxu0 %v860
      %1240 = vmatprep.subr.bf16.mxu0 0
      %1241 = vmatpush1.bf16.msra.mxu0 0
      %1242 = vmatprep.subr.bf16.mxu0 0
      %1243 = vmatpush1.bf16.msra.mxu0 0
      %1244 = vmatprep.subr.bf16.mxu0 0
      %1245 = vmatpush1.bf16.msra.mxu0 0
      %1246 = vmatprep.subr.bf16.mxu0 0
      %1247 = vmatpush1.bf16.msra.mxu0 0
      %1248 = vmatprep.subr.bf16.mxu0 0
      %1249 = vmatpush1.bf16.msra.mxu0 0
      %1250 = vmatprep.subr.bf16.mxu0 0
      %1251 = vmatpush1.bf16.msra.mxu0 0
      %1252 = vmatprep.subr.bf16.mxu0 0
      %1253 = vmatpush1.bf16.msra.mxu0 0
      %1254 = vmatprep.subr.bf16.mxu0 0
      %1255 = vmatpush1.bf16.msra.mxu0 0
      %1256 = vmatprep.subr.bf16.mxu0 0
      %1257 = vmatpush1.bf16.msra.mxu0 0
      %1258 = vmatprep.subr.bf16.mxu0 0
      %1259 = vmatpush1.bf16.msra.mxu0 0
      %1260 = vmatprep.subr.bf16.mxu0 0
      %1261 = vmatpush1.bf16.msra.mxu0 0
      %1262 = vmatprep.subr.bf16.mxu0 0
      %1263 = vmatpush1.bf16.msra.mxu0 0
      %1264 = vmatprep.subr.bf16.mxu0 0
      %1265 = vmatpush1.bf16.msra.mxu0 0
      %1266 = vmatprep.subr.bf16.mxu0 0
      %1267 = vmatpush1.bf16.msra.mxu0 0
      %1268 = vmatprep.mubr.bf16.mxu0 0
      %1269 = vmatmul.mubr.bf16.gmra.mrb[0].mxu0 %v823
      %v1270 = vpop.f32.mrb[0].mxu0
      %v1271 = vadd.f32 %v329, %v1270
      %v1272 = vpop.f32.mrb[0].mxu0
      %v1273 = vadd.f32 %v329, %v1272
      %v1274 = vpop.f32.mrb[0].mxu0
      %v1275 = vadd.f32 %v334, %v1274
      %v1276 = vpop.f32.mrb[0].mxu0
      %v1277 = vadd.f32 %v334, %v1276
      %1278 = vdwg.mxu0
      %1279 = vmatprep.subr.bf16.mxu0 %v642
      %1280 = vmatpush1.bf16.msra.mxu0 %v641
      %1281 = vmatprep.subr.bf16.mxu0 %v869
      %1282 = vmatpush1.bf16.msra.mxu0 %v866
      %1283 = vmatprep.subr.bf16.mxu0 0
      %1284 = vmatpush1.bf16.msra.mxu0 0
      %1285 = vmatprep.subr.bf16.mxu0 0
      %1286 = vmatpush1.bf16.msra.mxu0 0
      %1287 = vmatprep.subr.bf16.mxu0 0
      %1288 = vmatpush1.bf16.msra.mxu0 0
      %1289 = vmatprep.subr.bf16.mxu0 0
      %1290 = vmatpush1.bf16.msra.mxu0 0
      %1291 = vmatprep.subr.bf16.mxu0 0
      %1292 = vmatpush1.bf16.msra.mxu0 0
      %1293 = vmatprep.subr.bf16.mxu0 0
      %1294 = vmatpush1.bf16.msra.mxu0 0
      %1295 = vmatprep.subr.bf16.mxu0 0
      %1296 = vmatpush1.bf16.msra.mxu0 0
      %1297 = vmatprep.subr.bf16.mxu0 0
      %1298 = vmatpush1.bf16.msra.mxu0 0
      %1299 = vmatprep.subr.bf16.mxu0 0
      %1300 = vmatpush1.bf16.msra.mxu0 0
      %1301 = vmatprep.subr.bf16.mxu0 0
      %1302 = vmatpush1.bf16.msra.mxu0 0
      %1303 = vmatprep.subr.bf16.mxu0 0
      %1304 = vmatpush1.bf16.msra.mxu0 0
      %1305 = vmatprep.subr.bf16.mxu0 0
      %1306 = vmatpush1.bf16.msra.mxu0 0
      %1307 = vmatprep.subr.bf16.mxu0 0
      %1308 = vmatpush1.bf16.msra.mxu0 0
      %1309 = vmatprep.subr.bf16.mxu0 0
      %1310 = vmatpush1.bf16.msra.mxu0 0
      %1311 = vmatprep.mubr.bf16.mxu0 0
      %1312 = vmatmul.mubr.bf16.gmra.mrb[0].mxu0 %v823
      %v1313 = vpop.f32.mrb[0].mxu0
      %v1314 = vadd.f32 %v329, %v1313
      %v1315 = vpop.f32.mrb[0].mxu0
      %v1316 = vadd.f32 %v329, %v1315
      %v1317 = vpop.f32.mrb[0].mxu0
      %v1318 = vadd.f32 %v334, %v1317
      %v1319 = vpop.f32.mrb[0].mxu0
      %v1320 = vadd.f32 %v334, %v1319
      %1321 = vdwg.mxu0
      %1322 = vmatprep.subr.bf16.mxu0 %v644
      %1323 = vmatpush1.bf16.msra.mxu0 %v643
      %1324 = vmatprep.subr.bf16.mxu0 %v875
      %1325 = vmatpush1.bf16.msra.mxu0 %v872
      %1326 = vmatprep.subr.bf16.mxu0 0
      %1327 = vmatpush1.bf16.msra.mxu0 0
      %1328 = vmatprep.subr.bf16.mxu0 0
      %1329 = vmatpush1.bf16.msra.mxu0 0
      %1330 = vmatprep.subr.bf16.mxu0 0
      %1331 = vmatpush1.bf16.msra.mxu0 0
      %1332 = vmatprep.subr.bf16.mxu0 0
      %1333 = vmatpush1.bf16.msra.mxu0 0
      %1334 = vmatprep.subr.bf16.mxu0 0
      %1335 = vmatpush1.bf16.msra.mxu0 0
      %1336 = vmatprep.subr.bf16.mxu0 0
      %1337 = vmatpush1.bf16.msra.mxu0 0
      %1338 = vmatprep.subr.bf16.mxu0 0
      %1339 = vmatpush1.bf16.msra.mxu0 0
      %1340 = vmatprep.subr.bf16.mxu0 0
      %1341 = vmatpush1.bf16.msra.mxu0 0
      %1342 = vmatprep.subr.bf16.mxu0 0
      %1343 = vmatpush1.bf16.msra.mxu0 0
      %1344 = vmatprep.subr.bf16.mxu0 0
      %1345 = vmatpush1.bf16.msra.mxu0 0
      %1346 = vmatprep.subr.bf16.mxu0 0
      %1347 = vmatpush1.bf16.msra.mxu0 0
      %1348 = vmatprep.subr.bf16.mxu0 0
      %1349 = vmatpush1.bf16.msra.mxu0 0
      %1350 = vmatprep.subr.bf16.mxu0 0
      %1351 = vmatpush1.bf16.msra.mxu0 0
      %1352 = vmatprep.subr.bf16.mxu0 0
      %1353 = vmatpush1.bf16.msra.mxu0 0
      %1354 = vmatprep.mubr.bf16.mxu0 0
      %1355 = vmatmul.mubr.bf16.gmra.mrb[0].mxu0 %v823
      %v1356 = vpop.f32.mrb[0].mxu0
      %v1357 = vadd.f32 %v329, %v1356
      %v1358 = vpop.f32.mrb[0].mxu0
      %v1359 = vadd.f32 %v329, %v1358
      %v1360 = vpop.f32.mrb[0].mxu0
      %v1361 = vadd.f32 %v334, %v1360
      %v1362 = vpop.f32.mrb[0].mxu0
      %v1363 = vadd.f32 %v334, %v1362
      %1364 = vdwg.mxu0
      %1365 = vmatprep.subr.bf16.mxu0 %v646
      %1366 = vmatpush1.bf16.msra.mxu0 %v645
      %1367 = vmatprep.subr.bf16.mxu0 %v881
      %1368 = vmatpush1.bf16.msra.mxu0 %v878
      %1369 = vmatprep.subr.bf16.mxu0 0
      %1370 = vmatpush1.bf16.msra.mxu0 0
      %1371 = vmatprep.subr.bf16.mxu0 0
      %1372 = vmatpush1.bf16.msra.mxu0 0
      %1373 = vmatprep.subr.bf16.mxu0 0
      %1374 = vmatpush1.bf16.msra.mxu0 0
      %1375 = vmatprep.subr.bf16.mxu0 0
      %1376 = vmatpush1.bf16.msra.mxu0 0
      %1377 = vmatprep.subr.bf16.mxu0 0
      %1378 = vmatpush1.bf16.msra.mxu0 0
      %1379 = vmatprep.subr.bf16.mxu0 0
      %1380 = vmatpush1.bf16.msra.mxu0 0
      %1381 = vmatprep.subr.bf16.mxu0 0
      %1382 = vmatpush1.bf16.msra.mxu0 0
      %1383 = vmatprep.subr.bf16.mxu0 0
      %1384 = vmatpush1.bf16.msra.mxu0 0
      %1385 = vmatprep.subr.bf16.mxu0 0
      %1386 = vmatpush1.bf16.msra.mxu0 0
      %1387 = vmatprep.subr.bf16.mxu0 0
      %1388 = vmatpush1.bf16.msra.mxu0 0
      %1389 = vmatprep.subr.bf16.mxu0 0
      %1390 = vmatpush1.bf16.msra.mxu0 0
      %1391 = vmatprep.subr.bf16.mxu0 0
      %1392 = vmatpush1.bf16.msra.mxu0 0
      %1393 = vmatprep.subr.bf16.mxu0 0
      %1394 = vmatpush1.bf16.msra.mxu0 0
      %1395 = vmatprep.subr.bf16.mxu0 0
      %1396 = vmatpush1.bf16.msra.mxu0 0
      %1397 = vmatprep.mubr.bf16.mxu0 0
      %1398 = vmatmul.mubr.bf16.gmra.mrb[0].mxu0 %v823
      %v1399 = vpop.f32.mrb[0].mxu0
      %v1400 = vadd.f32 %v329, %v1399
      %v1401 = vpop.f32.mrb[0].mxu0
      %v1402 = vadd.f32 %v329, %v1401
      %v1403 = vpop.f32.mrb[0].mxu0
      %v1404 = vadd.f32 %v334, %v1403
      %v1405 = vpop.f32.mrb[0].mxu0
      %v1406 = vadd.f32 %v334, %v1405
      %1407 = vdwg.mxu0
      %1408 = vmatprep.subr.bf16.mxu0 %v648
      %1409 = vmatpush1.bf16.msra.mxu0 %v647
      %1410 = vmatprep.subr.bf16.mxu0 %v887
      %1411 = vmatpush1.bf16.msra.mxu0 %v884
      %1412 = vmatprep.subr.bf16.mxu0 0
      %1413 = vmatpush1.bf16.msra.mxu0 0
      %1414 = vmatprep.subr.bf16.mxu0 0
      %1415 = vmatpush1.bf16.msra.mxu0 0
      %1416 = vmatprep.subr.bf16.mxu0 0
      %1417 = vmatpush1.bf16.msra.mxu0 0
      %1418 = vmatprep.subr.bf16.mxu0 0
      %1419 = vmatpush1.bf16.msra.mxu0 0
      %1420 = vmatprep.subr.bf16.mxu0 0
      %1421 = vmatpush1.bf16.msra.mxu0 0
      %1422 = vmatprep.subr.bf16.mxu0 0
      %1423 = vmatpush1.bf16.msra.mxu0 0
      %1424 = vmatprep.subr.bf16.mxu0 0
      %1425 = vmatpush1.bf16.msra.mxu0 0
      %1426 = vmatprep.subr.bf16.mxu0 0
      %1427 = vmatpush1.bf16.msra.mxu0 0
      %1428 = vmatprep.subr.bf16.mxu0 0
      %1429 = vmatpush1.bf16.msra.mxu0 0
      %1430 = vmatprep.subr.bf16.mxu0 0
      %1431 = vmatpush1.bf16.msra.mxu0 0
      %1432 = vmatprep.subr.bf16.mxu0 0
      %1433 = vmatpush1.bf16.msra.mxu0 0
      %1434 = vmatprep.subr.bf16.mxu0 0
      %1435 = vmatpush1.bf16.msra.mxu0 0
      %1436 = vmatprep.subr.bf16.mxu0 0
      %1437 = vmatpush1.bf16.msra.mxu0 0
      %1438 = vmatprep.subr.bf16.mxu0 0
      %1439 = vmatpush1.bf16.msra.mxu0 0
      %1440 = vmatprep.mubr.bf16.mxu0 0
      %1441 = vmatmul.mubr.bf16.gmra.mrb[0].mxu0 %v823
      %v1442 = vpop.f32.mrb[0].mxu0
      %v1443 = vadd.f32 %v329, %v1442
      %v1444 = vpop.f32.mrb[0].mxu0
      %v1445 = vadd.f32 %v329, %v1444
      %v1446 = vpop.f32.mrb[0].mxu0
      %v1447 = vadd.f32 %v334, %v1446
      %v1448 = vpop.f32.mrb[0].mxu0
      %v1449 = vadd.f32 %v334, %v1448
      %1450 = vdwg.mxu0
      %1451 = vmatprep.subr.bf16.mxu0 %v650
      %1452 = vmatpush1.bf16.msra.mxu0 %v649
      %1453 = vmatprep.subr.bf16.mxu0 %v893
      %1454 = vmatpush1.bf16.msra.mxu0 %v890
      %1455 = vmatprep.subr.bf16.mxu0 0
      %1456 = vmatpush1.bf16.msra.mxu0 0
      %1457 = vmatprep.subr.bf16.mxu0 0
      %1458 = vmatpush1.bf16.msra.mxu0 0
      %1459 = vmatprep.subr.bf16.mxu0 0
      %1460 = vmatpush1.bf16.msra.mxu0 0
      %1461 = vmatprep.subr.bf16.mxu0 0
      %1462 = vmatpush1.bf16.msra.mxu0 0
      %1463 = vmatprep.subr.bf16.mxu0 0
      %1464 = vmatpush1.bf16.msra.mxu0 0
      %1465 = vmatprep.subr.bf16.mxu0 0
      %1466 = vmatpush1.bf16.msra.mxu0 0
      %1467 = vmatprep.subr.bf16.mxu0 0
      %1468 = vmatpush1.bf16.msra.mxu0 0
      %1469 = vmatprep.subr.bf16.mxu0 0
      %1470 = vmatpush1.bf16.msra.mxu0 0
      %1471 = vmatprep.subr.bf16.mxu0 0
      %1472 = vmatpush1.bf16.msra.mxu0 0
      %1473 = vmatprep.subr.bf16.mxu0 0
      %1474 = vmatpush1.bf16.msra.mxu0 0
      %1475 = vmatprep.subr.bf16.mxu0 0
      %1476 = vmatpush1.bf16.msra.mxu0 0
      %1477 = vmatprep.subr.bf16.mxu0 0
      %1478 = vmatpush1.bf16.msra.mxu0 0
      %1479 = vmatprep.subr.bf16.mxu0 0
      %1480 = vmatpush1.bf16.msra.mxu0 0
      %1481 = vmatprep.subr.bf16.mxu0 0
      %1482 = vmatpush1.bf16.msra.mxu0 0
      %1483 = vmatprep.mubr.bf16.mxu0 0
      %1484 = vmatmul.mubr.bf16.gmra.mrb[0].mxu0 %v823
      %v1485 = vpop.f32.mrb[0].mxu0
      %v1486 = vadd.f32 %v329, %v1485
      %v1487 = vpop.f32.mrb[0].mxu0
      %v1488 = vadd.f32 %v329, %v1487
      %v1489 = vpop.f32.mrb[0].mxu0
      %v1490 = vadd.f32 %v334, %v1489
      %v1491 = vpop.f32.mrb[0].mxu0
      %v1492 = vadd.f32 %v334, %v1491
      %1493 = vdwg.mxu0
      %1494 = vmatprep.subr.bf16.mxu0 %v652
      %1495 = vmatpush1.bf16.msra.mxu0 %v651
      %1496 = vmatprep.subr.bf16.mxu0 %v899
      %1497 = vmatpush1.bf16.msra.mxu0 %v896
      %1498 = vmatprep.subr.bf16.mxu0 0
      %1499 = vmatpush1.bf16.msra.mxu0 0
      %1500 = vmatprep.subr.bf16.mxu0 0
      %1501 = vmatpush1.bf16.msra.mxu0 0
      %1502 = vmatprep.subr.bf16.mxu0 0
      %1503 = vmatpush1.bf16.msra.mxu0 0
      %1504 = vmatprep.subr.bf16.mxu0 0
      %1505 = vmatpush1.bf16.msra.mxu0 0
      %1506 = vmatprep.subr.bf16.mxu0 0
      %1507 = vmatpush1.bf16.msra.mxu0 0
      %1508 = vmatprep.subr.bf16.mxu0 0
      %1509 = vmatpush1.bf16.msra.mxu0 0
      %1510 = vmatprep.subr.bf16.mxu0 0
      %1511 = vmatpush1.bf16.msra.mxu0 0
      %1512 = vmatprep.subr.bf16.mxu0 0
      %1513 = vmatpush1.bf16.msra.mxu0 0
      %1514 = vmatprep.subr.bf16.mxu0 0
      %1515 = vmatpush1.bf16.msra.mxu0 0
      %1516 = vmatprep.subr.bf16.mxu0 0
      %1517 = vmatpush1.bf16.msra.mxu0 0
      %1518 = vmatprep.subr.bf16.mxu0 0
      %1519 = vmatpush1.bf16.msra.mxu0 0
      %1520 = vmatprep.subr.bf16.mxu0 0
      %1521 = vmatpush1.bf16.msra.mxu0 0
      %1522 = vmatprep.subr.bf16.mxu0 0
      %1523 = vmatpush1.bf16.msra.mxu0 0
      %1524 = vmatprep.subr.bf16.mxu0 0
      %1525 = vmatpush1.bf16.msra.mxu0 0
      %1526 = vmatprep.mubr.bf16.mxu0 0
      %1527 = vmatmul.mubr.bf16.gmra.mrb[0].mxu0 %v823
      %v1528 = vpop.f32.mrb[0].mxu0
      %v1529 = vadd.f32 %v329, %v1528
      %v1530 = vpop.f32.mrb[0].mxu0
      %v1531 = vadd.f32 %v329, %v1530
      %v1532 = vpop.f32.mrb[0].mxu0
      %v1533 = vadd.f32 %v334, %v1532
      %v1534 = vpop.f32.mrb[0].mxu0
      %v1535 = vadd.f32 %v334, %v1534
      %1536 = vdwg.mxu0
      %1537 = vmatprep.subr.bf16.mxu0 %v654
      %1538 = vmatpush1.bf16.msra.mxu0 %v653
      %1539 = vmatprep.subr.bf16.mxu0 %v905
      %1540 = vmatpush1.bf16.msra.mxu0 %v902
      %1541 = vmatprep.subr.bf16.mxu0 0
      %1542 = vmatpush1.bf16.msra.mxu0 0
      %1543 = vmatprep.subr.bf16.mxu0 0
      %1544 = vmatpush1.bf16.msra.mxu0 0
      %1545 = vmatprep.subr.bf16.mxu0 0
      %1546 = vmatpush1.bf16.msra.mxu0 0
      %1547 = vmatprep.subr.bf16.mxu0 0
      %1548 = vmatpush1.bf16.msra.mxu0 0
      %1549 = vmatprep.subr.bf16.mxu0 0
      %1550 = vmatpush1.bf16.msra.mxu0 0
      %1551 = vmatprep.subr.bf16.mxu0 0
      %1552 = vmatpush1.bf16.msra.mxu0 0
      %1553 = vmatprep.subr.bf16.mxu0 0
      %1554 = vmatpush1.bf16.msra.mxu0 0
      %1555 = vmatprep.subr.bf16.mxu0 0
      %1556 = vmatpush1.bf16.msra.mxu0 0
      %1557 = vmatprep.subr.bf16.mxu0 0
      %1558 = vmatpush1.bf16.msra.mxu0 0
      %1559 = vmatprep.subr.bf16.mxu0 0
      %1560 = vmatpush1.bf16.msra.mxu0 0
      %1561 = vmatprep.subr.bf16.mxu0 0
      %1562 = vmatpush1.bf16.msra.mxu0 0
      %1563 = vmatprep.subr.bf16.mxu0 0
      %1564 = vmatpush1.bf16.msra.mxu0 0
      %1565 = vmatprep.subr.bf16.mxu0 0
      %1566 = vmatpush1.bf16.msra.mxu0 0
      %1567 = vmatprep.subr.bf16.mxu0 0
      %1568 = vmatpush1.bf16.msra.mxu0 0
      %1569 = vmatprep.mubr.bf16.mxu0 0
      %1570 = vmatmul.mubr.bf16.gmra.mrb[0].mxu0 %v823
      %v1571 = vpop.f32.mrb[0].mxu0
      %v1572 = vadd.f32 %v329, %v1571
      %v1573 = vpop.f32.mrb[0].mxu0
      %v1574 = vadd.f32 %v329, %v1573
      %v1575 = vpop.f32.mrb[0].mxu0
      %v1576 = vadd.f32 %v334, %v1575
      %v1577 = vpop.f32.mrb[0].mxu0
      %v1578 = vadd.f32 %v334, %v1577
      %1579 = vdwg.mxu0
      %1580 = vmatprep.subr.bf16.mxu0 %v656
      %1581 = vmatpush1.bf16.msra.mxu0 %v655
      %1582 = vmatprep.subr.bf16.mxu0 %v911
      %1583 = vmatpush1.bf16.msra.mxu0 %v908
      %1584 = vmatprep.subr.bf16.mxu0 0
      %1585 = vmatpush1.bf16.msra.mxu0 0
      %1586 = vmatprep.subr.bf16.mxu0 0
      %1587 = vmatpush1.bf16.msra.mxu0 0
      %1588 = vmatprep.subr.bf16.mxu0 0
      %1589 = vmatpush1.bf16.msra.mxu0 0
      %1590 = vmatprep.subr.bf16.mxu0 0
      %1591 = vmatpush1.bf16.msra.mxu0 0
      %1592 = vmatprep.subr.bf16.mxu0 0
      %1593 = vmatpush1.bf16.msra.mxu0 0
      %1594 = vmatprep.subr.bf16.mxu0 0
      %1595 = vmatpush1.bf16.msra.mxu0 0
      %1596 = vmatprep.subr.bf16.mxu0 0
      %1597 = vmatpush1.bf16.msra.mxu0 0
      %1598 = vmatprep.subr.bf16.mxu0 0
      %1599 = vmatpush1.bf16.msra.mxu0 0
      %1600 = vmatprep.subr.bf16.mxu0 0
      %1601 = vmatpush1.bf16.msra.mxu0 0
      %1602 = vmatprep.subr.bf16.mxu0 0
      %1603 = vmatpush1.bf16.msra.mxu0 0
      %1604 = vmatprep.subr.bf16.mxu0 0
      %1605 = vmatpush1.bf16.msra.mxu0 0
      %1606 = vmatprep.subr.bf16.mxu0 0
      %1607 = vmatpush1.bf16.msra.mxu0 0
      %1608 = vmatprep.subr.bf16.mxu0 0
      %1609 = vmatpush1.bf16.msra.mxu0 0
      %1610 = vmatprep.subr.bf16.mxu0 0
      %1611 = vmatpush1.bf16.msra.mxu0 0
      %1612 = vmatprep.mubr.bf16.mxu0 0
      %1613 = vmatmul.mubr.bf16.gmra.mrb[0].mxu0 %v823
      %v1614 = vpop.f32.mrb[0].mxu0
      %v1615 = vadd.f32 %v329, %v1614
      %v1616 = vpop.f32.mrb[0].mxu0
      %v1617 = vadd.f32 %v329, %v1616
      %v1618 = vpop.f32.mrb[0].mxu0
      %v1619 = vadd.f32 %v334, %v1618
      %v1620 = vpop.f32.mrb[0].mxu0
      %v1621 = vadd.f32 %v334, %v1620
      %1622 = vdwg.mxu0
      %1623 = vmatprep.subr.bf16.mxu0 %v658
      %1624 = vmatpush1.bf16.msra.mxu0 %v657
      %1625 = vmatprep.subr.bf16.mxu0 %v917
      %1626 = vmatpush1.bf16.msra.mxu0 %v914
      %1627 = vmatprep.subr.bf16.mxu0 0
      %1628 = vmatpush1.bf16.msra.mxu0 0
      %1629 = vmatprep.subr.bf16.mxu0 0
      %1630 = vmatpush1.bf16.msra.mxu0 0
      %1631 = vmatprep.subr.bf16.mxu0 0
      %1632 = vmatpush1.bf16.msra.mxu0 0
      %1633 = vmatprep.subr.bf16.mxu0 0
      %1634 = vmatpush1.bf16.msra.mxu0 0
      %1635 = vmatprep.subr.bf16.mxu0 0
      %1636 = vmatpush1.bf16.msra.mxu0 0
      %1637 = vmatprep.subr.bf16.mxu0 0
      %1638 = vmatpush1.bf16.msra.mxu0 0
      %1639 = vmatprep.subr.bf16.mxu0 0
      %1640 = vmatpush1.bf16.msra.mxu0 0
      %1641 = vmatprep.subr.bf16.mxu0 0
      %1642 = vmatpush1.bf16.msra.mxu0 0
      %1643 = vmatprep.subr.bf16.mxu0 0
      %1644 = vmatpush1.bf16.msra.mxu0 0
      %1645 = vmatprep.subr.bf16.mxu0 0
      %1646 = vmatpush1.bf16.msra.mxu0 0
      %1647 = vmatprep.subr.bf16.mxu0 0
      %1648 = vmatpush1.bf16.msra.mxu0 0
      %1649 = vmatprep.subr.bf16.mxu0 0
      %1650 = vmatpush1.bf16.msra.mxu0 0
      %1651 = vmatprep.subr.bf16.mxu0 0
      %1652 = vmatpush1.bf16.msra.mxu0 0
      %1653 = vmatprep.subr.bf16.mxu0 0
      %1654 = vmatpush1.bf16.msra.mxu0 0
      %1655 = vmatprep.mubr.bf16.mxu0 0
      %1656 = vmatmul.mubr.bf16.gmra.mrb[0].mxu0 %v823
      %v1657 = vpop.f32.mrb[0].mxu0
      %v1658 = vadd.f32 %v329, %v1657
      %v1659 = vpop.f32.mrb[0].mxu0
      %v1660 = vadd.f32 %v329, %v1659
      %v1661 = vpop.f32.mrb[0].mxu0
      %v1662 = vadd.f32 %v334, %v1661
      %v1663 = vpop.f32.mrb[0].mxu0
      %v1664 = vadd.f32 %v334, %v1663
      %1665 = vdwg.mxu0
      %1666 = vmatprep.subr.bf16.mxu0 %v660
      %1667 = vmatpush1.bf16.msra.mxu0 %v659
      %1668 = vmatprep.subr.bf16.mxu0 %v923
      %1669 = vmatpush1.bf16.msra.mxu0 %v920
      %1670 = vmatprep.subr.bf16.mxu0 0
      %1671 = vmatpush1.bf16.msra.mxu0 0
      %1672 = vmatprep.subr.bf16.mxu0 0
      %1673 = vmatpush1.bf16.msra.mxu0 0
      %1674 = vmatprep.subr.bf16.mxu0 0
      %1675 = vmatpush1.bf16.msra.mxu0 0
      %1676 = vmatprep.subr.bf16.mxu0 0
      %1677 = vmatpush1.bf16.msra.mxu0 0
      %1678 = vmatprep.subr.bf16.mxu0 0
      %1679 = vmatpush1.bf16.msra.mxu0 0
      %1680 = vmatprep.subr.bf16.mxu0 0
      %1681 = vmatpush1.bf16.msra.mxu0 0
      %1682 = vmatprep.subr.bf16.mxu0 0
      %1683 = vmatpush1.bf16.msra.mxu0 0
      %1684 = vmatprep.subr.bf16.mxu0 0
      %1685 = vmatpush1.bf16.msra.mxu0 0
      %1686 = vmatprep.subr.bf16.mxu0 0
      %1687 = vmatpush1.bf16.msra.mxu0 0
      %1688 = vmatprep.subr.bf16.mxu0 0
      %1689 = vmatpush1.bf16.msra.mxu0 0
      %1690 = vmatprep.subr.bf16.mxu0 0
      %1691 = vmatpush1.bf16.msra.mxu0 0
      %1692 = vmatprep.subr.bf16.mxu0 0
      %1693 = vmatpush1.bf16.msra.mxu0 0
      %1694 = vmatprep.subr.bf16.mxu0 0
      %1695 = vmatpush1.bf16.msra.mxu0 0
      %1696 = vmatprep.subr.bf16.mxu0 0
      %1697 = vmatpush1.bf16.msra.mxu0 0
      %1698 = vmatprep.mubr.bf16.mxu0 0
      %1699 = vmatmul.mubr.bf16.gmra.mrb[0].mxu0 %v823
      %v1700 = vpop.f32.mrb[0].mxu0
      %v1701 = vadd.f32 %v329, %v1700
      %v1702 = vpop.f32.mrb[0].mxu0
      %v1703 = vadd.f32 %v329, %v1702
      %v1704 = vpop.f32.mrb[0].mxu0
      %v1705 = vadd.f32 %v334, %v1704
      %v1706 = vpop.f32.mrb[0].mxu0
      %v1707 = vadd.f32 %v334, %v1706
      %1708 = vdwg.mxu0
      %1709 = vmatprep.subr.bf16.mxu0 %v662
      %1710 = vmatpush1.bf16.msra.mxu0 %v661
      %1711 = vmatprep.subr.bf16.mxu0 %v929
      %1712 = vmatpush1.bf16.msra.mxu0 %v926
      %1713 = vmatprep.subr.bf16.mxu0 0
      %1714 = vmatpush1.bf16.msra.mxu0 0
      %1715 = vmatprep.subr.bf16.mxu0 0
      %1716 = vmatpush1.bf16.msra.mxu0 0
      %1717 = vmatprep.subr.bf16.mxu0 0
      %1718 = vmatpush1.bf16.msra.mxu0 0
      %1719 = vmatprep.subr.bf16.mxu0 0
      %1720 = vmatpush1.bf16.msra.mxu0 0
      %1721 = vmatprep.subr.bf16.mxu0 0
      %1722 = vmatpush1.bf16.msra.mxu0 0
      %1723 = vmatprep.subr.bf16.mxu0 0
      %1724 = vmatpush1.bf16.msra.mxu0 0
      %1725 = vmatprep.subr.bf16.mxu0 0
      %1726 = vmatpush1.bf16.msra.mxu0 0
      %1727 = vmatprep.subr.bf16.mxu0 0
      %1728 = vmatpush1.bf16.msra.mxu0 0
      %1729 = vmatprep.subr.bf16.mxu0 0
      %1730 = vmatpush1.bf16.msra.mxu0 0
      %1731 = vmatprep.subr.bf16.mxu0 0
      %1732 = vmatpush1.bf16.msra.mxu0 0
      %1733 = vmatprep.subr.bf16.mxu0 0
      %1734 = vmatpush1.bf16.msra.mxu0 0
      %1735 = vmatprep.subr.bf16.mxu0 0
      %1736 = vmatpush1.bf16.msra.mxu0 0
      %1737 = vmatprep.subr.bf16.mxu0 0
      %1738 = vmatpush1.bf16.msra.mxu0 0
      %1739 = vmatprep.subr.bf16.mxu0 0
      %1740 = vmatpush1.bf16.msra.mxu0 0
      %1741 = vmatprep.mubr.bf16.mxu0 0
      %1742 = vmatmul.mubr.bf16.gmra.mrb[0].mxu0 %v823
      %v1743 = vpop.f32.mrb[0].mxu0
      %v1744 = vadd.f32 %v329, %v1743
      %v1745 = vpop.f32.mrb[0].mxu0
      %v1746 = vadd.f32 %v329, %v1745
      %v1747 = vpop.f32.mrb[0].mxu0
      %v1748 = vadd.f32 %v334, %v1747
      %v1749 = vpop.f32.mrb[0].mxu0
      %v1750 = vadd.f32 %v334, %v1749
      %1751 = vdwg.mxu0
      %1752 = vmatprep.subr.bf16.mxu0 %v664
      %1753 = vmatpush1.bf16.msra.mxu0 %v663
      %1754 = vmatprep.subr.bf16.mxu0 %v935
      %1755 = vmatpush1.bf16.msra.mxu0 %v932
      %1756 = vmatprep.subr.bf16.mxu0 0
      %1757 = vmatpush1.bf16.msra.mxu0 0
      %1758 = vmatprep.subr.bf16.mxu0 0
      %1759 = vmatpush1.bf16.msra.mxu0 0
      %1760 = vmatprep.subr.bf16.mxu0 0
      %1761 = vmatpush1.bf16.msra.mxu0 0
      %1762 = vmatprep.subr.bf16.mxu0 0
      %1763 = vmatpush1.bf16.msra.mxu0 0
      %1764 = vmatprep.subr.bf16.mxu0 0
      %1765 = vmatpush1.bf16.msra.mxu0 0
      %1766 = vmatprep.subr.bf16.mxu0 0
      %1767 = vmatpush1.bf16.msra.mxu0 0
      %1768 = vmatprep.subr.bf16.mxu0 0
      %1769 = vmatpush1.bf16.msra.mxu0 0
      %1770 = vmatprep.subr.bf16.mxu0 0
      %1771 = vmatpush1.bf16.msra.mxu0 0
      %1772 = vmatprep.subr.bf16.mxu0 0
      %1773 = vmatpush1.bf16.msra.mxu0 0
      %1774 = vmatprep.subr.bf16.mxu0 0
      %1775 = vmatpush1.bf16.msra.mxu0 0
      %1776 = vmatprep.subr.bf16.mxu0 0
      %1777 = vmatpush1.bf16.msra.mxu0 0
      %1778 = vmatprep.subr.bf16.mxu0 0
      %1779 = vmatpush1.bf16.msra.mxu0 0
      %1780 = vmatprep.subr.bf16.mxu0 0
      %1781 = vmatpush1.bf16.msra.mxu0 0
      %1782 = vmatprep.subr.bf16.mxu0 0
      %1783 = vmatpush1.bf16.msra.mxu0 0
      %1784 = vmatprep.mubr.bf16.mxu0 0
      %1785 = vmatmul.mubr.bf16.gmra.mrb[0].mxu0 %v823
      %v1786 = vpop.f32.mrb[0].mxu0
      %v1787 = vadd.f32 %v329, %v1786
      %v1788 = vpop.f32.mrb[0].mxu0
      %v1789 = vadd.f32 %v329, %v1788
      %v1790 = vpop.f32.mrb[0].mxu0
      %v1791 = vadd.f32 %v334, %v1790
      %v1792 = vpop.f32.mrb[0].mxu0
      %v1793 = vadd.f32 %v334, %v1792
      %1794 = vdwg.mxu0
      %1795 = vmatprep.subr.bf16.mxu0 %v666
      %1796 = vmatpush1.bf16.msra.mxu0 %v665
      %1797 = vmatprep.subr.bf16.mxu0 %v941
      %1798 = vmatpush1.bf16.msra.mxu0 %v938
      %1799 = vmatprep.subr.bf16.mxu0 0
      %1800 = vmatpush1.bf16.msra.mxu0 0
      %1801 = vmatprep.subr.bf16.mxu0 0
      %1802 = vmatpush1.bf16.msra.mxu0 0
      %1803 = vmatprep.subr.bf16.mxu0 0
      %1804 = vmatpush1.bf16.msra.mxu0 0
      %1805 = vmatprep.subr.bf16.mxu0 0
      %1806 = vmatpush1.bf16.msra.mxu0 0
      %1807 = vmatprep.subr.bf16.mxu0 0
      %1808 = vmatpush1.bf16.msra.mxu0 0
      %1809 = vmatprep.subr.bf16.mxu0 0
      %1810 = vmatpush1.bf16.msra.mxu0 0
      %1811 = vmatprep.subr.bf16.mxu0 0
      %1812 = vmatpush1.bf16.msra.mxu0 0
      %1813 = vmatprep.subr.bf16.mxu0 0
      %1814 = vmatpush1.bf16.msra.mxu0 0
      %1815 = vmatprep.subr.bf16.mxu0 0
      %1816 = vmatpush1.bf16.msra.mxu0 0
      %1817 = vmatprep.subr.bf16.mxu0 0
      %1818 = vmatpush1.bf16.msra.mxu0 0
      %1819 = vmatprep.subr.bf16.mxu0 0
      %1820 = vmatpush1.bf16.msra.mxu0 0
      %1821 = vmatprep.subr.bf16.mxu0 0
      %1822 = vmatpush1.bf16.msra.mxu0 0
      %1823 = vmatprep.subr.bf16.mxu0 0
      %1824 = vmatpush1.bf16.msra.mxu0 0
      %1825 = vmatprep.subr.bf16.mxu0 0
      %1826 = vmatpush1.bf16.msra.mxu0 0
      %1827 = vmatprep.mubr.bf16.mxu0 0
      %1828 = vmatmul.mubr.bf16.gmra.mrb[0].mxu0 %v823
      %v1829 = vpop.f32.mrb[0].mxu0
      %v1830 = vadd.f32 %v329, %v1829
      %v1831 = vpop.f32.mrb[0].mxu0
      %v1832 = vadd.f32 %v329, %v1831
      %v1833 = vpop.f32.mrb[0].mxu0
      %v1834 = vadd.f32 %v334, %v1833
      %v1835 = vpop.f32.mrb[0].mxu0
      %v1836 = vadd.f32 %v334, %v1835
      %1837 = vdwg.mxu0
      %1838 = vmatprep.subr.bf16.mxu0 %v668
      %1839 = vmatpush1.bf16.msra.mxu0 %v667
      %1840 = vmatprep.subr.bf16.mxu0 %v947
      %1841 = vmatpush1.bf16.msra.mxu0 %v944
      %1842 = vmatprep.subr.bf16.mxu0 0
      %1843 = vmatpush1.bf16.msra.mxu0 0
      %1844 = vmatprep.subr.bf16.mxu0 0
      %1845 = vmatpush1.bf16.msra.mxu0 0
      %1846 = vmatprep.subr.bf16.mxu0 0
      %1847 = vmatpush1.bf16.msra.mxu0 0
      %1848 = vmatprep.subr.bf16.mxu0 0
      %1849 = vmatpush1.bf16.msra.mxu0 0
      %1850 = vmatprep.subr.bf16.mxu0 0
      %1851 = vmatpush1.bf16.msra.mxu0 0
      %1852 = vmatprep.subr.bf16.mxu0 0
      %1853 = vmatpush1.bf16.msra.mxu0 0
      %1854 = vmatprep.subr.bf16.mxu0 0
      %1855 = vmatpush1.bf16.msra.mxu0 0
      %1856 = vmatprep.subr.bf16.mxu0 0
      %1857 = vmatpush1.bf16.msra.mxu0 0
      %1858 = vmatprep.subr.bf16.mxu0 0
      %1859 = vmatpush1.bf16.msra.mxu0 0
      %1860 = vmatprep.subr.bf16.mxu0 0
      %1861 = vmatpush1.bf16.msra.mxu0 0
      %1862 = vmatprep.subr.bf16.mxu0 0
      %1863 = vmatpush1.bf16.msra.mxu0 0
      %1864 = vmatprep.subr.bf16.mxu0 0
      %1865 = vmatpush1.bf16.msra.mxu0 0
      %1866 = vmatprep.subr.bf16.mxu0 0
      %1867 = vmatpush1.bf16.msra.mxu0 0
      %1868 = vmatprep.subr.bf16.mxu0 0
      %1869 = vmatpush1.bf16.msra.mxu0 0
      %1870 = vmatprep.mubr.bf16.mxu0 0
      %1871 = vmatmul.mubr.bf16.gmra.mrb[0].mxu0 %v823
      %v1872 = vpop.f32.mrb[0].mxu0
      %v1873 = vadd.f32 %v329, %v1872
      %v1874 = vpop.f32.mrb[0].mxu0
      %v1875 = vadd.f32 %v329, %v1874
      %v1876 = vpop.f32.mrb[0].mxu0
      %v1877 = vadd.f32 %v334, %v1876
      %v1878 = vpop.f32.mrb[0].mxu0
      %v1879 = vadd.f32 %v334, %v1878
      %1880 = vdwg.mxu0
      %1881 = vmatprep.subr.bf16.mxu0 %v670
      %1882 = vmatpush1.bf16.msra.mxu0 %v669
      %1883 = vmatprep.subr.bf16.mxu0 %v953
      %1884 = vmatpush1.bf16.msra.mxu0 %v950
      %1885 = vmatprep.subr.bf16.mxu0 0
      %1886 = vmatpush1.bf16.msra.mxu0 0
      %1887 = vmatprep.subr.bf16.mxu0 0
      %1888 = vmatpush1.bf16.msra.mxu0 0
      %1889 = vmatprep.subr.bf16.mxu0 0
      %1890 = vmatpush1.bf16.msra.mxu0 0
      %1891 = vmatprep.subr.bf16.mxu0 0
      %1892 = vmatpush1.bf16.msra.mxu0 0
      %1893 = vmatprep.subr.bf16.mxu0 0
      %1894 = vmatpush1.bf16.msra.mxu0 0
      %1895 = vmatprep.subr.bf16.mxu0 0
      %1896 = vmatpush1.bf16.msra.mxu0 0
      %1897 = vmatprep.subr.bf16.mxu0 0
      %1898 = vmatpush1.bf16.msra.mxu0 0
      %1899 = vmatprep.subr.bf16.mxu0 0
      %1900 = vmatpush1.bf16.msra.mxu0 0
      %1901 = vmatprep.subr.bf16.mxu0 0
      %1902 = vmatpush1.bf16.msra.mxu0 0
      %1903 = vmatprep.subr.bf16.mxu0 0
      %1904 = vmatpush1.bf16.msra.mxu0 0
      %1905 = vmatprep.subr.bf16.mxu0 0
      %1906 = vmatpush1.bf16.msra.mxu0 0
      %1907 = vmatprep.subr.bf16.mxu0 0
      %1908 = vmatpush1.bf16.msra.mxu0 0
      %1909 = vmatprep.subr.bf16.mxu0 0
      %1910 = vmatpush1.bf16.msra.mxu0 0
      %1911 = vmatprep.subr.bf16.mxu0 0
      %1912 = vmatpush1.bf16.msra.mxu0 0
      %1913 = vmatprep.mubr.bf16.mxu0 0
      %1914 = vmatmul.mubr.bf16.gmra.mrb[0].mxu0 %v823
      %v1915 = vpop.f32.mrb[0].mxu0
      %v1916 = vadd.f32 %v329, %v1915
      %v1917 = vpop.f32.mrb[0].mxu0
      %v1918 = vadd.f32 %v329, %v1917
      %v1919 = vpop.f32.mrb[0].mxu0
      %v1920 = vadd.f32 %v334, %v1919
      %v1921 = vpop.f32.mrb[0].mxu0
      %v1922 = vadd.f32 %v334, %v1921
      %1923 = vdwg.mxu0
      %1924 = vmatprep.subr.bf16.mxu0 %v672
      %1925 = vmatpush1.bf16.msra.mxu0 %v671
      %1926 = vmatprep.subr.bf16.mxu0 %v959
      %1927 = vmatpush1.bf16.msra.mxu0 %v956
      %1928 = vmatprep.subr.bf16.mxu0 0
      %1929 = vmatpush1.bf16.msra.mxu0 0
      %1930 = vmatprep.subr.bf16.mxu0 0
      %1931 = vmatpush1.bf16.msra.mxu0 0
      %1932 = vmatprep.subr.bf16.mxu0 0
      %1933 = vmatpush1.bf16.msra.mxu0 0
      %1934 = vmatprep.subr.bf16.mxu0 0
      %1935 = vmatpush1.bf16.msra.mxu0 0
      %1936 = vmatprep.subr.bf16.mxu0 0
      %1937 = vmatpush1.bf16.msra.mxu0 0
      %1938 = vmatprep.subr.bf16.mxu0 0
      %1939 = vmatpush1.bf16.msra.mxu0 0
      %1940 = vmatprep.subr.bf16.mxu0 0
      %1941 = vmatpush1.bf16.msra.mxu0 0
      %1942 = vmatprep.subr.bf16.mxu0 0
      %1943 = vmatpush1.bf16.msra.mxu0 0
      %1944 = vmatprep.subr.bf16.mxu0 0
      %1945 = vmatpush1.bf16.msra.mxu0 0
      %1946 = vmatprep.subr.bf16.mxu0 0
      %1947 = vmatpush1.bf16.msra.mxu0 0
      %1948 = vmatprep.subr.bf16.mxu0 0
      %1949 = vmatpush1.bf16.msra.mxu0 0
      %1950 = vmatprep.subr.bf16.mxu0 0
      %1951 = vmatpush1.bf16.msra.mxu0 0
      %1952 = vmatprep.subr.bf16.mxu0 0
      %1953 = vmatpush1.bf16.msra.mxu0 0
      %1954 = vmatprep.subr.bf16.mxu0 0
      %1955 = vmatpush1.bf16.msra.mxu0 0
      %1956 = vmatprep.mubr.bf16.mxu0 0
      %1957 = vmatmul.mubr.bf16.gmra.mrb[0].mxu0 %v823
      %v1958 = vpop.f32.mrb[0].mxu0
      %v1959 = vadd.f32 %v329, %v1958
      %v1960 = vpop.f32.mrb[0].mxu0
      %v1961 = vadd.f32 %v329, %v1960
      %v1962 = vpop.f32.mrb[0].mxu0
      %v1963 = vadd.f32 %v334, %v1962
      %v1964 = vpop.f32.mrb[0].mxu0
      %v1965 = vadd.f32 %v334, %v1964
      %1966 = vdwg.mxu0
      %1967 = vmatprep.subr.bf16.mxu0 %v674
      %1968 = vmatpush1.bf16.msra.mxu0 %v673
      %1969 = vmatprep.subr.bf16.mxu0 %v965
      %1970 = vmatpush1.bf16.msra.mxu0 %v962
      %1971 = vmatprep.subr.bf16.mxu0 0
      %1972 = vmatpush1.bf16.msra.mxu0 0
      %1973 = vmatprep.subr.bf16.mxu0 0
      %1974 = vmatpush1.bf16.msra.mxu0 0
      %1975 = vmatprep.subr.bf16.mxu0 0
      %1976 = vmatpush1.bf16.msra.mxu0 0
      %1977 = vmatprep.subr.bf16.mxu0 0
      %1978 = vmatpush1.bf16.msra.mxu0 0
      %1979 = vmatprep.subr.bf16.mxu0 0
      %1980 = vmatpush1.bf16.msra.mxu0 0
      %1981 = vmatprep.subr.bf16.mxu0 0
      %1982 = vmatpush1.bf16.msra.mxu0 0
      %1983 = vmatprep.subr.bf16.mxu0 0
      %1984 = vmatpush1.bf16.msra.mxu0 0
      %1985 = vmatprep.subr.bf16.mxu0 0
      %1986 = vmatpush1.bf16.msra.mxu0 0
      %1987 = vmatprep.subr.bf16.mxu0 0
      %1988 = vmatpush1.bf16.msra.mxu0 0
      %1989 = vmatprep.subr.bf16.mxu0 0
      %1990 = vmatpush1.bf16.msra.mxu0 0
      %1991 = vmatprep.subr.bf16.mxu0 0
      %1992 = vmatpush1.bf16.msra.mxu0 0
      %1993 = vmatprep.subr.bf16.mxu0 0
      %1994 = vmatpush1.bf16.msra.mxu0 0
      %1995 = vmatprep.subr.bf16.mxu0 0
      %1996 = vmatpush1.bf16.msra.mxu0 0
      %1997 = vmatprep.subr.bf16.mxu0 0
      %1998 = vmatpush1.bf16.msra.mxu0 0
      %1999 = vmatprep.mubr.bf16.mxu0 0
      %2000 = vmatmul.mubr.bf16.gmra.mrb[0].mxu0 %v823
      %v2001 = vpop.f32.mrb[0].mxu0
      %v2002 = vadd.f32 %v329, %v2001
      %v2003 = vpop.f32.mrb[0].mxu0
      %v2004 = vadd.f32 %v329, %v2003
      %v2005 = vpop.f32.mrb[0].mxu0
      %v2006 = vadd.f32 %v334, %v2005
      %v2007 = vpop.f32.mrb[0].mxu0
      %v2008 = vadd.f32 %v334, %v2007
      %2009 = vdwg.mxu0
      %2010 = vmatprep.subr.bf16.mxu0 %v676
      %2011 = vmatpush1.bf16.msra.mxu0 %v675
      %2012 = vmatprep.subr.bf16.mxu0 %v971
      %2013 = vmatpush1.bf16.msra.mxu0 %v968
      %2014 = vmatprep.subr.bf16.mxu0 0
      %2015 = vmatpush1.bf16.msra.mxu0 0
      %2016 = vmatprep.subr.bf16.mxu0 0
      %2017 = vmatpush1.bf16.msra.mxu0 0
      %2018 = vmatprep.subr.bf16.mxu0 0
      %2019 = vmatpush1.bf16.msra.mxu0 0
      %2020 = vmatprep.subr.bf16.mxu0 0
      %2021 = vmatpush1.bf16.msra.mxu0 0
      %2022 = vmatprep.subr.bf16.mxu0 0
      %2023 = vmatpush1.bf16.msra.mxu0 0
      %2024 = vmatprep.subr.bf16.mxu0 0
      %2025 = vmatpush1.bf16.msra.mxu0 0
      %2026 = vmatprep.subr.bf16.mxu0 0
      %2027 = vmatpush1.bf16.msra.mxu0 0
      %2028 = vmatprep.subr.bf16.mxu0 0
      %2029 = vmatpush1.bf16.msra.mxu0 0
      %2030 = vmatprep.subr.bf16.mxu0 0
      %2031 = vmatpush1.bf16.msra.mxu0 0
      %2032 = vmatprep.subr.bf16.mxu0 0
      %2033 = vmatpush1.bf16.msra.mxu0 0
      %2034 = vmatprep.subr.bf16.mxu0 0
      %2035 = vmatpush1.bf16.msra.mxu0 0
      %2036 = vmatprep.subr.bf16.mxu0 0
      %2037 = vmatpush1.bf16.msra.mxu0 0
      %2038 = vmatprep.subr.bf16.mxu0 0
      %2039 = vmatpush1.bf16.msra.mxu0 0
      %2040 = vmatprep.subr.bf16.mxu0 0
      %2041 = vmatpush1.bf16.msra.mxu0 0
      %2042 = vmatprep.mubr.bf16.mxu0 0
      %2043 = vmatmul.mubr.bf16.gmra.mrb[0].mxu0 %v823
      %v2044 = vpop.f32.mrb[0].mxu0
      %v2045 = vadd.f32 %v329, %v2044
      %v2046 = vpop.f32.mrb[0].mxu0
      %v2047 = vadd.f32 %v329, %v2046
      %v2048 = vpop.f32.mrb[0].mxu0
      %v2049 = vadd.f32 %v334, %v2048
      %v2050 = vpop.f32.mrb[0].mxu0
      %v2051 = vadd.f32 %v334, %v2050
      %2052 = vdwg.mxu0
      %2053 = vmatprep.subr.bf16.mxu0 %v678
      %2054 = vmatpush1.bf16.msra.mxu0 %v677
      %2055 = vmatprep.subr.bf16.mxu0 %v977
      %2056 = vmatpush1.bf16.msra.mxu0 %v974
      %2057 = vmatprep.subr.bf16.mxu0 0
      %2058 = vmatpush1.bf16.msra.mxu0 0
      %2059 = vmatprep.subr.bf16.mxu0 0
      %2060 = vmatpush1.bf16.msra.mxu0 0
      %2061 = vmatprep.subr.bf16.mxu0 0
      %2062 = vmatpush1.bf16.msra.mxu0 0
      %2063 = vmatprep.subr.bf16.mxu0 0
      %2064 = vmatpush1.bf16.msra.mxu0 0
      %2065 = vmatprep.subr.bf16.mxu0 0
      %2066 = vmatpush1.bf16.msra.mxu0 0
      %2067 = vmatprep.subr.bf16.mxu0 0
      %2068 = vmatpush1.bf16.msra.mxu0 0
      %2069 = vmatprep.subr.bf16.mxu0 0
      %2070 = vmatpush1.bf16.msra.mxu0 0
      %2071 = vmatprep.subr.bf16.mxu0 0
      %2072 = vmatpush1.bf16.msra.mxu0 0
      %2073 = vmatprep.subr.bf16.mxu0 0
      %2074 = vmatpush1.bf16.msra.mxu0 0
      %2075 = vmatprep.subr.bf16.mxu0 0
      %2076 = vmatpush1.bf16.msra.mxu0 0
      %2077 = vmatprep.subr.bf16.mxu0 0
      %2078 = vmatpush1.bf16.msra.mxu0 0
      %2079 = vmatprep.subr.bf16.mxu0 0
      %2080 = vmatpush1.bf16.msra.mxu0 0
      %2081 = vmatprep.subr.bf16.mxu0 0
      %2082 = vmatpush1.bf16.msra.mxu0 0
      %2083 = vmatprep.subr.bf16.mxu0 0
      %2084 = vmatpush1.bf16.msra.mxu0 0
      %2085 = vmatprep.mubr.bf16.mxu0 0
      %2086 = vmatmul.mubr.bf16.gmra.mrb[0].mxu0 %v823
      %v2087 = vpop.f32.mrb[0].mxu0
      %v2088 = vadd.f32 %v329, %v2087
      %v2089 = vpop.f32.mrb[0].mxu0
      %v2090 = vadd.f32 %v329, %v2089
      %v2091 = vpop.f32.mrb[0].mxu0
      %v2092 = vadd.f32 %v334, %v2091
      %v2093 = vpop.f32.mrb[0].mxu0
      %v2094 = vadd.f32 %v334, %v2093
      %2095 = vdwg.mxu0
      %2096 = vmatprep.subr.bf16.mxu0 %v680
      %2097 = vmatpush1.bf16.msra.mxu0 %v679
      %2098 = vmatprep.subr.bf16.mxu0 %v983
      %2099 = vmatpush1.bf16.msra.mxu0 %v980
      %2100 = vmatprep.subr.bf16.mxu0 0
      %2101 = vmatpush1.bf16.msra.mxu0 0
      %2102 = vmatprep.subr.bf16.mxu0 0
      %2103 = vmatpush1.bf16.msra.mxu0 0
      %2104 = vmatprep.subr.bf16.mxu0 0
      %2105 = vmatpush1.bf16.msra.mxu0 0
      %2106 = vmatprep.subr.bf16.mxu0 0
      %2107 = vmatpush1.bf16.msra.mxu0 0
      %2108 = vmatprep.subr.bf16.mxu0 0
      %2109 = vmatpush1.bf16.msra.mxu0 0
      %2110 = vmatprep.subr.bf16.mxu0 0
      %2111 = vmatpush1.bf16.msra.mxu0 0
      %2112 = vmatprep.subr.bf16.mxu0 0
      %2113 = vmatpush1.bf16.msra.mxu0 0
      %2114 = vmatprep.subr.bf16.mxu0 0
      %2115 = vmatpush1.bf16.msra.mxu0 0
      %2116 = vmatprep.subr.bf16.mxu0 0
      %2117 = vmatpush1.bf16.msra.mxu0 0
      %2118 = vmatprep.subr.bf16.mxu0 0
      %2119 = vmatpush1.bf16.msra.mxu0 0
      %2120 = vmatprep.subr.bf16.mxu0 0
      %2121 = vmatpush1.bf16.msra.mxu0 0
      %2122 = vmatprep.subr.bf16.mxu0 0
      %2123 = vmatpush1.bf16.msra.mxu0 0
      %2124 = vmatprep.subr.bf16.mxu0 0
      %2125 = vmatpush1.bf16.msra.mxu0 0
      %2126 = vmatprep.subr.bf16.mxu0 0
      %2127 = vmatpush1.bf16.msra.mxu0 0
      %2128 = vmatprep.mubr.bf16.mxu0 0
      %2129 = vmatmul.mubr.bf16.gmra.mrb[0].mxu0 %v823
      %v2130 = vpop.f32.mrb[0].mxu0
      %v2131 = vadd.f32 %v329, %v2130
      %v2132 = vpop.f32.mrb[0].mxu0
      %v2133 = vadd.f32 %v329, %v2132
      %v2134 = vpop.f32.mrb[0].mxu0
      %v2135 = vadd.f32 %v334, %v2134
      %v2136 = vpop.f32.mrb[0].mxu0
      %v2137 = vadd.f32 %v334, %v2136
      %2138 = vdwg.mxu0
      %2139 = vmatprep.subr.bf16.mxu0 %v682
      %2140 = vmatpush1.bf16.msra.mxu0 %v681
      %2141 = vmatprep.subr.bf16.mxu0 %v989
      %2142 = vmatpush1.bf16.msra.mxu0 %v986
      %2143 = vmatprep.subr.bf16.mxu0 0
      %2144 = vmatpush1.bf16.msra.mxu0 0
      %2145 = vmatprep.subr.bf16.mxu0 0
      %2146 = vmatpush1.bf16.msra.mxu0 0
      %2147 = vmatprep.subr.bf16.mxu0 0
      %2148 = vmatpush1.bf16.msra.mxu0 0
      %2149 = vmatprep.subr.bf16.mxu0 0
      %2150 = vmatpush1.bf16.msra.mxu0 0
      %2151 = vmatprep.subr.bf16.mxu0 0
      %2152 = vmatpush1.bf16.msra.mxu0 0
      %2153 = vmatprep.subr.bf16.mxu0 0
      %2154 = vmatpush1.bf16.msra.mxu0 0
      %2155 = vmatprep.subr.bf16.mxu0 0
      %2156 = vmatpush1.bf16.msra.mxu0 0
      %2157 = vmatprep.subr.bf16.mxu0 0
      %2158 = vmatpush1.bf16.msra.mxu0 0
      %2159 = vmatprep.subr.bf16.mxu0 0
      %2160 = vmatpush1.bf16.msra.mxu0 0
      %2161 = vmatprep.subr.bf16.mxu0 0
      %2162 = vmatpush1.bf16.msra.mxu0 0
      %2163 = vmatprep.subr.bf16.mxu0 0
      %2164 = vmatpush1.bf16.msra.mxu0 0
      %2165 = vmatprep.subr.bf16.mxu0 0
      %2166 = vmatpush1.bf16.msra.mxu0 0
      %2167 = vmatprep.subr.bf16.mxu0 0
      %2168 = vmatpush1.bf16.msra.mxu0 0
      %2169 = vmatprep.subr.bf16.mxu0 0
      %2170 = vmatpush1.bf16.msra.mxu0 0
      %2171 = vmatprep.mubr.bf16.mxu0 0
      %2172 = vmatmul.mubr.bf16.gmra.mrb[0].mxu0 %v823
      %v2173 = vpop.f32.mrb[0].mxu0
      %v2174 = vadd.f32 %v329, %v2173
      %v2175 = vpop.f32.mrb[0].mxu0
      %v2176 = vadd.f32 %v329, %v2175
      %v2177 = vpop.f32.mrb[0].mxu0
      %v2178 = vadd.f32 %v334, %v2177
      %v2179 = vpop.f32.mrb[0].mxu0
      %v2180 = vadd.f32 %v334, %v2179
      %2181 = vdwg.mxu0
      %2182 = vmatprep.subr.bf16.mxu0 %v684
      %2183 = vmatpush1.bf16.msra.mxu0 %v683
      %2184 = vmatprep.subr.bf16.mxu0 %v995
      %2185 = vmatpush1.bf16.msra.mxu0 %v992
      %2186 = vmatprep.subr.bf16.mxu0 0
      %2187 = vmatpush1.bf16.msra.mxu0 0
      %2188 = vmatprep.subr.bf16.mxu0 0
      %2189 = vmatpush1.bf16.msra.mxu0 0
      %2190 = vmatprep.subr.bf16.mxu0 0
      %2191 = vmatpush1.bf16.msra.mxu0 0
      %2192 = vmatprep.subr.bf16.mxu0 0
      %2193 = vmatpush1.bf16.msra.mxu0 0
      %2194 = vmatprep.subr.bf16.mxu0 0
      %2195 = vmatpush1.bf16.msra.mxu0 0
      %2196 = vmatprep.subr.bf16.mxu0 0
      %2197 = vmatpush1.bf16.msra.mxu0 0
      %2198 = vmatprep.subr.bf16.mxu0 0
      %2199 = vmatpush1.bf16.msra.mxu0 0
      %2200 = vmatprep.subr.bf16.mxu0 0
      %2201 = vmatpush1.bf16.msra.mxu0 0
      %2202 = vmatprep.subr.bf16.mxu0 0
      %2203 = vmatpush1.bf16.msra.mxu0 0
      %2204 = vmatprep.subr.bf16.mxu0 0
      %2205 = vmatpush1.bf16.msra.mxu0 0
      %2206 = vmatprep.subr.bf16.mxu0 0
      %2207 = vmatpush1.bf16.msra.mxu0 0
      %2208 = vmatprep.subr.bf16.mxu0 0
      %2209 = vmatpush1.bf16.msra.mxu0 0
      %2210 = vmatprep.subr.bf16.mxu0 0
      %2211 = vmatpush1.bf16.msra.mxu0 0
      %2212 = vmatprep.subr.bf16.mxu0 0
      %2213 = vmatpush1.bf16.msra.mxu0 0
      %2214 = vmatprep.mubr.bf16.mxu0 0
      %2215 = vmatmul.mubr.bf16.gmra.mrb[0].mxu0 %v823
      %v2216 = vpop.f32.mrb[0].mxu0
      %v2217 = vadd.f32 %v329, %v2216
      %v2218 = vpop.f32.mrb[0].mxu0
      %v2219 = vadd.f32 %v329, %v2218
      %v2220 = vpop.f32.mrb[0].mxu0
      %v2221 = vadd.f32 %v334, %v2220
      %v2222 = vpop.f32.mrb[0].mxu0
      %v2223 = vadd.f32 %v334, %v2222
      %2224 = vdwg.mxu0
      %2225 = vmatprep.subr.bf16.mxu0 %v686
      %2226 = vmatpush1.bf16.msra.mxu0 %v685
      %2227 = vmatprep.subr.bf16.mxu0 %v1001
      %2228 = vmatpush1.bf16.msra.mxu0 %v998
      %2229 = vmatprep.subr.bf16.mxu0 0
      %2230 = vmatpush1.bf16.msra.mxu0 0
      %2231 = vmatprep.subr.bf16.mxu0 0
      %2232 = vmatpush1.bf16.msra.mxu0 0
      %2233 = vmatprep.subr.bf16.mxu0 0
      %2234 = vmatpush1.bf16.msra.mxu0 0
      %2235 = vmatprep.subr.bf16.mxu0 0
      %2236 = vmatpush1.bf16.msra.mxu0 0
      %2237 = vmatprep.subr.bf16.mxu0 0
      %2238 = vmatpush1.bf16.msra.mxu0 0
      %2239 = vmatprep.subr.bf16.mxu0 0
      %2240 = vmatpush1.bf16.msra.mxu0 0
      %2241 = vmatprep.subr.bf16.mxu0 0
      %2242 = vmatpush1.bf16.msra.mxu0 0
      %2243 = vmatprep.subr.bf16.mxu0 0
      %2244 = vmatpush1.bf16.msra.mxu0 0
      %2245 = vmatprep.subr.bf16.mxu0 0
      %2246 = vmatpush1.bf16.msra.mxu0 0
      %2247 = vmatprep.subr.bf16.mxu0 0
      %2248 = vmatpush1.bf16.msra.mxu0 0
      %2249 = vmatprep.subr.bf16.mxu0 0
      %2250 = vmatpush1.bf16.msra.mxu0 0
      %2251 = vmatprep.subr.bf16.mxu0 0
      %2252 = vmatpush1.bf16.msra.mxu0 0
      %2253 = vmatprep.subr.bf16.mxu0 0
      %2254 = vmatpush1.bf16.msra.mxu0 0
      %2255 = vmatprep.subr.bf16.mxu0 0
      %2256 = vmatpush1.bf16.msra.mxu0 0
      %2257 = vmatprep.mubr.bf16.mxu0 0
      %2258 = vmatmul.mubr.bf16.gmra.mrb[0].mxu0 %v823
      %v2259 = vpop.f32.mrb[0].mxu0
      %v2260 = vadd.f32 %v329, %v2259
      %v2261 = vpop.f32.mrb[0].mxu0
      %v2262 = vadd.f32 %v329, %v2261
      %v2263 = vpop.f32.mrb[0].mxu0
      %v2264 = vadd.f32 %v334, %v2263
      %v2265 = vpop.f32.mrb[0].mxu0
      %v2266 = vadd.f32 %v334, %v2265
      %2267 = vdwg.mxu0
      %2268 = vmatprep.subr.bf16.mxu0 %v688
      %2269 = vmatpush1.bf16.msra.mxu0 %v687
      %2270 = vmatprep.subr.bf16.mxu0 %v1007
      %2271 = vmatpush1.bf16.msra.mxu0 %v1004
      %2272 = vmatprep.subr.bf16.mxu0 0
      %2273 = vmatpush1.bf16.msra.mxu0 0
      %2274 = vmatprep.subr.bf16.mxu0 0
      %2275 = vmatpush1.bf16.msra.mxu0 0
      %2276 = vmatprep.subr.bf16.mxu0 0
      %2277 = vmatpush1.bf16.msra.mxu0 0
      %2278 = vmatprep.subr.bf16.mxu0 0
      %2279 = vmatpush1.bf16.msra.mxu0 0
      %2280 = vmatprep.subr.bf16.mxu0 0
      %2281 = vmatpush1.bf16.msra.mxu0 0
      %2282 = vmatprep.subr.bf16.mxu0 0
      %2283 = vmatpush1.bf16.msra.mxu0 0
      %2284 = vmatprep.subr.bf16.mxu0 0
      %2285 = vmatpush1.bf16.msra.mxu0 0
      %2286 = vmatprep.subr.bf16.mxu0 0
      %2287 = vmatpush1.bf16.msra.mxu0 0
      %2288 = vmatprep.subr.bf16.mxu0 0
      %2289 = vmatpush1.bf16.msra.mxu0 0
      %2290 = vmatprep.subr.bf16.mxu0 0
      %2291 = vmatpush1.bf16.msra.mxu0 0
      %2292 = vmatprep.subr.bf16.mxu0 0
      %2293 = vmatpush1.bf16.msra.mxu0 0
      %2294 = vmatprep.subr.bf16.mxu0 0
      %2295 = vmatpush1.bf16.msra.mxu0 0
      %2296 = vmatprep.subr.bf16.mxu0 0
      %2297 = vmatpush1.bf16.msra.mxu0 0
      %2298 = vmatprep.subr.bf16.mxu0 0
      %2299 = vmatpush1.bf16.msra.mxu0 0
      %2300 = vmatprep.mubr.bf16.mxu0 0
      %2301 = vmatmul.mubr.bf16.gmra.mrb[0].mxu0 %v823
      %v2302 = vpop.f32.mrb[0].mxu0
      %v2303 = vadd.f32 %v329, %v2302
      %v2304 = vpop.f32.mrb[0].mxu0
      %v2305 = vadd.f32 %v329, %v2304
      %v2306 = vpop.f32.mrb[0].mxu0
      %v2307 = vadd.f32 %v334, %v2306
      %v2308 = vpop.f32.mrb[0].mxu0
      %v2309 = vadd.f32 %v334, %v2308
      %2310 = vdwg.mxu0
      %2311 = vmatprep.subr.bf16.mxu0 %v690
      %2312 = vmatpush1.bf16.msra.mxu0 %v689
      %2313 = vmatprep.subr.bf16.mxu0 %v1013
      %2314 = vmatpush1.bf16.msra.mxu0 %v1010
      %2315 = vmatprep.subr.bf16.mxu0 0
      %2316 = vmatpush1.bf16.msra.mxu0 0
      %2317 = vmatprep.subr.bf16.mxu0 0
      %2318 = vmatpush1.bf16.msra.mxu0 0
      %2319 = vmatprep.subr.bf16.mxu0 0
      %2320 = vmatpush1.bf16.msra.mxu0 0
      %2321 = vmatprep.subr.bf16.mxu0 0
      %2322 = vmatpush1.bf16.msra.mxu0 0
      %2323 = vmatprep.subr.bf16.mxu0 0
      %2324 = vmatpush1.bf16.msra.mxu0 0
      %2325 = vmatprep.subr.bf16.mxu0 0
      %2326 = vmatpush1.bf16.msra.mxu0 0
      %2327 = vmatprep.subr.bf16.mxu0 0
      %2328 = vmatpush1.bf16.msra.mxu0 0
      %2329 = vmatprep.subr.bf16.mxu0 0
      %2330 = vmatpush1.bf16.msra.mxu0 0
      %2331 = vmatprep.subr.bf16.mxu0 0
      %2332 = vmatpush1.bf16.msra.mxu0 0
      %2333 = vmatprep.subr.bf16.mxu0 0
      %2334 = vmatpush1.bf16.msra.mxu0 0
      %2335 = vmatprep.subr.bf16.mxu0 0
      %2336 = vmatpush1.bf16.msra.mxu0 0
      %2337 = vmatprep.subr.bf16.mxu0 0
      %2338 = vmatpush1.bf16.msra.mxu0 0
      %2339 = vmatprep.subr.bf16.mxu0 0
      %2340 = vmatpush1.bf16.msra.mxu0 0
      %2341 = vmatprep.subr.bf16.mxu0 0
      %2342 = vmatpush1.bf16.msra.mxu0 0
      %2343 = vmatprep.mubr.bf16.mxu0 0
      %2344 = vmatmul.mubr.bf16.gmra.mrb[0].mxu0 %v823
      %v2345 = vpop.f32.mrb[0].mxu0
      %v2346 = vadd.f32 %v329, %v2345
      %v2347 = vpop.f32.mrb[0].mxu0
      %v2348 = vadd.f32 %v329, %v2347
      %v2349 = vpop.f32.mrb[0].mxu0
      %v2350 = vadd.f32 %v334, %v2349
      %v2351 = vpop.f32.mrb[0].mxu0
      %v2352 = vadd.f32 %v334, %v2351
      %2353 = vdwg.mxu0
      %2354 = vmatprep.subr.bf16.mxu0 %v692
      %2355 = vmatpush1.bf16.msra.mxu0 %v691
      %2356 = vmatprep.subr.bf16.mxu0 %v1019
      %2357 = vmatpush1.bf16.msra.mxu0 %v1016
      %2358 = vmatprep.subr.bf16.mxu0 0
      %2359 = vmatpush1.bf16.msra.mxu0 0
      %2360 = vmatprep.subr.bf16.mxu0 0
      %2361 = vmatpush1.bf16.msra.mxu0 0
      %2362 = vmatprep.subr.bf16.mxu0 0
      %2363 = vmatpush1.bf16.msra.mxu0 0
      %2364 = vmatprep.subr.bf16.mxu0 0
      %2365 = vmatpush1.bf16.msra.mxu0 0
      %2366 = vmatprep.subr.bf16.mxu0 0
      %2367 = vmatpush1.bf16.msra.mxu0 0
      %2368 = vmatprep.subr.bf16.mxu0 0
      %2369 = vmatpush1.bf16.msra.mxu0 0
      %2370 = vmatprep.subr.bf16.mxu0 0
      %2371 = vmatpush1.bf16.msra.mxu0 0
      %2372 = vmatprep.subr.bf16.mxu0 0
      %2373 = vmatpush1.bf16.msra.mxu0 0
      %2374 = vmatprep.subr.bf16.mxu0 0
      %2375 = vmatpush1.bf16.msra.mxu0 0
      %2376 = vmatprep.subr.bf16.mxu0 0
      %2377 = vmatpush1.bf16.msra.mxu0 0
      %2378 = vmatprep.subr.bf16.mxu0 0
      %2379 = vmatpush1.bf16.msra.mxu0 0
      %2380 = vmatprep.subr.bf16.mxu0 0
      %2381 = vmatpush1.bf16.msra.mxu0 0
      %2382 = vmatprep.subr.bf16.mxu0 0
      %2383 = vmatpush1.bf16.msra.mxu0 0
      %2384 = vmatprep.subr.bf16.mxu0 0
      %2385 = vmatpush1.bf16.msra.mxu0 0
      %2386 = vmatprep.mubr.bf16.mxu0 0
      %2387 = vmatmul.mubr.bf16.gmra.mrb[0].mxu0 %v823
      %v2388 = vpop.f32.mrb[0].mxu0
      %v2389 = vadd.f32 %v329, %v2388
      %v2390 = vpop.f32.mrb[0].mxu0
      %v2391 = vadd.f32 %v329, %v2390
      %v2392 = vpop.f32.mrb[0].mxu0
      %v2393 = vadd.f32 %v334, %v2392
      %v2394 = vpop.f32.mrb[0].mxu0
      %v2395 = vadd.f32 %v334, %v2394
      %2396 = vdwg.mxu0
      %v2397 = vmax.f32 %v1056, 0.0
      %v2398 = vmax.f32 %v1058, 0.0
      %v2399 = vmax.f32 %v1099, 0.0
      %v2400 = vmax.f32 %v1101, 0.0
      %v2401 = vmax.f32 %v1142, 0.0
      %v2402 = vmax.f32 %v1144, 0.0
      %v2403 = vmax.f32 %v1185, 0.0
      %v2404 = vmax.f32 %v1187, 0.0
      %v2405 = vmax.f32 %v1228, 0.0
      %v2406 = vmax.f32 %v1230, 0.0
      %v2407 = vmax.f32 %v1271, 0.0
      %v2408 = vmax.f32 %v1273, 0.0
      %v2409 = vmax.f32 %v1314, 0.0
      %v2410 = vmax.f32 %v1316, 0.0
      %v2411 = vmax.f32 %v1357, 0.0
      %v2412 = vmax.f32 %v1359, 0.0
      %v2413 = vmax.f32 %v1400, 0.0
      %v2414 = vmax.f32 %v1402, 0.0
      %v2415 = vmax.f32 %v1443, 0.0
      %v2416 = vmax.f32 %v1445, 0.0
      %v2417 = vmax.f32 %v1486, 0.0
      %v2418 = vmax.f32 %v1488, 0.0
      %v2419 = vmax.f32 %v1529, 0.0
      %v2420 = vmax.f32 %v1531, 0.0
      %v2421 = vmax.f32 %v1572, 0.0
      %v2422 = vmax.f32 %v1574, 0.0
      %v2423 = vmax.f32 %v1615, 0.0
      %v2424 = vmax.f32 %v1617, 0.0
      %v2425 = vmax.f32 %v1658, 0.0
      %v2426 = vmax.f32 %v1660, 0.0
      %v2427 = vmax.f32 %v1701, 0.0
      %v2428 = vmax.f32 %v1703, 0.0
      %v2429 = vmax.f32 %v1744, 0.0
      %v2430 = vmax.f32 %v1746, 0.0
      %v2431 = vmax.f32 %v1787, 0.0
      %v2432 = vmax.f32 %v1789, 0.0
      %v2433 = vmax.f32 %v1830, 0.0
      %v2434 = vmax.f32 %v1832, 0.0
      %v2435 = vmax.f32 %v1873, 0.0
      %v2436 = vmax.f32 %v1875, 0.0
      %v2437 = vmax.f32 %v1916, 0.0
      %v2438 = vmax.f32 %v1918, 0.0
      %v2439 = vmax.f32 %v1959, 0.0
      %v2440 = vmax.f32 %v1961, 0.0
      %v2441 = vmax.f32 %v2002, 0.0
      %v2442 = vmax.f32 %v2004, 0.0
      %v2443 = vmax.f32 %v2045, 0.0
      %v2444 = vmax.f32 %v2047, 0.0
      %v2445 = vmax.f32 %v2088, 0.0
      %v2446 = vmax.f32 %v2090, 0.0
      %v2447 = vmax.f32 %v2131, 0.0
      %v2448 = vmax.f32 %v2133, 0.0
      %v2449 = vmax.f32 %v2174, 0.0
      %v2450 = vmax.f32 %v2176, 0.0
      %v2451 = vmax.f32 %v2217, 0.0
      %v2452 = vmax.f32 %v2219, 0.0
      %v2453 = vmax.f32 %v2260, 0.0
      %v2454 = vmax.f32 %v2262, 0.0
      %v2455 = vmax.f32 %v2303, 0.0
      %v2456 = vmax.f32 %v2305, 0.0
      %v2457 = vmax.f32 %v2346, 0.0
      %v2458 = vmax.f32 %v2348, 0.0
      %v2459 = vmax.f32 %v2389, 0.0
      %v2460 = vmax.f32 %v2391, 0.0
      %v2461 = vmax.f32 %v1060, 0.0
      %v2462 = vmax.f32 %v1062, 0.0
      %v2463 = vmax.f32 %v1103, 0.0
      %v2464 = vmax.f32 %v1105, 0.0
      %v2465 = vmax.f32 %v1146, 0.0
      %v2466 = vmax.f32 %v1148, 0.0
      %v2467 = vmax.f32 %v1189, 0.0
      %v2468 = vmax.f32 %v1191, 0.0
      %v2469 = vmax.f32 %v1232, 0.0
      %v2470 = vmax.f32 %v1234, 0.0
      %v2471 = vmax.f32 %v1275, 0.0
      %v2472 = vmax.f32 %v1277, 0.0
      %v2473 = vmax.f32 %v1318, 0.0
      %v2474 = vmax.f32 %v1320, 0.0
      %v2475 = vmax.f32 %v1361, 0.0
      %v2476 = vmax.f32 %v1363, 0.0
      %v2477 = vmax.f32 %v1404, 0.0
      %v2478 = vmax.f32 %v1406, 0.0
      %v2479 = vmax.f32 %v1447, 0.0
      %v2480 = vmax.f32 %v1449, 0.0
      %v2481 = vmax.f32 %v1490, 0.0
      %v2482 = vmax.f32 %v1492, 0.0
      %v2483 = vmax.f32 %v1533, 0.0
      %v2484 = vmax.f32 %v1535, 0.0
      %v2485 = vmax.f32 %v1576, 0.0
      %v2486 = vmax.f32 %v1578, 0.0
      %v2487 = vmax.f32 %v1619, 0.0
      %v2488 = vmax.f32 %v1621, 0.0
      %v2489 = vmax.f32 %v1662, 0.0
      %v2490 = vmax.f32 %v1664, 0.0
      %v2491 = vmax.f32 %v1705, 0.0
      %v2492 = vmax.f32 %v1707, 0.0
      %v2493 = vmax.f32 %v1748, 0.0
      %v2494 = vmax.f32 %v1750, 0.0
      %v2495 = vmax.f32 %v1791, 0.0
      %v2496 = vmax.f32 %v1793, 0.0
      %v2497 = vmax.f32 %v1834, 0.0
      %v2498 = vmax.f32 %v1836, 0.0
      %v2499 = vmax.f32 %v1877, 0.0
      %v2500 = vmax.f32 %v1879, 0.0
      %v2501 = vmax.f32 %v1920, 0.0
      %v2502 = vmax.f32 %v1922, 0.0
      %v2503 = vmax.f32 %v1963, 0.0
      %v2504 = vmax.f32 %v1965, 0.0
      %v2505 = vmax.f32 %v2006, 0.0
      %v2506 = vmax.f32 %v2008, 0.0
      %v2507 = vmax.f32 %v2049, 0.0
      %v2508 = vmax.f32 %v2051, 0.0
      %v2509 = vmax.f32 %v2092, 0.0
      %v2510 = vmax.f32 %v2094, 0.0
      %v2511 = vmax.f32 %v2135, 0.0
      %v2512 = vmax.f32 %v2137, 0.0
      %v2513 = vmax.f32 %v2178, 0.0
      %v2514 = vmax.f32 %v2180, 0.0
      %v2515 = vmax.f32 %v2221, 0.0
      %v2516 = vmax.f32 %v2223, 0.0
      %v2517 = vmax.f32 %v2264, 0.0
      %v2518 = vmax.f32 %v2266, 0.0
      %v2519 = vmax.f32 %v2307, 0.0
      %v2520 = vmax.f32 %v2309, 0.0
      %v2521 = vmax.f32 %v2350, 0.0
      %v2522 = vmax.f32 %v2352, 0.0
      %v2523 = vmax.f32 %v2393, 0.0
      %v2524 = vmax.f32 %v2395, 0.0
      %v2525 = vpack.c.bf16 %v2461, %v2397
      %v2526 = vpack.c.bf16 %v2462, %v2398
      %v2527 = vpack.c.bf16 %v2463, %v2399
      %v2528 = vpack.c.bf16 %v2464, %v2400
      %v2529 = vpack.c.bf16 %v2465, %v2401
      %v2530 = vpack.c.bf16 %v2466, %v2402
      %v2531 = vpack.c.bf16 %v2467, %v2403
      %v2532 = vpack.c.bf16 %v2468, %v2404
      %v2533 = vpack.c.bf16 %v2469, %v2405
      %v2534 = vpack.c.bf16 %v2470, %v2406
      %v2535 = vpack.c.bf16 %v2471, %v2407
      %v2536 = vpack.c.bf16 %v2472, %v2408
      %v2537 = vpack.c.bf16 %v2473, %v2409
      %v2538 = vpack.c.bf16 %v2474, %v2410
      %v2539 = vpack.c.bf16 %v2475, %v2411
      %v2540 = vpack.c.bf16 %v2476, %v2412
      %v2541 = vpack.c.bf16 %v2477, %v2413
      %v2542 = vpack.c.bf16 %v2478, %v2414
      %v2543 = vpack.c.bf16 %v2479, %v2415
      %v2544 = vpack.c.bf16 %v2480, %v2416
      %v2545 = vpack.c.bf16 %v2481, %v2417
      %v2546 = vpack.c.bf16 %v2482, %v2418
      %v2547 = vpack.c.bf16 %v2483, %v2419
      %v2548 = vpack.c.bf16 %v2484, %v2420
      %v2549 = vpack.c.bf16 %v2485, %v2421
      %v2550 = vpack.c.bf16 %v2486, %v2422
      %v2551 = vpack.c.bf16 %v2487, %v2423
      %v2552 = vpack.c.bf16 %v2488, %v2424
      %v2553 = vpack.c.bf16 %v2489, %v2425
      %v2554 = vpack.c.bf16 %v2490, %v2426
      %v2555 = vpack.c.bf16 %v2491, %v2427
      %v2556 = vpack.c.bf16 %v2492, %v2428
      %v2557 = vpack.c.bf16 %v2493, %v2429
      %v2558 = vpack.c.bf16 %v2494, %v2430
      %v2559 = vpack.c.bf16 %v2495, %v2431
      %v2560 = vpack.c.bf16 %v2496, %v2432
      %v2561 = vpack.c.bf16 %v2497, %v2433
      %v2562 = vpack.c.bf16 %v2498, %v2434
      %v2563 = vpack.c.bf16 %v2499, %v2435
      %v2564 = vpack.c.bf16 %v2500, %v2436
      %v2565 = vpack.c.bf16 %v2501, %v2437
      %v2566 = vpack.c.bf16 %v2502, %v2438
      %v2567 = vpack.c.bf16 %v2503, %v2439
      %v2568 = vpack.c.bf16 %v2504, %v2440
      %v2569 = vpack.c.bf16 %v2505, %v2441
      %v2570 = vpack.c.bf16 %v2506, %v2442
      %v2571 = vpack.c.bf16 %v2507, %v2443
      %v2572 = vpack.c.bf16 %v2508, %v2444
      %v2573 = vpack.c.bf16 %v2509, %v2445
      %v2574 = vpack.c.bf16 %v2510, %v2446
      %v2575 = vpack.c.bf16 %v2511, %v2447
      %v2576 = vpack.c.bf16 %v2512, %v2448
      %v2577 = vpack.c.bf16 %v2513, %v2449
      %v2578 = vpack.c.bf16 %v2514, %v2450
      %v2579 = vpack.c.bf16 %v2515, %v2451
      %v2580 = vpack.c.bf16 %v2516, %v2452
      %v2581 = vpack.c.bf16 %v2517, %v2453
      %v2582 = vpack.c.bf16 %v2518, %v2454
      %v2583 = vpack.c.bf16 %v2519, %v2455
      %v2584 = vpack.c.bf16 %v2520, %v2456
      %v2585 = vpack.c.bf16 %v2521, %v2457
      %v2586 = vpack.c.bf16 %v2522, %v2458
      %v2587 = vpack.c.bf16 %v2523, %v2459
      %v2588 = vpack.c.bf16 %v2524, %v2460
      %v2589 = vld [vmem:[%s3] sm:$0xf]
      %v2590 = vld [vmem:[%s3 + $0x4] sm:$0xf]
      %v2591 = vld [vmem:[%s3 + $0x8] sm:$0xf]
      %v2592 = vld [vmem:[%s3 + $0xc] sm:$0xf]
      %v2597 = vunpack.c.l.b16 %v2589
      %v2598 = vunpack.c.l.b16 %v2590
      %v2599 = vunpack.c.l.b16 %v2591
      %v2600 = vunpack.c.l.b16 %v2592
      %v2601 = vpack.c.b16 %v2598, %v2597
      %v2602 = vpack.c.b16 %v2600, %v2599
      %vm2603 = vcmask 130048
      %v2605 = vsel %vm2603, %v2601, 0
      %v2608 = vsel %vm2603, %v2602, 0
      %2610 = vmatprep.subr.bf16.mxu0 %v2526
      %2611 = vmatpush1.bf16.msra.mxu0 %v2525
      %2612 = vmatprep.subr.bf16.mxu0 0
      %2613 = vmatpush1.bf16.msra.mxu0 0
      %2614 = vmatprep.subr.bf16.mxu0 0
      %2615 = vmatpush1.bf16.msra.mxu0 0
      %2616 = vmatprep.subr.bf16.mxu0 0
      %2617 = vmatpush1.bf16.msra.mxu0 0
      %2618 = vmatprep.subr.bf16.mxu0 0
      %2619 = vmatpush1.bf16.msra.mxu0 0
      %2620 = vmatprep.subr.bf16.mxu0 0
      %2621 = vmatpush1.bf16.msra.mxu0 0
      %2622 = vmatprep.subr.bf16.mxu0 0
      %2623 = vmatpush1.bf16.msra.mxu0 0
      %2624 = vmatprep.subr.bf16.mxu0 0
      %2625 = vmatpush1.bf16.msra.mxu0 0
      %2626 = vmatprep.subr.bf16.mxu0 0
      %2627 = vmatpush1.bf16.msra.mxu0 0
      %2628 = vmatprep.subr.bf16.mxu0 0
      %2629 = vmatpush1.bf16.msra.mxu0 0
      %2630 = vmatprep.subr.bf16.mxu0 0
      %2631 = vmatpush1.bf16.msra.mxu0 0
      %2632 = vmatprep.subr.bf16.mxu0 0
      %2633 = vmatpush1.bf16.msra.mxu0 0
      %2634 = vmatprep.subr.bf16.mxu0 0
      %2635 = vmatpush1.bf16.msra.mxu0 0
      %2636 = vmatprep.subr.bf16.mxu0 0
      %2637 = vmatpush1.bf16.msra.mxu0 0
      %2638 = vmatprep.subr.bf16.mxu0 0
      %2639 = vmatpush1.bf16.msra.mxu0 0
      %2640 = vmatprep.subr.bf16.mxu0 0
      %2641 = vmatpush1.bf16.msra.mxu0 0
      %2642 = vmatprep.mubr.bf16.mxu0 0
      %2643 = vmatmul.mubr.bf16.gmra.mrb[0].mxu0 %v2605
      %v2644 = vpop.f32.mrb[0].mxu0
      %v2645 = vadd.f32 0.0, %v2644
      %v2646 = vpop.f32.mrb[0].mxu0
      %v2647 = vadd.f32 0.0, %v2646
      %v2648 = vpop.f32.mrb[0].mxu0
      %v2649 = vadd.f32 0.0, %v2648
      %v2650 = vpop.f32.mrb[0].mxu0
      %v2651 = vadd.f32 0.0, %v2650
      %2652 = vmatprep.mubr.bf16.mxu0 0
      %2653 = vmatmul.mubr.bf16.gmra.mrb[0].mxu0 %v2608
      %v2654 = vpop.f32.mrb[0].mxu0
      %v2655 = vadd.f32 0.0, %v2654
      %v2656 = vpop.f32.mrb[0].mxu0
      %v2657 = vadd.f32 0.0, %v2656
      %v2658 = vpop.f32.mrb[0].mxu0
      %v2659 = vadd.f32 0.0, %v2658
      %v2660 = vpop.f32.mrb[0].mxu0
      %v2661 = vadd.f32 0.0, %v2660
      %2662 = vdwg.mxu0
      %2663 = vmatprep.subr.bf16.mxu0 %v2528
      %2664 = vmatpush1.bf16.msra.mxu0 %v2527
      %2665 = vmatprep.subr.bf16.mxu0 0
      %2666 = vmatpush1.bf16.msra.mxu0 0
      %2667 = vmatprep.subr.bf16.mxu0 0
      %2668 = vmatpush1.bf16.msra.mxu0 0
      %2669 = vmatprep.subr.bf16.mxu0 0
      %2670 = vmatpush1.bf16.msra.mxu0 0
      %2671 = vmatprep.subr.bf16.mxu0 0
      %2672 = vmatpush1.bf16.msra.mxu0 0
      %2673 = vmatprep.subr.bf16.mxu0 0
      %2674 = vmatpush1.bf16.msra.mxu0 0
      %2675 = vmatprep.subr.bf16.mxu0 0
      %2676 = vmatpush1.bf16.msra.mxu0 0
      %2677 = vmatprep.subr.bf16.mxu0 0
      %2678 = vmatpush1.bf16.msra.mxu0 0
      %2679 = vmatprep.subr.bf16.mxu0 0
      %2680 = vmatpush1.bf16.msra.mxu0 0
      %2681 = vmatprep.subr.bf16.mxu0 0
      %2682 = vmatpush1.bf16.msra.mxu0 0
      %2683 = vmatprep.subr.bf16.mxu0 0
      %2684 = vmatpush1.bf16.msra.mxu0 0
      %2685 = vmatprep.subr.bf16.mxu0 0
      %2686 = vmatpush1.bf16.msra.mxu0 0
      %2687 = vmatprep.subr.bf16.mxu0 0
      %2688 = vmatpush1.bf16.msra.mxu0 0
      %2689 = vmatprep.subr.bf16.mxu0 0
      %2690 = vmatpush1.bf16.msra.mxu0 0
      %2691 = vmatprep.subr.bf16.mxu0 0
      %2692 = vmatpush1.bf16.msra.mxu0 0
      %2693 = vmatprep.subr.bf16.mxu0 0
      %2694 = vmatpush1.bf16.msra.mxu0 0
      %2695 = vmatprep.mubr.bf16.mxu0 0
      %2696 = vmatmul.mubr.bf16.gmra.mrb[0].mxu0 %v2605
      %v2697 = vpop.f32.mrb[0].mxu0
      %v2698 = vadd.f32 0.0, %v2697
      %v2699 = vpop.f32.mrb[0].mxu0
      %v2700 = vadd.f32 0.0, %v2699
      %v2701 = vpop.f32.mrb[0].mxu0
      %v2702 = vadd.f32 0.0, %v2701
      %v2703 = vpop.f32.mrb[0].mxu0
      %v2704 = vadd.f32 0.0, %v2703
      %2705 = vmatprep.mubr.bf16.mxu0 0
      %2706 = vmatmul.mubr.bf16.gmra.mrb[0].mxu0 %v2608
      %v2707 = vpop.f32.mrb[0].mxu0
      %v2708 = vadd.f32 0.0, %v2707
      %v2709 = vpop.f32.mrb[0].mxu0
      %v2710 = vadd.f32 0.0, %v2709
      %v2711 = vpop.f32.mrb[0].mxu0
      %v2712 = vadd.f32 0.0, %v2711
      %v2713 = vpop.f32.mrb[0].mxu0
      %v2714 = vadd.f32 0.0, %v2713
      %2715 = vdwg.mxu0
      %2716 = vmatprep.subr.bf16.mxu0 %v2530
      %2717 = vmatpush1.bf16.msra.mxu0 %v2529
      %2718 = vmatprep.subr.bf16.mxu0 0
      %2719 = vmatpush1.bf16.msra.mxu0 0
      %2720 = vmatprep.subr.bf16.mxu0 0
      %2721 = vmatpush1.bf16.msra.mxu0 0
      %2722 = vmatprep.subr.bf16.mxu0 0
      %2723 = vmatpush1.bf16.msra.mxu0 0
      %2724 = vmatprep.subr.bf16.mxu0 0
      %2725 = vmatpush1.bf16.msra.mxu0 0
      %2726 = vmatprep.subr.bf16.mxu0 0
      %2727 = vmatpush1.bf16.msra.mxu0 0
      %2728 = vmatprep.subr.bf16.mxu0 0
      %2729 = vmatpush1.bf16.msra.mxu0 0
      %2730 = vmatprep.subr.bf16.mxu0 0
      %2731 = vmatpush1.bf16.msra.mxu0 0
      %2732 = vmatprep.subr.bf16.mxu0 0
      %2733 = vmatpush1.bf16.msra.mxu0 0
      %2734 = vmatprep.subr.bf16.mxu0 0
      %2735 = vmatpush1.bf16.msra.mxu0 0
      %2736 = vmatprep.subr.bf16.mxu0 0
      %2737 = vmatpush1.bf16.msra.mxu0 0
      %2738 = vmatprep.subr.bf16.mxu0 0
      %2739 = vmatpush1.bf16.msra.mxu0 0
      %2740 = vmatprep.subr.bf16.mxu0 0
      %2741 = vmatpush1.bf16.msra.mxu0 0
      %2742 = vmatprep.subr.bf16.mxu0 0
      %2743 = vmatpush1.bf16.msra.mxu0 0
      %2744 = vmatprep.subr.bf16.mxu0 0
      %2745 = vmatpush1.bf16.msra.mxu0 0
      %2746 = vmatprep.subr.bf16.mxu0 0
      %2747 = vmatpush1.bf16.msra.mxu0 0
      %2748 = vmatprep.mubr.bf16.mxu0 0
      %2749 = vmatmul.mubr.bf16.gmra.mrb[0].mxu0 %v2605
      %v2750 = vpop.f32.mrb[0].mxu0
      %v2751 = vadd.f32 0.0, %v2750
      %v2752 = vpop.f32.mrb[0].mxu0
      %v2753 = vadd.f32 0.0, %v2752
      %v2754 = vpop.f32.mrb[0].mxu0
      %v2755 = vadd.f32 0.0, %v2754
      %v2756 = vpop.f32.mrb[0].mxu0
      %v2757 = vadd.f32 0.0, %v2756
      %2758 = vmatprep.mubr.bf16.mxu0 0
      %2759 = vmatmul.mubr.bf16.gmra.mrb[0].mxu0 %v2608
      %v2760 = vpop.f32.mrb[0].mxu0
      %v2761 = vadd.f32 0.0, %v2760
      %v2762 = vpop.f32.mrb[0].mxu0
      %v2763 = vadd.f32 0.0, %v2762
      %v2764 = vpop.f32.mrb[0].mxu0
      %v2765 = vadd.f32 0.0, %v2764
      %v2766 = vpop.f32.mrb[0].mxu0
      %v2767 = vadd.f32 0.0, %v2766
      %2768 = vdwg.mxu0
      %2769 = vmatprep.subr.bf16.mxu0 %v2532
      %2770 = vmatpush1.bf16.msra.mxu0 %v2531
      %2771 = vmatprep.subr.bf16.mxu0 0
      %2772 = vmatpush1.bf16.msra.mxu0 0
      %2773 = vmatprep.subr.bf16.mxu0 0
      %2774 = vmatpush1.bf16.msra.mxu0 0
      %2775 = vmatprep.subr.bf16.mxu0 0
      %2776 = vmatpush1.bf16.msra.mxu0 0
      %2777 = vmatprep.subr.bf16.mxu0 0
      %2778 = vmatpush1.bf16.msra.mxu0 0
      %2779 = vmatprep.subr.bf16.mxu0 0
      %2780 = vmatpush1.bf16.msra.mxu0 0
      %2781 = vmatprep.subr.bf16.mxu0 0
      %2782 = vmatpush1.bf16.msra.mxu0 0
      %2783 = vmatprep.subr.bf16.mxu0 0
      %2784 = vmatpush1.bf16.msra.mxu0 0
      %2785 = vmatprep.subr.bf16.mxu0 0
      %2786 = vmatpush1.bf16.msra.mxu0 0
      %2787 = vmatprep.subr.bf16.mxu0 0
      %2788 = vmatpush1.bf16.msra.mxu0 0
      %2789 = vmatprep.subr.bf16.mxu0 0
      %2790 = vmatpush1.bf16.msra.mxu0 0
      %2791 = vmatprep.subr.bf16.mxu0 0
      %2792 = vmatpush1.bf16.msra.mxu0 0
      %2793 = vmatprep.subr.bf16.mxu0 0
      %2794 = vmatpush1.bf16.msra.mxu0 0
      %2795 = vmatprep.subr.bf16.mxu0 0
      %2796 = vmatpush1.bf16.msra.mxu0 0
      %2797 = vmatprep.subr.bf16.mxu0 0
      %2798 = vmatpush1.bf16.msra.mxu0 0
      %2799 = vmatprep.subr.bf16.mxu0 0
      %2800 = vmatpush1.bf16.msra.mxu0 0
      %2801 = vmatprep.mubr.bf16.mxu0 0
      %2802 = vmatmul.mubr.bf16.gmra.mrb[0].mxu0 %v2605
      %v2803 = vpop.f32.mrb[0].mxu0
      %v2804 = vadd.f32 0.0, %v2803
      %v2805 = vpop.f32.mrb[0].mxu0
      %v2806 = vadd.f32 0.0, %v2805
      %v2807 = vpop.f32.mrb[0].mxu0
      %v2808 = vadd.f32 0.0, %v2807
      %v2809 = vpop.f32.mrb[0].mxu0
      %v2810 = vadd.f32 0.0, %v2809
      %2811 = vmatprep.mubr.bf16.mxu0 0
      %2812 = vmatmul.mubr.bf16.gmra.mrb[0].mxu0 %v2608
      %v2813 = vpop.f32.mrb[0].mxu0
      %v2814 = vadd.f32 0.0, %v2813
      %v2815 = vpop.f32.mrb[0].mxu0
      %v2816 = vadd.f32 0.0, %v2815
      %v2817 = vpop.f32.mrb[0].mxu0
      %v2818 = vadd.f32 0.0, %v2817
      %v2819 = vpop.f32.mrb[0].mxu0
      %v2820 = vadd.f32 0.0, %v2819
      %2821 = vdwg.mxu0
      %2822 = vmatprep.subr.bf16.mxu0 %v2534
      %2823 = vmatpush1.bf16.msra.mxu0 %v2533
      %2824 = vmatprep.subr.bf16.mxu0 0
      %2825 = vmatpush1.bf16.msra.mxu0 0
      %2826 = vmatprep.subr.bf16.mxu0 0
      %2827 = vmatpush1.bf16.msra.mxu0 0
      %2828 = vmatprep.subr.bf16.mxu0 0
      %2829 = vmatpush1.bf16.msra.mxu0 0
      %2830 = vmatprep.subr.bf16.mxu0 0
      %2831 = vmatpush1.bf16.msra.mxu0 0
      %2832 = vmatprep.subr.bf16.mxu0 0
      %2833 = vmatpush1.bf16.msra.mxu0 0
      %2834 = vmatprep.subr.bf16.mxu0 0
      %2835 = vmatpush1.bf16.msra.mxu0 0
      %2836 = vmatprep.subr.bf16.mxu0 0
      %2837 = vmatpush1.bf16.msra.mxu0 0
      %2838 = vmatprep.subr.bf16.mxu0 0
      %2839 = vmatpush1.bf16.msra.mxu0 0
      %2840 = vmatprep.subr.bf16.mxu0 0
      %2841 = vmatpush1.bf16.msra.mxu0 0
      %2842 = vmatprep.subr.bf16.mxu0 0
      %2843 = vmatpush1.bf16.msra.mxu0 0
      %2844 = vmatprep.subr.bf16.mxu0 0
      %2845 = vmatpush1.bf16.msra.mxu0 0
      %2846 = vmatprep.subr.bf16.mxu0 0
      %2847 = vmatpush1.bf16.msra.mxu0 0
      %2848 = vmatprep.subr.bf16.mxu0 0
      %2849 = vmatpush1.bf16.msra.mxu0 0
      %2850 = vmatprep.subr.bf16.mxu0 0
      %2851 = vmatpush1.bf16.msra.mxu0 0
      %2852 = vmatprep.subr.bf16.mxu0 0
      %2853 = vmatpush1.bf16.msra.mxu0 0
      %2854 = vmatprep.mubr.bf16.mxu0 0
      %2855 = vmatmul.mubr.bf16.gmra.mrb[0].mxu0 %v2605
      %v2856 = vpop.f32.mrb[0].mxu0
      %v2857 = vadd.f32 0.0, %v2856
      %v2858 = vpop.f32.mrb[0].mxu0
      %v2859 = vadd.f32 0.0, %v2858
      %v2860 = vpop.f32.mrb[0].mxu0
      %v2861 = vadd.f32 0.0, %v2860
      %v2862 = vpop.f32.mrb[0].mxu0
      %v2863 = vadd.f32 0.0, %v2862
      %2864 = vmatprep.mubr.bf16.mxu0 0
      %2865 = vmatmul.mubr.bf16.gmra.mrb[0].mxu0 %v2608
      %v2866 = vpop.f32.mrb[0].mxu0
      %v2867 = vadd.f32 0.0, %v2866
      %v2868 = vpop.f32.mrb[0].mxu0
      %v2869 = vadd.f32 0.0, %v2868
      %v2870 = vpop.f32.mrb[0].mxu0
      %v2871 = vadd.f32 0.0, %v2870
      %v2872 = vpop.f32.mrb[0].mxu0
      %v2873 = vadd.f32 0.0, %v2872
      %2874 = vdwg.mxu0
      %2875 = vmatprep.subr.bf16.mxu0 %v2536
      %2876 = vmatpush1.bf16.msra.mxu0 %v2535
      %2877 = vmatprep.subr.bf16.mxu0 0
      %2878 = vmatpush1.bf16.msra.mxu0 0
      %2879 = vmatprep.subr.bf16.mxu0 0
      %2880 = vmatpush1.bf16.msra.mxu0 0
      %2881 = vmatprep.subr.bf16.mxu0 0
      %2882 = vmatpush1.bf16.msra.mxu0 0
      %2883 = vmatprep.subr.bf16.mxu0 0
      %2884 = vmatpush1.bf16.msra.mxu0 0
      %2885 = vmatprep.subr.bf16.mxu0 0
      %2886 = vmatpush1.bf16.msra.mxu0 0
      %2887 = vmatprep.subr.bf16.mxu0 0
      %2888 = vmatpush1.bf16.msra.mxu0 0
      %2889 = vmatprep.subr.bf16.mxu0 0
      %2890 = vmatpush1.bf16.msra.mxu0 0
      %2891 = vmatprep.subr.bf16.mxu0 0
      %2892 = vmatpush1.bf16.msra.mxu0 0
      %2893 = vmatprep.subr.bf16.mxu0 0
      %2894 = vmatpush1.bf16.msra.mxu0 0
      %2895 = vmatprep.subr.bf16.mxu0 0
      %2896 = vmatpush1.bf16.msra.mxu0 0
      %2897 = vmatprep.subr.bf16.mxu0 0
      %2898 = vmatpush1.bf16.msra.mxu0 0
      %2899 = vmatprep.subr.bf16.mxu0 0
      %2900 = vmatpush1.bf16.msra.mxu0 0
      %2901 = vmatprep.subr.bf16.mxu0 0
      %2902 = vmatpush1.bf16.msra.mxu0 0
      %2903 = vmatprep.subr.bf16.mxu0 0
      %2904 = vmatpush1.bf16.msra.mxu0 0
      %2905 = vmatprep.subr.bf16.mxu0 0
      %2906 = vmatpush1.bf16.msra.mxu0 0
      %2907 = vmatprep.mubr.bf16.mxu0 0
      %2908 = vmatmul.mubr.bf16.gmra.mrb[0].mxu0 %v2605
      %v2909 = vpop.f32.mrb[0].mxu0
      %v2910 = vadd.f32 0.0, %v2909
      %v2911 = vpop.f32.mrb[0].mxu0
      %v2912 = vadd.f32 0.0, %v2911
      %v2913 = vpop.f32.mrb[0].mxu0
      %v2914 = vadd.f32 0.0, %v2913
      %v2915 = vpop.f32.mrb[0].mxu0
      %v2916 = vadd.f32 0.0, %v2915
      %2917 = vmatprep.mubr.bf16.mxu0 0
      %2918 = vmatmul.mubr.bf16.gmra.mrb[0].mxu0 %v2608
      %v2919 = vpop.f32.mrb[0].mxu0
      %v2920 = vadd.f32 0.0, %v2919
      %v2921 = vpop.f32.mrb[0].mxu0
      %v2922 = vadd.f32 0.0, %v2921
      %v2923 = vpop.f32.mrb[0].mxu0
      %v2924 = vadd.f32 0.0, %v2923
      %v2925 = vpop.f32.mrb[0].mxu0
      %v2926 = vadd.f32 0.0, %v2925
      %2927 = vdwg.mxu0
      %2928 = vmatprep.subr.bf16.mxu0 %v2538
      %2929 = vmatpush1.bf16.msra.mxu0 %v2537
      %2930 = vmatprep.subr.bf16.mxu0 0
      %2931 = vmatpush1.bf16.msra.mxu0 0
      %2932 = vmatprep.subr.bf16.mxu0 0
      %2933 = vmatpush1.bf16.msra.mxu0 0
      %2934 = vmatprep.subr.bf16.mxu0 0
      %2935 = vmatpush1.bf16.msra.mxu0 0
      %2936 = vmatprep.subr.bf16.mxu0 0
      %2937 = vmatpush1.bf16.msra.mxu0 0
      %2938 = vmatprep.subr.bf16.mxu0 0
      %2939 = vmatpush1.bf16.msra.mxu0 0
      %2940 = vmatprep.subr.bf16.mxu0 0
      %2941 = vmatpush1.bf16.msra.mxu0 0
      %2942 = vmatprep.subr.bf16.mxu0 0
      %2943 = vmatpush1.bf16.msra.mxu0 0
      %2944 = vmatprep.subr.bf16.mxu0 0
      %2945 = vmatpush1.bf16.msra.mxu0 0
      %2946 = vmatprep.subr.bf16.mxu0 0
      %2947 = vmatpush1.bf16.msra.mxu0 0
      %2948 = vmatprep.subr.bf16.mxu0 0
      %2949 = vmatpush1.bf16.msra.mxu0 0
      %2950 = vmatprep.subr.bf16.mxu0 0
      %2951 = vmatpush1.bf16.msra.mxu0 0
      %2952 = vmatprep.subr.bf16.mxu0 0
      %2953 = vmatpush1.bf16.msra.mxu0 0
      %2954 = vmatprep.subr.bf16.mxu0 0
      %2955 = vmatpush1.bf16.msra.mxu0 0
      %2956 = vmatprep.subr.bf16.mxu0 0
      %2957 = vmatpush1.bf16.msra.mxu0 0
      %2958 = vmatprep.subr.bf16.mxu0 0
      %2959 = vmatpush1.bf16.msra.mxu0 0
      %2960 = vmatprep.mubr.bf16.mxu0 0
      %2961 = vmatmul.mubr.bf16.gmra.mrb[0].mxu0 %v2605
      %v2962 = vpop.f32.mrb[0].mxu0
      %v2963 = vadd.f32 0.0, %v2962
      %v2964 = vpop.f32.mrb[0].mxu0
      %v2965 = vadd.f32 0.0, %v2964
      %v2966 = vpop.f32.mrb[0].mxu0
      %v2967 = vadd.f32 0.0, %v2966
      %v2968 = vpop.f32.mrb[0].mxu0
      %v2969 = vadd.f32 0.0, %v2968
      %2970 = vmatprep.mubr.bf16.mxu0 0
      %2971 = vmatmul.mubr.bf16.gmra.mrb[0].mxu0 %v2608
      %v2972 = vpop.f32.mrb[0].mxu0
      %v2973 = vadd.f32 0.0, %v2972
      %v2974 = vpop.f32.mrb[0].mxu0
      %v2975 = vadd.f32 0.0, %v2974
      %v2976 = vpop.f32.mrb[0].mxu0
      %v2977 = vadd.f32 0.0, %v2976
      %v2978 = vpop.f32.mrb[0].mxu0
      %v2979 = vadd.f32 0.0, %v2978
      %2980 = vdwg.mxu0
      %2981 = vmatprep.subr.bf16.mxu0 %v2540
      %2982 = vmatpush1.bf16.msra.mxu0 %v2539
      %2983 = vmatprep.subr.bf16.mxu0 0
      %2984 = vmatpush1.bf16.msra.mxu0 0
      %2985 = vmatprep.subr.bf16.mxu0 0
      %2986 = vmatpush1.bf16.msra.mxu0 0
      %2987 = vmatprep.subr.bf16.mxu0 0
      %2988 = vmatpush1.bf16.msra.mxu0 0
      %2989 = vmatprep.subr.bf16.mxu0 0
      %2990 = vmatpush1.bf16.msra.mxu0 0
      %2991 = vmatprep.subr.bf16.mxu0 0
      %2992 = vmatpush1.bf16.msra.mxu0 0
      %2993 = vmatprep.subr.bf16.mxu0 0
      %2994 = vmatpush1.bf16.msra.mxu0 0
      %2995 = vmatprep.subr.bf16.mxu0 0
      %2996 = vmatpush1.bf16.msra.mxu0 0
      %2997 = vmatprep.subr.bf16.mxu0 0
      %2998 = vmatpush1.bf16.msra.mxu0 0
      %2999 = vmatprep.subr.bf16.mxu0 0
      %3000 = vmatpush1.bf16.msra.mxu0 0
      %3001 = vmatprep.subr.bf16.mxu0 0
      %3002 = vmatpush1.bf16.msra.mxu0 0
      %3003 = vmatprep.subr.bf16.mxu0 0
      %3004 = vmatpush1.bf16.msra.mxu0 0
      %3005 = vmatprep.subr.bf16.mxu0 0
      %3006 = vmatpush1.bf16.msra.mxu0 0
      %3007 = vmatprep.subr.bf16.mxu0 0
      %3008 = vmatpush1.bf16.msra.mxu0 0
      %3009 = vmatprep.subr.bf16.mxu0 0
      %3010 = vmatpush1.bf16.msra.mxu0 0
      %3011 = vmatprep.subr.bf16.mxu0 0
      %3012 = vmatpush1.bf16.msra.mxu0 0
      %3013 = vmatprep.mubr.bf16.mxu0 0
      %3014 = vmatmul.mubr.bf16.gmra.mrb[0].mxu0 %v2605
      %v3015 = vpop.f32.mrb[0].mxu0
      %v3016 = vadd.f32 0.0, %v3015
      %v3017 = vpop.f32.mrb[0].mxu0
      %v3018 = vadd.f32 0.0, %v3017
      %v3019 = vpop.f32.mrb[0].mxu0
      %v3020 = vadd.f32 0.0, %v3019
      %v3021 = vpop.f32.mrb[0].mxu0
      %v3022 = vadd.f32 0.0, %v3021
      %3023 = vmatprep.mubr.bf16.mxu0 0
      %3024 = vmatmul.mubr.bf16.gmra.mrb[0].mxu0 %v2608
      %v3025 = vpop.f32.mrb[0].mxu0
      %v3026 = vadd.f32 0.0, %v3025
      %v3027 = vpop.f32.mrb[0].mxu0
      %v3028 = vadd.f32 0.0, %v3027
      %v3029 = vpop.f32.mrb[0].mxu0
      %v3030 = vadd.f32 0.0, %v3029
      %v3031 = vpop.f32.mrb[0].mxu0
      %v3032 = vadd.f32 0.0, %v3031
      %3033 = vdwg.mxu0
      %3034 = vmatprep.subr.bf16.mxu0 %v2542
      %3035 = vmatpush1.bf16.msra.mxu0 %v2541
      %3036 = vmatprep.subr.bf16.mxu0 0
      %3037 = vmatpush1.bf16.msra.mxu0 0
      %3038 = vmatprep.subr.bf16.mxu0 0
      %3039 = vmatpush1.bf16.msra.mxu0 0
      %3040 = vmatprep.subr.bf16.mxu0 0
      %3041 = vmatpush1.bf16.msra.mxu0 0
      %3042 = vmatprep.subr.bf16.mxu0 0
      %3043 = vmatpush1.bf16.msra.mxu0 0
      %3044 = vmatprep.subr.bf16.mxu0 0
      %3045 = vmatpush1.bf16.msra.mxu0 0
      %3046 = vmatprep.subr.bf16.mxu0 0
      %3047 = vmatpush1.bf16.msra.mxu0 0
      %3048 = vmatprep.subr.bf16.mxu0 0
      %3049 = vmatpush1.bf16.msra.mxu0 0
      %3050 = vmatprep.subr.bf16.mxu0 0
      %3051 = vmatpush1.bf16.msra.mxu0 0
      %3052 = vmatprep.subr.bf16.mxu0 0
      %3053 = vmatpush1.bf16.msra.mxu0 0
      %3054 = vmatprep.subr.bf16.mxu0 0
      %3055 = vmatpush1.bf16.msra.mxu0 0
      %3056 = vmatprep.subr.bf16.mxu0 0
      %3057 = vmatpush1.bf16.msra.mxu0 0
      %3058 = vmatprep.subr.bf16.mxu0 0
      %3059 = vmatpush1.bf16.msra.mxu0 0
      %3060 = vmatprep.subr.bf16.mxu0 0
      %3061 = vmatpush1.bf16.msra.mxu0 0
      %3062 = vmatprep.subr.bf16.mxu0 0
      %3063 = vmatpush1.bf16.msra.mxu0 0
      %3064 = vmatprep.subr.bf16.mxu0 0
      %3065 = vmatpush1.bf16.msra.mxu0 0
      %3066 = vmatprep.mubr.bf16.mxu0 0
      %3067 = vmatmul.mubr.bf16.gmra.mrb[0].mxu0 %v2605
      %v3068 = vpop.f32.mrb[0].mxu0
      %v3069 = vadd.f32 0.0, %v3068
      %v3070 = vpop.f32.mrb[0].mxu0
      %v3071 = vadd.f32 0.0, %v3070
      %v3072 = vpop.f32.mrb[0].mxu0
      %v3073 = vadd.f32 0.0, %v3072
      %v3074 = vpop.f32.mrb[0].mxu0
      %v3075 = vadd.f32 0.0, %v3074
      %3076 = vmatprep.mubr.bf16.mxu0 0
      %3077 = vmatmul.mubr.bf16.gmra.mrb[0].mxu0 %v2608
      %v3078 = vpop.f32.mrb[0].mxu0
      %v3079 = vadd.f32 0.0, %v3078
      %v3080 = vpop.f32.mrb[0].mxu0
      %v3081 = vadd.f32 0.0, %v3080
      %v3082 = vpop.f32.mrb[0].mxu0
      %v3083 = vadd.f32 0.0, %v3082
      %v3084 = vpop.f32.mrb[0].mxu0
      %v3085 = vadd.f32 0.0, %v3084
      %3086 = vdwg.mxu0
      %3087 = vmatprep.subr.bf16.mxu0 %v2544
      %3088 = vmatpush1.bf16.msra.mxu0 %v2543
      %3089 = vmatprep.subr.bf16.mxu0 0
      %3090 = vmatpush1.bf16.msra.mxu0 0
      %3091 = vmatprep.subr.bf16.mxu0 0
      %3092 = vmatpush1.bf16.msra.mxu0 0
      %3093 = vmatprep.subr.bf16.mxu0 0
      %3094 = vmatpush1.bf16.msra.mxu0 0
      %3095 = vmatprep.subr.bf16.mxu0 0
      %3096 = vmatpush1.bf16.msra.mxu0 0
      %3097 = vmatprep.subr.bf16.mxu0 0
      %3098 = vmatpush1.bf16.msra.mxu0 0
      %3099 = vmatprep.subr.bf16.mxu0 0
      %3100 = vmatpush1.bf16.msra.mxu0 0
      %3101 = vmatprep.subr.bf16.mxu0 0
      %3102 = vmatpush1.bf16.msra.mxu0 0
      %3103 = vmatprep.subr.bf16.mxu0 0
      %3104 = vmatpush1.bf16.msra.mxu0 0
      %3105 = vmatprep.subr.bf16.mxu0 0
      %3106 = vmatpush1.bf16.msra.mxu0 0
      %3107 = vmatprep.subr.bf16.mxu0 0
      %3108 = vmatpush1.bf16.msra.mxu0 0
      %3109 = vmatprep.subr.bf16.mxu0 0
      %3110 = vmatpush1.bf16.msra.mxu0 0
      %3111 = vmatprep.subr.bf16.mxu0 0
      %3112 = vmatpush1.bf16.msra.mxu0 0
      %3113 = vmatprep.subr.bf16.mxu0 0
      %3114 = vmatpush1.bf16.msra.mxu0 0
      %3115 = vmatprep.subr.bf16.mxu0 0
      %3116 = vmatpush1.bf16.msra.mxu0 0
      %3117 = vmatprep.subr.bf16.mxu0 0
      %3118 = vmatpush1.bf16.msra.mxu0 0
      %3119 = vmatprep.mubr.bf16.mxu0 0
      %3120 = vmatmul.mubr.bf16.gmra.mrb[0].mxu0 %v2605
      %v3121 = vpop.f32.mrb[0].mxu0
      %v3122 = vadd.f32 0.0, %v3121
      %v3123 = vpop.f32.mrb[0].mxu0
      %v3124 = vadd.f32 0.0, %v3123
      %v3125 = vpop.f32.mrb[0].mxu0
      %v3126 = vadd.f32 0.0, %v3125
      %v3127 = vpop.f32.mrb[0].mxu0
      %v3128 = vadd.f32 0.0, %v3127
      %3129 = vmatprep.mubr.bf16.mxu0 0
      %3130 = vmatmul.mubr.bf16.gmra.mrb[0].mxu0 %v2608
      %v3131 = vpop.f32.mrb[0].mxu0
      %v3132 = vadd.f32 0.0, %v3131
      %v3133 = vpop.f32.mrb[0].mxu0
      %v3134 = vadd.f32 0.0, %v3133
      %v3135 = vpop.f32.mrb[0].mxu0
      %v3136 = vadd.f32 0.0, %v3135
      %v3137 = vpop.f32.mrb[0].mxu0
      %v3138 = vadd.f32 0.0, %v3137
      %3139 = vdwg.mxu0
      %3140 = vmatprep.subr.bf16.mxu0 %v2546
      %3141 = vmatpush1.bf16.msra.mxu0 %v2545
      %3142 = vmatprep.subr.bf16.mxu0 0
      %3143 = vmatpush1.bf16.msra.mxu0 0
      %3144 = vmatprep.subr.bf16.mxu0 0
      %3145 = vmatpush1.bf16.msra.mxu0 0
      %3146 = vmatprep.subr.bf16.mxu0 0
      %3147 = vmatpush1.bf16.msra.mxu0 0
      %3148 = vmatprep.subr.bf16.mxu0 0
      %3149 = vmatpush1.bf16.msra.mxu0 0
      %3150 = vmatprep.subr.bf16.mxu0 0
      %3151 = vmatpush1.bf16.msra.mxu0 0
      %3152 = vmatprep.subr.bf16.mxu0 0
      %3153 = vmatpush1.bf16.msra.mxu0 0
      %3154 = vmatprep.subr.bf16.mxu0 0
      %3155 = vmatpush1.bf16.msra.mxu0 0
      %3156 = vmatprep.subr.bf16.mxu0 0
      %3157 = vmatpush1.bf16.msra.mxu0 0
      %3158 = vmatprep.subr.bf16.mxu0 0
      %3159 = vmatpush1.bf16.msra.mxu0 0
      %3160 = vmatprep.subr.bf16.mxu0 0
      %3161 = vmatpush1.bf16.msra.mxu0 0
      %3162 = vmatprep.subr.bf16.mxu0 0
      %3163 = vmatpush1.bf16.msra.mxu0 0
      %3164 = vmatprep.subr.bf16.mxu0 0
      %3165 = vmatpush1.bf16.msra.mxu0 0
      %3166 = vmatprep.subr.bf16.mxu0 0
      %3167 = vmatpush1.bf16.msra.mxu0 0
      %3168 = vmatprep.subr.bf16.mxu0 0
      %3169 = vmatpush1.bf16.msra.mxu0 0
      %3170 = vmatprep.subr.bf16.mxu0 0
      %3171 = vmatpush1.bf16.msra.mxu0 0
      %3172 = vmatprep.mubr.bf16.mxu0 0
      %3173 = vmatmul.mubr.bf16.gmra.mrb[0].mxu0 %v2605
      %v3174 = vpop.f32.mrb[0].mxu0
      %v3175 = vadd.f32 0.0, %v3174
      %v3176 = vpop.f32.mrb[0].mxu0
      %v3177 = vadd.f32 0.0, %v3176
      %v3178 = vpop.f32.mrb[0].mxu0
      %v3179 = vadd.f32 0.0, %v3178
      %v3180 = vpop.f32.mrb[0].mxu0
      %v3181 = vadd.f32 0.0, %v3180
      %3182 = vmatprep.mubr.bf16.mxu0 0
      %3183 = vmatmul.mubr.bf16.gmra.mrb[0].mxu0 %v2608
      %v3184 = vpop.f32.mrb[0].mxu0
      %v3185 = vadd.f32 0.0, %v3184
      %v3186 = vpop.f32.mrb[0].mxu0
      %v3187 = vadd.f32 0.0, %v3186
      %v3188 = vpop.f32.mrb[0].mxu0
      %v3189 = vadd.f32 0.0, %v3188
      %v3190 = vpop.f32.mrb[0].mxu0
      %v3191 = vadd.f32 0.0, %v3190
      %3192 = vdwg.mxu0
      %3193 = vmatprep.subr.bf16.mxu0 %v2548
      %3194 = vmatpush1.bf16.msra.mxu0 %v2547
      %3195 = vmatprep.subr.bf16.mxu0 0
      %3196 = vmatpush1.bf16.msra.mxu0 0
      %3197 = vmatprep.subr.bf16.mxu0 0
      %3198 = vmatpush1.bf16.msra.mxu0 0
      %3199 = vmatprep.subr.bf16.mxu0 0
      %3200 = vmatpush1.bf16.msra.mxu0 0
      %3201 = vmatprep.subr.bf16.mxu0 0
      %3202 = vmatpush1.bf16.msra.mxu0 0
      %3203 = vmatprep.subr.bf16.mxu0 0
      %3204 = vmatpush1.bf16.msra.mxu0 0
      %3205 = vmatprep.subr.bf16.mxu0 0
      %3206 = vmatpush1.bf16.msra.mxu0 0
      %3207 = vmatprep.subr.bf16.mxu0 0
      %3208 = vmatpush1.bf16.msra.mxu0 0
      %3209 = vmatprep.subr.bf16.mxu0 0
      %3210 = vmatpush1.bf16.msra.mxu0 0
      %3211 = vmatprep.subr.bf16.mxu0 0
      %3212 = vmatpush1.bf16.msra.mxu0 0
      %3213 = vmatprep.subr.bf16.mxu0 0
      %3214 = vmatpush1.bf16.msra.mxu0 0
      %3215 = vmatprep.subr.bf16.mxu0 0
      %3216 = vmatpush1.bf16.msra.mxu0 0
      %3217 = vmatprep.subr.bf16.mxu0 0
      %3218 = vmatpush1.bf16.msra.mxu0 0
      %3219 = vmatprep.subr.bf16.mxu0 0
      %3220 = vmatpush1.bf16.msra.mxu0 0
      %3221 = vmatprep.subr.bf16.mxu0 0
      %3222 = vmatpush1.bf16.msra.mxu0 0
      %3223 = vmatprep.subr.bf16.mxu0 0
      %3224 = vmatpush1.bf16.msra.mxu0 0
      %3225 = vmatprep.mubr.bf16.mxu0 0
      %3226 = vmatmul.mubr.bf16.gmra.mrb[0].mxu0 %v2605
      %v3227 = vpop.f32.mrb[0].mxu0
      %v3228 = vadd.f32 0.0, %v3227
      %v3229 = vpop.f32.mrb[0].mxu0
      %v3230 = vadd.f32 0.0, %v3229
      %v3231 = vpop.f32.mrb[0].mxu0
      %v3232 = vadd.f32 0.0, %v3231
      %v3233 = vpop.f32.mrb[0].mxu0
      %v3234 = vadd.f32 0.0, %v3233
      %3235 = vmatprep.mubr.bf16.mxu0 0
      %3236 = vmatmul.mubr.bf16.gmra.mrb[0].mxu0 %v2608
      %v3237 = vpop.f32.mrb[0].mxu0
      %v3238 = vadd.f32 0.0, %v3237
      %v3239 = vpop.f32.mrb[0].mxu0
      %v3240 = vadd.f32 0.0, %v3239
      %v3241 = vpop.f32.mrb[0].mxu0
      %v3242 = vadd.f32 0.0, %v3241
      %v3243 = vpop.f32.mrb[0].mxu0
      %v3244 = vadd.f32 0.0, %v3243
      %3245 = vdwg.mxu0
      %3246 = vmatprep.subr.bf16.mxu0 %v2550
      %3247 = vmatpush1.bf16.msra.mxu0 %v2549
      %3248 = vmatprep.subr.bf16.mxu0 0
      %3249 = vmatpush1.bf16.msra.mxu0 0
      %3250 = vmatprep.subr.bf16.mxu0 0
      %3251 = vmatpush1.bf16.msra.mxu0 0
      %3252 = vmatprep.subr.bf16.mxu0 0
      %3253 = vmatpush1.bf16.msra.mxu0 0
      %3254 = vmatprep.subr.bf16.mxu0 0
      %3255 = vmatpush1.bf16.msra.mxu0 0
      %3256 = vmatprep.subr.bf16.mxu0 0
      %3257 = vmatpush1.bf16.msra.mxu0 0
      %3258 = vmatprep.subr.bf16.mxu0 0
      %3259 = vmatpush1.bf16.msra.mxu0 0
      %3260 = vmatprep.subr.bf16.mxu0 0
      %3261 = vmatpush1.bf16.msra.mxu0 0
      %3262 = vmatprep.subr.bf16.mxu0 0
      %3263 = vmatpush1.bf16.msra.mxu0 0
      %3264 = vmatprep.subr.bf16.mxu0 0
      %3265 = vmatpush1.bf16.msra.mxu0 0
      %3266 = vmatprep.subr.bf16.mxu0 0
      %3267 = vmatpush1.bf16.msra.mxu0 0
      %3268 = vmatprep.subr.bf16.mxu0 0
      %3269 = vmatpush1.bf16.msra.mxu0 0
      %3270 = vmatprep.subr.bf16.mxu0 0
      %3271 = vmatpush1.bf16.msra.mxu0 0
      %3272 = vmatprep.subr.bf16.mxu0 0
      %3273 = vmatpush1.bf16.msra.mxu0 0
      %3274 = vmatprep.subr.bf16.mxu0 0
      %3275 = vmatpush1.bf16.msra.mxu0 0
      %3276 = vmatprep.subr.bf16.mxu0 0
      %3277 = vmatpush1.bf16.msra.mxu0 0
      %3278 = vmatprep.mubr.bf16.mxu0 0
      %3279 = vmatmul.mubr.bf16.gmra.mrb[0].mxu0 %v2605
      %v3280 = vpop.f32.mrb[0].mxu0
      %v3281 = vadd.f32 0.0, %v3280
      %v3282 = vpop.f32.mrb[0].mxu0
      %v3283 = vadd.f32 0.0, %v3282
      %v3284 = vpop.f32.mrb[0].mxu0
      %v3285 = vadd.f32 0.0, %v3284
      %v3286 = vpop.f32.mrb[0].mxu0
      %v3287 = vadd.f32 0.0, %v3286
      %3288 = vmatprep.mubr.bf16.mxu0 0
      %3289 = vmatmul.mubr.bf16.gmra.mrb[0].mxu0 %v2608
      %v3290 = vpop.f32.mrb[0].mxu0
      %v3291 = vadd.f32 0.0, %v3290
      %v3292 = vpop.f32.mrb[0].mxu0
      %v3293 = vadd.f32 0.0, %v3292
      %v3294 = vpop.f32.mrb[0].mxu0
      %v3295 = vadd.f32 0.0, %v3294
      %v3296 = vpop.f32.mrb[0].mxu0
      %v3297 = vadd.f32 0.0, %v3296
      %3298 = vdwg.mxu0
      %3299 = vmatprep.subr.bf16.mxu0 %v2552
      %3300 = vmatpush1.bf16.msra.mxu0 %v2551
      %3301 = vmatprep.subr.bf16.mxu0 0
      %3302 = vmatpush1.bf16.msra.mxu0 0
      %3303 = vmatprep.subr.bf16.mxu0 0
      %3304 = vmatpush1.bf16.msra.mxu0 0
      %3305 = vmatprep.subr.bf16.mxu0 0
      %3306 = vmatpush1.bf16.msra.mxu0 0
      %3307 = vmatprep.subr.bf16.mxu0 0
      %3308 = vmatpush1.bf16.msra.mxu0 0
      %3309 = vmatprep.subr.bf16.mxu0 0
      %3310 = vmatpush1.bf16.msra.mxu0 0
      %3311 = vmatprep.subr.bf16.mxu0 0
      %3312 = vmatpush1.bf16.msra.mxu0 0
      %3313 = vmatprep.subr.bf16.mxu0 0
      %3314 = vmatpush1.bf16.msra.mxu0 0
      %3315 = vmatprep.subr.bf16.mxu0 0
      %3316 = vmatpush1.bf16.msra.mxu0 0
      %3317 = vmatprep.subr.bf16.mxu0 0
      %3318 = vmatpush1.bf16.msra.mxu0 0
      %3319 = vmatprep.subr.bf16.mxu0 0
      %3320 = vmatpush1.bf16.msra.mxu0 0
      %3321 = vmatprep.subr.bf16.mxu0 0
      %3322 = vmatpush1.bf16.msra.mxu0 0
      %3323 = vmatprep.subr.bf16.mxu0 0
      %3324 = vmatpush1.bf16.msra.mxu0 0
      %3325 = vmatprep.subr.bf16.mxu0 0
      %3326 = vmatpush1.bf16.msra.mxu0 0
      %3327 = vmatprep.subr.bf16.mxu0 0
      %3328 = vmatpush1.bf16.msra.mxu0 0
      %3329 = vmatprep.subr.bf16.mxu0 0
      %3330 = vmatpush1.bf16.msra.mxu0 0
      %3331 = vmatprep.mubr.bf16.mxu0 0
      %3332 = vmatmul.mubr.bf16.gmra.mrb[0].mxu0 %v2605
      %v3333 = vpop.f32.mrb[0].mxu0
      %v3334 = vadd.f32 0.0, %v3333
      %v3335 = vpop.f32.mrb[0].mxu0
      %v3336 = vadd.f32 0.0, %v3335
      %v3337 = vpop.f32.mrb[0].mxu0
      %v3338 = vadd.f32 0.0, %v3337
      %v3339 = vpop.f32.mrb[0].mxu0
      %v3340 = vadd.f32 0.0, %v3339
      %3341 = vmatprep.mubr.bf16.mxu0 0
      %3342 = vmatmul.mubr.bf16.gmra.mrb[0].mxu0 %v2608
      %v3343 = vpop.f32.mrb[0].mxu0
      %v3344 = vadd.f32 0.0, %v3343
      %v3345 = vpop.f32.mrb[0].mxu0
      %v3346 = vadd.f32 0.0, %v3345
      %v3347 = vpop.f32.mrb[0].mxu0
      %v3348 = vadd.f32 0.0, %v3347
      %v3349 = vpop.f32.mrb[0].mxu0
      %v3350 = vadd.f32 0.0, %v3349
      %3351 = vdwg.mxu0
      %3352 = vmatprep.subr.bf16.mxu0 %v2554
      %3353 = vmatpush1.bf16.msra.mxu0 %v2553
      %3354 = vmatprep.subr.bf16.mxu0 0
      %3355 = vmatpush1.bf16.msra.mxu0 0
      %3356 = vmatprep.subr.bf16.mxu0 0
      %3357 = vmatpush1.bf16.msra.mxu0 0
      %3358 = vmatprep.subr.bf16.mxu0 0
      %3359 = vmatpush1.bf16.msra.mxu0 0
      %3360 = vmatprep.subr.bf16.mxu0 0
      %3361 = vmatpush1.bf16.msra.mxu0 0
      %3362 = vmatprep.subr.bf16.mxu0 0
      %3363 = vmatpush1.bf16.msra.mxu0 0
      %3364 = vmatprep.subr.bf16.mxu0 0
      %3365 = vmatpush1.bf16.msra.mxu0 0
      %3366 = vmatprep.subr.bf16.mxu0 0
      %3367 = vmatpush1.bf16.msra.mxu0 0
      %3368 = vmatprep.subr.bf16.mxu0 0
      %3369 = vmatpush1.bf16.msra.mxu0 0
      %3370 = vmatprep.subr.bf16.mxu0 0
      %3371 = vmatpush1.bf16.msra.mxu0 0
      %3372 = vmatprep.subr.bf16.mxu0 0
      %3373 = vmatpush1.bf16.msra.mxu0 0
      %3374 = vmatprep.subr.bf16.mxu0 0
      %3375 = vmatpush1.bf16.msra.mxu0 0
      %3376 = vmatprep.subr.bf16.mxu0 0
      %3377 = vmatpush1.bf16.msra.mxu0 0
      %3378 = vmatprep.subr.bf16.mxu0 0
      %3379 = vmatpush1.bf16.msra.mxu0 0
      %3380 = vmatprep.subr.bf16.mxu0 0
      %3381 = vmatpush1.bf16.msra.mxu0 0
      %3382 = vmatprep.subr.bf16.mxu0 0
      %3383 = vmatpush1.bf16.msra.mxu0 0
      %3384 = vmatprep.mubr.bf16.mxu0 0
      %3385 = vmatmul.mubr.bf16.gmra.mrb[0].mxu0 %v2605
      %v3386 = vpop.f32.mrb[0].mxu0
      %v3387 = vadd.f32 0.0, %v3386
      %v3388 = vpop.f32.mrb[0].mxu0
      %v3389 = vadd.f32 0.0, %v3388
      %v3390 = vpop.f32.mrb[0].mxu0
      %v3391 = vadd.f32 0.0, %v3390
      %v3392 = vpop.f32.mrb[0].mxu0
      %v3393 = vadd.f32 0.0, %v3392
      %3394 = vmatprep.mubr.bf16.mxu0 0
      %3395 = vmatmul.mubr.bf16.gmra.mrb[0].mxu0 %v2608
      %v3396 = vpop.f32.mrb[0].mxu0
      %v3397 = vadd.f32 0.0, %v3396
      %v3398 = vpop.f32.mrb[0].mxu0
      %v3399 = vadd.f32 0.0, %v3398
      %v3400 = vpop.f32.mrb[0].mxu0
      %v3401 = vadd.f32 0.0, %v3400
      %v3402 = vpop.f32.mrb[0].mxu0
      %v3403 = vadd.f32 0.0, %v3402
      %3404 = vdwg.mxu0
      %3405 = vmatprep.subr.bf16.mxu0 %v2556
      %3406 = vmatpush1.bf16.msra.mxu0 %v2555
      %3407 = vmatprep.subr.bf16.mxu0 0
      %3408 = vmatpush1.bf16.msra.mxu0 0
      %3409 = vmatprep.subr.bf16.mxu0 0
      %3410 = vmatpush1.bf16.msra.mxu0 0
      %3411 = vmatprep.subr.bf16.mxu0 0
      %3412 = vmatpush1.bf16.msra.mxu0 0
      %3413 = vmatprep.subr.bf16.mxu0 0
      %3414 = vmatpush1.bf16.msra.mxu0 0
      %3415 = vmatprep.subr.bf16.mxu0 0
      %3416 = vmatpush1.bf16.msra.mxu0 0
      %3417 = vmatprep.subr.bf16.mxu0 0
      %3418 = vmatpush1.bf16.msra.mxu0 0
      %3419 = vmatprep.subr.bf16.mxu0 0
      %3420 = vmatpush1.bf16.msra.mxu0 0
      %3421 = vmatprep.subr.bf16.mxu0 0
      %3422 = vmatpush1.bf16.msra.mxu0 0
      %3423 = vmatprep.subr.bf16.mxu0 0
      %3424 = vmatpush1.bf16.msra.mxu0 0
      %3425 = vmatprep.subr.bf16.mxu0 0
      %3426 = vmatpush1.bf16.msra.mxu0 0
      %3427 = vmatprep.subr.bf16.mxu0 0
      %3428 = vmatpush1.bf16.msra.mxu0 0
      %3429 = vmatprep.subr.bf16.mxu0 0
      %3430 = vmatpush1.bf16.msra.mxu0 0
      %3431 = vmatprep.subr.bf16.mxu0 0
      %3432 = vmatpush1.bf16.msra.mxu0 0
      %3433 = vmatprep.subr.bf16.mxu0 0
      %3434 = vmatpush1.bf16.msra.mxu0 0
      %3435 = vmatprep.subr.bf16.mxu0 0
      %3436 = vmatpush1.bf16.msra.mxu0 0
      %3437 = vmatprep.mubr.bf16.mxu0 0
      %3438 = vmatmul.mubr.bf16.gmra.mrb[0].mxu0 %v2605
      %v3439 = vpop.f32.mrb[0].mxu0
      %v3440 = vadd.f32 0.0, %v3439
      %v3441 = vpop.f32.mrb[0].mxu0
      %v3442 = vadd.f32 0.0, %v3441
      %v3443 = vpop.f32.mrb[0].mxu0
      %v3444 = vadd.f32 0.0, %v3443
      %v3445 = vpop.f32.mrb[0].mxu0
      %v3446 = vadd.f32 0.0, %v3445
      %3447 = vmatprep.mubr.bf16.mxu0 0
      %3448 = vmatmul.mubr.bf16.gmra.mrb[0].mxu0 %v2608
      %v3449 = vpop.f32.mrb[0].mxu0
      %v3450 = vadd.f32 0.0, %v3449
      %v3451 = vpop.f32.mrb[0].mxu0
      %v3452 = vadd.f32 0.0, %v3451
      %v3453 = vpop.f32.mrb[0].mxu0
      %v3454 = vadd.f32 0.0, %v3453
      %v3455 = vpop.f32.mrb[0].mxu0
      %v3456 = vadd.f32 0.0, %v3455
      %3457 = vdwg.mxu0
      %3458 = vmatprep.subr.bf16.mxu0 %v2558
      %3459 = vmatpush1.bf16.msra.mxu0 %v2557
      %3460 = vmatprep.subr.bf16.mxu0 0
      %3461 = vmatpush1.bf16.msra.mxu0 0
      %3462 = vmatprep.subr.bf16.mxu0 0
      %3463 = vmatpush1.bf16.msra.mxu0 0
      %3464 = vmatprep.subr.bf16.mxu0 0
      %3465 = vmatpush1.bf16.msra.mxu0 0
      %3466 = vmatprep.subr.bf16.mxu0 0
      %3467 = vmatpush1.bf16.msra.mxu0 0
      %3468 = vmatprep.subr.bf16.mxu0 0
      %3469 = vmatpush1.bf16.msra.mxu0 0
      %3470 = vmatprep.subr.bf16.mxu0 0
      %3471 = vmatpush1.bf16.msra.mxu0 0
      %3472 = vmatprep.subr.bf16.mxu0 0
      %3473 = vmatpush1.bf16.msra.mxu0 0
      %3474 = vmatprep.subr.bf16.mxu0 0
      %3475 = vmatpush1.bf16.msra.mxu0 0
      %3476 = vmatprep.subr.bf16.mxu0 0
      %3477 = vmatpush1.bf16.msra.mxu0 0
      %3478 = vmatprep.subr.bf16.mxu0 0
      %3479 = vmatpush1.bf16.msra.mxu0 0
      %3480 = vmatprep.subr.bf16.mxu0 0
      %3481 = vmatpush1.bf16.msra.mxu0 0
      %3482 = vmatprep.subr.bf16.mxu0 0
      %3483 = vmatpush1.bf16.msra.mxu0 0
      %3484 = vmatprep.subr.bf16.mxu0 0
      %3485 = vmatpush1.bf16.msra.mxu0 0
      %3486 = vmatprep.subr.bf16.mxu0 0
      %3487 = vmatpush1.bf16.msra.mxu0 0
      %3488 = vmatprep.subr.bf16.mxu0 0
      %3489 = vmatpush1.bf16.msra.mxu0 0
      %3490 = vmatprep.mubr.bf16.mxu0 0
      %3491 = vmatmul.mubr.bf16.gmra.mrb[0].mxu0 %v2605
      %v3492 = vpop.f32.mrb[0].mxu0
      %v3493 = vadd.f32 0.0, %v3492
      %v3494 = vpop.f32.mrb[0].mxu0
      %v3495 = vadd.f32 0.0, %v3494
      %v3496 = vpop.f32.mrb[0].mxu0
      %v3497 = vadd.f32 0.0, %v3496
      %v3498 = vpop.f32.mrb[0].mxu0
      %v3499 = vadd.f32 0.0, %v3498
      %3500 = vmatprep.mubr.bf16.mxu0 0
      %3501 = vmatmul.mubr.bf16.gmra.mrb[0].mxu0 %v2608
      %v3502 = vpop.f32.mrb[0].mxu0
      %v3503 = vadd.f32 0.0, %v3502
      %v3504 = vpop.f32.mrb[0].mxu0
      %v3505 = vadd.f32 0.0, %v3504
      %v3506 = vpop.f32.mrb[0].mxu0
      %v3507 = vadd.f32 0.0, %v3506
      %v3508 = vpop.f32.mrb[0].mxu0
      %v3509 = vadd.f32 0.0, %v3508
      %3510 = vdwg.mxu0
      %3511 = vmatprep.subr.bf16.mxu0 %v2560
      %3512 = vmatpush1.bf16.msra.mxu0 %v2559
      %3513 = vmatprep.subr.bf16.mxu0 0
      %3514 = vmatpush1.bf16.msra.mxu0 0
      %3515 = vmatprep.subr.bf16.mxu0 0
      %3516 = vmatpush1.bf16.msra.mxu0 0
      %3517 = vmatprep.subr.bf16.mxu0 0
      %3518 = vmatpush1.bf16.msra.mxu0 0
      %3519 = vmatprep.subr.bf16.mxu0 0
      %3520 = vmatpush1.bf16.msra.mxu0 0
      %3521 = vmatprep.subr.bf16.mxu0 0
      %3522 = vmatpush1.bf16.msra.mxu0 0
      %3523 = vmatprep.subr.bf16.mxu0 0
      %3524 = vmatpush1.bf16.msra.mxu0 0
      %3525 = vmatprep.subr.bf16.mxu0 0
      %3526 = vmatpush1.bf16.msra.mxu0 0
      %3527 = vmatprep.subr.bf16.mxu0 0
      %3528 = vmatpush1.bf16.msra.mxu0 0
      %3529 = vmatprep.subr.bf16.mxu0 0
      %3530 = vmatpush1.bf16.msra.mxu0 0
      %3531 = vmatprep.subr.bf16.mxu0 0
      %3532 = vmatpush1.bf16.msra.mxu0 0
      %3533 = vmatprep.subr.bf16.mxu0 0
      %3534 = vmatpush1.bf16.msra.mxu0 0
      %3535 = vmatprep.subr.bf16.mxu0 0
      %3536 = vmatpush1.bf16.msra.mxu0 0
      %3537 = vmatprep.subr.bf16.mxu0 0
      %3538 = vmatpush1.bf16.msra.mxu0 0
      %3539 = vmatprep.subr.bf16.mxu0 0
      %3540 = vmatpush1.bf16.msra.mxu0 0
      %3541 = vmatprep.subr.bf16.mxu0 0
      %3542 = vmatpush1.bf16.msra.mxu0 0
      %3543 = vmatprep.mubr.bf16.mxu0 0
      %3544 = vmatmul.mubr.bf16.gmra.mrb[0].mxu0 %v2605
      %v3545 = vpop.f32.mrb[0].mxu0
      %v3546 = vadd.f32 0.0, %v3545
      %v3547 = vpop.f32.mrb[0].mxu0
      %v3548 = vadd.f32 0.0, %v3547
      %v3549 = vpop.f32.mrb[0].mxu0
      %v3550 = vadd.f32 0.0, %v3549
      %v3551 = vpop.f32.mrb[0].mxu0
      %v3552 = vadd.f32 0.0, %v3551
      %3553 = vmatprep.mubr.bf16.mxu0 0
      %3554 = vmatmul.mubr.bf16.gmra.mrb[0].mxu0 %v2608
      %v3555 = vpop.f32.mrb[0].mxu0
      %v3556 = vadd.f32 0.0, %v3555
      %v3557 = vpop.f32.mrb[0].mxu0
      %v3558 = vadd.f32 0.0, %v3557
      %v3559 = vpop.f32.mrb[0].mxu0
      %v3560 = vadd.f32 0.0, %v3559
      %v3561 = vpop.f32.mrb[0].mxu0
      %v3562 = vadd.f32 0.0, %v3561
      %3563 = vdwg.mxu0
      %3564 = vmatprep.subr.bf16.mxu0 %v2562
      %3565 = vmatpush1.bf16.msra.mxu0 %v2561
      %3566 = vmatprep.subr.bf16.mxu0 0
      %3567 = vmatpush1.bf16.msra.mxu0 0
      %3568 = vmatprep.subr.bf16.mxu0 0
      %3569 = vmatpush1.bf16.msra.mxu0 0
      %3570 = vmatprep.subr.bf16.mxu0 0
      %3571 = vmatpush1.bf16.msra.mxu0 0
      %3572 = vmatprep.subr.bf16.mxu0 0
      %3573 = vmatpush1.bf16.msra.mxu0 0
      %3574 = vmatprep.subr.bf16.mxu0 0
      %3575 = vmatpush1.bf16.msra.mxu0 0
      %3576 = vmatprep.subr.bf16.mxu0 0
      %3577 = vmatpush1.bf16.msra.mxu0 0
      %3578 = vmatprep.subr.bf16.mxu0 0
      %3579 = vmatpush1.bf16.msra.mxu0 0
      %3580 = vmatprep.subr.bf16.mxu0 0
      %3581 = vmatpush1.bf16.msra.mxu0 0
      %3582 = vmatprep.subr.bf16.mxu0 0
      %3583 = vmatpush1.bf16.msra.mxu0 0
      %3584 = vmatprep.subr.bf16.mxu0 0
      %3585 = vmatpush1.bf16.msra.mxu0 0
      %3586 = vmatprep.subr.bf16.mxu0 0
      %3587 = vmatpush1.bf16.msra.mxu0 0
      %3588 = vmatprep.subr.bf16.mxu0 0
      %3589 = vmatpush1.bf16.msra.mxu0 0
      %3590 = vmatprep.subr.bf16.mxu0 0
      %3591 = vmatpush1.bf16.msra.mxu0 0
      %3592 = vmatprep.subr.bf16.mxu0 0
      %3593 = vmatpush1.bf16.msra.mxu0 0
      %3594 = vmatprep.subr.bf16.mxu0 0
      %3595 = vmatpush1.bf16.msra.mxu0 0
      %3596 = vmatprep.mubr.bf16.mxu0 0
      %3597 = vmatmul.mubr.bf16.gmra.mrb[0].mxu0 %v2605
      %v3598 = vpop.f32.mrb[0].mxu0
      %v3599 = vadd.f32 0.0, %v3598
      %v3600 = vpop.f32.mrb[0].mxu0
      %v3601 = vadd.f32 0.0, %v3600
      %v3602 = vpop.f32.mrb[0].mxu0
      %v3603 = vadd.f32 0.0, %v3602
      %v3604 = vpop.f32.mrb[0].mxu0
      %v3605 = vadd.f32 0.0, %v3604
      %3606 = vmatprep.mubr.bf16.mxu0 0
      %3607 = vmatmul.mubr.bf16.gmra.mrb[0].mxu0 %v2608
      %v3608 = vpop.f32.mrb[0].mxu0
      %v3609 = vadd.f32 0.0, %v3608
      %v3610 = vpop.f32.mrb[0].mxu0
      %v3611 = vadd.f32 0.0, %v3610
      %v3612 = vpop.f32.mrb[0].mxu0
      %v3613 = vadd.f32 0.0, %v3612
      %v3614 = vpop.f32.mrb[0].mxu0
      %v3615 = vadd.f32 0.0, %v3614
      %3616 = vdwg.mxu0
      %3617 = vmatprep.subr.bf16.mxu0 %v2564
      %3618 = vmatpush1.bf16.msra.mxu0 %v2563
      %3619 = vmatprep.subr.bf16.mxu0 0
      %3620 = vmatpush1.bf16.msra.mxu0 0
      %3621 = vmatprep.subr.bf16.mxu0 0
      %3622 = vmatpush1.bf16.msra.mxu0 0
      %3623 = vmatprep.subr.bf16.mxu0 0
      %3624 = vmatpush1.bf16.msra.mxu0 0
      %3625 = vmatprep.subr.bf16.mxu0 0
      %3626 = vmatpush1.bf16.msra.mxu0 0
      %3627 = vmatprep.subr.bf16.mxu0 0
      %3628 = vmatpush1.bf16.msra.mxu0 0
      %3629 = vmatprep.subr.bf16.mxu0 0
      %3630 = vmatpush1.bf16.msra.mxu0 0
      %3631 = vmatprep.subr.bf16.mxu0 0
      %3632 = vmatpush1.bf16.msra.mxu0 0
      %3633 = vmatprep.subr.bf16.mxu0 0
      %3634 = vmatpush1.bf16.msra.mxu0 0
      %3635 = vmatprep.subr.bf16.mxu0 0
      %3636 = vmatpush1.bf16.msra.mxu0 0
      %3637 = vmatprep.subr.bf16.mxu0 0
      %3638 = vmatpush1.bf16.msra.mxu0 0
      %3639 = vmatprep.subr.bf16.mxu0 0
      %3640 = vmatpush1.bf16.msra.mxu0 0
      %3641 = vmatprep.subr.bf16.mxu0 0
      %3642 = vmatpush1.bf16.msra.mxu0 0
      %3643 = vmatprep.subr.bf16.mxu0 0
      %3644 = vmatpush1.bf16.msra.mxu0 0
      %3645 = vmatprep.subr.bf16.mxu0 0
      %3646 = vmatpush1.bf16.msra.mxu0 0
      %3647 = vmatprep.subr.bf16.mxu0 0
      %3648 = vmatpush1.bf16.msra.mxu0 0
      %3649 = vmatprep.mubr.bf16.mxu0 0
      %3650 = vmatmul.mubr.bf16.gmra.mrb[0].mxu0 %v2605
      %v3651 = vpop.f32.mrb[0].mxu0
      %v3652 = vadd.f32 0.0, %v3651
      %v3653 = vpop.f32.mrb[0].mxu0
      %v3654 = vadd.f32 0.0, %v3653
      %v3655 = vpop.f32.mrb[0].mxu0
      %v3656 = vadd.f32 0.0, %v3655
      %v3657 = vpop.f32.mrb[0].mxu0
      %v3658 = vadd.f32 0.0, %v3657
      %3659 = vmatprep.mubr.bf16.mxu0 0
      %3660 = vmatmul.mubr.bf16.gmra.mrb[0].mxu0 %v2608
      %v3661 = vpop.f32.mrb[0].mxu0
      %v3662 = vadd.f32 0.0, %v3661
      %v3663 = vpop.f32.mrb[0].mxu0
      %v3664 = vadd.f32 0.0, %v3663
      %v3665 = vpop.f32.mrb[0].mxu0
      %v3666 = vadd.f32 0.0, %v3665
      %v3667 = vpop.f32.mrb[0].mxu0
      %v3668 = vadd.f32 0.0, %v3667
      %3669 = vdwg.mxu0
      %3670 = vmatprep.subr.bf16.mxu0 %v2566
      %3671 = vmatpush1.bf16.msra.mxu0 %v2565
      %3672 = vmatprep.subr.bf16.mxu0 0
      %3673 = vmatpush1.bf16.msra.mxu0 0
      %3674 = vmatprep.subr.bf16.mxu0 0
      %3675 = vmatpush1.bf16.msra.mxu0 0
      %3676 = vmatprep.subr.bf16.mxu0 0
      %3677 = vmatpush1.bf16.msra.mxu0 0
      %3678 = vmatprep.subr.bf16.mxu0 0
      %3679 = vmatpush1.bf16.msra.mxu0 0
      %3680 = vmatprep.subr.bf16.mxu0 0
      %3681 = vmatpush1.bf16.msra.mxu0 0
      %3682 = vmatprep.subr.bf16.mxu0 0
      %3683 = vmatpush1.bf16.msra.mxu0 0
      %3684 = vmatprep.subr.bf16.mxu0 0
      %3685 = vmatpush1.bf16.msra.mxu0 0
      %3686 = vmatprep.subr.bf16.mxu0 0
      %3687 = vmatpush1.bf16.msra.mxu0 0
      %3688 = vmatprep.subr.bf16.mxu0 0
      %3689 = vmatpush1.bf16.msra.mxu0 0
      %3690 = vmatprep.subr.bf16.mxu0 0
      %3691 = vmatpush1.bf16.msra.mxu0 0
      %3692 = vmatprep.subr.bf16.mxu0 0
      %3693 = vmatpush1.bf16.msra.mxu0 0
      %3694 = vmatprep.subr.bf16.mxu0 0
      %3695 = vmatpush1.bf16.msra.mxu0 0
      %3696 = vmatprep.subr.bf16.mxu0 0
      %3697 = vmatpush1.bf16.msra.mxu0 0
      %3698 = vmatprep.subr.bf16.mxu0 0
      %3699 = vmatpush1.bf16.msra.mxu0 0
      %3700 = vmatprep.subr.bf16.mxu0 0
      %3701 = vmatpush1.bf16.msra.mxu0 0
      %3702 = vmatprep.mubr.bf16.mxu0 0
      %3703 = vmatmul.mubr.bf16.gmra.mrb[0].mxu0 %v2605
      %v3704 = vpop.f32.mrb[0].mxu0
      %v3705 = vadd.f32 0.0, %v3704
      %v3706 = vpop.f32.mrb[0].mxu0
      %v3707 = vadd.f32 0.0, %v3706
      %v3708 = vpop.f32.mrb[0].mxu0
      %v3709 = vadd.f32 0.0, %v3708
      %v3710 = vpop.f32.mrb[0].mxu0
      %v3711 = vadd.f32 0.0, %v3710
      %3712 = vmatprep.mubr.bf16.mxu0 0
      %3713 = vmatmul.mubr.bf16.gmra.mrb[0].mxu0 %v2608
      %v3714 = vpop.f32.mrb[0].mxu0
      %v3715 = vadd.f32 0.0, %v3714
      %v3716 = vpop.f32.mrb[0].mxu0
      %v3717 = vadd.f32 0.0, %v3716
      %v3718 = vpop.f32.mrb[0].mxu0
      %v3719 = vadd.f32 0.0, %v3718
      %v3720 = vpop.f32.mrb[0].mxu0
      %v3721 = vadd.f32 0.0, %v3720
      %3722 = vdwg.mxu0
      %3723 = vmatprep.subr.bf16.mxu0 %v2568
      %3724 = vmatpush1.bf16.msra.mxu0 %v2567
      %3725 = vmatprep.subr.bf16.mxu0 0
      %3726 = vmatpush1.bf16.msra.mxu0 0
      %3727 = vmatprep.subr.bf16.mxu0 0
      %3728 = vmatpush1.bf16.msra.mxu0 0
      %3729 = vmatprep.subr.bf16.mxu0 0
      %3730 = vmatpush1.bf16.msra.mxu0 0
      %3731 = vmatprep.subr.bf16.mxu0 0
      %3732 = vmatpush1.bf16.msra.mxu0 0
      %3733 = vmatprep.subr.bf16.mxu0 0
      %3734 = vmatpush1.bf16.msra.mxu0 0
      %3735 = vmatprep.subr.bf16.mxu0 0
      %3736 = vmatpush1.bf16.msra.mxu0 0
      %3737 = vmatprep.subr.bf16.mxu0 0
      %3738 = vmatpush1.bf16.msra.mxu0 0
      %3739 = vmatprep.subr.bf16.mxu0 0
      %3740 = vmatpush1.bf16.msra.mxu0 0
      %3741 = vmatprep.subr.bf16.mxu0 0
      %3742 = vmatpush1.bf16.msra.mxu0 0
      %3743 = vmatprep.subr.bf16.mxu0 0
      %3744 = vmatpush1.bf16.msra.mxu0 0
      %3745 = vmatprep.subr.bf16.mxu0 0
      %3746 = vmatpush1.bf16.msra.mxu0 0
      %3747 = vmatprep.subr.bf16.mxu0 0
      %3748 = vmatpush1.bf16.msra.mxu0 0
      %3749 = vmatprep.subr.bf16.mxu0 0
      %3750 = vmatpush1.bf16.msra.mxu0 0
      %3751 = vmatprep.subr.bf16.mxu0 0
      %3752 = vmatpush1.bf16.msra.mxu0 0
      %3753 = vmatprep.subr.bf16.mxu0 0
      %3754 = vmatpush1.bf16.msra.mxu0 0
      %3755 = vmatprep.mubr.bf16.mxu0 0
      %3756 = vmatmul.mubr.bf16.gmra.mrb[0].mxu0 %v2605
      %v3757 = vpop.f32.mrb[0].mxu0
      %v3758 = vadd.f32 0.0, %v3757
      %v3759 = vpop.f32.mrb[0].mxu0
      %v3760 = vadd.f32 0.0, %v3759
      %v3761 = vpop.f32.mrb[0].mxu0
      %v3762 = vadd.f32 0.0, %v3761
      %v3763 = vpop.f32.mrb[0].mxu0
      %v3764 = vadd.f32 0.0, %v3763
      %3765 = vmatprep.mubr.bf16.mxu0 0
      %3766 = vmatmul.mubr.bf16.gmra.mrb[0].mxu0 %v2608
      %v3767 = vpop.f32.mrb[0].mxu0
      %v3768 = vadd.f32 0.0, %v3767
      %v3769 = vpop.f32.mrb[0].mxu0
      %v3770 = vadd.f32 0.0, %v3769
      %v3771 = vpop.f32.mrb[0].mxu0
      %v3772 = vadd.f32 0.0, %v3771
      %v3773 = vpop.f32.mrb[0].mxu0
      %v3774 = vadd.f32 0.0, %v3773
      %3775 = vdwg.mxu0
      %3776 = vmatprep.subr.bf16.mxu0 %v2570
      %3777 = vmatpush1.bf16.msra.mxu0 %v2569
      %3778 = vmatprep.subr.bf16.mxu0 0
      %3779 = vmatpush1.bf16.msra.mxu0 0
      %3780 = vmatprep.subr.bf16.mxu0 0
      %3781 = vmatpush1.bf16.msra.mxu0 0
      %3782 = vmatprep.subr.bf16.mxu0 0
      %3783 = vmatpush1.bf16.msra.mxu0 0
      %3784 = vmatprep.subr.bf16.mxu0 0
      %3785 = vmatpush1.bf16.msra.mxu0 0
      %3786 = vmatprep.subr.bf16.mxu0 0
      %3787 = vmatpush1.bf16.msra.mxu0 0
      %3788 = vmatprep.subr.bf16.mxu0 0
      %3789 = vmatpush1.bf16.msra.mxu0 0
      %3790 = vmatprep.subr.bf16.mxu0 0
      %3791 = vmatpush1.bf16.msra.mxu0 0
      %3792 = vmatprep.subr.bf16.mxu0 0
      %3793 = vmatpush1.bf16.msra.mxu0 0
      %3794 = vmatprep.subr.bf16.mxu0 0
      %3795 = vmatpush1.bf16.msra.mxu0 0
      %3796 = vmatprep.subr.bf16.mxu0 0
      %3797 = vmatpush1.bf16.msra.mxu0 0
      %3798 = vmatprep.subr.bf16.mxu0 0
      %3799 = vmatpush1.bf16.msra.mxu0 0
      %3800 = vmatprep.subr.bf16.mxu0 0
      %3801 = vmatpush1.bf16.msra.mxu0 0
      %3802 = vmatprep.subr.bf16.mxu0 0
      %3803 = vmatpush1.bf16.msra.mxu0 0
      %3804 = vmatprep.subr.bf16.mxu0 0
      %3805 = vmatpush1.bf16.msra.mxu0 0
      %3806 = vmatprep.subr.bf16.mxu0 0
      %3807 = vmatpush1.bf16.msra.mxu0 0
      %3808 = vmatprep.mubr.bf16.mxu0 0
      %3809 = vmatmul.mubr.bf16.gmra.mrb[0].mxu0 %v2605
      %v3810 = vpop.f32.mrb[0].mxu0
      %v3811 = vadd.f32 0.0, %v3810
      %v3812 = vpop.f32.mrb[0].mxu0
      %v3813 = vadd.f32 0.0, %v3812
      %v3814 = vpop.f32.mrb[0].mxu0
      %v3815 = vadd.f32 0.0, %v3814
      %v3816 = vpop.f32.mrb[0].mxu0
      %v3817 = vadd.f32 0.0, %v3816
      %3818 = vmatprep.mubr.bf16.mxu0 0
      %3819 = vmatmul.mubr.bf16.gmra.mrb[0].mxu0 %v2608
      %v3820 = vpop.f32.mrb[0].mxu0
      %v3821 = vadd.f32 0.0, %v3820
      %v3822 = vpop.f32.mrb[0].mxu0
      %v3823 = vadd.f32 0.0, %v3822
      %v3824 = vpop.f32.mrb[0].mxu0
      %v3825 = vadd.f32 0.0, %v3824
      %v3826 = vpop.f32.mrb[0].mxu0
      %v3827 = vadd.f32 0.0, %v3826
      %3828 = vdwg.mxu0
      %3829 = vmatprep.subr.bf16.mxu0 %v2572
      %3830 = vmatpush1.bf16.msra.mxu0 %v2571
      %3831 = vmatprep.subr.bf16.mxu0 0
      %3832 = vmatpush1.bf16.msra.mxu0 0
      %3833 = vmatprep.subr.bf16.mxu0 0
      %3834 = vmatpush1.bf16.msra.mxu0 0
      %3835 = vmatprep.subr.bf16.mxu0 0
      %3836 = vmatpush1.bf16.msra.mxu0 0
      %3837 = vmatprep.subr.bf16.mxu0 0
      %3838 = vmatpush1.bf16.msra.mxu0 0
      %3839 = vmatprep.subr.bf16.mxu0 0
      %3840 = vmatpush1.bf16.msra.mxu0 0
      %3841 = vmatprep.subr.bf16.mxu0 0
      %3842 = vmatpush1.bf16.msra.mxu0 0
      %3843 = vmatprep.subr.bf16.mxu0 0
      %3844 = vmatpush1.bf16.msra.mxu0 0
      %3845 = vmatprep.subr.bf16.mxu0 0
      %3846 = vmatpush1.bf16.msra.mxu0 0
      %3847 = vmatprep.subr.bf16.mxu0 0
      %3848 = vmatpush1.bf16.msra.mxu0 0
      %3849 = vmatprep.subr.bf16.mxu0 0
      %3850 = vmatpush1.bf16.msra.mxu0 0
      %3851 = vmatprep.subr.bf16.mxu0 0
      %3852 = vmatpush1.bf16.msra.mxu0 0
      %3853 = vmatprep.subr.bf16.mxu0 0
      %3854 = vmatpush1.bf16.msra.mxu0 0
      %3855 = vmatprep.subr.bf16.mxu0 0
      %3856 = vmatpush1.bf16.msra.mxu0 0
      %3857 = vmatprep.subr.bf16.mxu0 0
      %3858 = vmatpush1.bf16.msra.mxu0 0
      %3859 = vmatprep.subr.bf16.mxu0 0
      %3860 = vmatpush1.bf16.msra.mxu0 0
      %3861 = vmatprep.mubr.bf16.mxu0 0
      %3862 = vmatmul.mubr.bf16.gmra.mrb[0].mxu0 %v2605
      %v3863 = vpop.f32.mrb[0].mxu0
      %v3864 = vadd.f32 0.0, %v3863
      %v3865 = vpop.f32.mrb[0].mxu0
      %v3866 = vadd.f32 0.0, %v3865
      %v3867 = vpop.f32.mrb[0].mxu0
      %v3868 = vadd.f32 0.0, %v3867
      %v3869 = vpop.f32.mrb[0].mxu0
      %v3870 = vadd.f32 0.0, %v3869
      %3871 = vmatprep.mubr.bf16.mxu0 0
      %3872 = vmatmul.mubr.bf16.gmra.mrb[0].mxu0 %v2608
      %v3873 = vpop.f32.mrb[0].mxu0
      %v3874 = vadd.f32 0.0, %v3873
      %v3875 = vpop.f32.mrb[0].mxu0
      %v3876 = vadd.f32 0.0, %v3875
      %v3877 = vpop.f32.mrb[0].mxu0
      %v3878 = vadd.f32 0.0, %v3877
      %v3879 = vpop.f32.mrb[0].mxu0
      %v3880 = vadd.f32 0.0, %v3879
      %3881 = vdwg.mxu0
      %3882 = vmatprep.subr.bf16.mxu0 %v2574
      %3883 = vmatpush1.bf16.msra.mxu0 %v2573
      %3884 = vmatprep.subr.bf16.mxu0 0
      %3885 = vmatpush1.bf16.msra.mxu0 0
      %3886 = vmatprep.subr.bf16.mxu0 0
      %3887 = vmatpush1.bf16.msra.mxu0 0
      %3888 = vmatprep.subr.bf16.mxu0 0
      %3889 = vmatpush1.bf16.msra.mxu0 0
      %3890 = vmatprep.subr.bf16.mxu0 0
      %3891 = vmatpush1.bf16.msra.mxu0 0
      %3892 = vmatprep.subr.bf16.mxu0 0
      %3893 = vmatpush1.bf16.msra.mxu0 0
      %3894 = vmatprep.subr.bf16.mxu0 0
      %3895 = vmatpush1.bf16.msra.mxu0 0
      %3896 = vmatprep.subr.bf16.mxu0 0
      %3897 = vmatpush1.bf16.msra.mxu0 0
      %3898 = vmatprep.subr.bf16.mxu0 0
      %3899 = vmatpush1.bf16.msra.mxu0 0
      %3900 = vmatprep.subr.bf16.mxu0 0
      %3901 = vmatpush1.bf16.msra.mxu0 0
      %3902 = vmatprep.subr.bf16.mxu0 0
      %3903 = vmatpush1.bf16.msra.mxu0 0
      %3904 = vmatprep.subr.bf16.mxu0 0
      %3905 = vmatpush1.bf16.msra.mxu0 0
      %3906 = vmatprep.subr.bf16.mxu0 0
      %3907 = vmatpush1.bf16.msra.mxu0 0
      %3908 = vmatprep.subr.bf16.mxu0 0
      %3909 = vmatpush1.bf16.msra.mxu0 0
      %3910 = vmatprep.subr.bf16.mxu0 0
      %3911 = vmatpush1.bf16.msra.mxu0 0
      %3912 = vmatprep.subr.bf16.mxu0 0
      %3913 = vmatpush1.bf16.msra.mxu0 0
      %3914 = vmatprep.mubr.bf16.mxu0 0
      %3915 = vmatmul.mubr.bf16.gmra.mrb[0].mxu0 %v2605
      %v3916 = vpop.f32.mrb[0].mxu0
      %v3917 = vadd.f32 0.0, %v3916
      %v3918 = vpop.f32.mrb[0].mxu0
      %v3919 = vadd.f32 0.0, %v3918
      %v3920 = vpop.f32.mrb[0].mxu0
      %v3921 = vadd.f32 0.0, %v3920
      %v3922 = vpop.f32.mrb[0].mxu0
      %v3923 = vadd.f32 0.0, %v3922
      %3924 = vmatprep.mubr.bf16.mxu0 0
      %3925 = vmatmul.mubr.bf16.gmra.mrb[0].mxu0 %v2608
      %v3926 = vpop.f32.mrb[0].mxu0
      %v3927 = vadd.f32 0.0, %v3926
      %v3928 = vpop.f32.mrb[0].mxu0
      %v3929 = vadd.f32 0.0, %v3928
      %v3930 = vpop.f32.mrb[0].mxu0
      %v3931 = vadd.f32 0.0, %v3930
      %v3932 = vpop.f32.mrb[0].mxu0
      %v3933 = vadd.f32 0.0, %v3932
      %3934 = vdwg.mxu0
      %3935 = vmatprep.subr.bf16.mxu0 %v2576
      %3936 = vmatpush1.bf16.msra.mxu0 %v2575
      %3937 = vmatprep.subr.bf16.mxu0 0
      %3938 = vmatpush1.bf16.msra.mxu0 0
      %3939 = vmatprep.subr.bf16.mxu0 0
      %3940 = vmatpush1.bf16.msra.mxu0 0
      %3941 = vmatprep.subr.bf16.mxu0 0
      %3942 = vmatpush1.bf16.msra.mxu0 0
      %3943 = vmatprep.subr.bf16.mxu0 0
      %3944 = vmatpush1.bf16.msra.mxu0 0
      %3945 = vmatprep.subr.bf16.mxu0 0
      %3946 = vmatpush1.bf16.msra.mxu0 0
      %3947 = vmatprep.subr.bf16.mxu0 0
      %3948 = vmatpush1.bf16.msra.mxu0 0
      %3949 = vmatprep.subr.bf16.mxu0 0
      %3950 = vmatpush1.bf16.msra.mxu0 0
      %3951 = vmatprep.subr.bf16.mxu0 0
      %3952 = vmatpush1.bf16.msra.mxu0 0
      %3953 = vmatprep.subr.bf16.mxu0 0
      %3954 = vmatpush1.bf16.msra.mxu0 0
      %3955 = vmatprep.subr.bf16.mxu0 0
      %3956 = vmatpush1.bf16.msra.mxu0 0
      %3957 = vmatprep.subr.bf16.mxu0 0
      %3958 = vmatpush1.bf16.msra.mxu0 0
      %3959 = vmatprep.subr.bf16.mxu0 0
      %3960 = vmatpush1.bf16.msra.mxu0 0
      %3961 = vmatprep.subr.bf16.mxu0 0
      %3962 = vmatpush1.bf16.msra.mxu0 0
      %3963 = vmatprep.subr.bf16.mxu0 0
      %3964 = vmatpush1.bf16.msra.mxu0 0
      %3965 = vmatprep.subr.bf16.mxu0 0
      %3966 = vmatpush1.bf16.msra.mxu0 0
      %3967 = vmatprep.mubr.bf16.mxu0 0
      %3968 = vmatmul.mubr.bf16.gmra.mrb[0].mxu0 %v2605
      %v3969 = vpop.f32.mrb[0].mxu0
      %v3970 = vadd.f32 0.0, %v3969
      %v3971 = vpop.f32.mrb[0].mxu0
      %v3972 = vadd.f32 0.0, %v3971
      %v3973 = vpop.f32.mrb[0].mxu0
      %v3974 = vadd.f32 0.0, %v3973
      %v3975 = vpop.f32.mrb[0].mxu0
      %v3976 = vadd.f32 0.0, %v3975
      %3977 = vmatprep.mubr.bf16.mxu0 0
      %3978 = vmatmul.mubr.bf16.gmra.mrb[0].mxu0 %v2608
      %v3979 = vpop.f32.mrb[0].mxu0
      %v3980 = vadd.f32 0.0, %v3979
      %v3981 = vpop.f32.mrb[0].mxu0
      %v3982 = vadd.f32 0.0, %v3981
      %v3983 = vpop.f32.mrb[0].mxu0
      %v3984 = vadd.f32 0.0, %v3983
      %v3985 = vpop.f32.mrb[0].mxu0
      %v3986 = vadd.f32 0.0, %v3985
      %3987 = vdwg.mxu0
      %3988 = vmatprep.subr.bf16.mxu0 %v2578
      %3989 = vmatpush1.bf16.msra.mxu0 %v2577
      %3990 = vmatprep.subr.bf16.mxu0 0
      %3991 = vmatpush1.bf16.msra.mxu0 0
      %3992 = vmatprep.subr.bf16.mxu0 0
      %3993 = vmatpush1.bf16.msra.mxu0 0
      %3994 = vmatprep.subr.bf16.mxu0 0
      %3995 = vmatpush1.bf16.msra.mxu0 0
      %3996 = vmatprep.subr.bf16.mxu0 0
      %3997 = vmatpush1.bf16.msra.mxu0 0
      %3998 = vmatprep.subr.bf16.mxu0 0
      %3999 = vmatpush1.bf16.msra.mxu0 0
      %4000 = vmatprep.subr.bf16.mxu0 0
      %4001 = vmatpush1.bf16.msra.mxu0 0
      %4002 = vmatprep.subr.bf16.mxu0 0
      %4003 = vmatpush1.bf16.msra.mxu0 0
      %4004 = vmatprep.subr.bf16.mxu0 0
      %4005 = vmatpush1.bf16.msra.mxu0 0
      %4006 = vmatprep.subr.bf16.mxu0 0
      %4007 = vmatpush1.bf16.msra.mxu0 0
      %4008 = vmatprep.subr.bf16.mxu0 0
      %4009 = vmatpush1.bf16.msra.mxu0 0
      %4010 = vmatprep.subr.bf16.mxu0 0
      %4011 = vmatpush1.bf16.msra.mxu0 0
      %4012 = vmatprep.subr.bf16.mxu0 0
      %4013 = vmatpush1.bf16.msra.mxu0 0
      %4014 = vmatprep.subr.bf16.mxu0 0
      %4015 = vmatpush1.bf16.msra.mxu0 0
      %4016 = vmatprep.subr.bf16.mxu0 0
      %4017 = vmatpush1.bf16.msra.mxu0 0
      %4018 = vmatprep.subr.bf16.mxu0 0
      %4019 = vmatpush1.bf16.msra.mxu0 0
      %4020 = vmatprep.mubr.bf16.mxu0 0
      %4021 = vmatmul.mubr.bf16.gmra.mrb[0].mxu0 %v2605
      %v4022 = vpop.f32.mrb[0].mxu0
      %v4023 = vadd.f32 0.0, %v4022
      %v4024 = vpop.f32.mrb[0].mxu0
      %v4025 = vadd.f32 0.0, %v4024
      %v4026 = vpop.f32.mrb[0].mxu0
      %v4027 = vadd.f32 0.0, %v4026
      %v4028 = vpop.f32.mrb[0].mxu0
      %v4029 = vadd.f32 0.0, %v4028
      %4030 = vmatprep.mubr.bf16.mxu0 0
      %4031 = vmatmul.mubr.bf16.gmra.mrb[0].mxu0 %v2608
      %v4032 = vpop.f32.mrb[0].mxu0
      %v4033 = vadd.f32 0.0, %v4032
      %v4034 = vpop.f32.mrb[0].mxu0
      %v4035 = vadd.f32 0.0, %v4034
      %v4036 = vpop.f32.mrb[0].mxu0
      %v4037 = vadd.f32 0.0, %v4036
      %v4038 = vpop.f32.mrb[0].mxu0
      %v4039 = vadd.f32 0.0, %v4038
      %4040 = vdwg.mxu0
      %4041 = vmatprep.subr.bf16.mxu0 %v2580
      %4042 = vmatpush1.bf16.msra.mxu0 %v2579
      %4043 = vmatprep.subr.bf16.mxu0 0
      %4044 = vmatpush1.bf16.msra.mxu0 0
      %4045 = vmatprep.subr.bf16.mxu0 0
      %4046 = vmatpush1.bf16.msra.mxu0 0
      %4047 = vmatprep.subr.bf16.mxu0 0
      %4048 = vmatpush1.bf16.msra.mxu0 0
      %4049 = vmatprep.subr.bf16.mxu0 0
      %4050 = vmatpush1.bf16.msra.mxu0 0
      %4051 = vmatprep.subr.bf16.mxu0 0
      %4052 = vmatpush1.bf16.msra.mxu0 0
      %4053 = vmatprep.subr.bf16.mxu0 0
      %4054 = vmatpush1.bf16.msra.mxu0 0
      %4055 = vmatprep.subr.bf16.mxu0 0
      %4056 = vmatpush1.bf16.msra.mxu0 0
      %4057 = vmatprep.subr.bf16.mxu0 0
      %4058 = vmatpush1.bf16.msra.mxu0 0
      %4059 = vmatprep.subr.bf16.mxu0 0
      %4060 = vmatpush1.bf16.msra.mxu0 0
      %4061 = vmatprep.subr.bf16.mxu0 0
      %4062 = vmatpush1.bf16.msra.mxu0 0
      %4063 = vmatprep.subr.bf16.mxu0 0
      %4064 = vmatpush1.bf16.msra.mxu0 0
      %4065 = vmatprep.subr.bf16.mxu0 0
      %4066 = vmatpush1.bf16.msra.mxu0 0
      %4067 = vmatprep.subr.bf16.mxu0 0
      %4068 = vmatpush1.bf16.msra.mxu0 0
      %4069 = vmatprep.subr.bf16.mxu0 0
      %4070 = vmatpush1.bf16.msra.mxu0 0
      %4071 = vmatprep.subr.bf16.mxu0 0
      %4072 = vmatpush1.bf16.msra.mxu0 0
      %4073 = vmatprep.mubr.bf16.mxu0 0
      %4074 = vmatmul.mubr.bf16.gmra.mrb[0].mxu0 %v2605
      %v4075 = vpop.f32.mrb[0].mxu0
      %v4076 = vadd.f32 0.0, %v4075
      %v4077 = vpop.f32.mrb[0].mxu0
      %v4078 = vadd.f32 0.0, %v4077
      %v4079 = vpop.f32.mrb[0].mxu0
      %v4080 = vadd.f32 0.0, %v4079
      %v4081 = vpop.f32.mrb[0].mxu0
      %v4082 = vadd.f32 0.0, %v4081
      %4083 = vmatprep.mubr.bf16.mxu0 0
      %4084 = vmatmul.mubr.bf16.gmra.mrb[0].mxu0 %v2608
      %v4085 = vpop.f32.mrb[0].mxu0
      %v4086 = vadd.f32 0.0, %v4085
      %v4087 = vpop.f32.mrb[0].mxu0
      %v4088 = vadd.f32 0.0, %v4087
      %v4089 = vpop.f32.mrb[0].mxu0
      %v4090 = vadd.f32 0.0, %v4089
      %v4091 = vpop.f32.mrb[0].mxu0
      %v4092 = vadd.f32 0.0, %v4091
      %4093 = vdwg.mxu0
      %4094 = vmatprep.subr.bf16.mxu0 %v2582
      %4095 = vmatpush1.bf16.msra.mxu0 %v2581
      %4096 = vmatprep.subr.bf16.mxu0 0
      %4097 = vmatpush1.bf16.msra.mxu0 0
      %4098 = vmatprep.subr.bf16.mxu0 0
      %4099 = vmatpush1.bf16.msra.mxu0 0
      %4100 = vmatprep.subr.bf16.mxu0 0
      %4101 = vmatpush1.bf16.msra.mxu0 0
      %4102 = vmatprep.subr.bf16.mxu0 0
      %4103 = vmatpush1.bf16.msra.mxu0 0
      %4104 = vmatprep.subr.bf16.mxu0 0
      %4105 = vmatpush1.bf16.msra.mxu0 0
      %4106 = vmatprep.subr.bf16.mxu0 0
      %4107 = vmatpush1.bf16.msra.mxu0 0
      %4108 = vmatprep.subr.bf16.mxu0 0
      %4109 = vmatpush1.bf16.msra.mxu0 0
      %4110 = vmatprep.subr.bf16.mxu0 0
      %4111 = vmatpush1.bf16.msra.mxu0 0
      %4112 = vmatprep.subr.bf16.mxu0 0
      %4113 = vmatpush1.bf16.msra.mxu0 0
      %4114 = vmatprep.subr.bf16.mxu0 0
      %4115 = vmatpush1.bf16.msra.mxu0 0
      %4116 = vmatprep.subr.bf16.mxu0 0
      %4117 = vmatpush1.bf16.msra.mxu0 0
      %4118 = vmatprep.subr.bf16.mxu0 0
      %4119 = vmatpush1.bf16.msra.mxu0 0
      %4120 = vmatprep.subr.bf16.mxu0 0
      %4121 = vmatpush1.bf16.msra.mxu0 0
      %4122 = vmatprep.subr.bf16.mxu0 0
      %4123 = vmatpush1.bf16.msra.mxu0 0
      %4124 = vmatprep.subr.bf16.mxu0 0
      %4125 = vmatpush1.bf16.msra.mxu0 0
      %4126 = vmatprep.mubr.bf16.mxu0 0
      %4127 = vmatmul.mubr.bf16.gmra.mrb[0].mxu0 %v2605
      %v4128 = vpop.f32.mrb[0].mxu0
      %v4129 = vadd.f32 0.0, %v4128
      %v4130 = vpop.f32.mrb[0].mxu0
      %v4131 = vadd.f32 0.0, %v4130
      %v4132 = vpop.f32.mrb[0].mxu0
      %v4133 = vadd.f32 0.0, %v4132
      %v4134 = vpop.f32.mrb[0].mxu0
      %v4135 = vadd.f32 0.0, %v4134
      %4136 = vmatprep.mubr.bf16.mxu0 0
      %4137 = vmatmul.mubr.bf16.gmra.mrb[0].mxu0 %v2608
      %v4138 = vpop.f32.mrb[0].mxu0
      %v4139 = vadd.f32 0.0, %v4138
      %v4140 = vpop.f32.mrb[0].mxu0
      %v4141 = vadd.f32 0.0, %v4140
      %v4142 = vpop.f32.mrb[0].mxu0
      %v4143 = vadd.f32 0.0, %v4142
      %v4144 = vpop.f32.mrb[0].mxu0
      %v4145 = vadd.f32 0.0, %v4144
      %4146 = vdwg.mxu0
      %4147 = vmatprep.subr.bf16.mxu0 %v2584
      %4148 = vmatpush1.bf16.msra.mxu0 %v2583
      %4149 = vmatprep.subr.bf16.mxu0 0
      %4150 = vmatpush1.bf16.msra.mxu0 0
      %4151 = vmatprep.subr.bf16.mxu0 0
      %4152 = vmatpush1.bf16.msra.mxu0 0
      %4153 = vmatprep.subr.bf16.mxu0 0
      %4154 = vmatpush1.bf16.msra.mxu0 0
      %4155 = vmatprep.subr.bf16.mxu0 0
      %4156 = vmatpush1.bf16.msra.mxu0 0
      %4157 = vmatprep.subr.bf16.mxu0 0
      %4158 = vmatpush1.bf16.msra.mxu0 0
      %4159 = vmatprep.subr.bf16.mxu0 0
      %4160 = vmatpush1.bf16.msra.mxu0 0
      %4161 = vmatprep.subr.bf16.mxu0 0
      %4162 = vmatpush1.bf16.msra.mxu0 0
      %4163 = vmatprep.subr.bf16.mxu0 0
      %4164 = vmatpush1.bf16.msra.mxu0 0
      %4165 = vmatprep.subr.bf16.mxu0 0
      %4166 = vmatpush1.bf16.msra.mxu0 0
      %4167 = vmatprep.subr.bf16.mxu0 0
      %4168 = vmatpush1.bf16.msra.mxu0 0
      %4169 = vmatprep.subr.bf16.mxu0 0
      %4170 = vmatpush1.bf16.msra.mxu0 0
      %4171 = vmatprep.subr.bf16.mxu0 0
      %4172 = vmatpush1.bf16.msra.mxu0 0
      %4173 = vmatprep.subr.bf16.mxu0 0
      %4174 = vmatpush1.bf16.msra.mxu0 0
      %4175 = vmatprep.subr.bf16.mxu0 0
      %4176 = vmatpush1.bf16.msra.mxu0 0
      %4177 = vmatprep.subr.bf16.mxu0 0
      %4178 = vmatpush1.bf16.msra.mxu0 0
      %4179 = vmatprep.mubr.bf16.mxu0 0
      %4180 = vmatmul.mubr.bf16.gmra.mrb[0].mxu0 %v2605
      %v4181 = vpop.f32.mrb[0].mxu0
      %v4182 = vadd.f32 0.0, %v4181
      %v4183 = vpop.f32.mrb[0].mxu0
      %v4184 = vadd.f32 0.0, %v4183
      %v4185 = vpop.f32.mrb[0].mxu0
      %v4186 = vadd.f32 0.0, %v4185
      %v4187 = vpop.f32.mrb[0].mxu0
      %v4188 = vadd.f32 0.0, %v4187
      %4189 = vmatprep.mubr.bf16.mxu0 0
      %4190 = vmatmul.mubr.bf16.gmra.mrb[0].mxu0 %v2608
      %v4191 = vpop.f32.mrb[0].mxu0
      %v4192 = vadd.f32 0.0, %v4191
      %v4193 = vpop.f32.mrb[0].mxu0
      %v4194 = vadd.f32 0.0, %v4193
      %v4195 = vpop.f32.mrb[0].mxu0
      %v4196 = vadd.f32 0.0, %v4195
      %v4197 = vpop.f32.mrb[0].mxu0
      %v4198 = vadd.f32 0.0, %v4197
      %4199 = vdwg.mxu0
      %4200 = vmatprep.subr.bf16.mxu0 %v2586
      %4201 = vmatpush1.bf16.msra.mxu0 %v2585
      %4202 = vmatprep.subr.bf16.mxu0 0
      %4203 = vmatpush1.bf16.msra.mxu0 0
      %4204 = vmatprep.subr.bf16.mxu0 0
      %4205 = vmatpush1.bf16.msra.mxu0 0
      %4206 = vmatprep.subr.bf16.mxu0 0
      %4207 = vmatpush1.bf16.msra.mxu0 0
      %4208 = vmatprep.subr.bf16.mxu0 0
      %4209 = vmatpush1.bf16.msra.mxu0 0
      %4210 = vmatprep.subr.bf16.mxu0 0
      %4211 = vmatpush1.bf16.msra.mxu0 0
      %4212 = vmatprep.subr.bf16.mxu0 0
      %4213 = vmatpush1.bf16.msra.mxu0 0
      %4214 = vmatprep.subr.bf16.mxu0 0
      %4215 = vmatpush1.bf16.msra.mxu0 0
      %4216 = vmatprep.subr.bf16.mxu0 0
      %4217 = vmatpush1.bf16.msra.mxu0 0
      %4218 = vmatprep.subr.bf16.mxu0 0
      %4219 = vmatpush1.bf16.msra.mxu0 0
      %4220 = vmatprep.subr.bf16.mxu0 0
      %4221 = vmatpush1.bf16.msra.mxu0 0
      %4222 = vmatprep.subr.bf16.mxu0 0
      %4223 = vmatpush1.bf16.msra.mxu0 0
      %4224 = vmatprep.subr.bf16.mxu0 0
      %4225 = vmatpush1.bf16.msra.mxu0 0
      %4226 = vmatprep.subr.bf16.mxu0 0
      %4227 = vmatpush1.bf16.msra.mxu0 0
      %4228 = vmatprep.subr.bf16.mxu0 0
      %4229 = vmatpush1.bf16.msra.mxu0 0
      %4230 = vmatprep.subr.bf16.mxu0 0
      %4231 = vmatpush1.bf16.msra.mxu0 0
      %4232 = vmatprep.mubr.bf16.mxu0 0
      %4233 = vmatmul.mubr.bf16.gmra.mrb[0].mxu0 %v2605
      %v4234 = vpop.f32.mrb[0].mxu0
      %v4235 = vadd.f32 0.0, %v4234
      %v4236 = vpop.f32.mrb[0].mxu0
      %v4237 = vadd.f32 0.0, %v4236
      %v4238 = vpop.f32.mrb[0].mxu0
      %v4239 = vadd.f32 0.0, %v4238
      %v4240 = vpop.f32.mrb[0].mxu0
      %v4241 = vadd.f32 0.0, %v4240
      %4242 = vmatprep.mubr.bf16.mxu0 0
      %4243 = vmatmul.mubr.bf16.gmra.mrb[0].mxu0 %v2608
      %v4244 = vpop.f32.mrb[0].mxu0
      %v4245 = vadd.f32 0.0, %v4244
      %v4246 = vpop.f32.mrb[0].mxu0
      %v4247 = vadd.f32 0.0, %v4246
      %v4248 = vpop.f32.mrb[0].mxu0
      %v4249 = vadd.f32 0.0, %v4248
      %v4250 = vpop.f32.mrb[0].mxu0
      %v4251 = vadd.f32 0.0, %v4250
      %4252 = vdwg.mxu0
      %4253 = vmatprep.subr.bf16.mxu0 %v2588
      %4254 = vmatpush1.bf16.msra.mxu0 %v2587
      %4255 = vmatprep.subr.bf16.mxu0 0
      %4256 = vmatpush1.bf16.msra.mxu0 0
      %4257 = vmatprep.subr.bf16.mxu0 0
      %4258 = vmatpush1.bf16.msra.mxu0 0
      %4259 = vmatprep.subr.bf16.mxu0 0
      %4260 = vmatpush1.bf16.msra.mxu0 0
      %4261 = vmatprep.subr.bf16.mxu0 0
      %4262 = vmatpush1.bf16.msra.mxu0 0
      %4263 = vmatprep.subr.bf16.mxu0 0
      %4264 = vmatpush1.bf16.msra.mxu0 0
      %4265 = vmatprep.subr.bf16.mxu0 0
      %4266 = vmatpush1.bf16.msra.mxu0 0
      %4267 = vmatprep.subr.bf16.mxu0 0
      %4268 = vmatpush1.bf16.msra.mxu0 0
      %4269 = vmatprep.subr.bf16.mxu0 0
      %4270 = vmatpush1.bf16.msra.mxu0 0
      %4271 = vmatprep.subr.bf16.mxu0 0
      %4272 = vmatpush1.bf16.msra.mxu0 0
      %4273 = vmatprep.subr.bf16.mxu0 0
      %4274 = vmatpush1.bf16.msra.mxu0 0
      %4275 = vmatprep.subr.bf16.mxu0 0
      %4276 = vmatpush1.bf16.msra.mxu0 0
      %4277 = vmatprep.subr.bf16.mxu0 0
      %4278 = vmatpush1.bf16.msra.mxu0 0
      %4279 = vmatprep.subr.bf16.mxu0 0
      %4280 = vmatpush1.bf16.msra.mxu0 0
      %4281 = vmatprep.subr.bf16.mxu0 0
      %4282 = vmatpush1.bf16.msra.mxu0 0
      %4283 = vmatprep.subr.bf16.mxu0 0
      %4284 = vmatpush1.bf16.msra.mxu0 0
      %4285 = vmatprep.mubr.bf16.mxu0 0
      %4286 = vmatmul.mubr.bf16.gmra.mrb[0].mxu0 %v2605
      %v4287 = vpop.f32.mrb[0].mxu0
      %v4288 = vadd.f32 0.0, %v4287
      %v4289 = vpop.f32.mrb[0].mxu0
      %v4290 = vadd.f32 0.0, %v4289
      %v4291 = vpop.f32.mrb[0].mxu0
      %v4292 = vadd.f32 0.0, %v4291
      %v4293 = vpop.f32.mrb[0].mxu0
      %v4294 = vadd.f32 0.0, %v4293
      %4295 = vmatprep.mubr.bf16.mxu0 0
      %4296 = vmatmul.mubr.bf16.gmra.mrb[0].mxu0 %v2608
      %v4297 = vpop.f32.mrb[0].mxu0
      %v4298 = vadd.f32 0.0, %v4297
      %v4299 = vpop.f32.mrb[0].mxu0
      %v4300 = vadd.f32 0.0, %v4299
      %v4301 = vpop.f32.mrb[0].mxu0
      %v4302 = vadd.f32 0.0, %v4301
      %v4303 = vpop.f32.mrb[0].mxu0
      %v4304 = vadd.f32 0.0, %v4303
      %4305 = vdwg.mxu0
      %v4306 = vmax.f32 %v2645, %v2647
      %v4307 = vmax.f32 %v2649, %v2651
      %v4308 = vmax.f32 %v2655, %v2657
      %v4309 = vmax.f32 %v2659, %v2661
      %v4310 = vmax.f32 %v2698, %v2700
      %v4311 = vmax.f32 %v2702, %v2704
      %v4312 = vmax.f32 %v2708, %v2710
      %v4313 = vmax.f32 %v2712, %v2714
      %v4314 = vmax.f32 %v2751, %v2753
      %v4315 = vmax.f32 %v2755, %v2757
      %v4316 = vmax.f32 %v2761, %v2763
      %v4317 = vmax.f32 %v2765, %v2767
      %v4318 = vmax.f32 %v2804, %v2806
      %v4319 = vmax.f32 %v2808, %v2810
      %v4320 = vmax.f32 %v2814, %v2816
      %v4321 = vmax.f32 %v2818, %v2820
      %v4322 = vmax.f32 %v2857, %v2859
      %v4323 = vmax.f32 %v2861, %v2863
      %v4324 = vmax.f32 %v2867, %v2869
      %v4325 = vmax.f32 %v2871, %v2873
      %v4326 = vmax.f32 %v2910, %v2912
      %v4327 = vmax.f32 %v2914, %v2916
      %v4328 = vmax.f32 %v2920, %v2922
      %v4329 = vmax.f32 %v2924, %v2926
      %v4330 = vmax.f32 %v2963, %v2965
      %v4331 = vmax.f32 %v2967, %v2969
      %v4332 = vmax.f32 %v2973, %v2975
      %v4333 = vmax.f32 %v2977, %v2979
      %v4334 = vmax.f32 %v3016, %v3018
      %v4335 = vmax.f32 %v3020, %v3022
      %v4336 = vmax.f32 %v3026, %v3028
      %v4337 = vmax.f32 %v3030, %v3032
      %v4338 = vmax.f32 %v3069, %v3071
      %v4339 = vmax.f32 %v3073, %v3075
      %v4340 = vmax.f32 %v3079, %v3081
      %v4341 = vmax.f32 %v3083, %v3085
      %v4342 = vmax.f32 %v3122, %v3124
      %v4343 = vmax.f32 %v3126, %v3128
      %v4344 = vmax.f32 %v3132, %v3134
      %v4345 = vmax.f32 %v3136, %v3138
      %v4346 = vmax.f32 %v3175, %v3177
      %v4347 = vmax.f32 %v3179, %v3181
      %v4348 = vmax.f32 %v3185, %v3187
      %v4349 = vmax.f32 %v3189, %v3191
      %v4350 = vmax.f32 %v3228, %v3230
      %v4351 = vmax.f32 %v3232, %v3234
      %v4352 = vmax.f32 %v3238, %v3240
      %v4353 = vmax.f32 %v3242, %v3244
      %v4354 = vmax.f32 %v3281, %v3283
      %v4355 = vmax.f32 %v3285, %v3287
      %v4356 = vmax.f32 %v3291, %v3293
      %v4357 = vmax.f32 %v3295, %v3297
      %v4358 = vmax.f32 %v3334, %v3336
      %v4359 = vmax.f32 %v3338, %v3340
      %v4360 = vmax.f32 %v3344, %v3346
      %v4361 = vmax.f32 %v3348, %v3350
      %v4362 = vmax.f32 %v3387, %v3389
      %v4363 = vmax.f32 %v3391, %v3393
      %v4364 = vmax.f32 %v3397, %v3399
      %v4365 = vmax.f32 %v3401, %v3403
      %v4366 = vmax.f32 %v3440, %v3442
      %v4367 = vmax.f32 %v3444, %v3446
      %v4368 = vmax.f32 %v3450, %v3452
      %v4369 = vmax.f32 %v3454, %v3456
      %v4370 = vmax.f32 %v3493, %v3495
      %v4371 = vmax.f32 %v3497, %v3499
      %v4372 = vmax.f32 %v3503, %v3505
      %v4373 = vmax.f32 %v3507, %v3509
      %v4374 = vmax.f32 %v3546, %v3548
      %v4375 = vmax.f32 %v3550, %v3552
      %v4376 = vmax.f32 %v3556, %v3558
      %v4377 = vmax.f32 %v3560, %v3562
      %v4378 = vmax.f32 %v3599, %v3601
      %v4379 = vmax.f32 %v3603, %v3605
      %v4380 = vmax.f32 %v3609, %v3611
      %v4381 = vmax.f32 %v3613, %v3615
      %v4382 = vmax.f32 %v3652, %v3654
      %v4383 = vmax.f32 %v3656, %v3658
      %v4384 = vmax.f32 %v3662, %v3664
      %v4385 = vmax.f32 %v3666, %v3668
      %v4386 = vmax.f32 %v3705, %v3707
      %v4387 = vmax.f32 %v3709, %v3711
      %v4388 = vmax.f32 %v3715, %v3717
      %v4389 = vmax.f32 %v3719, %v3721
      %v4390 = vmax.f32 %v3758, %v3760
      %v4391 = vmax.f32 %v3762, %v3764
      %v4392 = vmax.f32 %v3768, %v3770
      %v4393 = vmax.f32 %v3772, %v3774
      %v4394 = vmax.f32 %v3811, %v3813
      %v4395 = vmax.f32 %v3815, %v3817
      %v4396 = vmax.f32 %v3821, %v3823
      %v4397 = vmax.f32 %v3825, %v3827
      %v4398 = vmax.f32 %v3864, %v3866
      %v4399 = vmax.f32 %v3868, %v3870
      %v4400 = vmax.f32 %v3874, %v3876
      %v4401 = vmax.f32 %v3878, %v3880
      %v4402 = vmax.f32 %v3917, %v3919
      %v4403 = vmax.f32 %v3921, %v3923
      %v4404 = vmax.f32 %v3927, %v3929
      %v4405 = vmax.f32 %v3931, %v3933
      %v4406 = vmax.f32 %v3970, %v3972
      %v4407 = vmax.f32 %v3974, %v3976
      %v4408 = vmax.f32 %v3980, %v3982
      %v4409 = vmax.f32 %v3984, %v3986
      %v4410 = vmax.f32 %v4023, %v4025
      %v4411 = vmax.f32 %v4027, %v4029
      %v4412 = vmax.f32 %v4033, %v4035
      %v4413 = vmax.f32 %v4037, %v4039
      %v4414 = vmax.f32 %v4076, %v4078
      %v4415 = vmax.f32 %v4080, %v4082
      %v4416 = vmax.f32 %v4086, %v4088
      %v4417 = vmax.f32 %v4090, %v4092
      %v4418 = vmax.f32 %v4129, %v4131
      %v4419 = vmax.f32 %v4133, %v4135
      %v4420 = vmax.f32 %v4139, %v4141
      %v4421 = vmax.f32 %v4143, %v4145
      %v4422 = vmax.f32 %v4182, %v4184
      %v4423 = vmax.f32 %v4186, %v4188
      %v4424 = vmax.f32 %v4192, %v4194
      %v4425 = vmax.f32 %v4196, %v4198
      %v4426 = vmax.f32 %v4235, %v4237
      %v4427 = vmax.f32 %v4239, %v4241
      %v4428 = vmax.f32 %v4245, %v4247
      %v4429 = vmax.f32 %v4249, %v4251
      %v4430 = vmax.f32 %v4288, %v4290
      %v4431 = vmax.f32 %v4292, %v4294
      %v4432 = vmax.f32 %v4298, %v4300
      %v4433 = vmax.f32 %v4302, %v4304
      %v4434 = vmax.f32 %v4306, %v4310
      %v4435 = vmax.f32 %v4307, %v4311
      %v4436 = vmax.f32 %v4308, %v4312
      %v4437 = vmax.f32 %v4309, %v4313
      %v4438 = vmax.f32 %v4314, %v4318
      %v4439 = vmax.f32 %v4315, %v4319
      %v4440 = vmax.f32 %v4316, %v4320
      %v4441 = vmax.f32 %v4317, %v4321
      %v4442 = vmax.f32 %v4322, %v4326
      %v4443 = vmax.f32 %v4323, %v4327
      %v4444 = vmax.f32 %v4324, %v4328
      %v4445 = vmax.f32 %v4325, %v4329
      %v4446 = vmax.f32 %v4330, %v4334
      %v4447 = vmax.f32 %v4331, %v4335
      %v4448 = vmax.f32 %v4332, %v4336
      %v4449 = vmax.f32 %v4333, %v4337
      %v4450 = vmax.f32 %v4338, %v4342
      %v4451 = vmax.f32 %v4339, %v4343
      %v4452 = vmax.f32 %v4340, %v4344
      %v4453 = vmax.f32 %v4341, %v4345
      %v4454 = vmax.f32 %v4346, %v4350
      %v4455 = vmax.f32 %v4347, %v4351
      %v4456 = vmax.f32 %v4348, %v4352
      %v4457 = vmax.f32 %v4349, %v4353
      %v4458 = vmax.f32 %v4354, %v4358
      %v4459 = vmax.f32 %v4355, %v4359
      %v4460 = vmax.f32 %v4356, %v4360
      %v4461 = vmax.f32 %v4357, %v4361
      %v4462 = vmax.f32 %v4362, %v4366
      %v4463 = vmax.f32 %v4363, %v4367
      %v4464 = vmax.f32 %v4364, %v4368
      %v4465 = vmax.f32 %v4365, %v4369
      %v4466 = vmax.f32 %v4370, %v4374
      %v4467 = vmax.f32 %v4371, %v4375
      %v4468 = vmax.f32 %v4372, %v4376
      %v4469 = vmax.f32 %v4373, %v4377
      %v4470 = vmax.f32 %v4378, %v4382
      %v4471 = vmax.f32 %v4379, %v4383
      %v4472 = vmax.f32 %v4380, %v4384
      %v4473 = vmax.f32 %v4381, %v4385
      %v4474 = vmax.f32 %v4386, %v4390
      %v4475 = vmax.f32 %v4387, %v4391
      %v4476 = vmax.f32 %v4388, %v4392
      %v4477 = vmax.f32 %v4389, %v4393
      %v4478 = vmax.f32 %v4394, %v4398
      %v4479 = vmax.f32 %v4395, %v4399
      %v4480 = vmax.f32 %v4396, %v4400
      %v4481 = vmax.f32 %v4397, %v4401
      %v4482 = vmax.f32 %v4402, %v4406
      %v4483 = vmax.f32 %v4403, %v4407
      %v4484 = vmax.f32 %v4404, %v4408
      %v4485 = vmax.f32 %v4405, %v4409
      %v4486 = vmax.f32 %v4410, %v4414
      %v4487 = vmax.f32 %v4411, %v4415
      %v4488 = vmax.f32 %v4412, %v4416
      %v4489 = vmax.f32 %v4413, %v4417
      %v4490 = vmax.f32 %v4418, %v4422
      %v4491 = vmax.f32 %v4419, %v4423
      %v4492 = vmax.f32 %v4420, %v4424
      %v4493 = vmax.f32 %v4421, %v4425
      %v4494 = vmax.f32 %v4426, %v4430
      %v4495 = vmax.f32 %v4427, %v4431
      %v4496 = vmax.f32 %v4428, %v4432
      %v4497 = vmax.f32 %v4429, %v4433
      %v4498 = vmax.f32 %v4434, %v4438
      %v4499 = vmax.f32 %v4435, %v4439
      %v4500 = vmax.f32 %v4436, %v4440
      %v4501 = vmax.f32 %v4437, %v4441
      %v4502 = vmax.f32 %v4442, %v4446
      %v4503 = vmax.f32 %v4443, %v4447
      %v4504 = vmax.f32 %v4444, %v4448
      %v4505 = vmax.f32 %v4445, %v4449
      %v4506 = vmax.f32 %v4450, %v4454
      %v4507 = vmax.f32 %v4451, %v4455
      %v4508 = vmax.f32 %v4452, %v4456
      %v4509 = vmax.f32 %v4453, %v4457
      %v4510 = vmax.f32 %v4458, %v4462
      %v4511 = vmax.f32 %v4459, %v4463
      %v4512 = vmax.f32 %v4460, %v4464
      %v4513 = vmax.f32 %v4461, %v4465
      %v4514 = vmax.f32 %v4466, %v4470
      %v4515 = vmax.f32 %v4467, %v4471
      %v4516 = vmax.f32 %v4468, %v4472
      %v4517 = vmax.f32 %v4469, %v4473
      %v4518 = vmax.f32 %v4474, %v4478
      %v4519 = vmax.f32 %v4475, %v4479
      %v4520 = vmax.f32 %v4476, %v4480
      %v4521 = vmax.f32 %v4477, %v4481
      %v4522 = vmax.f32 %v4482, %v4486
      %v4523 = vmax.f32 %v4483, %v4487
      %v4524 = vmax.f32 %v4484, %v4488
      %v4525 = vmax.f32 %v4485, %v4489
      %v4526 = vmax.f32 %v4490, %v4494
      %v4527 = vmax.f32 %v4491, %v4495
      %v4528 = vmax.f32 %v4492, %v4496
      %v4529 = vmax.f32 %v4493, %v4497
      %v4530 = vmax.f32 %v4498, %v4502
      %v4531 = vmax.f32 %v4499, %v4503
      %v4532 = vmax.f32 %v4500, %v4504
      %v4533 = vmax.f32 %v4501, %v4505
      %v4534 = vmax.f32 %v4506, %v4510
      %v4535 = vmax.f32 %v4507, %v4511
      %v4536 = vmax.f32 %v4508, %v4512
      %v4537 = vmax.f32 %v4509, %v4513
      %v4538 = vmax.f32 %v4514, %v4518
      %v4539 = vmax.f32 %v4515, %v4519
      %v4540 = vmax.f32 %v4516, %v4520
      %v4541 = vmax.f32 %v4517, %v4521
      %v4542 = vmax.f32 %v4522, %v4526
      %v4543 = vmax.f32 %v4523, %v4527
      %v4544 = vmax.f32 %v4524, %v4528
      %v4545 = vmax.f32 %v4525, %v4529
      %v4546 = vmax.f32 %v4530, %v4534
      %v4547 = vmax.f32 %v4531, %v4535
      %v4548 = vmax.f32 %v4532, %v4536
      %v4549 = vmax.f32 %v4533, %v4537
      %v4550 = vmax.f32 %v4538, %v4542
      %v4551 = vmax.f32 %v4539, %v4543
      %v4552 = vmax.f32 %v4540, %v4544
      %v4553 = vmax.f32 %v4541, %v4545
      %v4554 = vmax.f32 %v4546, %v4550
      %v4555 = vmax.f32 %v4547, %v4551
      %v4556 = vmax.f32 %v4548, %v4552
      %v4557 = vmax.f32 %v4549, %v4553
      %v4558 = vld [vmem:[%s4] sm:$0xff]
      %v4559 = vld [vmem:[%s4 + $0x8] sm:$0xff]
      %v4560 = vld [vmem:[%s4 + $0x10] sm:$0xff]
      %v4561 = vld [vmem:[%s4 + $0x18] sm:$0xff]
      %4563 = vset.pattern.permute.xlu0 0
      %4564 = vperm.xlu0 %4563, %v4558
      %v4565 = vpop.permute.xlu0 %4564
      %4568 = vset.pattern.permute.xlu0 0
      %4569 = vperm.xlu0 %4568, %v4559
      %v4570 = vpop.permute.xlu0 %4569
      %4573 = vset.pattern.permute.xlu0 0
      %4574 = vperm.xlu0 %4573, %v4560
      %v4575 = vpop.permute.xlu0 %4574
      %4578 = vset.pattern.permute.xlu0 0
      %4579 = vperm.xlu0 %4578, %v4561
      %v4580 = vpop.permute.xlu0 %4579
      %v4582 = vadd.f32 %v4554, %v4565
      %v4583 = vadd.f32 %v4555, %v4570
      %v4584 = vadd.f32 %v4556, %v4575
      %v4585 = vadd.f32 %v4557, %v4580
      %v4586 = vmax.f32 %v4582, 0.0
      %v4587 = vmax.f32 %v4583, 0.0
      %v4588 = vmax.f32 %v4584, 0.0
      %v4589 = vmax.f32 %v4585, 0.0
      %v4590 = vpack.c.bf16 %v4587, %v4586
      %v4591 = vpack.c.bf16 %v4589, %v4588
      %v4594 = vunpack.c.l.b16 %v4590
      %v4595 = vunpack.c.h.b16 %v4590
      %v4596 = vunpack.c.l.b16 %v4591
      %v4597 = vunpack.c.h.b16 %v4591
      %v4598 = vpack.c.b16 %v4594, %v4594
      %v4599 = vpack.c.b16 %v4595, %v4595
      %v4600 = vpack.c.b16 %v4596, %v4596
      %v4601 = vpack.c.b16 %v4597, %v4597
      %4606 = vst [vmem:[%s224] sm:$0xf] %v4598
      %4607 = vst [vmem:[%s224 + $0x4] sm:$0xf] %v4599
      %4608 = vst [vmem:[%s224 + $0x8] sm:$0xf] %v4600
      %4609 = vst [vmem:[%s224 + $0xc] sm:$0xf] %v4601
      %p4610 = scmp.lt.s32.totalorder %s16, 1
      %s4611 = scalar_select %p4610, %s16, 1
      %s4612 = smul.addr %s4611, 4
      %s4613 = smul.addr %s4612, 4
      %s4614 = scalar_lea.vmem %s5, %s4613
      // Predicated region
      $region41: #{pointnet_encoder.7} parent=39 // pred_check
        %p4615 = pneg %p144
      $region42: #{pointnet_encoder.7} parent=39 // pred_check_branch
        %4617 = sbr.rel (%p4615) target = $region44
      $region43: #{pointnet_encoder.7} parent=39 // pred_region
        _
      $region44: #{pointnet_encoder.7} parent=39 // pred_fallthru
        _
    $region40: #{pointnet_encoder.7} parent=5 // pred_fallthru
      _
    %p4618 = scmp.le.s32.totalorder 2, %s11
    // Predicated region
    $region45: #{pointnet_encoder.7} parent=5 // pred_check
      %p4619 = pneg %p4618
    $region46: #{pointnet_encoder.7} parent=5 // pred_check_branch
      %4621 = sbr.rel (%p4619) target = $region48
    $region47: #{pointnet_encoder.7} parent=5 // pred_region
      %s4622 = ssub.s32 %s11, 2
      // Predicated region
      $region49: #{pointnet_encoder.7} parent=47 // pred_check
        %p4623 = pneg %p150
      $region50: #{pointnet_encoder.7} parent=47 // pred_check_branch
        %4625 = sbr.rel (%p4623) target = $region52
      $region51: #{pointnet_encoder.7} parent=47 // pred_region
        %p4626 = scmp.lt.s32.totalorder %s17, 1
        %s4627 = scalar_select %p4626, %s17, 1
        %s4628 = smul.addr %s4627, 4
        %s4629 = smul.addr %s4628, 4
        %s4630 = scalar_lea.vmem %s5, %s4629
      $region52: #{pointnet_encoder.7} parent=47 // pred_fallthru
        _
    $region48: #{pointnet_encoder.7} parent=5 // pred_fallthru
      _
  $region6: #{pointnet_encoder.7} parent=0 // loop_footer
    %s15 = sadd.s32 1, %s11
  $region7: #{pointnet_encoder.7} parent=0 // loop_footer_branch
    %10 = sbr.rel target = $region3
  $region8: #{pointnet_encoder.7} parent=0 // loop_exit
    _

</llo_original>
